<compile_context>
chip_gen: v6e
topology: v6e:2x2x1
jax: 0.10.0
libtpu: 0.0.40
codegen_flags: <defaults>
</compile_context>

<pallas_src>
import numpy as np
import jax
import jax.numpy as jnp
from jax.experimental import pallas as pl
from jax.experimental.pallas import tpu as pltpu

EPS = 1e-5


# ------------------- fused EncoderLayer kernel (one per layer) ---------------
def _make_layer_kernel(N, Ho, Wo, Cout, d_rows, n_resblocks):
    rows = N * Ho                      # sublane axis of the activation slab
    WC = Wo * Cout                     # lane axis (W and C folded together)
    inv_m = 1.0 / float(N * Ho * Wo)   # BN reduction size per channel
    rb_block = 3 * WC                  # rows of one resblock-conv weight block

    def kernel(xcat_ref, wall_ref, vec_ref, y_ref):
        vecs = vec_ref[...]                                    # (1+4*n_rb, WC)

        # ---- downsampling conv (stride 2) + bias + ReLU: ONE MXU matmul ----
        # xcat holds the three ky-row-gathered slabs lane-concatenated; the
        # stride-2 kx taps and W padding live in the banded weight matrix.
        x = jnp.dot(xcat_ref[...], wall_ref[pl.ds(0, d_rows), :],
                    preferred_element_type=jnp.float32)
        x = jnp.maximum(x + vecs[0:1, :], 0.0)                 # (rows, WC)

        # ---- hoisted constants (built once per kernel invocation) ----
        # Row-shift matrices: (S_up @ v)[h] = v[h-1] (zero at the top row of
        # each image), (S_dn @ v)[h] = v[h+1] (zero at the bottom row).
        ri = jax.lax.broadcasted_iota(jnp.int32, (rows, rows), 0)
        rj = jax.lax.broadcasted_iota(jnp.int32, (rows, rows), 1)
        s_up = jnp.logical_and(rj == ri - 1, (ri % Ho) != 0).astype(jnp.float32)
        s_dn = jnp.logical_and(rj == ri + 1,
                               (ri % Ho) != (Ho - 1)).astype(jnp.float32)
        # Lane <-> channel gather matrices for per-channel BN statistics.
        gi = jax.lax.broadcasted_iota(jnp.int32, (WC, Cout), 0)
        gj = jax.lax.broadcasted_iota(jnp.int32, (WC, Cout), 1)
        g_mat = ((gi % Cout) == gj).astype(jnp.float32)        # (WC, C)
        ti = jax.lax.broadcasted_iota(jnp.int32, (Cout, WC), 0)
        tj = jax.lax.broadcasted_iota(jnp.int32, (Cout, WC), 1)
        gt_mat = (ti == (tj % Cout)).astype(jnp.float32)       # (C, WC)

        def conv3x3(v, off):
            # 3x3 / stride-1 / pad-1 conv: 3 banded matmuls (kx taps are in
            # the weight matrices) + 2 row-shift matmuls (ky taps / H pad).
            acc = jnp.dot(v, wall_ref[pl.ds(off + WC, WC), :],
                          preferred_element_type=jnp.float32)           # ky=1
            v_up = jnp.dot(s_up, v, preferred_element_type=jnp.float32)
            acc = acc + jnp.dot(v_up, wall_ref[pl.ds(off, WC), :],
                                preferred_element_type=jnp.float32)     # ky=0
            v_dn = jnp.dot(s_dn, v, preferred_element_type=jnp.float32)
            acc = acc + jnp.dot(v_dn, wall_ref[pl.ds(off + 2 * WC, WC), :],
                                preferred_element_type=jnp.float32)     # ky=2
            return acc

        def batchnorm(a, gamma_wc, beta_wc):
            # Training-mode BN, two-pass (mean-subtracted) statistics in f32.
            sum_c = jnp.dot(jnp.sum(a, axis=0, keepdims=True), g_mat,
                            preferred_element_type=jnp.float32)         # (1,C)
            mean_wc = jnp.dot(sum_c * inv_m, gt_mat,
                              preferred_element_type=jnp.float32)       # (1,WC)
            ac = a - mean_wc
            var_c = jnp.dot(jnp.sum(ac * ac, axis=0, keepdims=True), g_mat,
                            preferred_element_type=jnp.float32) * inv_m
            rstd_wc = jnp.dot(jax.lax.rsqrt(var_c + EPS), gt_mat,
                              preferred_element_type=jnp.float32)
            return ac * (gamma_wc * rstd_wc) + beta_wc

        # TODO(synk): switch to lax.fori_loop over stacked weights if
        # n_resblocks grows beyond a few (bound live ranges / compile time).
        off = d_rows
        for r in range(n_resblocks):
            g1 = vecs[1 + 4 * r:2 + 4 * r, :]
            b1 = vecs[2 + 4 * r:3 + 4 * r, :]
            g2 = vecs[3 + 4 * r:4 + 4 * r, :]
            b2 = vecs[4 + 4 * r:5 + 4 * r, :]
            # Conv biases omitted: training-mode BN mean-subtract cancels them.
            h = jnp.maximum(batchnorm(conv3x3(x, off), g1, b1), 0.0)
            off += rb_block
            h2 = batchnorm(conv3x3(h, off), g2, b2)
            off += rb_block
            x = jnp.maximum(x + h2, 0.0)

        y_ref[...] = x                # full-lane (WC-wide) unmasked store

    return kernel


# --------------------------------- wrappers ----------------------------------
def _placement(W, Wo, stride):
    """0/1 constant P[kx, w', wo] = 1 iff w' == stride*wo + kx - 1 (in range)."""
    p = np.zeros((3, W, Wo), np.float32)
    for kx in range(3):
        for wo in range(Wo):
            wp = stride * wo + kx - 1
            if 0 <= wp < W:
                p[kx, wp, wo] = 1.0
    return p


def _banded_matrix(placement, w_hwio):
    """Fold the kx taps / W zero-padding (and stride) of a 3x3 conv into a
    banded matrix so that, in the (rows, W*C) lane-dense layout, one ky tap of
    the conv is a single matmul.  Parameter prep (layout), once per layer."""
    m = jnp.einsum('xwv,yxio->ywivo', jnp.asarray(placement),
                   w_hwio.astype(jnp.float32))
    ky, W, Ci, Wo, Co = m.shape
    return m.reshape(ky * W * Ci, Wo * Co)


def encoder_layer_pallas(x_nhwc, layer_params):
    (dw, db), resblocks = layer_params
    N, H, W, Cin = x_nhwc.shape
    Cout = dw.shape[-1]
    Ho, Wo = (H + 1) // 2, (W + 1) // 2
    WC = Wo * Cout
    rows = N * Ho

    # ---- wrapper-side layout plumbing (no activation compute) ----
    # Lane-dense stride-2 row gather: for each ky, take input rows 2*ho+ky-1
    # (H zero-padded) and fold (W, Cin) into the lane axis; lane-concat the 3
    # ky slabs so the downsampling conv is a single in-kernel matmul.
    xpad = jnp.pad(x_nhwc.astype(jnp.float32), ((0, 0), (1, 1), (0, 0), (0, 0)))
    slabs = [xpad[:, ky:ky + 2 * Ho:2, :, :].reshape(rows, W * Cin)
             for ky in range(3)]
    xcat = jnp.concatenate(slabs, axis=-1)                 # (rows, 3*W*Cin)

    # ---- parameter packing: one weight-matrix array + one vector array ----
    d_mat = _banded_matrix(_placement(W, Wo, 2), dw)       # (3*W*Cin, WC)
    q = _placement(Wo, Wo, 1)
    tile = lambda v: jnp.tile(v.astype(jnp.float32), Wo).reshape(1, WC)
    wmats, vrows = [d_mat], [tile(db)]
    for (w1, _b1, g1, be1, w2, _b2, g2, be2) in resblocks:
        wmats.append(_banded_matrix(q, w1))                # (3*WC, WC)
        wmats.append(_banded_matrix(q, w2))
        vrows += [tile(g1), tile(be1), tile(g2), tile(be2)]
    wall = jnp.concatenate(wmats, axis=0)
    vecs = jnp.concatenate(vrows, axis=0)

    kernel = _make_layer_kernel(N, Ho, Wo, Cout, d_mat.shape[0], len(resblocks))
    vspec = pl.BlockSpec(memory_space=pltpu.MemorySpace.VMEM)
    y2d = pl.pallas_call(
        kernel,
        out_shape=jax.ShapeDtypeStruct((rows, WC), jnp.float32),
        in_specs=[vspec, vspec, vspec],
        out_specs=vspec,
    )(xcat, wall, vecs)
    return y2d.reshape(N, Ho, Wo, Cout)


def encoder_pallas(x_nchw, enc_params):
    """Encoder forward.  x_nchw: (N, C, H, W); returns the final layer output
    in NCHW.  (The module's `layers_outs` list is Python-side bookkeeping.)"""
    x = jnp.transpose(x_nchw, (0, 2, 3, 1))                # NCHW -> NHWC
    for layer_params in enc_params:
        x = encoder_layer_pallas(x, layer_params)
    return jnp.transpose(x, (0, 3, 1, 2))                  # NHWC -> NCHW


# ---------------------------- pure-JAX reference ------------------------------
def encoder_ref(x_nchw, enc_params):
    def conv(x, w, b, stride):
        y = jax.lax.conv_general_dilated(
            x, w, window_strides=(stride, stride), padding=((1, 1), (1, 1)),
            dimension_numbers=("NHWC", "HWIO", "NHWC"),
            precision=jax.lax.Precision.HIGHEST)
        return y + b.reshape(1, 1, 1, -1)

    def bn(x, g, be):
        mean = jnp.mean(x, axis=(0, 1, 2), keepdims=True)
        var = jnp.mean((x - mean) ** 2, axis=(0, 1, 2), keepdims=True)
        return (x - mean) * jax.lax.rsqrt(var + EPS) * g.reshape(1, 1, 1, -1) \
            + be.reshape(1, 1, 1, -1)

    x = jnp.transpose(x_nchw, (0, 2, 3, 1))
    for (dw, db), resblocks in enc_params:
        x = jnp.maximum(conv(x, dw, db, 2), 0.0)
        for (w1, b1, g1, be1, w2, b2, g2, be2) in resblocks:
            h = jnp.maximum(bn(conv(x, w1, b1, 1), g1, be1), 0.0)
            h2 = bn(conv(h, w2, b2, 1), g2, be2)
            x = jnp.maximum(x + h2, 0.0)
    return jnp.transpose(x, (0, 3, 1, 2))


# ------------------------------------ demo ------------------------------------
if __name__ == "__main__":
    N, C_IN, H, W = 2, 3, 32, 32        # spatial stays a multiple of 8 per stage
    N_STAGES, N_RESBLOCKS, BASE_OUT = 2, 2, 8

    keys = iter(jax.random.split(jax.random.PRNGKey(0), 128))

    def rnd(shape, scale=0.2):
        return scale * jax.random.normal(next(keys), shape, jnp.float32)

    # Parameter construction mirrors the PyTorch __init__ channel logic.
    enc_params = []
    in_ch = C_IN
    out_ch = BASE_OUT // 2 ** (N_STAGES - 1)
    for _ in range(N_STAGES):
        dw = rnd((3, 3, in_ch, out_ch))              # HWIO conv weights
        db = rnd((out_ch,), 0.1)
        rbs = []
        for _ in range(N_RESBLOCKS):
            rbs.append((rnd((3, 3, out_ch, out_ch)), rnd((out_ch,), 0.1),
                        1.0 + rnd((out_ch,), 0.1), rnd((out_ch,), 0.1),
                        rnd((3, 3, out_ch, out_ch)), rnd((out_ch,), 0.1),
                        1.0 + rnd((out_ch,), 0.1), rnd((out_ch,), 0.1)))
        enc_params.append(((dw, db), tuple(rbs)))
        in_ch, out_ch = out_ch, out_ch * 2
    enc_params = tuple(enc_params)

    x = jax.random.normal(next(keys), (N, C_IN, H, W), jnp.float32)

    run = jax.jit(encoder_pallas)
    y = jax.block_until_ready(run(x, enc_params))
    y_ref = jax.block_until_ready(encoder_ref(x, enc_params))

    final_c = BASE_OUT
    final_hw = H // (2 ** N_STAGES)
    assert y.shape == (N, final_c, final_hw, final_hw), y.shape
    err = float(jnp.max(jnp.abs(y - y_ref)))
    assert jnp.allclose(y, y_ref, atol=2e-3, rtol=2e-3), f"max err {err}"

    print("KERNEL_OK")
</pallas_src>

<mosaic_0001>
module attributes {stable_mosaic.version = 11 : i64} {
  func.func @kernel(%arg0: memref<32x288xf32, #tpu.memory_space<vmem>>, %arg1: memref<1056x64xf32, #tpu.memory_space<vmem>>, %arg2: memref<9x64xf32, #tpu.memory_space<vmem>>, %arg3: memref<32x64xf32, #tpu.memory_space<vmem>>) attributes {dimension_semantics = [], scalar_prefetch = 0 : i64, scratch_operands = 0 : i64, tpu.core_type = #tpu.core_type<tc>} {
    %c0 = arith.constant 0 : index
    %c0_0 = arith.constant 0 : index
    %0 = vector.load %arg2[%c0, %c0_0] : memref<9x64xf32, #tpu.memory_space<vmem>>, vector<9x64xf32>
    %c0_1 = arith.constant 0 : index
    %c0_2 = arith.constant 0 : index
    %1 = vector.load %arg0[%c0_1, %c0_2] : memref<32x288xf32, #tpu.memory_space<vmem>>, vector<32x288xf32>
    %c0_3 = arith.constant 0 : index
    %c0_4 = arith.constant 0 : index
    %2 = vector.load %arg1[%c0_3, %c0_4] : memref<1056x64xf32, #tpu.memory_space<vmem>>, vector<288x64xf32>
    %cst = arith.constant dense<0.000000e+00> : vector<32x64xf32>
    %3 = tpu.matmul %1, %2, %cst {dimension_numbers = #tpu.dot_dimension_numbers<[1], [0], [0], [1], [0, 0, 1, 1], [], []>} : vector<32x288xf32>, vector<288x64xf32>, vector<32x64xf32> -> vector<32x64xf32>
    %4 = vector.extract_strided_slice %0 {offsets = [0, 0], sizes = [1, 64], strides = [1, 1]} : vector<9x64xf32> to vector<1x64xf32>
    %5 = vector.broadcast %4 : vector<1x64xf32> to vector<32x64xf32>
    %6 = arith.addf %3, %5 : vector<32x64xf32>
    %cst_5 = arith.constant 0.000000e+00 : f32
    %7 = vector.broadcast %cst_5 : f32 to vector<32x64xf32>
    %8 = arith.maximumf %6, %7 : vector<32x64xf32>
    %9 = tpu.iota {dimensions = array<i32: 0>} : vector<32x32xi32>
    %10 = tpu.iota {dimensions = array<i32: 1>} : vector<32x32xi32>
    %c1_i32 = arith.constant 1 : i32
    %11 = vector.broadcast %c1_i32 : i32 to vector<32x32xi32>
    %12 = arith.subi %9, %11 : vector<32x32xi32>
    %13 = arith.cmpi eq, %10, %12 : vector<32x32xi32>
    %c16_i32 = arith.constant 16 : i32
    %c0_i32 = arith.constant 0 : i32
    %14 = arith.cmpi eq, %c16_i32, %c0_i32 : i32
    %c1_i32_6 = arith.constant 1 : i32
    %15 = arith.select %14, %c1_i32_6, %c16_i32 : i32
    %16 = vector.broadcast %15 : i32 to vector<32x32xi32>
    %17 = arith.remsi %9, %16 : vector<32x32xi32>
    %c0_i32_7 = arith.constant 0 : i32
    %18 = vector.broadcast %c0_i32_7 : i32 to vector<32x32xi32>
    %19 = arith.cmpi ne, %17, %18 : vector<32x32xi32>
    %c0_i32_8 = arith.constant 0 : i32
    %20 = vector.broadcast %c0_i32_8 : i32 to vector<32x32xi32>
    %21 = arith.cmpi slt, %17, %20 : vector<32x32xi32>
    %c0_i32_9 = arith.constant 0 : i32
    %22 = arith.cmpi slt, %15, %c0_i32_9 : i32
    %23 = vector.broadcast %22 : i1 to vector<32x32xi1>
    %24 = vector.broadcast %23 : vector<32x32xi1> to vector<32x32xi1>
    %25 = arith.xori %21, %24 : vector<32x32xi1>
    %26 = arith.andi %25, %19 : vector<32x32xi1>
    %27 = vector.broadcast %15 : i32 to vector<32x32xi32>
    %28 = arith.addi %17, %27 : vector<32x32xi32>
    %29 = arith.select %26, %28, %17 : vector<32x32xi1>, vector<32x32xi32>
    %c0_i32_10 = arith.constant 0 : i32
    %30 = vector.broadcast %c0_i32_10 : i32 to vector<32x32xi32>
    %31 = arith.cmpi ne, %29, %30 : vector<32x32xi32>
    %32 = arith.andi %13, %31 : vector<32x32xi1>
    %33 = arith.extui %32 : vector<32x32xi1> to vector<32x32xi32>
    %34 = arith.sitofp %33 : vector<32x32xi32> to vector<32x32xf32>
    %c1_i32_11 = arith.constant 1 : i32
    %35 = vector.broadcast %c1_i32_11 : i32 to vector<32x32xi32>
    %36 = arith.addi %9, %35 : vector<32x32xi32>
    %37 = arith.cmpi eq, %10, %36 : vector<32x32xi32>
    %c16_i32_12 = arith.constant 16 : i32
    %c0_i32_13 = arith.constant 0 : i32
    %38 = arith.cmpi eq, %c16_i32_12, %c0_i32_13 : i32
    %c1_i32_14 = arith.constant 1 : i32
    %39 = arith.select %38, %c1_i32_14, %c16_i32_12 : i32
    %40 = vector.broadcast %39 : i32 to vector<32x32xi32>
    %41 = arith.remsi %9, %40 : vector<32x32xi32>
    %c0_i32_15 = arith.constant 0 : i32
    %42 = vector.broadcast %c0_i32_15 : i32 to vector<32x32xi32>
    %43 = arith.cmpi ne, %41, %42 : vector<32x32xi32>
    %c0_i32_16 = arith.constant 0 : i32
    %44 = vector.broadcast %c0_i32_16 : i32 to vector<32x32xi32>
    %45 = arith.cmpi slt, %41, %44 : vector<32x32xi32>
    %c0_i32_17 = arith.constant 0 : i32
    %46 = arith.cmpi slt, %39, %c0_i32_17 : i32
    %47 = vector.broadcast %46 : i1 to vector<32x32xi1>
    %48 = vector.broadcast %47 : vector<32x32xi1> to vector<32x32xi1>
    %49 = arith.xori %45, %48 : vector<32x32xi1>
    %50 = arith.andi %49, %43 : vector<32x32xi1>
    %51 = vector.broadcast %39 : i32 to vector<32x32xi32>
    %52 = arith.addi %41, %51 : vector<32x32xi32>
    %53 = arith.select %50, %52, %41 : vector<32x32xi1>, vector<32x32xi32>
    %c15_i32 = arith.constant 15 : i32
    %54 = vector.broadcast %c15_i32 : i32 to vector<32x32xi32>
    %55 = arith.cmpi ne, %53, %54 : vector<32x32xi32>
    %56 = arith.andi %37, %55 : vector<32x32xi1>
    %57 = arith.extui %56 : vector<32x32xi1> to vector<32x32xi32>
    %58 = arith.sitofp %57 : vector<32x32xi32> to vector<32x32xf32>
    %59 = tpu.iota {dimensions = array<i32: 0>} : vector<64x4xi32>
    %60 = tpu.iota {dimensions = array<i32: 1>} : vector<64x4xi32>
    %c4_i32 = arith.constant 4 : i32
    %c0_i32_18 = arith.constant 0 : i32
    %61 = arith.cmpi eq, %c4_i32, %c0_i32_18 : i32
    %c1_i32_19 = arith.constant 1 : i32
    %62 = arith.select %61, %c1_i32_19, %c4_i32 : i32
    %63 = vector.broadcast %62 : i32 to vector<64x4xi32>
    %64 = arith.remsi %59, %63 : vector<64x4xi32>
    %c0_i32_20 = arith.constant 0 : i32
    %65 = vector.broadcast %c0_i32_20 : i32 to vector<64x4xi32>
    %66 = arith.cmpi ne, %64, %65 : vector<64x4xi32>
    %c0_i32_21 = arith.constant 0 : i32
    %67 = vector.broadcast %c0_i32_21 : i32 to vector<64x4xi32>
    %68 = arith.cmpi slt, %64, %67 : vector<64x4xi32>
    %c0_i32_22 = arith.constant 0 : i32
    %69 = arith.cmpi slt, %62, %c0_i32_22 : i32
    %70 = vector.broadcast %69 : i1 to vector<64x4xi1>
    %71 = vector.broadcast %70 : vector<64x4xi1> to vector<64x4xi1>
    %72 = arith.xori %68, %71 : vector<64x4xi1>
    %73 = arith.andi %72, %66 : vector<64x4xi1>
    %74 = vector.broadcast %62 : i32 to vector<64x4xi32>
    %75 = arith.addi %64, %74 : vector<64x4xi32>
    %76 = arith.select %73, %75, %64 : vector<64x4xi1>, vector<64x4xi32>
    %77 = arith.cmpi eq, %76, %60 : vector<64x4xi32>
    %78 = arith.extui %77 : vector<64x4xi1> to vector<64x4xi32>
    %79 = arith.sitofp %78 : vector<64x4xi32> to vector<64x4xf32>
    %80 = tpu.iota {dimensions = array<i32: 0>} : vector<4x64xi32>
    %81 = tpu.iota {dimensions = array<i32: 1>} : vector<4x64xi32>
    %c4_i32_23 = arith.constant 4 : i32
    %c0_i32_24 = arith.constant 0 : i32
    %82 = arith.cmpi eq, %c4_i32_23, %c0_i32_24 : i32
    %c1_i32_25 = arith.constant 1 : i32
    %83 = arith.select %82, %c1_i32_25, %c4_i32_23 : i32
    %84 = vector.broadcast %83 : i32 to vector<4x64xi32>
    %85 = arith.remsi %81, %84 : vector<4x64xi32>
    %c0_i32_26 = arith.constant 0 : i32
    %86 = vector.broadcast %c0_i32_26 : i32 to vector<4x64xi32>
    %87 = arith.cmpi ne, %85, %86 : vector<4x64xi32>
    %c0_i32_27 = arith.constant 0 : i32
    %88 = vector.broadcast %c0_i32_27 : i32 to vector<4x64xi32>
    %89 = arith.cmpi slt, %85, %88 : vector<4x64xi32>
    %c0_i32_28 = arith.constant 0 : i32
    %90 = arith.cmpi slt, %83, %c0_i32_28 : i32
    %91 = vector.broadcast %90 : i1 to vector<4x64xi1>
    %92 = vector.broadcast %91 : vector<4x64xi1> to vector<4x64xi1>
    %93 = arith.xori %89, %92 : vector<4x64xi1>
    %94 = arith.andi %93, %87 : vector<4x64xi1>
    %95 = vector.broadcast %83 : i32 to vector<4x64xi32>
    %96 = arith.addi %85, %95 : vector<4x64xi32>
    %97 = arith.select %94, %96, %85 : vector<4x64xi1>, vector<4x64xi32>
    %98 = arith.cmpi eq, %80, %97 : vector<4x64xi32>
    %99 = arith.extui %98 : vector<4x64xi1> to vector<4x64xi32>
    %100 = arith.sitofp %99 : vector<4x64xi32> to vector<4x64xf32>
    %101 = vector.extract_strided_slice %0 {offsets = [1, 0], sizes = [1, 64], strides = [1, 1]} : vector<9x64xf32> to vector<1x64xf32>
    %102 = vector.extract_strided_slice %0 {offsets = [2, 0], sizes = [1, 64], strides = [1, 1]} : vector<9x64xf32> to vector<1x64xf32>
    %103 = vector.extract_strided_slice %0 {offsets = [3, 0], sizes = [1, 64], strides = [1, 1]} : vector<9x64xf32> to vector<1x64xf32>
    %104 = vector.extract_strided_slice %0 {offsets = [4, 0], sizes = [1, 64], strides = [1, 1]} : vector<9x64xf32> to vector<1x64xf32>
    %c352 = arith.constant 352 : index
    %c0_29 = arith.constant 0 : index
    %105 = vector.load %arg1[%c352, %c0_29] : memref<1056x64xf32, #tpu.memory_space<vmem>>, vector<64x64xf32>
    %cst_30 = arith.constant dense<0.000000e+00> : vector<32x64xf32>
    %106 = tpu.matmul %8, %105, %cst_30 {dimension_numbers = #tpu.dot_dimension_numbers<[1], [0], [0], [1], [0, 0, 1, 1], [], []>} : vector<32x64xf32>, vector<64x64xf32>, vector<32x64xf32> -> vector<32x64xf32>
    %cst_31 = arith.constant dense<0.000000e+00> : vector<32x64xf32>
    %107 = tpu.matmul %34, %8, %cst_31 {dimension_numbers = #tpu.dot_dimension_numbers<[1], [0], [0], [1], [0, 0, 1, 1], [], []>} : vector<32x32xf32>, vector<32x64xf32>, vector<32x64xf32> -> vector<32x64xf32>
    %c288 = arith.constant 288 : index
    %c0_32 = arith.constant 0 : index
    %108 = vector.load %arg1[%c288, %c0_32] : memref<1056x64xf32, #tpu.memory_space<vmem>>, vector<64x64xf32>
    %cst_33 = arith.constant dense<0.000000e+00> : vector<32x64xf32>
    %109 = tpu.matmul %107, %108, %cst_33 {dimension_numbers = #tpu.dot_dimension_numbers<[1], [0], [0], [1], [0, 0, 1, 1], [], []>} : vector<32x64xf32>, vector<64x64xf32>, vector<32x64xf32> -> vector<32x64xf32>
    %110 = arith.addf %106, %109 : vector<32x64xf32>
    %cst_34 = arith.constant dense<0.000000e+00> : vector<32x64xf32>
    %111 = tpu.matmul %58, %8, %cst_34 {dimension_numbers = #tpu.dot_dimension_numbers<[1], [0], [0], [1], [0, 0, 1, 1], [], []>} : vector<32x32xf32>, vector<32x64xf32>, vector<32x64xf32> -> vector<32x64xf32>
    %c416 = arith.constant 416 : index
    %c0_35 = arith.constant 0 : index
    %112 = vector.load %arg1[%c416, %c0_35] : memref<1056x64xf32, #tpu.memory_space<vmem>>, vector<64x64xf32>
    %cst_36 = arith.constant dense<0.000000e+00> : vector<32x64xf32>
    %113 = tpu.matmul %111, %112, %cst_36 {dimension_numbers = #tpu.dot_dimension_numbers<[1], [0], [0], [1], [0, 0, 1, 1], [], []>} : vector<32x64xf32>, vector<64x64xf32>, vector<32x64xf32> -> vector<32x64xf32>
    %114 = arith.addf %110, %113 : vector<32x64xf32>
    %cst_37 = arith.constant dense<0.000000e+00> : vector<64xf32>
    %115 = vector.multi_reduction <add>, %114, %cst_37 [0] : vector<32x64xf32> to vector<64xf32>
    %116 = vector.shape_cast %115 : vector<64xf32> to vector<1x64xf32>
    %cst_38 = arith.constant dense<0.000000e+00> : vector<1x4xf32>
    %117 = tpu.matmul %116, %79, %cst_38 {dimension_numbers = #tpu.dot_dimension_numbers<[1], [0], [0], [1], [0, 0, 1, 1], [], []>} : vector<1x64xf32>, vector<64x4xf32>, vector<1x4xf32> -> vector<1x4xf32>
    %cst_39 = arith.constant 0.001953125 : f32
    %118 = vector.broadcast %cst_39 : f32 to vector<1x4xf32>
    %119 = arith.mulf %117, %118 : vector<1x4xf32>
    %cst_40 = arith.constant dense<0.000000e+00> : vector<1x64xf32>
    %120 = tpu.matmul %119, %100, %cst_40 {dimension_numbers = #tpu.dot_dimension_numbers<[1], [0], [0], [1], [0, 0, 1, 1], [], []>} : vector<1x4xf32>, vector<4x64xf32>, vector<1x64xf32> -> vector<1x64xf32>
    %121 = vector.broadcast %120 : vector<1x64xf32> to vector<32x64xf32>
    %122 = arith.subf %114, %121 : vector<32x64xf32>
    %123 = arith.mulf %122, %122 : vector<32x64xf32>
    %cst_41 = arith.constant dense<0.000000e+00> : vector<64xf32>
    %124 = vector.multi_reduction <add>, %123, %cst_41 [0] : vector<32x64xf32> to vector<64xf32>
    %125 = vector.shape_cast %124 : vector<64xf32> to vector<1x64xf32>
    %cst_42 = arith.constant dense<0.000000e+00> : vector<1x4xf32>
    %126 = tpu.matmul %125, %79, %cst_42 {dimension_numbers = #tpu.dot_dimension_numbers<[1], [0], [0], [1], [0, 0, 1, 1], [], []>} : vector<1x64xf32>, vector<64x4xf32>, vector<1x4xf32> -> vector<1x4xf32>
    %cst_43 = arith.constant 0.001953125 : f32
    %127 = vector.broadcast %cst_43 : f32 to vector<1x4xf32>
    %128 = arith.mulf %126, %127 : vector<1x4xf32>
    %cst_44 = arith.constant 9.99999974E-6 : f32
    %129 = vector.broadcast %cst_44 : f32 to vector<1x4xf32>
    %130 = arith.addf %128, %129 : vector<1x4xf32>
    %131 = math.rsqrt %130 : vector<1x4xf32>
    %cst_45 = arith.constant dense<0.000000e+00> : vector<1x64xf32>
    %132 = tpu.matmul %131, %100, %cst_45 {dimension_numbers = #tpu.dot_dimension_numbers<[1], [0], [0], [1], [0, 0, 1, 1], [], []>} : vector<1x4xf32>, vector<4x64xf32>, vector<1x64xf32> -> vector<1x64xf32>
    %133 = arith.mulf %101, %132 : vector<1x64xf32>
    %134 = vector.broadcast %133 : vector<1x64xf32> to vector<32x64xf32>
    %135 = arith.mulf %122, %134 : vector<32x64xf32>
    %136 = vector.broadcast %102 : vector<1x64xf32> to vector<32x64xf32>
    %137 = arith.addf %135, %136 : vector<32x64xf32>
    %cst_46 = arith.constant 0.000000e+00 : f32
    %138 = vector.broadcast %cst_46 : f32 to vector<32x64xf32>
    %139 = arith.maximumf %137, %138 : vector<32x64xf32>
    %c544 = arith.constant 544 : index
    %c0_47 = arith.constant 0 : index
    %140 = vector.load %arg1[%c544, %c0_47] : memref<1056x64xf32, #tpu.memory_space<vmem>>, vector<64x64xf32>
    %cst_48 = arith.constant dense<0.000000e+00> : vector<32x64xf32>
    %141 = tpu.matmul %139, %140, %cst_48 {dimension_numbers = #tpu.dot_dimension_numbers<[1], [0], [0], [1], [0, 0, 1, 1], [], []>} : vector<32x64xf32>, vector<64x64xf32>, vector<32x64xf32> -> vector<32x64xf32>
    %cst_49 = arith.constant dense<0.000000e+00> : vector<32x64xf32>
    %142 = tpu.matmul %34, %139, %cst_49 {dimension_numbers = #tpu.dot_dimension_numbers<[1], [0], [0], [1], [0, 0, 1, 1], [], []>} : vector<32x32xf32>, vector<32x64xf32>, vector<32x64xf32> -> vector<32x64xf32>
    %c480 = arith.constant 480 : index
    %c0_50 = arith.constant 0 : index
    %143 = vector.load %arg1[%c480, %c0_50] : memref<1056x64xf32, #tpu.memory_space<vmem>>, vector<64x64xf32>
    %cst_51 = arith.constant dense<0.000000e+00> : vector<32x64xf32>
    %144 = tpu.matmul %142, %143, %cst_51 {dimension_numbers = #tpu.dot_dimension_numbers<[1], [0], [0], [1], [0, 0, 1, 1], [], []>} : vector<32x64xf32>, vector<64x64xf32>, vector<32x64xf32> -> vector<32x64xf32>
    %145 = arith.addf %141, %144 : vector<32x64xf32>
    %cst_52 = arith.constant dense<0.000000e+00> : vector<32x64xf32>
    %146 = tpu.matmul %58, %139, %cst_52 {dimension_numbers = #tpu.dot_dimension_numbers<[1], [0], [0], [1], [0, 0, 1, 1], [], []>} : vector<32x32xf32>, vector<32x64xf32>, vector<32x64xf32> -> vector<32x64xf32>
    %c608 = arith.constant 608 : index
    %c0_53 = arith.constant 0 : index
    %147 = vector.load %arg1[%c608, %c0_53] : memref<1056x64xf32, #tpu.memory_space<vmem>>, vector<64x64xf32>
    %cst_54 = arith.constant dense<0.000000e+00> : vector<32x64xf32>
    %148 = tpu.matmul %146, %147, %cst_54 {dimension_numbers = #tpu.dot_dimension_numbers<[1], [0], [0], [1], [0, 0, 1, 1], [], []>} : vector<32x64xf32>, vector<64x64xf32>, vector<32x64xf32> -> vector<32x64xf32>
    %149 = arith.addf %145, %148 : vector<32x64xf32>
    %cst_55 = arith.constant dense<0.000000e+00> : vector<64xf32>
    %150 = vector.multi_reduction <add>, %149, %cst_55 [0] : vector<32x64xf32> to vector<64xf32>
    %151 = vector.shape_cast %150 : vector<64xf32> to vector<1x64xf32>
    %cst_56 = arith.constant dense<0.000000e+00> : vector<1x4xf32>
    %152 = tpu.matmul %151, %79, %cst_56 {dimension_numbers = #tpu.dot_dimension_numbers<[1], [0], [0], [1], [0, 0, 1, 1], [], []>} : vector<1x64xf32>, vector<64x4xf32>, vector<1x4xf32> -> vector<1x4xf32>
    %cst_57 = arith.constant 0.001953125 : f32
    %153 = vector.broadcast %cst_57 : f32 to vector<1x4xf32>
    %154 = arith.mulf %152, %153 : vector<1x4xf32>
    %cst_58 = arith.constant dense<0.000000e+00> : vector<1x64xf32>
    %155 = tpu.matmul %154, %100, %cst_58 {dimension_numbers = #tpu.dot_dimension_numbers<[1], [0], [0], [1], [0, 0, 1, 1], [], []>} : vector<1x4xf32>, vector<4x64xf32>, vector<1x64xf32> -> vector<1x64xf32>
    %156 = vector.broadcast %155 : vector<1x64xf32> to vector<32x64xf32>
    %157 = arith.subf %149, %156 : vector<32x64xf32>
    %158 = arith.mulf %157, %157 : vector<32x64xf32>
    %cst_59 = arith.constant dense<0.000000e+00> : vector<64xf32>
    %159 = vector.multi_reduction <add>, %158, %cst_59 [0] : vector<32x64xf32> to vector<64xf32>
    %160 = vector.shape_cast %159 : vector<64xf32> to vector<1x64xf32>
    %cst_60 = arith.constant dense<0.000000e+00> : vector<1x4xf32>
    %161 = tpu.matmul %160, %79, %cst_60 {dimension_numbers = #tpu.dot_dimension_numbers<[1], [0], [0], [1], [0, 0, 1, 1], [], []>} : vector<1x64xf32>, vector<64x4xf32>, vector<1x4xf32> -> vector<1x4xf32>
    %cst_61 = arith.constant 0.001953125 : f32
    %162 = vector.broadcast %cst_61 : f32 to vector<1x4xf32>
    %163 = arith.mulf %161, %162 : vector<1x4xf32>
    %cst_62 = arith.constant 9.99999974E-6 : f32
    %164 = vector.broadcast %cst_62 : f32 to vector<1x4xf32>
    %165 = arith.addf %163, %164 : vector<1x4xf32>
    %166 = math.rsqrt %165 : vector<1x4xf32>
    %cst_63 = arith.constant dense<0.000000e+00> : vector<1x64xf32>
    %167 = tpu.matmul %166, %100, %cst_63 {dimension_numbers = #tpu.dot_dimension_numbers<[1], [0], [0], [1], [0, 0, 1, 1], [], []>} : vector<1x4xf32>, vector<4x64xf32>, vector<1x64xf32> -> vector<1x64xf32>
    %168 = arith.mulf %103, %167 : vector<1x64xf32>
    %169 = vector.broadcast %168 : vector<1x64xf32> to vector<32x64xf32>
    %170 = arith.mulf %157, %169 : vector<32x64xf32>
    %171 = vector.broadcast %104 : vector<1x64xf32> to vector<32x64xf32>
    %172 = arith.addf %170, %171 : vector<32x64xf32>
    %173 = arith.addf %8, %172 : vector<32x64xf32>
    %cst_64 = arith.constant 0.000000e+00 : f32
    %174 = vector.broadcast %cst_64 : f32 to vector<32x64xf32>
    %175 = arith.maximumf %173, %174 : vector<32x64xf32>
    %176 = vector.extract_strided_slice %0 {offsets = [5, 0], sizes = [1, 64], strides = [1, 1]} : vector<9x64xf32> to vector<1x64xf32>
    %177 = vector.extract_strided_slice %0 {offsets = [6, 0], sizes = [1, 64], strides = [1, 1]} : vector<9x64xf32> to vector<1x64xf32>
    %178 = vector.extract_strided_slice %0 {offsets = [7, 0], sizes = [1, 64], strides = [1, 1]} : vector<9x64xf32> to vector<1x64xf32>
    %179 = vector.extract_strided_slice %0 {offsets = [8, 0], sizes = [1, 64], strides = [1, 1]} : vector<9x64xf32> to vector<1x64xf32>
    %c736 = arith.constant 736 : index
    %c0_65 = arith.constant 0 : index
    %180 = vector.load %arg1[%c736, %c0_65] : memref<1056x64xf32, #tpu.memory_space<vmem>>, vector<64x64xf32>
    %cst_66 = arith.constant dense<0.000000e+00> : vector<32x64xf32>
    %181 = tpu.matmul %175, %180, %cst_66 {dimension_numbers = #tpu.dot_dimension_numbers<[1], [0], [0], [1], [0, 0, 1, 1], [], []>} : vector<32x64xf32>, vector<64x64xf32>, vector<32x64xf32> -> vector<32x64xf32>
    %cst_67 = arith.constant dense<0.000000e+00> : vector<32x64xf32>
    %182 = tpu.matmul %34, %175, %cst_67 {dimension_numbers = #tpu.dot_dimension_numbers<[1], [0], [0], [1], [0, 0, 1, 1], [], []>} : vector<32x32xf32>, vector<32x64xf32>, vector<32x64xf32> -> vector<32x64xf32>
    %c672 = arith.constant 672 : index
    %c0_68 = arith.constant 0 : index
    %183 = vector.load %arg1[%c672, %c0_68] : memref<1056x64xf32, #tpu.memory_space<vmem>>, vector<64x64xf32>
    %cst_69 = arith.constant dense<0.000000e+00> : vector<32x64xf32>
    %184 = tpu.matmul %182, %183, %cst_69 {dimension_numbers = #tpu.dot_dimension_numbers<[1], [0], [0], [1], [0, 0, 1, 1], [], []>} : vector<32x64xf32>, vector<64x64xf32>, vector<32x64xf32> -> vector<32x64xf32>
    %185 = arith.addf %181, %184 : vector<32x64xf32>
    %cst_70 = arith.constant dense<0.000000e+00> : vector<32x64xf32>
    %186 = tpu.matmul %58, %175, %cst_70 {dimension_numbers = #tpu.dot_dimension_numbers<[1], [0], [0], [1], [0, 0, 1, 1], [], []>} : vector<32x32xf32>, vector<32x64xf32>, vector<32x64xf32> -> vector<32x64xf32>
    %c800 = arith.constant 800 : index
    %c0_71 = arith.constant 0 : index
    %187 = vector.load %arg1[%c800, %c0_71] : memref<1056x64xf32, #tpu.memory_space<vmem>>, vector<64x64xf32>
    %cst_72 = arith.constant dense<0.000000e+00> : vector<32x64xf32>
    %188 = tpu.matmul %186, %187, %cst_72 {dimension_numbers = #tpu.dot_dimension_numbers<[1], [0], [0], [1], [0, 0, 1, 1], [], []>} : vector<32x64xf32>, vector<64x64xf32>, vector<32x64xf32> -> vector<32x64xf32>
    %189 = arith.addf %185, %188 : vector<32x64xf32>
    %cst_73 = arith.constant dense<0.000000e+00> : vector<64xf32>
    %190 = vector.multi_reduction <add>, %189, %cst_73 [0] : vector<32x64xf32> to vector<64xf32>
    %191 = vector.shape_cast %190 : vector<64xf32> to vector<1x64xf32>
    %cst_74 = arith.constant dense<0.000000e+00> : vector<1x4xf32>
    %192 = tpu.matmul %191, %79, %cst_74 {dimension_numbers = #tpu.dot_dimension_numbers<[1], [0], [0], [1], [0, 0, 1, 1], [], []>} : vector<1x64xf32>, vector<64x4xf32>, vector<1x4xf32> -> vector<1x4xf32>
    %cst_75 = arith.constant 0.001953125 : f32
    %193 = vector.broadcast %cst_75 : f32 to vector<1x4xf32>
    %194 = arith.mulf %192, %193 : vector<1x4xf32>
    %cst_76 = arith.constant dense<0.000000e+00> : vector<1x64xf32>
    %195 = tpu.matmul %194, %100, %cst_76 {dimension_numbers = #tpu.dot_dimension_numbers<[1], [0], [0], [1], [0, 0, 1, 1], [], []>} : vector<1x4xf32>, vector<4x64xf32>, vector<1x64xf32> -> vector<1x64xf32>
    %196 = vector.broadcast %195 : vector<1x64xf32> to vector<32x64xf32>
    %197 = arith.subf %189, %196 : vector<32x64xf32>
    %198 = arith.mulf %197, %197 : vector<32x64xf32>
    %cst_77 = arith.constant dense<0.000000e+00> : vector<64xf32>
    %199 = vector.multi_reduction <add>, %198, %cst_77 [0] : vector<32x64xf32> to vector<64xf32>
    %200 = vector.shape_cast %199 : vector<64xf32> to vector<1x64xf32>
    %cst_78 = arith.constant dense<0.000000e+00> : vector<1x4xf32>
    %201 = tpu.matmul %200, %79, %cst_78 {dimension_numbers = #tpu.dot_dimension_numbers<[1], [0], [0], [1], [0, 0, 1, 1], [], []>} : vector<1x64xf32>, vector<64x4xf32>, vector<1x4xf32> -> vector<1x4xf32>
    %cst_79 = arith.constant 0.001953125 : f32
    %202 = vector.broadcast %cst_79 : f32 to vector<1x4xf32>
    %203 = arith.mulf %201, %202 : vector<1x4xf32>
    %cst_80 = arith.constant 9.99999974E-6 : f32
    %204 = vector.broadcast %cst_80 : f32 to vector<1x4xf32>
    %205 = arith.addf %203, %204 : vector<1x4xf32>
    %206 = math.rsqrt %205 : vector<1x4xf32>
    %cst_81 = arith.constant dense<0.000000e+00> : vector<1x64xf32>
    %207 = tpu.matmul %206, %100, %cst_81 {dimension_numbers = #tpu.dot_dimension_numbers<[1], [0], [0], [1], [0, 0, 1, 1], [], []>} : vector<1x4xf32>, vector<4x64xf32>, vector<1x64xf32> -> vector<1x64xf32>
    %208 = arith.mulf %176, %207 : vector<1x64xf32>
    %209 = vector.broadcast %208 : vector<1x64xf32> to vector<32x64xf32>
    %210 = arith.mulf %197, %209 : vector<32x64xf32>
    %211 = vector.broadcast %177 : vector<1x64xf32> to vector<32x64xf32>
    %212 = arith.addf %210, %211 : vector<32x64xf32>
    %cst_82 = arith.constant 0.000000e+00 : f32
    %213 = vector.broadcast %cst_82 : f32 to vector<32x64xf32>
    %214 = arith.maximumf %212, %213 : vector<32x64xf32>
    %c928 = arith.constant 928 : index
    %c0_83 = arith.constant 0 : index
    %215 = vector.load %arg1[%c928, %c0_83] : memref<1056x64xf32, #tpu.memory_space<vmem>>, vector<64x64xf32>
    %cst_84 = arith.constant dense<0.000000e+00> : vector<32x64xf32>
    %216 = tpu.matmul %214, %215, %cst_84 {dimension_numbers = #tpu.dot_dimension_numbers<[1], [0], [0], [1], [0, 0, 1, 1], [], []>} : vector<32x64xf32>, vector<64x64xf32>, vector<32x64xf32> -> vector<32x64xf32>
    %cst_85 = arith.constant dense<0.000000e+00> : vector<32x64xf32>
    %217 = tpu.matmul %34, %214, %cst_85 {dimension_numbers = #tpu.dot_dimension_numbers<[1], [0], [0], [1], [0, 0, 1, 1], [], []>} : vector<32x32xf32>, vector<32x64xf32>, vector<32x64xf32> -> vector<32x64xf32>
    %c864 = arith.constant 864 : index
    %c0_86 = arith.constant 0 : index
    %218 = vector.load %arg1[%c864, %c0_86] : memref<1056x64xf32, #tpu.memory_space<vmem>>, vector<64x64xf32>
    %cst_87 = arith.constant dense<0.000000e+00> : vector<32x64xf32>
    %219 = tpu.matmul %217, %218, %cst_87 {dimension_numbers = #tpu.dot_dimension_numbers<[1], [0], [0], [1], [0, 0, 1, 1], [], []>} : vector<32x64xf32>, vector<64x64xf32>, vector<32x64xf32> -> vector<32x64xf32>
    %220 = arith.addf %216, %219 : vector<32x64xf32>
    %cst_88 = arith.constant dense<0.000000e+00> : vector<32x64xf32>
    %221 = tpu.matmul %58, %214, %cst_88 {dimension_numbers = #tpu.dot_dimension_numbers<[1], [0], [0], [1], [0, 0, 1, 1], [], []>} : vector<32x32xf32>, vector<32x64xf32>, vector<32x64xf32> -> vector<32x64xf32>
    %c992 = arith.constant 992 : index
    %c0_89 = arith.constant 0 : index
    %222 = vector.load %arg1[%c992, %c0_89] : memref<1056x64xf32, #tpu.memory_space<vmem>>, vector<64x64xf32>
    %cst_90 = arith.constant dense<0.000000e+00> : vector<32x64xf32>
    %223 = tpu.matmul %221, %222, %cst_90 {dimension_numbers = #tpu.dot_dimension_numbers<[1], [0], [0], [1], [0, 0, 1, 1], [], []>} : vector<32x64xf32>, vector<64x64xf32>, vector<32x64xf32> -> vector<32x64xf32>
    %224 = arith.addf %220, %223 : vector<32x64xf32>
    %cst_91 = arith.constant dense<0.000000e+00> : vector<64xf32>
    %225 = vector.multi_reduction <add>, %224, %cst_91 [0] : vector<32x64xf32> to vector<64xf32>
    %226 = vector.shape_cast %225 : vector<64xf32> to vector<1x64xf32>
    %cst_92 = arith.constant dense<0.000000e+00> : vector<1x4xf32>
    %227 = tpu.matmul %226, %79, %cst_92 {dimension_numbers = #tpu.dot_dimension_numbers<[1], [0], [0], [1], [0, 0, 1, 1], [], []>} : vector<1x64xf32>, vector<64x4xf32>, vector<1x4xf32> -> vector<1x4xf32>
    %cst_93 = arith.constant 0.001953125 : f32
    %228 = vector.broadcast %cst_93 : f32 to vector<1x4xf32>
    %229 = arith.mulf %227, %228 : vector<1x4xf32>
    %cst_94 = arith.constant dense<0.000000e+00> : vector<1x64xf32>
    %230 = tpu.matmul %229, %100, %cst_94 {dimension_numbers = #tpu.dot_dimension_numbers<[1], [0], [0], [1], [0, 0, 1, 1], [], []>} : vector<1x4xf32>, vector<4x64xf32>, vector<1x64xf32> -> vector<1x64xf32>
    %231 = vector.broadcast %230 : vector<1x64xf32> to vector<32x64xf32>
    %232 = arith.subf %224, %231 : vector<32x64xf32>
    %233 = arith.mulf %232, %232 : vector<32x64xf32>
    %cst_95 = arith.constant dense<0.000000e+00> : vector<64xf32>
    %234 = vector.multi_reduction <add>, %233, %cst_95 [0] : vector<32x64xf32> to vector<64xf32>
    %235 = vector.shape_cast %234 : vector<64xf32> to vector<1x64xf32>
    %cst_96 = arith.constant dense<0.000000e+00> : vector<1x4xf32>
    %236 = tpu.matmul %235, %79, %cst_96 {dimension_numbers = #tpu.dot_dimension_numbers<[1], [0], [0], [1], [0, 0, 1, 1], [], []>} : vector<1x64xf32>, vector<64x4xf32>, vector<1x4xf32> -> vector<1x4xf32>
    %cst_97 = arith.constant 0.001953125 : f32
    %237 = vector.broadcast %cst_97 : f32 to vector<1x4xf32>
    %238 = arith.mulf %236, %237 : vector<1x4xf32>
    %cst_98 = arith.constant 9.99999974E-6 : f32
    %239 = vector.broadcast %cst_98 : f32 to vector<1x4xf32>
    %240 = arith.addf %238, %239 : vector<1x4xf32>
    %241 = math.rsqrt %240 : vector<1x4xf32>
    %cst_99 = arith.constant dense<0.000000e+00> : vector<1x64xf32>
    %242 = tpu.matmul %241, %100, %cst_99 {dimension_numbers = #tpu.dot_dimension_numbers<[1], [0], [0], [1], [0, 0, 1, 1], [], []>} : vector<1x4xf32>, vector<4x64xf32>, vector<1x64xf32> -> vector<1x64xf32>
    %243 = arith.mulf %178, %242 : vector<1x64xf32>
    %244 = vector.broadcast %243 : vector<1x64xf32> to vector<32x64xf32>
    %245 = arith.mulf %232, %244 : vector<32x64xf32>
    %246 = vector.broadcast %179 : vector<1x64xf32> to vector<32x64xf32>
    %247 = arith.addf %245, %246 : vector<32x64xf32>
    %248 = arith.addf %175, %247 : vector<32x64xf32>
    %cst_100 = arith.constant 0.000000e+00 : f32
    %249 = vector.broadcast %cst_100 : f32 to vector<32x64xf32>
    %250 = arith.maximumf %248, %249 : vector<32x64xf32>
    %c0_101 = arith.constant 0 : index
    %c0_102 = arith.constant 0 : index
    %251 = vector.load %arg3[%c0_101, %c0_102] : memref<32x64xf32, #tpu.memory_space<vmem>>, vector<32x64xf32>
    tpu.vector_store %arg3[%c0_101, %c0_102], %250 {strides = array<i32>} : memref<32x64xf32, #tpu.memory_space<vmem>>, vector<32x64xf32>,
    return
  }
}

module attributes {stable_mosaic.version = 11 : i64} {
  func.func @kernel(%arg0: memref<16x192xf32, #tpu.memory_space<vmem>>, %arg1: memref<960x64xf32, #tpu.memory_space<vmem>>, %arg2: memref<9x64xf32, #tpu.memory_space<vmem>>, %arg3: memref<16x64xf32, #tpu.memory_space<vmem>>) attributes {dimension_semantics = [], scalar_prefetch = 0 : i64, scratch_operands = 0 : i64, tpu.core_type = #tpu.core_type<tc>} {
    %c0 = arith.constant 0 : index
    %c0_0 = arith.constant 0 : index
    %0 = vector.load %arg2[%c0, %c0_0] : memref<9x64xf32, #tpu.memory_space<vmem>>, vector<9x64xf32>
    %c0_1 = arith.constant 0 : index
    %c0_2 = arith.constant 0 : index
    %1 = vector.load %arg0[%c0_1, %c0_2] : memref<16x192xf32, #tpu.memory_space<vmem>>, vector<16x192xf32>
    %c0_3 = arith.constant 0 : index
    %c0_4 = arith.constant 0 : index
    %2 = vector.load %arg1[%c0_3, %c0_4] : memref<960x64xf32, #tpu.memory_space<vmem>>, vector<192x64xf32>
    %cst = arith.constant dense<0.000000e+00> : vector<16x64xf32>
    %3 = tpu.matmul %1, %2, %cst {dimension_numbers = #tpu.dot_dimension_numbers<[1], [0], [0], [1], [0, 0, 1, 1], [], []>} : vector<16x192xf32>, vector<192x64xf32>, vector<16x64xf32> -> vector<16x64xf32>
    %4 = vector.extract_strided_slice %0 {offsets = [0, 0], sizes = [1, 64], strides = [1, 1]} : vector<9x64xf32> to vector<1x64xf32>
    %5 = vector.broadcast %4 : vector<1x64xf32> to vector<16x64xf32>
    %6 = arith.addf %3, %5 : vector<16x64xf32>
    %cst_5 = arith.constant 0.000000e+00 : f32
    %7 = vector.broadcast %cst_5 : f32 to vector<16x64xf32>
    %8 = arith.maximumf %6, %7 : vector<16x64xf32>
    %9 = tpu.iota {dimensions = array<i32: 0>} : vector<16x16xi32>
    %10 = tpu.iota {dimensions = array<i32: 1>} : vector<16x16xi32>
    %c1_i32 = arith.constant 1 : i32
    %11 = vector.broadcast %c1_i32 : i32 to vector<16x16xi32>
    %12 = arith.subi %9, %11 : vector<16x16xi32>
    %13 = arith.cmpi eq, %10, %12 : vector<16x16xi32>
    %c8_i32 = arith.constant 8 : i32
    %c0_i32 = arith.constant 0 : i32
    %14 = arith.cmpi eq, %c8_i32, %c0_i32 : i32
    %c1_i32_6 = arith.constant 1 : i32
    %15 = arith.select %14, %c1_i32_6, %c8_i32 : i32
    %16 = vector.broadcast %15 : i32 to vector<16x16xi32>
    %17 = arith.remsi %9, %16 : vector<16x16xi32>
    %c0_i32_7 = arith.constant 0 : i32
    %18 = vector.broadcast %c0_i32_7 : i32 to vector<16x16xi32>
    %19 = arith.cmpi ne, %17, %18 : vector<16x16xi32>
    %c0_i32_8 = arith.constant 0 : i32
    %20 = vector.broadcast %c0_i32_8 : i32 to vector<16x16xi32>
    %21 = arith.cmpi slt, %17, %20 : vector<16x16xi32>
    %c0_i32_9 = arith.constant 0 : i32
    %22 = arith.cmpi slt, %15, %c0_i32_9 : i32
    %23 = vector.broadcast %22 : i1 to vector<16x16xi1>
    %24 = vector.broadcast %23 : vector<16x16xi1> to vector<16x16xi1>
    %25 = arith.xori %21, %24 : vector<16x16xi1>
    %26 = arith.andi %25, %19 : vector<16x16xi1>
    %27 = vector.broadcast %15 : i32 to vector<16x16xi32>
    %28 = arith.addi %17, %27 : vector<16x16xi32>
    %29 = arith.select %26, %28, %17 : vector<16x16xi1>, vector<16x16xi32>
    %c0_i32_10 = arith.constant 0 : i32
    %30 = vector.broadcast %c0_i32_10 : i32 to vector<16x16xi32>
    %31 = arith.cmpi ne, %29, %30 : vector<16x16xi32>
    %32 = arith.andi %13, %31 : vector<16x16xi1>
    %33 = arith.extui %32 : vector<16x16xi1> to vector<16x16xi32>
    %34 = arith.sitofp %33 : vector<16x16xi32> to vector<16x16xf32>
    %c1_i32_11 = arith.constant 1 : i32
    %35 = vector.broadcast %c1_i32_11 : i32 to vector<16x16xi32>
    %36 = arith.addi %9, %35 : vector<16x16xi32>
    %37 = arith.cmpi eq, %10, %36 : vector<16x16xi32>
    %c8_i32_12 = arith.constant 8 : i32
    %c0_i32_13 = arith.constant 0 : i32
    %38 = arith.cmpi eq, %c8_i32_12, %c0_i32_13 : i32
    %c1_i32_14 = arith.constant 1 : i32
    %39 = arith.select %38, %c1_i32_14, %c8_i32_12 : i32
    %40 = vector.broadcast %39 : i32 to vector<16x16xi32>
    %41 = arith.remsi %9, %40 : vector<16x16xi32>
    %c0_i32_15 = arith.constant 0 : i32
    %42 = vector.broadcast %c0_i32_15 : i32 to vector<16x16xi32>
    %43 = arith.cmpi ne, %41, %42 : vector<16x16xi32>
    %c0_i32_16 = arith.constant 0 : i32
    %44 = vector.broadcast %c0_i32_16 : i32 to vector<16x16xi32>
    %45 = arith.cmpi slt, %41, %44 : vector<16x16xi32>
    %c0_i32_17 = arith.constant 0 : i32
    %46 = arith.cmpi slt, %39, %c0_i32_17 : i32
    %47 = vector.broadcast %46 : i1 to vector<16x16xi1>
    %48 = vector.broadcast %47 : vector<16x16xi1> to vector<16x16xi1>
    %49 = arith.xori %45, %48 : vector<16x16xi1>
    %50 = arith.andi %49, %43 : vector<16x16xi1>
    %51 = vector.broadcast %39 : i32 to vector<16x16xi32>
    %52 = arith.addi %41, %51 : vector<16x16xi32>
    %53 = arith.select %50, %52, %41 : vector<16x16xi1>, vector<16x16xi32>
    %c7_i32 = arith.constant 7 : i32
    %54 = vector.broadcast %c7_i32 : i32 to vector<16x16xi32>
    %55 = arith.cmpi ne, %53, %54 : vector<16x16xi32>
    %56 = arith.andi %37, %55 : vector<16x16xi1>
    %57 = arith.extui %56 : vector<16x16xi1> to vector<16x16xi32>
    %58 = arith.sitofp %57 : vector<16x16xi32> to vector<16x16xf32>
    %59 = tpu.iota {dimensions = array<i32: 0>} : vector<64x8xi32>
    %60 = tpu.iota {dimensions = array<i32: 1>} : vector<64x8xi32>
    %c8_i32_18 = arith.constant 8 : i32
    %c0_i32_19 = arith.constant 0 : i32
    %61 = arith.cmpi eq, %c8_i32_18, %c0_i32_19 : i32
    %c1_i32_20 = arith.constant 1 : i32
    %62 = arith.select %61, %c1_i32_20, %c8_i32_18 : i32
    %63 = vector.broadcast %62 : i32 to vector<64x8xi32>
    %64 = arith.remsi %59, %63 : vector<64x8xi32>
    %c0_i32_21 = arith.constant 0 : i32
    %65 = vector.broadcast %c0_i32_21 : i32 to vector<64x8xi32>
    %66 = arith.cmpi ne, %64, %65 : vector<64x8xi32>
    %c0_i32_22 = arith.constant 0 : i32
    %67 = vector.broadcast %c0_i32_22 : i32 to vector<64x8xi32>
    %68 = arith.cmpi slt, %64, %67 : vector<64x8xi32>
    %c0_i32_23 = arith.constant 0 : i32
    %69 = arith.cmpi slt, %62, %c0_i32_23 : i32
    %70 = vector.broadcast %69 : i1 to vector<64x8xi1>
    %71 = vector.broadcast %70 : vector<64x8xi1> to vector<64x8xi1>
    %72 = arith.xori %68, %71 : vector<64x8xi1>
    %73 = arith.andi %72, %66 : vector<64x8xi1>
    %74 = vector.broadcast %62 : i32 to vector<64x8xi32>
    %75 = arith.addi %64, %74 : vector<64x8xi32>
    %76 = arith.select %73, %75, %64 : vector<64x8xi1>, vector<64x8xi32>
    %77 = arith.cmpi eq, %76, %60 : vector<64x8xi32>
    %78 = arith.extui %77 : vector<64x8xi1> to vector<64x8xi32>
    %79 = arith.sitofp %78 : vector<64x8xi32> to vector<64x8xf32>
    %80 = tpu.iota {dimensions = array<i32: 0>} : vector<8x64xi32>
    %81 = tpu.iota {dimensions = array<i32: 1>} : vector<8x64xi32>
    %c8_i32_24 = arith.constant 8 : i32
    %c0_i32_25 = arith.constant 0 : i32
    %82 = arith.cmpi eq, %c8_i32_24, %c0_i32_25 : i32
    %c1_i32_26 = arith.constant 1 : i32
    %83 = arith.select %82, %c1_i32_26, %c8_i32_24 : i32
    %84 = vector.broadcast %83 : i32 to vector<8x64xi32>
    %85 = arith.remsi %81, %84 : vector<8x64xi32>
    %c0_i32_27 = arith.constant 0 : i32
    %86 = vector.broadcast %c0_i32_27 : i32 to vector<8x64xi32>
    %87 = arith.cmpi ne, %85, %86 : vector<8x64xi32>
    %c0_i32_28 = arith.constant 0 : i32
    %88 = vector.broadcast %c0_i32_28 : i32 to vector<8x64xi32>
    %89 = arith.cmpi slt, %85, %88 : vector<8x64xi32>
    %c0_i32_29 = arith.constant 0 : i32
    %90 = arith.cmpi slt, %83, %c0_i32_29 : i32
    %91 = vector.broadcast %90 : i1 to vector<8x64xi1>
    %92 = vector.broadcast %91 : vector<8x64xi1> to vector<8x64xi1>
    %93 = arith.xori %89, %92 : vector<8x64xi1>
    %94 = arith.andi %93, %87 : vector<8x64xi1>
    %95 = vector.broadcast %83 : i32 to vector<8x64xi32>
    %96 = arith.addi %85, %95 : vector<8x64xi32>
    %97 = arith.select %94, %96, %85 : vector<8x64xi1>, vector<8x64xi32>
    %98 = arith.cmpi eq, %80, %97 : vector<8x64xi32>
    %99 = arith.extui %98 : vector<8x64xi1> to vector<8x64xi32>
    %100 = arith.sitofp %99 : vector<8x64xi32> to vector<8x64xf32>
    %101 = vector.extract_strided_slice %0 {offsets = [1, 0], sizes = [1, 64], strides = [1, 1]} : vector<9x64xf32> to vector<1x64xf32>
    %102 = vector.extract_strided_slice %0 {offsets = [2, 0], sizes = [1, 64], strides = [1, 1]} : vector<9x64xf32> to vector<1x64xf32>
    %103 = vector.extract_strided_slice %0 {offsets = [3, 0], sizes = [1, 64], strides = [1, 1]} : vector<9x64xf32> to vector<1x64xf32>
    %104 = vector.extract_strided_slice %0 {offsets = [4, 0], sizes = [1, 64], strides = [1, 1]} : vector<9x64xf32> to vector<1x64xf32>
    %c256 = arith.constant 256 : index
    %c0_30 = arith.constant 0 : index
    %105 = vector.load %arg1[%c256, %c0_30] : memref<960x64xf32, #tpu.memory_space<vmem>>, vector<64x64xf32>
    %cst_31 = arith.constant dense<0.000000e+00> : vector<16x64xf32>
    %106 = tpu.matmul %8, %105, %cst_31 {dimension_numbers = #tpu.dot_dimension_numbers<[1], [0], [0], [1], [0, 0, 1, 1], [], []>} : vector<16x64xf32>, vector<64x64xf32>, vector<16x64xf32> -> vector<16x64xf32>
    %cst_32 = arith.constant dense<0.000000e+00> : vector<16x64xf32>
    %107 = tpu.matmul %34, %8, %cst_32 {dimension_numbers = #tpu.dot_dimension_numbers<[1], [0], [0], [1], [0, 0, 1, 1], [], []>} : vector<16x16xf32>, vector<16x64xf32>, vector<16x64xf32> -> vector<16x64xf32>
    %c192 = arith.constant 192 : index
    %c0_33 = arith.constant 0 : index
    %108 = vector.load %arg1[%c192, %c0_33] : memref<960x64xf32, #tpu.memory_space<vmem>>, vector<64x64xf32>
    %cst_34 = arith.constant dense<0.000000e+00> : vector<16x64xf32>
    %109 = tpu.matmul %107, %108, %cst_34 {dimension_numbers = #tpu.dot_dimension_numbers<[1], [0], [0], [1], [0, 0, 1, 1], [], []>} : vector<16x64xf32>, vector<64x64xf32>, vector<16x64xf32> -> vector<16x64xf32>
    %110 = arith.addf %106, %109 : vector<16x64xf32>
    %cst_35 = arith.constant dense<0.000000e+00> : vector<16x64xf32>
    %111 = tpu.matmul %58, %8, %cst_35 {dimension_numbers = #tpu.dot_dimension_numbers<[1], [0], [0], [1], [0, 0, 1, 1], [], []>} : vector<16x16xf32>, vector<16x64xf32>, vector<16x64xf32> -> vector<16x64xf32>
    %c320 = arith.constant 320 : index
    %c0_36 = arith.constant 0 : index
    %112 = vector.load %arg1[%c320, %c0_36] : memref<960x64xf32, #tpu.memory_space<vmem>>, vector<64x64xf32>
    %cst_37 = arith.constant dense<0.000000e+00> : vector<16x64xf32>
    %113 = tpu.matmul %111, %112, %cst_37 {dimension_numbers = #tpu.dot_dimension_numbers<[1], [0], [0], [1], [0, 0, 1, 1], [], []>} : vector<16x64xf32>, vector<64x64xf32>, vector<16x64xf32> -> vector<16x64xf32>
    %114 = arith.addf %110, %113 : vector<16x64xf32>
    %cst_38 = arith.constant dense<0.000000e+00> : vector<64xf32>
    %115 = vector.multi_reduction <add>, %114, %cst_38 [0] : vector<16x64xf32> to vector<64xf32>
    %116 = vector.shape_cast %115 : vector<64xf32> to vector<1x64xf32>
    %cst_39 = arith.constant dense<0.000000e+00> : vector<1x8xf32>
    %117 = tpu.matmul %116, %79, %cst_39 {dimension_numbers = #tpu.dot_dimension_numbers<[1], [0], [0], [1], [0, 0, 1, 1], [], []>} : vector<1x64xf32>, vector<64x8xf32>, vector<1x8xf32> -> vector<1x8xf32>
    %cst_40 = arith.constant 7.812500e-03 : f32
    %118 = vector.broadcast %cst_40 : f32 to vector<1x8xf32>
    %119 = arith.mulf %117, %118 : vector<1x8xf32>
    %cst_41 = arith.constant dense<0.000000e+00> : vector<1x64xf32>
    %120 = tpu.matmul %119, %100, %cst_41 {dimension_numbers = #tpu.dot_dimension_numbers<[1], [0], [0], [1], [0, 0, 1, 1], [], []>} : vector<1x8xf32>, vector<8x64xf32>, vector<1x64xf32> -> vector<1x64xf32>
    %121 = vector.broadcast %120 : vector<1x64xf32> to vector<16x64xf32>
    %122 = arith.subf %114, %121 : vector<16x64xf32>
    %123 = arith.mulf %122, %122 : vector<16x64xf32>
    %cst_42 = arith.constant dense<0.000000e+00> : vector<64xf32>
    %124 = vector.multi_reduction <add>, %123, %cst_42 [0] : vector<16x64xf32> to vector<64xf32>
    %125 = vector.shape_cast %124 : vector<64xf32> to vector<1x64xf32>
    %cst_43 = arith.constant dense<0.000000e+00> : vector<1x8xf32>
    %126 = tpu.matmul %125, %79, %cst_43 {dimension_numbers = #tpu.dot_dimension_numbers<[1], [0], [0], [1], [0, 0, 1, 1], [], []>} : vector<1x64xf32>, vector<64x8xf32>, vector<1x8xf32> -> vector<1x8xf32>
    %cst_44 = arith.constant 7.812500e-03 : f32
    %127 = vector.broadcast %cst_44 : f32 to vector<1x8xf32>
    %128 = arith.mulf %126, %127 : vector<1x8xf32>
    %cst_45 = arith.constant 9.99999974E-6 : f32
    %129 = vector.broadcast %cst_45 : f32 to vector<1x8xf32>
    %130 = arith.addf %128, %129 : vector<1x8xf32>
    %131 = math.rsqrt %130 : vector<1x8xf32>
    %cst_46 = arith.constant dense<0.000000e+00> : vector<1x64xf32>
    %132 = tpu.matmul %131, %100, %cst_46 {dimension_numbers = #tpu.dot_dimension_numbers<[1], [0], [0], [1], [0, 0, 1, 1], [], []>} : vector<1x8xf32>, vector<8x64xf32>, vector<1x64xf32> -> vector<1x64xf32>
    %133 = arith.mulf %101, %132 : vector<1x64xf32>
    %134 = vector.broadcast %133 : vector<1x64xf32> to vector<16x64xf32>
    %135 = arith.mulf %122, %134 : vector<16x64xf32>
    %136 = vector.broadcast %102 : vector<1x64xf32> to vector<16x64xf32>
    %137 = arith.addf %135, %136 : vector<16x64xf32>
    %cst_47 = arith.constant 0.000000e+00 : f32
    %138 = vector.broadcast %cst_47 : f32 to vector<16x64xf32>
    %139 = arith.maximumf %137, %138 : vector<16x64xf32>
    %c448 = arith.constant 448 : index
    %c0_48 = arith.constant 0 : index
    %140 = vector.load %arg1[%c448, %c0_48] : memref<960x64xf32, #tpu.memory_space<vmem>>, vector<64x64xf32>
    %cst_49 = arith.constant dense<0.000000e+00> : vector<16x64xf32>
    %141 = tpu.matmul %139, %140, %cst_49 {dimension_numbers = #tpu.dot_dimension_numbers<[1], [0], [0], [1], [0, 0, 1, 1], [], []>} : vector<16x64xf32>, vector<64x64xf32>, vector<16x64xf32> -> vector<16x64xf32>
    %cst_50 = arith.constant dense<0.000000e+00> : vector<16x64xf32>
    %142 = tpu.matmul %34, %139, %cst_50 {dimension_numbers = #tpu.dot_dimension_numbers<[1], [0], [0], [1], [0, 0, 1, 1], [], []>} : vector<16x16xf32>, vector<16x64xf32>, vector<16x64xf32> -> vector<16x64xf32>
    %c384 = arith.constant 384 : index
    %c0_51 = arith.constant 0 : index
    %143 = vector.load %arg1[%c384, %c0_51] : memref<960x64xf32, #tpu.memory_space<vmem>>, vector<64x64xf32>
    %cst_52 = arith.constant dense<0.000000e+00> : vector<16x64xf32>
    %144 = tpu.matmul %142, %143, %cst_52 {dimension_numbers = #tpu.dot_dimension_numbers<[1], [0], [0], [1], [0, 0, 1, 1], [], []>} : vector<16x64xf32>, vector<64x64xf32>, vector<16x64xf32> -> vector<16x64xf32>
    %145 = arith.addf %141, %144 : vector<16x64xf32>
    %cst_53 = arith.constant dense<0.000000e+00> : vector<16x64xf32>
    %146 = tpu.matmul %58, %139, %cst_53 {dimension_numbers = #tpu.dot_dimension_numbers<[1], [0], [0], [1], [0, 0, 1, 1], [], []>} : vector<16x16xf32>, vector<16x64xf32>, vector<16x64xf32> -> vector<16x64xf32>
    %c512 = arith.constant 512 : index
    %c0_54 = arith.constant 0 : index
    %147 = vector.load %arg1[%c512, %c0_54] : memref<960x64xf32, #tpu.memory_space<vmem>>, vector<64x64xf32>
    %cst_55 = arith.constant dense<0.000000e+00> : vector<16x64xf32>
    %148 = tpu.matmul %146, %147, %cst_55 {dimension_numbers = #tpu.dot_dimension_numbers<[1], [0], [0], [1], [0, 0, 1, 1], [], []>} : vector<16x64xf32>, vector<64x64xf32>, vector<16x64xf32> -> vector<16x64xf32>
    %149 = arith.addf %145, %148 : vector<16x64xf32>
    %cst_56 = arith.constant dense<0.000000e+00> : vector<64xf32>
    %150 = vector.multi_reduction <add>, %149, %cst_56 [0] : vector<16x64xf32> to vector<64xf32>
    %151 = vector.shape_cast %150 : vector<64xf32> to vector<1x64xf32>
    %cst_57 = arith.constant dense<0.000000e+00> : vector<1x8xf32>
    %152 = tpu.matmul %151, %79, %cst_57 {dimension_numbers = #tpu.dot_dimension_numbers<[1], [0], [0], [1], [0, 0, 1, 1], [], []>} : vector<1x64xf32>, vector<64x8xf32>, vector<1x8xf32> -> vector<1x8xf32>
    %cst_58 = arith.constant 7.812500e-03 : f32
    %153 = vector.broadcast %cst_58 : f32 to vector<1x8xf32>
    %154 = arith.mulf %152, %153 : vector<1x8xf32>
    %cst_59 = arith.constant dense<0.000000e+00> : vector<1x64xf32>
    %155 = tpu.matmul %154, %100, %cst_59 {dimension_numbers = #tpu.dot_dimension_numbers<[1], [0], [0], [1], [0, 0, 1, 1], [], []>} : vector<1x8xf32>, vector<8x64xf32>, vector<1x64xf32> -> vector<1x64xf32>
    %156 = vector.broadcast %155 : vector<1x64xf32> to vector<16x64xf32>
    %157 = arith.subf %149, %156 : vector<16x64xf32>
    %158 = arith.mulf %157, %157 : vector<16x64xf32>
    %cst_60 = arith.constant dense<0.000000e+00> : vector<64xf32>
    %159 = vector.multi_reduction <add>, %158, %cst_60 [0] : vector<16x64xf32> to vector<64xf32>
    %160 = vector.shape_cast %159 : vector<64xf32> to vector<1x64xf32>
    %cst_61 = arith.constant dense<0.000000e+00> : vector<1x8xf32>
    %161 = tpu.matmul %160, %79, %cst_61 {dimension_numbers = #tpu.dot_dimension_numbers<[1], [0], [0], [1], [0, 0, 1, 1], [], []>} : vector<1x64xf32>, vector<64x8xf32>, vector<1x8xf32> -> vector<1x8xf32>
    %cst_62 = arith.constant 7.812500e-03 : f32
    %162 = vector.broadcast %cst_62 : f32 to vector<1x8xf32>
    %163 = arith.mulf %161, %162 : vector<1x8xf32>
    %cst_63 = arith.constant 9.99999974E-6 : f32
    %164 = vector.broadcast %cst_63 : f32 to vector<1x8xf32>
    %165 = arith.addf %163, %164 : vector<1x8xf32>
    %166 = math.rsqrt %165 : vector<1x8xf32>
    %cst_64 = arith.constant dense<0.000000e+00> : vector<1x64xf32>
    %167 = tpu.matmul %166, %100, %cst_64 {dimension_numbers = #tpu.dot_dimension_numbers<[1], [0], [0], [1], [0, 0, 1, 1], [], []>} : vector<1x8xf32>, vector<8x64xf32>, vector<1x64xf32> -> vector<1x64xf32>
    %168 = arith.mulf %103, %167 : vector<1x64xf32>
    %169 = vector.broadcast %168 : vector<1x64xf32> to vector<16x64xf32>
    %170 = arith.mulf %157, %169 : vector<16x64xf32>
    %171 = vector.broadcast %104 : vector<1x64xf32> to vector<16x64xf32>
    %172 = arith.addf %170, %171 : vector<16x64xf32>
    %173 = arith.addf %8, %172 : vector<16x64xf32>
    %cst_65 = arith.constant 0.000000e+00 : f32
    %174 = vector.broadcast %cst_65 : f32 to vector<16x64xf32>
    %175 = arith.maximumf %173, %174 : vector<16x64xf32>
    %176 = vector.extract_strided_slice %0 {offsets = [5, 0], sizes = [1, 64], strides = [1, 1]} : vector<9x64xf32> to vector<1x64xf32>
    %177 = vector.extract_strided_slice %0 {offsets = [6, 0], sizes = [1, 64], strides = [1, 1]} : vector<9x64xf32> to vector<1x64xf32>
    %178 = vector.extract_strided_slice %0 {offsets = [7, 0], sizes = [1, 64], strides = [1, 1]} : vector<9x64xf32> to vector<1x64xf32>
    %179 = vector.extract_strided_slice %0 {offsets = [8, 0], sizes = [1, 64], strides = [1, 1]} : vector<9x64xf32> to vector<1x64xf32>
    %c640 = arith.constant 640 : index
    %c0_66 = arith.constant 0 : index
    %180 = vector.load %arg1[%c640, %c0_66] : memref<960x64xf32, #tpu.memory_space<vmem>>, vector<64x64xf32>
    %cst_67 = arith.constant dense<0.000000e+00> : vector<16x64xf32>
    %181 = tpu.matmul %175, %180, %cst_67 {dimension_numbers = #tpu.dot_dimension_numbers<[1], [0], [0], [1], [0, 0, 1, 1], [], []>} : vector<16x64xf32>, vector<64x64xf32>, vector<16x64xf32> -> vector<16x64xf32>
    %cst_68 = arith.constant dense<0.000000e+00> : vector<16x64xf32>
    %182 = tpu.matmul %34, %175, %cst_68 {dimension_numbers = #tpu.dot_dimension_numbers<[1], [0], [0], [1], [0, 0, 1, 1], [], []>} : vector<16x16xf32>, vector<16x64xf32>, vector<16x64xf32> -> vector<16x64xf32>
    %c576 = arith.constant 576 : index
    %c0_69 = arith.constant 0 : index
    %183 = vector.load %arg1[%c576, %c0_69] : memref<960x64xf32, #tpu.memory_space<vmem>>, vector<64x64xf32>
    %cst_70 = arith.constant dense<0.000000e+00> : vector<16x64xf32>
    %184 = tpu.matmul %182, %183, %cst_70 {dimension_numbers = #tpu.dot_dimension_numbers<[1], [0], [0], [1], [0, 0, 1, 1], [], []>} : vector<16x64xf32>, vector<64x64xf32>, vector<16x64xf32> -> vector<16x64xf32>
    %185 = arith.addf %181, %184 : vector<16x64xf32>
    %cst_71 = arith.constant dense<0.000000e+00> : vector<16x64xf32>
    %186 = tpu.matmul %58, %175, %cst_71 {dimension_numbers = #tpu.dot_dimension_numbers<[1], [0], [0], [1], [0, 0, 1, 1], [], []>} : vector<16x16xf32>, vector<16x64xf32>, vector<16x64xf32> -> vector<16x64xf32>
    %c704 = arith.constant 704 : index
    %c0_72 = arith.constant 0 : index
    %187 = vector.load %arg1[%c704, %c0_72] : memref<960x64xf32, #tpu.memory_space<vmem>>, vector<64x64xf32>
    %cst_73 = arith.constant dense<0.000000e+00> : vector<16x64xf32>
    %188 = tpu.matmul %186, %187, %cst_73 {dimension_numbers = #tpu.dot_dimension_numbers<[1], [0], [0], [1], [0, 0, 1, 1], [], []>} : vector<16x64xf32>, vector<64x64xf32>, vector<16x64xf32> -> vector<16x64xf32>
    %189 = arith.addf %185, %188 : vector<16x64xf32>
    %cst_74 = arith.constant dense<0.000000e+00> : vector<64xf32>
    %190 = vector.multi_reduction <add>, %189, %cst_74 [0] : vector<16x64xf32> to vector<64xf32>
    %191 = vector.shape_cast %190 : vector<64xf32> to vector<1x64xf32>
    %cst_75 = arith.constant dense<0.000000e+00> : vector<1x8xf32>
    %192 = tpu.matmul %191, %79, %cst_75 {dimension_numbers = #tpu.dot_dimension_numbers<[1], [0], [0], [1], [0, 0, 1, 1], [], []>} : vector<1x64xf32>, vector<64x8xf32>, vector<1x8xf32> -> vector<1x8xf32>
    %cst_76 = arith.constant 7.812500e-03 : f32
    %193 = vector.broadcast %cst_76 : f32 to vector<1x8xf32>
    %194 = arith.mulf %192, %193 : vector<1x8xf32>
    %cst_77 = arith.constant dense<0.000000e+00> : vector<1x64xf32>
    %195 = tpu.matmul %194, %100, %cst_77 {dimension_numbers = #tpu.dot_dimension_numbers<[1], [0], [0], [1], [0, 0, 1, 1], [], []>} : vector<1x8xf32>, vector<8x64xf32>, vector<1x64xf32> -> vector<1x64xf32>
    %196 = vector.broadcast %195 : vector<1x64xf32> to vector<16x64xf32>
    %197 = arith.subf %189, %196 : vector<16x64xf32>
    %198 = arith.mulf %197, %197 : vector<16x64xf32>
    %cst_78 = arith.constant dense<0.000000e+00> : vector<64xf32>
    %199 = vector.multi_reduction <add>, %198, %cst_78 [0] : vector<16x64xf32> to vector<64xf32>
    %200 = vector.shape_cast %199 : vector<64xf32> to vector<1x64xf32>
    %cst_79 = arith.constant dense<0.000000e+00> : vector<1x8xf32>
    %201 = tpu.matmul %200, %79, %cst_79 {dimension_numbers = #tpu.dot_dimension_numbers<[1], [0], [0], [1], [0, 0, 1, 1], [], []>} : vector<1x64xf32>, vector<64x8xf32>, vector<1x8xf32> -> vector<1x8xf32>
    %cst_80 = arith.constant 7.812500e-03 : f32
    %202 = vector.broadcast %cst_80 : f32 to vector<1x8xf32>
    %203 = arith.mulf %201, %202 : vector<1x8xf32>
    %cst_81 = arith.constant 9.99999974E-6 : f32
    %204 = vector.broadcast %cst_81 : f32 to vector<1x8xf32>
    %205 = arith.addf %203, %204 : vector<1x8xf32>
    %206 = math.rsqrt %205 : vector<1x8xf32>
    %cst_82 = arith.constant dense<0.000000e+00> : vector<1x64xf32>
    %207 = tpu.matmul %206, %100, %cst_82 {dimension_numbers = #tpu.dot_dimension_numbers<[1], [0], [0], [1], [0, 0, 1, 1], [], []>} : vector<1x8xf32>, vector<8x64xf32>, vector<1x64xf32> -> vector<1x64xf32>
    %208 = arith.mulf %176, %207 : vector<1x64xf32>
    %209 = vector.broadcast %208 : vector<1x64xf32> to vector<16x64xf32>
    %210 = arith.mulf %197, %209 : vector<16x64xf32>
    %211 = vector.broadcast %177 : vector<1x64xf32> to vector<16x64xf32>
    %212 = arith.addf %210, %211 : vector<16x64xf32>
    %cst_83 = arith.constant 0.000000e+00 : f32
    %213 = vector.broadcast %cst_83 : f32 to vector<16x64xf32>
    %214 = arith.maximumf %212, %213 : vector<16x64xf32>
    %c832 = arith.constant 832 : index
    %c0_84 = arith.constant 0 : index
    %215 = vector.load %arg1[%c832, %c0_84] : memref<960x64xf32, #tpu.memory_space<vmem>>, vector<64x64xf32>
    %cst_85 = arith.constant dense<0.000000e+00> : vector<16x64xf32>
    %216 = tpu.matmul %214, %215, %cst_85 {dimension_numbers = #tpu.dot_dimension_numbers<[1], [0], [0], [1], [0, 0, 1, 1], [], []>} : vector<16x64xf32>, vector<64x64xf32>, vector<16x64xf32> -> vector<16x64xf32>
    %cst_86 = arith.constant dense<0.000000e+00> : vector<16x64xf32>
    %217 = tpu.matmul %34, %214, %cst_86 {dimension_numbers = #tpu.dot_dimension_numbers<[1], [0], [0], [1], [0, 0, 1, 1], [], []>} : vector<16x16xf32>, vector<16x64xf32>, vector<16x64xf32> -> vector<16x64xf32>
    %c768 = arith.constant 768 : index
    %c0_87 = arith.constant 0 : index
    %218 = vector.load %arg1[%c768, %c0_87] : memref<960x64xf32, #tpu.memory_space<vmem>>, vector<64x64xf32>
    %cst_88 = arith.constant dense<0.000000e+00> : vector<16x64xf32>
    %219 = tpu.matmul %217, %218, %cst_88 {dimension_numbers = #tpu.dot_dimension_numbers<[1], [0], [0], [1], [0, 0, 1, 1], [], []>} : vector<16x64xf32>, vector<64x64xf32>, vector<16x64xf32> -> vector<16x64xf32>
    %220 = arith.addf %216, %219 : vector<16x64xf32>
    %cst_89 = arith.constant dense<0.000000e+00> : vector<16x64xf32>
    %221 = tpu.matmul %58, %214, %cst_89 {dimension_numbers = #tpu.dot_dimension_numbers<[1], [0], [0], [1], [0, 0, 1, 1], [], []>} : vector<16x16xf32>, vector<16x64xf32>, vector<16x64xf32> -> vector<16x64xf32>
    %c896 = arith.constant 896 : index
    %c0_90 = arith.constant 0 : index
    %222 = vector.load %arg1[%c896, %c0_90] : memref<960x64xf32, #tpu.memory_space<vmem>>, vector<64x64xf32>
    %cst_91 = arith.constant dense<0.000000e+00> : vector<16x64xf32>
    %223 = tpu.matmul %221, %222, %cst_91 {dimension_numbers = #tpu.dot_dimension_numbers<[1], [0], [0], [1], [0, 0, 1, 1], [], []>} : vector<16x64xf32>, vector<64x64xf32>, vector<16x64xf32> -> vector<16x64xf32>
    %224 = arith.addf %220, %223 : vector<16x64xf32>
    %cst_92 = arith.constant dense<0.000000e+00> : vector<64xf32>
    %225 = vector.multi_reduction <add>, %224, %cst_92 [0] : vector<16x64xf32> to vector<64xf32>
    %226 = vector.shape_cast %225 : vector<64xf32> to vector<1x64xf32>
    %cst_93 = arith.constant dense<0.000000e+00> : vector<1x8xf32>
    %227 = tpu.matmul %226, %79, %cst_93 {dimension_numbers = #tpu.dot_dimension_numbers<[1], [0], [0], [1], [0, 0, 1, 1], [], []>} : vector<1x64xf32>, vector<64x8xf32>, vector<1x8xf32> -> vector<1x8xf32>
    %cst_94 = arith.constant 7.812500e-03 : f32
    %228 = vector.broadcast %cst_94 : f32 to vector<1x8xf32>
    %229 = arith.mulf %227, %228 : vector<1x8xf32>
    %cst_95 = arith.constant dense<0.000000e+00> : vector<1x64xf32>
    %230 = tpu.matmul %229, %100, %cst_95 {dimension_numbers = #tpu.dot_dimension_numbers<[1], [0], [0], [1], [0, 0, 1, 1], [], []>} : vector<1x8xf32>, vector<8x64xf32>, vector<1x64xf32> -> vector<1x64xf32>
    %231 = vector.broadcast %230 : vector<1x64xf32> to vector<16x64xf32>
    %232 = arith.subf %224, %231 : vector<16x64xf32>
    %233 = arith.mulf %232, %232 : vector<16x64xf32>
    %cst_96 = arith.constant dense<0.000000e+00> : vector<64xf32>
    %234 = vector.multi_reduction <add>, %233, %cst_96 [0] : vector<16x64xf32> to vector<64xf32>
    %235 = vector.shape_cast %234 : vector<64xf32> to vector<1x64xf32>
    %cst_97 = arith.constant dense<0.000000e+00> : vector<1x8xf32>
    %236 = tpu.matmul %235, %79, %cst_97 {dimension_numbers = #tpu.dot_dimension_numbers<[1], [0], [0], [1], [0, 0, 1, 1], [], []>} : vector<1x64xf32>, vector<64x8xf32>, vector<1x8xf32> -> vector<1x8xf32>
    %cst_98 = arith.constant 7.812500e-03 : f32
    %237 = vector.broadcast %cst_98 : f32 to vector<1x8xf32>
    %238 = arith.mulf %236, %237 : vector<1x8xf32>
    %cst_99 = arith.constant 9.99999974E-6 : f32
    %239 = vector.broadcast %cst_99 : f32 to vector<1x8xf32>
    %240 = arith.addf %238, %239 : vector<1x8xf32>
    %241 = math.rsqrt %240 : vector<1x8xf32>
    %cst_100 = arith.constant dense<0.000000e+00> : vector<1x64xf32>
    %242 = tpu.matmul %241, %100, %cst_100 {dimension_numbers = #tpu.dot_dimension_numbers<[1], [0], [0], [1], [0, 0, 1, 1], [], []>} : vector<1x8xf32>, vector<8x64xf32>, vector<1x64xf32> -> vector<1x64xf32>
    %243 = arith.mulf %178, %242 : vector<1x64xf32>
    %244 = vector.broadcast %243 : vector<1x64xf32> to vector<16x64xf32>
    %245 = arith.mulf %232, %244 : vector<16x64xf32>
    %246 = vector.broadcast %179 : vector<1x64xf32> to vector<16x64xf32>
    %247 = arith.addf %245, %246 : vector<16x64xf32>
    %248 = arith.addf %175, %247 : vector<16x64xf32>
    %cst_101 = arith.constant 0.000000e+00 : f32
    %249 = vector.broadcast %cst_101 : f32 to vector<16x64xf32>
    %250 = arith.maximumf %248, %249 : vector<16x64xf32>
    %c0_102 = arith.constant 0 : index
    %c0_103 = arith.constant 0 : index
    %251 = vector.load %arg3[%c0_102, %c0_103] : memref<16x64xf32, #tpu.memory_space<vmem>>, vector<16x64xf32>
    tpu.vector_store %arg3[%c0_102, %c0_103], %250 {strides = array<i32>} : memref<16x64xf32, #tpu.memory_space<vmem>>, vector<16x64xf32>,
    return
  }
}

</mosaic_0001>

<llo_original>
// kernel: tile.103
$region0: #{tile.103}
  #allocation0 [shape = 's32[1]{0}', space=sflag, size = 0x4, scoped, tag = 'scoped memory for tile.103']
  %s0 = inlined_call_operand.vmem [shape: f32[4], index: 0, kind: input, shape index: {}]
  %s1 = inlined_call_operand.vmem [shape: f32[16,4], index: 1, kind: output, shape index: {}]
  // Predicated region
  $region2: #{tile.103} parent=0 // pred_check
    _
  $region3: #{tile.103} parent=0 // pred_check_branch
    %3 = sbr.rel (0) target = $region5
  $region4: #{tile.103} parent=0 // pred_region
    _
  $region5: #{tile.103} parent=0 // pred_fallthru
    _
  %v4 = vld [vmem:[%s0] ss:$0 sm:$0xff]
  %5 = vst [vmem:[%s1] sm:$0xff] %v4
  %s6 = scalar_lea.vmem %s1, 8
  %7 = vst [vmem:[%s6] sm:$0xff] %v4

// kernel: tile.104
$region0: #{tile.104}
  %s0 = inlined_call_operand.vmem [shape: f32[16,4], index: 0, kind: input, shape index: {}]
  %s1 = inlined_call_operand.vmem [shape: f32[1,64], index: 1, kind: output, shape index: {}]
  $region1: #{tile.104} parent=0
    #allocation0 [shape = 'u8[4096]{0}', space=vmem, size = 0x1000, scoped, tag = 'scoped mem for output reshape']
    %v2 = vld [vmem:[%s0] sm:$0x1]
    %vm3 = vcmask 31744
    %4 = vst.msk [vmem:[#allocation0] sm:$0x1] %vm3, %v2
    %s5 = scalar_lea.vmem %s0, 15
    %v6 = vld [vmem:[%s5] sm:$0x1]
    %7 = vrot.lane.b32.xlu0 %v6, 60
    %v8 = vpop.permute.xlu0 %7
    %vm9 = vcmask 523744
    %10 = vst.msk [vmem:[#allocation0] sm:$0x1] %vm9, %v8
    %s11 = scalar_lea.vmem %s0, 14
    %v12 = vld [vmem:[%s11] sm:$0x1]
    %13 = vrot.lane.b32.xlu0 %v12, 56
    %v14 = vpop.permute.xlu0 %13
    %vm15 = vcmask 490944
    %16 = vst.msk [vmem:[#allocation0] sm:$0x1] %vm15, %v14
    %s17 = scalar_lea.vmem %s0, 13
    %v18 = vld [vmem:[%s17] sm:$0x1]
    %19 = vrot.lane.b32.xlu0 %v18, 52
    %v20 = vpop.permute.xlu0 %19
    %vm21 = vcmask 458144
    %22 = vst.msk [vmem:[#allocation0] sm:$0x1] %vm21, %v20
    %s23 = scalar_lea.vmem %s0, 12
    %v24 = vld [vmem:[%s23] sm:$0x1]
    %25 = vrot.lane.b32.xlu0 %v24, 48
    %v26 = vpop.permute.xlu0 %25
    %vm27 = vcmask 425344
    %28 = vst.msk [vmem:[#allocation0] sm:$0x1] %vm27, %v26
    %s29 = scalar_lea.vmem %s0, 11
    %v30 = vld [vmem:[%s29] sm:$0x1]
    %31 = vrot.lane.b32.xlu0 %v30, 44
    %v32 = vpop.permute.xlu0 %31
    %vm33 = vcmask 392544
    %34 = vst.msk [vmem:[#allocation0] sm:$0x1] %vm33, %v32
    %s35 = scalar_lea.vmem %s0, 10
    %v36 = vld [vmem:[%s35] sm:$0x1]
    %37 = vrot.lane.b32.xlu0 %v36, 40
    %v38 = vpop.permute.xlu0 %37
    %vm39 = vcmask 359744
    %40 = vst.msk [vmem:[#allocation0] sm:$0x1] %vm39, %v38
    %s41 = scalar_lea.vmem %s0, 9
    %v42 = vld [vmem:[%s41] sm:$0x1]
    %43 = vrot.lane.b32.xlu0 %v42, 36
    %v44 = vpop.permute.xlu0 %43
    %vm45 = vcmask 326944
    %46 = vst.msk [vmem:[#allocation0] sm:$0x1] %vm45, %v44
    %s47 = scalar_lea.vmem %s0, 8
    %v48 = vld [vmem:[%s47] sm:$0x1]
    %49 = vrot.lane.b32.xlu0 %v48, 32
    %v50 = vpop.permute.xlu0 %49
    %vm51 = vcmask 294144
    %52 = vst.msk [vmem:[#allocation0] sm:$0x1] %vm51, %v50
    %s53 = scalar_lea.vmem %s0, 7
    %v54 = vld [vmem:[%s53] sm:$0x1]
    %55 = vrot.lane.b32.xlu0 %v54, 28
    %v56 = vpop.permute.xlu0 %55
    %vm57 = vcmask 261344
    %58 = vst.msk [vmem:[#allocation0] sm:$0x1] %vm57, %v56
    %s59 = scalar_lea.vmem %s0, 6
    %v60 = vld [vmem:[%s59] sm:$0x1]
    %61 = vrot.lane.b32.xlu0 %v60, 24
    %v62 = vpop.permute.xlu0 %61
    %vm63 = vcmask 228544
    %64 = vst.msk [vmem:[#allocation0] sm:$0x1] %vm63, %v62
    %s65 = scalar_lea.vmem %s0, 5
    %v66 = vld [vmem:[%s65] sm:$0x1]
    %67 = vrot.lane.b32.xlu0 %v66, 20
    %v68 = vpop.permute.xlu0 %67
    %vm69 = vcmask 195744
    %70 = vst.msk [vmem:[#allocation0] sm:$0x1] %vm69, %v68
    %s71 = scalar_lea.vmem %s0, 4
    %v72 = vld [vmem:[%s71] sm:$0x1]
    %73 = vrot.lane.b32.xlu0 %v72, 16
    %v74 = vpop.permute.xlu0 %73
    %vm75 = vcmask 162944
    %76 = vst.msk [vmem:[#allocation0] sm:$0x1] %vm75, %v74
    %s77 = scalar_lea.vmem %s0, 3
    %v78 = vld [vmem:[%s77] sm:$0x1]
    %79 = vrot.lane.b32.xlu0 %v78, 12
    %v80 = vpop.permute.xlu0 %79
    %vm81 = vcmask 130144
    %82 = vst.msk [vmem:[#allocation0] sm:$0x1] %vm81, %v80
    %s83 = scalar_lea.vmem %s0, 2
    %v84 = vld [vmem:[%s83] sm:$0x1]
    %85 = vrot.lane.b32.xlu0 %v84, 8
    %v86 = vpop.permute.xlu0 %85
    %vm87 = vcmask 97344
    %88 = vst.msk [vmem:[#allocation0] sm:$0x1] %vm87, %v86
    %s89 = scalar_lea.vmem %s0, 1
    %v90 = vld [vmem:[%s89] sm:$0x1]
    %91 = vrot.lane.b32.xlu0 %v90, 4
    %v92 = vpop.permute.xlu0 %91
    %vm93 = vcmask 64544
    %94 = vst.msk [vmem:[#allocation0] sm:$0x1] %vm93, %v92
    %s96 = sshll.u32 1, 1
    %s97 = ssub.s32 %s96, 1
    %v99 = vld [vmem:[#allocation0] sm:%s97]
    %s100 = sshll.u32 1, 1
    %s101 = ssub.s32 %s100, 1
    %102 = vst [vmem:[%s1] sm:%s101] %v99

// kernel: encoder_pallas.2
$region0: #{encoder_pallas.2}
  #allocation0 [shape = 'u32[]', space=smem, size = 0x4, offset = 0x4, fixed_abs, tag = 'smem constant byte address 0x4 - core index']
  #allocation1 [shape = 'u32[144,128]{1,0:T(1,128)}', space=vmem, size = 0x12000, scoped, tag = 'internal scratch']
  %s0 = inlined_call_operand.vmem [shape: f32[32,288], index: 0, kind: input, shape index: {}]
  %s1 = inlined_call_operand.vmem [shape: f32[1056,64], index: 1, kind: input, shape index: {}]
  %s2 = inlined_call_operand.vmem [shape: f32[9,64], index: 2, kind: input, shape index: {}]
  %s3 = inlined_call_operand.vmem [shape: f32[32,64], index: 3, kind: output, shape index: {}]
  %s4 = sld [smem:[#allocation0]]
  $region22: #{encoder_pallas.2} parent=0
    _
  %s6 = ssub.s32 1, %s4
  %s7 = scalar_select 0, %s6, %s4
  // Predicated region
  $region2: #{encoder_pallas.2} parent=0 // pred_check
    _
  $region3: #{encoder_pallas.2} parent=0 // pred_check_branch
    %9 = sbr.rel (0) target = $region5
  $region4: #{encoder_pallas.2} parent=0 // pred_region
    _
  $region5: #{encoder_pallas.2} parent=0 // pred_fallthru
    _
  // Predicated region
  $region6: #{encoder_pallas.2} parent=0 // pred_check
    _
  $region7: #{encoder_pallas.2} parent=0 // pred_check_branch
    %11 = sbr.rel (0) target = $region9
  $region8: #{encoder_pallas.2} parent=0 // pred_region
    _
  $region9: #{encoder_pallas.2} parent=0 // pred_fallthru
    _
  // Predicated region
  $region10: #{encoder_pallas.2} parent=0 // pred_check
    _
  $region11: #{encoder_pallas.2} parent=0 // pred_check_branch
    %13 = sbr.rel (0) target = $region13
  $region12: #{encoder_pallas.2} parent=0 // pred_region
    _
  $region13: #{encoder_pallas.2} parent=0 // pred_fallthru
    _
  %v14 = vld [vmem:[%s2] sm:$0xff]
  %v15 = vld [vmem:[%s2 + $0x8] sm:$0x1]
  %v16 = vld [vmem:[%s0] sm:$0xff]
  %v17 = vld [vmem:[%s0 + $0x8] sm:$0xff]
  %v18 = vld [vmem:[%s0 + $0x10] sm:$0xff]
  %v19 = vld [vmem:[%s0 + $0x18] sm:$0xff]
  %v20 = vld [vmem:[%s0 + $0x20] sm:$0xff]
  %v21 = vld [vmem:[%s0 + $0x28] sm:$0xff]
  %v22 = vld [vmem:[%s0 + $0x30] sm:$0xff]
  %v23 = vld [vmem:[%s0 + $0x38] sm:$0xff]
  %v24 = vld [vmem:[%s0 + $0x40] sm:$0xff]
  %v25 = vld [vmem:[%s0 + $0x48] sm:$0xff]
  %v26 = vld [vmem:[%s0 + $0x50] sm:$0xff]
  %v27 = vld [vmem:[%s0 + $0x58] sm:$0xff]
  %v28 = vld [vmem:[%s1] sm:$0xff]
  %v29 = vld [vmem:[%s1 + $0x8] sm:$0xff]
  %v30 = vld [vmem:[%s1 + $0x10] sm:$0xff]
  %v31 = vld [vmem:[%s1 + $0x18] sm:$0xff]
  %v32 = vld [vmem:[%s1 + $0x20] sm:$0xff]
  %v33 = vld [vmem:[%s1 + $0x28] sm:$0xff]
  %v34 = vld [vmem:[%s1 + $0x30] sm:$0xff]
  %v35 = vld [vmem:[%s1 + $0x38] sm:$0xff]
  %v36 = vld [vmem:[%s1 + $0x40] sm:$0xff]
  %v37 = vld [vmem:[%s1 + $0x48] sm:$0xff]
  %v38 = vld [vmem:[%s1 + $0x50] sm:$0xff]
  %v39 = vld [vmem:[%s1 + $0x58] sm:$0xff]
  %v40 = vld [vmem:[%s1 + $0x60] sm:$0xff]
  %v41 = vld [vmem:[%s1 + $0x68] sm:$0xff]
  %v42 = vld [vmem:[%s1 + $0x70] sm:$0xff]
  %v43 = vld [vmem:[%s1 + $0x78] sm:$0xff]
  %v44 = vld [vmem:[%s1 + $0x80] sm:$0xff]
  %v45 = vld [vmem:[%s1 + $0x88] sm:$0xff]
  %v46 = vld [vmem:[%s1 + $0x90] sm:$0xff]
  %v47 = vld [vmem:[%s1 + $0x98] sm:$0xff]
  %v48 = vld [vmem:[%s1 + $0xa0] sm:$0xff]
  %v49 = vld [vmem:[%s1 + $0xa8] sm:$0xff]
  %v50 = vld [vmem:[%s1 + $0xb0] sm:$0xff]
  %v51 = vld [vmem:[%s1 + $0xb8] sm:$0xff]
  %v52 = vld [vmem:[%s1 + $0xc0] sm:$0xff]
  %v53 = vld [vmem:[%s1 + $0xc8] sm:$0xff]
  %v54 = vld [vmem:[%s1 + $0xd0] sm:$0xff]
  %v55 = vld [vmem:[%s1 + $0xd8] sm:$0xff]
  %v56 = vld [vmem:[%s1 + $0xe0] sm:$0xff]
  %v57 = vld [vmem:[%s1 + $0xe8] sm:$0xff]
  %v58 = vld [vmem:[%s1 + $0xf0] sm:$0xff]
  %v59 = vld [vmem:[%s1 + $0xf8] sm:$0xff]
  %v60 = vld [vmem:[%s1 + $0x100] sm:$0xff]
  %v61 = vld [vmem:[%s1 + $0x108] sm:$0xff]
  %v62 = vld [vmem:[%s1 + $0x110] sm:$0xff]
  %v63 = vld [vmem:[%s1 + $0x118] sm:$0xff]
  %v64 = vlaneseq
  %v65 = vshrl.u32 %v64, 7
  %v66 = vsub.s32 0, %v65
  %v67 = vrot.slane %v14, %v66
  %vm68 = vcmask 261120
  %v70 = vsel %vm68, %v18, 0
  %v73 = vsel %vm68, %v21, 0
  %v76 = vsel %vm68, %v24, 0
  %v79 = vsel %vm68, %v27, 0
  %81 = vmatprep.subr.mxu0 0.0
  %82 = vmatpush1.msra.mxu0 %v43
  %83 = vmatprep.subr.mxu0 0.0
  %84 = vmatpush1.msra.mxu0 %v42
  %85 = vmatprep.subr.mxu0 0.0
  %86 = vmatpush1.msra.mxu0 %v41
  %87 = vmatprep.subr.mxu0 0.0
  %88 = vmatpush1.msra.mxu0 %v40
  %89 = vmatprep.subr.mxu0 0.0
  %90 = vmatpush1.msra.mxu0 %v39
  %91 = vmatprep.subr.mxu0 0.0
  %92 = vmatpush1.msra.mxu0 %v38
  %93 = vmatprep.subr.mxu0 0.0
  %94 = vmatpush1.msra.mxu0 %v37
  %95 = vmatprep.subr.mxu0 0.0
  %96 = vmatpush1.msra.mxu0 %v36
  %97 = vmatprep.subr.mxu0 0.0
  %98 = vmatpush1.msra.mxu0 %v35
  %99 = vmatprep.subr.mxu0 0.0
  %100 = vmatpush1.msra.mxu0 %v34
  %101 = vmatprep.subr.mxu0 0.0
  %102 = vmatpush1.msra.mxu0 %v33
  %103 = vmatprep.subr.mxu0 0.0
  %104 = vmatpush1.msra.mxu0 %v32
  %105 = vmatprep.subr.mxu0 0.0
  %106 = vmatpush1.msra.mxu0 %v31
  %107 = vmatprep.subr.mxu0 0.0
  %108 = vmatpush1.msra.mxu0 %v30
  %109 = vmatprep.subr.mxu0 0.0
  %110 = vmatpush1.msra.mxu0 %v29
  %111 = vmatprep.subr.mxu0 0.0
  %112 = vmatpush1.msra.mxu0 %v28
  %113 = vmatprep.subr.mxu0 0.0
  %114 = vmatpush2.msra.mxu0 %v59
  %115 = vmatprep.subr.mxu0 0.0
  %116 = vmatpush2.msra.mxu0 %v58
  %117 = vmatprep.subr.mxu0 0.0
  %118 = vmatpush2.msra.mxu0 %v57
  %119 = vmatprep.subr.mxu0 0.0
  %120 = vmatpush2.msra.mxu0 %v56
  %121 = vmatprep.subr.mxu0 0.0
  %122 = vmatpush2.msra.mxu0 %v55
  %123 = vmatprep.subr.mxu0 0.0
  %124 = vmatpush2.msra.mxu0 %v54
  %125 = vmatprep.subr.mxu0 0.0
  %126 = vmatpush2.msra.mxu0 %v53
  %127 = vmatprep.subr.mxu0 0.0
  %128 = vmatpush2.msra.mxu0 %v52
  %129 = vmatprep.subr.mxu0 0.0
  %130 = vmatpush2.msra.mxu0 %v51
  %131 = vmatprep.subr.mxu0 0.0
  %132 = vmatpush2.msra.mxu0 %v50
  %133 = vmatprep.subr.mxu0 0.0
  %134 = vmatpush2.msra.mxu0 %v49
  %135 = vmatprep.subr.mxu0 0.0
  %136 = vmatpush2.msra.mxu0 %v48
  %137 = vmatprep.subr.mxu0 0.0
  %138 = vmatpush2.msra.mxu0 %v47
  %139 = vmatprep.subr.mxu0 0.0
  %140 = vmatpush2.msra.mxu0 %v46
  %141 = vmatprep.subr.mxu0 0.0
  %142 = vmatpush2.msra.mxu0 %v45
  %143 = vmatprep.subr.mxu0 0.0
  %144 = vmatpush2.msra.mxu0 %v44
  %145 = vmatprep.mubr.f32.mxu0 %v17
  %146 = vmatmul.mubr.f32.gmra.mxu0 %v16
  %v147 = vpop.f32.mrf.mxu0
  %v148 = vadd.f32 %v67, %v147
  %v149 = vpop.f32.mrf.mxu0
  %150 = vmatprep.mubr.f32.mxu0 %v20
  %151 = vmatmul.mubr.f32.gmra.mxu0 %v19
  %v152 = vpop.f32.mrf.mxu0
  %v153 = vadd.f32 %v67, %v152
  %v154 = vpop.f32.mrf.mxu0
  %155 = vmatprep.mubr.f32.mxu0 %v23
  %156 = vmatmul.mubr.f32.gmra.mxu0 %v22
  %v157 = vpop.f32.mrf.mxu0
  %v158 = vadd.f32 %v67, %v157
  %v159 = vpop.f32.mrf.mxu0
  %160 = vmatprep.mubr.f32.mxu0 %v26
  %161 = vmatmul.mubr.f32.gmra.mxu0 %v25
  %v162 = vpop.f32.mrf.mxu0
  %v163 = vadd.f32 %v67, %v162
  %v164 = vpop.f32.mrf.mxu0
  %165 = vdwg.mxu0
  %166 = vmatprep.subr.mxu0 0.0
  %167 = vmatpush1.msra.mxu0 0.0
  %168 = vmatprep.subr.mxu0 0.0
  %169 = vmatpush1.msra.mxu0 0.0
  %170 = vmatprep.subr.mxu0 0.0
  %171 = vmatpush1.msra.mxu0 0.0
  %172 = vmatprep.subr.mxu0 0.0
  %173 = vmatpush1.msra.mxu0 0.0
  %174 = vmatprep.subr.mxu0 0.0
  %175 = vmatpush1.msra.mxu0 0.0
  %176 = vmatprep.subr.mxu0 0.0
  %177 = vmatpush1.msra.mxu0 0.0
  %178 = vmatprep.subr.mxu0 0.0
  %179 = vmatpush1.msra.mxu0 0.0
  %180 = vmatprep.subr.mxu0 0.0
  %181 = vmatpush1.msra.mxu0 0.0
  %182 = vmatprep.subr.mxu0 0.0
  %183 = vmatpush1.msra.mxu0 0.0
  %184 = vmatprep.subr.mxu0 0.0
  %185 = vmatpush1.msra.mxu0 0.0
  %186 = vmatprep.subr.mxu0 0.0
  %187 = vmatpush1.msra.mxu0 0.0
  %188 = vmatprep.subr.mxu0 0.0
  %189 = vmatpush1.msra.mxu0 0.0
  %190 = vmatprep.subr.mxu0 0.0
  %191 = vmatpush1.msra.mxu0 %v63
  %192 = vmatprep.subr.mxu0 0.0
  %193 = vmatpush1.msra.mxu0 %v62
  %194 = vmatprep.subr.mxu0 0.0
  %195 = vmatpush1.msra.mxu0 %v61
  %196 = vmatprep.subr.mxu0 0.0
  %197 = vmatpush1.msra.mxu0 %v60
  %198 = vmatprep.subr.mxu0 0.0
  %199 = vmatpush2.msra.mxu0 0.0
  %200 = vmatprep.subr.mxu0 0.0
  %201 = vmatpush2.msra.mxu0 0.0
  %202 = vmatprep.subr.mxu0 0.0
  %203 = vmatpush2.msra.mxu0 0.0
  %204 = vmatprep.subr.mxu0 0.0
  %205 = vmatpush2.msra.mxu0 0.0
  %206 = vmatprep.subr.mxu0 0.0
  %207 = vmatpush2.msra.mxu0 0.0
  %208 = vmatprep.subr.mxu0 0.0
  %209 = vmatpush2.msra.mxu0 0.0
  %210 = vmatprep.subr.mxu0 0.0
  %211 = vmatpush2.msra.mxu0 0.0
  %212 = vmatprep.subr.mxu0 0.0
  %213 = vmatpush2.msra.mxu0 0.0
  %214 = vmatprep.subr.mxu0 0.0
  %215 = vmatpush2.msra.mxu0 0.0
  %216 = vmatprep.subr.mxu0 0.0
  %217 = vmatpush2.msra.mxu0 0.0
  %218 = vmatprep.subr.mxu0 0.0
  %219 = vmatpush2.msra.mxu0 0.0
  %220 = vmatprep.subr.mxu0 0.0
  %221 = vmatpush2.msra.mxu0 0.0
  %222 = vmatprep.subr.mxu0 0.0
  %223 = vmatpush2.msra.mxu0 0.0
  %224 = vmatprep.subr.mxu0 0.0
  %225 = vmatpush2.msra.mxu0 0.0
  %226 = vmatprep.subr.mxu0 0.0
  %227 = vmatpush2.msra.mxu0 0.0
  %228 = vmatprep.subr.mxu0 0.0
  %229 = vmatpush2.msra.mxu0 0.0
  %230 = vmatprep.mubr.f32.mxu0 0.0
  %231 = vmatmul.mubr.f32.gmra.mxu0 %v70
  %v232 = vpop.f32.mrf.mxu0
  %v233 = vadd.f32 %v148, %v232
  %v234 = vpop.f32.mrf.mxu0
  %235 = vmatprep.mubr.f32.mxu0 0.0
  %236 = vmatmul.mubr.f32.gmra.mxu0 %v73
  %v237 = vpop.f32.mrf.mxu0
  %v238 = vadd.f32 %v153, %v237
  %v239 = vpop.f32.mrf.mxu0
  %240 = vmatprep.mubr.f32.mxu0 0.0
  %241 = vmatmul.mubr.f32.gmra.mxu0 %v76
  %v242 = vpop.f32.mrf.mxu0
  %v243 = vadd.f32 %v158, %v242
  %v244 = vpop.f32.mrf.mxu0
  %245 = vmatprep.mubr.f32.mxu0 0.0
  %246 = vmatmul.mubr.f32.gmra.mxu0 %v79
  %v247 = vpop.f32.mrf.mxu0
  %v248 = vadd.f32 %v163, %v247
  %v249 = vpop.f32.mrf.mxu0
  %250 = vdwg.mxu0
  %v251 = vmax.f32 %v233, 0.0
  %v252 = vmax.f32 %v238, 0.0
  %v253 = vmax.f32 %v243, 0.0
  %v254 = vmax.f32 %v248, 0.0
  %v255 = vlaneseq
  %v256 = vshrl.u32 %v255, 7
  %v257 = vadd.s32 %v256, 8
  %v258 = vadd.s32 %v256, 16
  %v259 = vadd.s32 %v256, 24
  %v260 = vlaneseq
  %v261 = vand.u32 %v260, 127
  %v262 = vsub.s32 %v256, 1
  %v263 = vsub.s32 %v257, 1
  %v264 = vsub.s32 %v258, 1
  %v265 = vsub.s32 %v259, 1
  %vm266 = vcmp.eq.s32.totalorder %v261, %v262
  %vm267 = vcmp.eq.s32.totalorder %v261, %v263
  %vm268 = vcmp.eq.s32.totalorder %v261, %v264
  %vm269 = vcmp.eq.s32.totalorder %v261, %v265
  %vm270 = vcmp.lt.s32.totalorder %v256, 0
  %v271 = vsub.s32 0, %v256
  %v272 = vsel %vm270, %v271, %v256
  %v273 = vshrl.u32 %v272, 4
  %v274 = vand.u32 %v272, 15
  %v275 = vsub.s32 0, %v274
  %v276 = vsel %vm270, %v275, %v274
  %vm277 = vcmp.lt.s32.totalorder %v257, 0
  %v278 = vsub.s32 0, %v257
  %v279 = vsel %vm277, %v278, %v257
  %v280 = vshrl.u32 %v279, 4
  %v281 = vand.u32 %v279, 15
  %v282 = vsub.s32 0, %v281
  %v283 = vsel %vm277, %v282, %v281
  %vm284 = vcmp.lt.s32.totalorder %v258, 0
  %v285 = vsub.s32 0, %v258
  %v286 = vsel %vm284, %v285, %v258
  %v287 = vshrl.u32 %v286, 4
  %v288 = vand.u32 %v286, 15
  %v289 = vsub.s32 0, %v288
  %v290 = vsel %vm284, %v289, %v288
  %vm291 = vcmp.lt.s32.totalorder %v259, 0
  %v292 = vsub.s32 0, %v259
  %v293 = vsel %vm291, %v292, %v259
  %v294 = vshrl.u32 %v293, 4
  %v295 = vand.u32 %v293, 15
  %v296 = vsub.s32 0, %v295
  %v297 = vsel %vm291, %v296, %v295
  %vm298 = vcmp.ne.s32.totalorder %v276, 0
  %vm299 = vcmp.ne.s32.totalorder %v283, 0
  %vm300 = vcmp.ne.s32.totalorder %v290, 0
  %vm301 = vcmp.ne.s32.totalorder %v297, 0
  %vm302 = vcmp.lt.s32.totalorder %v276, 0
  %vm303 = vcmp.lt.s32.totalorder %v283, 0
  %vm304 = vcmp.lt.s32.totalorder %v290, 0
  %vm305 = vcmp.lt.s32.totalorder %v297, 0
  %vm306 = vmand %vm302, %vm298
  %vm307 = vmand %vm303, %vm299
  %vm308 = vmand %vm304, %vm300
  %vm309 = vmand %vm305, %vm301
  %v310 = vadd.s32 %v276, 16
  %v311 = vadd.s32 %v283, 16
  %v312 = vadd.s32 %v290, 16
  %v313 = vadd.s32 %v297, 16
  %v314 = vsel %vm306, %v310, %v276
  %v315 = vsel %vm307, %v311, %v283
  %v316 = vsel %vm308, %v312, %v290
  %v317 = vsel %vm309, %v313, %v297
  %vm318 = vcmp.ne.s32.totalorder %v314, 0
  %vm319 = vcmp.ne.s32.totalorder %v315, 0
  %vm320 = vcmp.ne.s32.totalorder %v316, 0
  %vm321 = vcmp.ne.s32.totalorder %v317, 0
  %vm322 = vmand %vm266, %vm318
  %vm323 = vmand %vm267, %vm319
  %vm324 = vmand %vm268, %vm320
  %vm325 = vmand %vm269, %vm321
  %v326 = vsel %vm322, 1, 0
  %v327 = vsel %vm323, 1, 0
  %v328 = vsel %vm324, 1, 0
  %v329 = vsel %vm325, 1, 0
  %v330 = vcvt.s32.f32 %v326
  %v331 = vcvt.s32.f32 %v327
  %v332 = vcvt.s32.f32 %v328
  %v333 = vcvt.s32.f32 %v329
  %v334 = vadd.s32 %v256, 1
  %v335 = vadd.s32 %v257, 1
  %v336 = vadd.s32 %v258, 1
  %v337 = vadd.s32 %v259, 1
  %vm338 = vcmp.eq.s32.totalorder %v261, %v334
  %vm339 = vcmp.eq.s32.totalorder %v261, %v335
  %vm340 = vcmp.eq.s32.totalorder %v261, %v336
  %vm341 = vcmp.eq.s32.totalorder %v261, %v337
  %vm342 = vcmp.ne.s32.totalorder %v314, 15
  %vm343 = vcmp.ne.s32.totalorder %v315, 15
  %vm344 = vcmp.ne.s32.totalorder %v316, 15
  %vm345 = vcmp.ne.s32.totalorder %v317, 15
  %vm346 = vmand %vm338, %vm342
  %vm347 = vmand %vm339, %vm343
  %vm348 = vmand %vm340, %vm344
  %vm349 = vmand %vm341, %vm345
  %v350 = vsel %vm346, 1, 0
  %v351 = vsel %vm347, 1, 0
  %v352 = vsel %vm348, 1, 0
  %v353 = vsel %vm349, 1, 0
  %v354 = vcvt.s32.f32 %v350
  %v355 = vcvt.s32.f32 %v351
  %v356 = vcvt.s32.f32 %v352
  %v357 = vcvt.s32.f32 %v353
  %v358 = vadd.s32 %v256, 32
  %v359 = vadd.s32 %v256, 40
  %v360 = vadd.s32 %v256, 48
  %v361 = vadd.s32 %v256, 56
  %vm362 = vcmp.lt.s32.totalorder %v256, 0
  %v363 = vsub.s32 0, %v256
  %v364 = vsel %vm362, %v363, %v256
  %v365 = vshrl.u32 %v364, 2
  %v366 = vand.u32 %v364, 3
  %v367 = vsub.s32 0, %v366
  %v368 = vsel %vm362, %v367, %v366
  %vm369 = vcmp.lt.s32.totalorder %v257, 0
  %v370 = vsub.s32 0, %v257
  %v371 = vsel %vm369, %v370, %v257
  %v372 = vshrl.u32 %v371, 2
  %v373 = vand.u32 %v371, 3
  %v374 = vsub.s32 0, %v373
  %v375 = vsel %vm369, %v374, %v373
  %vm376 = vcmp.lt.s32.totalorder %v258, 0
  %v377 = vsub.s32 0, %v258
  %v378 = vsel %vm376, %v377, %v258
  %v379 = vshrl.u32 %v378, 2
  %v380 = vand.u32 %v378, 3
  %v381 = vsub.s32 0, %v380
  %v382 = vsel %vm376, %v381, %v380
  %vm383 = vcmp.lt.s32.totalorder %v259, 0
  %v384 = vsub.s32 0, %v259
  %v385 = vsel %vm383, %v384, %v259
  %v386 = vshrl.u32 %v385, 2
  %v387 = vand.u32 %v385, 3
  %v388 = vsub.s32 0, %v387
  %v389 = vsel %vm383, %v388, %v387
  %vm390 = vcmp.lt.s32.totalorder %v358, 0
  %v391 = vsub.s32 0, %v358
  %v392 = vsel %vm390, %v391, %v358
  %v393 = vshrl.u32 %v392, 2
  %v394 = vand.u32 %v392, 3
  %v395 = vsub.s32 0, %v394
  %v396 = vsel %vm390, %v395, %v394
  %vm397 = vcmp.lt.s32.totalorder %v359, 0
  %v398 = vsub.s32 0, %v359
  %v399 = vsel %vm397, %v398, %v359
  %v400 = vshrl.u32 %v399, 2
  %v401 = vand.u32 %v399, 3
  %v402 = vsub.s32 0, %v401
  %v403 = vsel %vm397, %v402, %v401
  %vm404 = vcmp.lt.s32.totalorder %v360, 0
  %v405 = vsub.s32 0, %v360
  %v406 = vsel %vm404, %v405, %v360
  %v407 = vshrl.u32 %v406, 2
  %v408 = vand.u32 %v406, 3
  %v409 = vsub.s32 0, %v408
  %v410 = vsel %vm404, %v409, %v408
  %vm411 = vcmp.lt.s32.totalorder %v361, 0
  %v412 = vsub.s32 0, %v361
  %v413 = vsel %vm411, %v412, %v361
  %v414 = vshrl.u32 %v413, 2
  %v415 = vand.u32 %v413, 3
  %v416 = vsub.s32 0, %v415
  %v417 = vsel %vm411, %v416, %v415
  %vm418 = vcmp.ne.s32.totalorder %v368, 0
  %vm419 = vcmp.ne.s32.totalorder %v375, 0
  %vm420 = vcmp.ne.s32.totalorder %v382, 0
  %vm421 = vcmp.ne.s32.totalorder %v389, 0
  %vm422 = vcmp.ne.s32.totalorder %v396, 0
  %vm423 = vcmp.ne.s32.totalorder %v403, 0
  %vm424 = vcmp.ne.s32.totalorder %v410, 0
  %vm425 = vcmp.ne.s32.totalorder %v417, 0
  %vm426 = vcmp.lt.s32.totalorder %v368, 0
  %vm427 = vcmp.lt.s32.totalorder %v375, 0
  %vm428 = vcmp.lt.s32.totalorder %v382, 0
  %vm429 = vcmp.lt.s32.totalorder %v389, 0
  %vm430 = vcmp.lt.s32.totalorder %v396, 0
  %vm431 = vcmp.lt.s32.totalorder %v403, 0
  %vm432 = vcmp.lt.s32.totalorder %v410, 0
  %vm433 = vcmp.lt.s32.totalorder %v417, 0
  %vm434 = vmand %vm426, %vm418
  %vm435 = vmand %vm427, %vm419
  %vm436 = vmand %vm428, %vm420
  %vm437 = vmand %vm429, %vm421
  %vm438 = vmand %vm430, %vm422
  %vm439 = vmand %vm431, %vm423
  %vm440 = vmand %vm432, %vm424
  %vm441 = vmand %vm433, %vm425
  %v442 = vadd.s32 %v368, 4
  %v443 = vadd.s32 %v375, 4
  %v444 = vadd.s32 %v382, 4
  %v445 = vadd.s32 %v389, 4
  %v446 = vadd.s32 %v396, 4
  %v447 = vadd.s32 %v403, 4
  %v448 = vadd.s32 %v410, 4
  %v449 = vadd.s32 %v417, 4
  %v450 = vsel %vm434, %v442, %v368
  %v451 = vsel %vm435, %v443, %v375
  %v452 = vsel %vm436, %v444, %v382
  %v453 = vsel %vm437, %v445, %v389
  %v454 = vsel %vm438, %v446, %v396
  %v455 = vsel %vm439, %v447, %v403
  %v456 = vsel %vm440, %v448, %v410
  %v457 = vsel %vm441, %v449, %v417
  %vm458 = vcmp.eq.s32.totalorder %v450, %v261
  %vm459 = vcmp.eq.s32.totalorder %v451, %v261
  %vm460 = vcmp.eq.s32.totalorder %v452, %v261
  %vm461 = vcmp.eq.s32.totalorder %v453, %v261
  %vm462 = vcmp.eq.s32.totalorder %v454, %v261
  %vm463 = vcmp.eq.s32.totalorder %v455, %v261
  %vm464 = vcmp.eq.s32.totalorder %v456, %v261
  %vm465 = vcmp.eq.s32.totalorder %v457, %v261
  %v466 = vsel %vm458, 1, 0
  %v467 = vsel %vm459, 1, 0
  %v468 = vsel %vm460, 1, 0
  %v469 = vsel %vm461, 1, 0
  %v470 = vsel %vm462, 1, 0
  %v471 = vsel %vm463, 1, 0
  %v472 = vsel %vm464, 1, 0
  %v473 = vsel %vm465, 1, 0
  %v474 = vcvt.s32.f32 %v466
  %v475 = vcvt.s32.f32 %v467
  %v476 = vcvt.s32.f32 %v468
  %v477 = vcvt.s32.f32 %v469
  %v478 = vcvt.s32.f32 %v470
  %v479 = vcvt.s32.f32 %v471
  %v480 = vcvt.s32.f32 %v472
  %v481 = vcvt.s32.f32 %v473
  %vm482 = vcmp.lt.s32.totalorder %v261, 0
  %v483 = vsub.s32 0, %v261
  %v484 = vsel %vm482, %v483, %v261
  %v485 = vshrl.u32 %v484, 2
  %v486 = vand.u32 %v484, 3
  %v487 = vsub.s32 0, %v486
  %v488 = vsel %vm482, %v487, %v486
  %vm489 = vcmp.ne.s32.totalorder %v488, 0
  %vm490 = vcmp.lt.s32.totalorder %v488, 0
  %vm491 = vmand %vm490, %vm489
  %v492 = vadd.s32 %v488, 4
  %v493 = vsel %vm491, %v492, %v488
  %vm494 = vcmp.eq.s32.totalorder %v256, %v493
  %v495 = vsel %vm494, 1, 0
  %v496 = vcvt.s32.f32 %v495
  %v497 = vld [vmem:[%s1 + $0x160] sm:$0xff]
  %v498 = vld [vmem:[%s1 + $0x168] sm:$0xff]
  %v499 = vld [vmem:[%s1 + $0x170] sm:$0xff]
  %v500 = vld [vmem:[%s1 + $0x178] sm:$0xff]
  %v501 = vld [vmem:[%s1 + $0x180] sm:$0xff]
  %v502 = vld [vmem:[%s1 + $0x188] sm:$0xff]
  %v503 = vld [vmem:[%s1 + $0x190] sm:$0xff]
  %v504 = vld [vmem:[%s1 + $0x198] sm:$0xff]
  %v506 = vsel %vm68, %v330, 0
  %v509 = vsel %vm68, %v331, 0
  %v512 = vsel %vm68, %v332, 0
  %v515 = vsel %vm68, %v333, 0
  %517 = vmatprep.subr.mxu0 0.0
  %518 = vmatpush1.msra.mxu0 0.0
  %519 = vmatprep.subr.mxu0 0.0
  %520 = vmatpush1.msra.mxu0 0.0
  %521 = vmatprep.subr.mxu0 0.0
  %522 = vmatpush1.msra.mxu0 0.0
  %523 = vmatprep.subr.mxu0 0.0
  %524 = vmatpush1.msra.mxu0 0.0
  %525 = vmatprep.subr.mxu0 0.0
  %526 = vmatpush1.msra.mxu0 0.0
  %527 = vmatprep.subr.mxu0 0.0
  %528 = vmatpush1.msra.mxu0 0.0
  %529 = vmatprep.subr.mxu0 0.0
  %530 = vmatpush1.msra.mxu0 0.0
  %531 = vmatprep.subr.mxu0 0.0
  %532 = vmatpush1.msra.mxu0 0.0
  %533 = vmatprep.subr.mxu0 0.0
  %534 = vmatpush1.msra.mxu0 0.0
  %535 = vmatprep.subr.mxu0 0.0
  %536 = vmatpush1.msra.mxu0 0.0
  %537 = vmatprep.subr.mxu0 0.0
  %538 = vmatpush1.msra.mxu0 0.0
  %539 = vmatprep.subr.mxu0 0.0
  %540 = vmatpush1.msra.mxu0 0.0
  %541 = vmatprep.subr.mxu0 0.0
  %542 = vmatpush1.msra.mxu0 %v254
  %543 = vmatprep.subr.mxu0 0.0
  %544 = vmatpush1.msra.mxu0 %v253
  %545 = vmatprep.subr.mxu0 0.0
  %546 = vmatpush1.msra.mxu0 %v252
  %547 = vmatprep.subr.mxu0 0.0
  %548 = vmatpush1.msra.mxu0 %v251
  %549 = vmatprep.subr.mxu0 0.0
  %550 = vmatpush2.msra.mxu0 0.0
  %551 = vmatprep.subr.mxu0 0.0
  %552 = vmatpush2.msra.mxu0 0.0
  %553 = vmatprep.subr.mxu0 0.0
  %554 = vmatpush2.msra.mxu0 0.0
  %555 = vmatprep.subr.mxu0 0.0
  %556 = vmatpush2.msra.mxu0 0.0
  %557 = vmatprep.subr.mxu0 0.0
  %558 = vmatpush2.msra.mxu0 0.0
  %559 = vmatprep.subr.mxu0 0.0
  %560 = vmatpush2.msra.mxu0 0.0
  %561 = vmatprep.subr.mxu0 0.0
  %562 = vmatpush2.msra.mxu0 0.0
  %563 = vmatprep.subr.mxu0 0.0
  %564 = vmatpush2.msra.mxu0 0.0
  %565 = vmatprep.subr.mxu0 0.0
  %566 = vmatpush2.msra.mxu0 0.0
  %567 = vmatprep.subr.mxu0 0.0
  %568 = vmatpush2.msra.mxu0 0.0
  %569 = vmatprep.subr.mxu0 0.0
  %570 = vmatpush2.msra.mxu0 0.0
  %571 = vmatprep.subr.mxu0 0.0
  %572 = vmatpush2.msra.mxu0 0.0
  %573 = vmatprep.subr.mxu0 0.0
  %574 = vmatpush2.msra.mxu0 0.0
  %575 = vmatprep.subr.mxu0 0.0
  %576 = vmatpush2.msra.mxu0 0.0
  %577 = vmatprep.subr.mxu0 0.0
  %578 = vmatpush2.msra.mxu0 0.0
  %579 = vmatprep.subr.mxu0 0.0
  %580 = vmatpush2.msra.mxu0 0.0
  %581 = vmatprep.mubr.f32.mxu0 0.0
  %582 = vmatmul.mubr.f32.gmra.mxu0 %v506
  %v583 = vpop.f32.mrf.mxu0
  %v584 = vadd.f32 0.0, %v583
  %v585 = vpop.f32.mrf.mxu0
  %586 = vmatprep.mubr.f32.mxu0 0.0
  %587 = vmatmul.mubr.f32.gmra.mxu0 %v509
  %v588 = vpop.f32.mrf.mxu0
  %v589 = vadd.f32 0.0, %v588
  %v590 = vpop.f32.mrf.mxu0
  %591 = vmatprep.mubr.f32.mxu0 0.0
  %592 = vmatmul.mubr.f32.gmra.mxu0 %v512
  %v593 = vpop.f32.mrf.mxu0
  %v594 = vadd.f32 0.0, %v593
  %v595 = vpop.f32.mrf.mxu0
  %596 = vmatprep.mubr.f32.mxu0 0.0
  %597 = vmatmul.mubr.f32.gmra.mxu0 %v515
  %v598 = vpop.f32.mrf.mxu0
  %v599 = vadd.f32 0.0, %v598
  %v600 = vpop.f32.mrf.mxu0
  %601 = vdwg.mxu0
  %v602 = vld [vmem:[%s1 + $0x120] sm:$0xff]
  %v603 = vld [vmem:[%s1 + $0x128] sm:$0xff]
  %v604 = vld [vmem:[%s1 + $0x130] sm:$0xff]
  %v605 = vld [vmem:[%s1 + $0x138] sm:$0xff]
  %v606 = vld [vmem:[%s1 + $0x140] sm:$0xff]
  %v607 = vld [vmem:[%s1 + $0x148] sm:$0xff]
  %v608 = vld [vmem:[%s1 + $0x150] sm:$0xff]
  %v609 = vld [vmem:[%s1 + $0x158] sm:$0xff]
  %vm610 = vcmask 523264
  %v612 = vsel %vm610, %v584, 0
  %v615 = vsel %vm610, %v589, 0
  %v618 = vsel %vm610, %v594, 0
  %v621 = vsel %vm610, %v599, 0
  %623 = vmatprep.subr.mxu0 0.0
  %624 = vmatpush1.msra.mxu0 0.0
  %625 = vmatprep.subr.mxu0 0.0
  %626 = vmatpush1.msra.mxu0 0.0
  %627 = vmatprep.subr.mxu0 0.0
  %628 = vmatpush1.msra.mxu0 0.0
  %629 = vmatprep.subr.mxu0 0.0
  %630 = vmatpush1.msra.mxu0 0.0
  %631 = vmatprep.subr.mxu0 0.0
  %632 = vmatpush1.msra.mxu0 0.0
  %633 = vmatprep.subr.mxu0 0.0
  %634 = vmatpush1.msra.mxu0 0.0
  %635 = vmatprep.subr.mxu0 0.0
  %636 = vmatpush1.msra.mxu0 0.0
  %637 = vmatprep.subr.mxu0 0.0
  %638 = vmatpush1.msra.mxu0 0.0
  %639 = vmatprep.subr.mxu0 0.0
  %640 = vmatpush1.msra.mxu0 %v609
  %641 = vmatprep.subr.mxu0 0.0
  %642 = vmatpush1.msra.mxu0 %v608
  %643 = vmatprep.subr.mxu0 0.0
  %644 = vmatpush1.msra.mxu0 %v607
  %645 = vmatprep.subr.mxu0 0.0
  %646 = vmatpush1.msra.mxu0 %v606
  %647 = vmatprep.subr.mxu0 0.0
  %648 = vmatpush1.msra.mxu0 %v605
  %649 = vmatprep.subr.mxu0 0.0
  %650 = vmatpush1.msra.mxu0 %v604
  %651 = vmatprep.subr.mxu0 0.0
  %652 = vmatpush1.msra.mxu0 %v603
  %653 = vmatprep.subr.mxu0 0.0
  %654 = vmatpush1.msra.mxu0 %v602
  %655 = vmatprep.subr.mxu0 0.0
  %656 = vmatpush2.msra.mxu0 0.0
  %657 = vmatprep.subr.mxu0 0.0
  %658 = vmatpush2.msra.mxu0 0.0
  %659 = vmatprep.subr.mxu0 0.0
  %660 = vmatpush2.msra.mxu0 0.0
  %661 = vmatprep.subr.mxu0 0.0
  %662 = vmatpush2.msra.mxu0 0.0
  %663 = vmatprep.subr.mxu0 0.0
  %664 = vmatpush2.msra.mxu0 0.0
  %665 = vmatprep.subr.mxu0 0.0
  %666 = vmatpush2.msra.mxu0 0.0
  %667 = vmatprep.subr.mxu0 0.0
  %668 = vmatpush2.msra.mxu0 0.0
  %669 = vmatprep.subr.mxu0 0.0
  %670 = vmatpush2.msra.mxu0 0.0
  %671 = vmatprep.subr.mxu0 0.0
  %672 = vmatpush2.msra.mxu0 0.0
  %673 = vmatprep.subr.mxu0 0.0
  %674 = vmatpush2.msra.mxu0 0.0
  %675 = vmatprep.subr.mxu0 0.0
  %676 = vmatpush2.msra.mxu0 0.0
  %677 = vmatprep.subr.mxu0 0.0
  %678 = vmatpush2.msra.mxu0 0.0
  %679 = vmatprep.subr.mxu0 0.0
  %680 = vmatpush2.msra.mxu0 0.0
  %681 = vmatprep.subr.mxu0 0.0
  %682 = vmatpush2.msra.mxu0 0.0
  %683 = vmatprep.subr.mxu0 0.0
  %684 = vmatpush2.msra.mxu0 0.0
  %685 = vmatprep.subr.mxu0 0.0
  %686 = vmatpush2.msra.mxu0 0.0
  %687 = vmatprep.mubr.f32.mxu0 0.0
  %688 = vmatmul.mubr.f32.gmra.mxu0 %v612
  %v689 = vpop.f32.mrf.mxu0
  %v690 = vadd.f32 0.0, %v689
  %v691 = vpop.f32.mrf.mxu0
  %692 = vmatprep.mubr.f32.mxu0 0.0
  %693 = vmatmul.mubr.f32.gmra.mxu0 %v615
  %v694 = vpop.f32.mrf.mxu0
  %v695 = vadd.f32 0.0, %v694
  %v696 = vpop.f32.mrf.mxu0
  %697 = vmatprep.mubr.f32.mxu0 0.0
  %698 = vmatmul.mubr.f32.gmra.mxu0 %v618
  %v699 = vpop.f32.mrf.mxu0
  %v700 = vadd.f32 0.0, %v699
  %v701 = vpop.f32.mrf.mxu0
  %702 = vmatprep.mubr.f32.mxu0 0.0
  %703 = vmatmul.mubr.f32.gmra.mxu0 %v621
  %v704 = vpop.f32.mrf.mxu0
  %v705 = vadd.f32 0.0, %v704
  %v706 = vpop.f32.mrf.mxu0
  %707 = vdwg.mxu0
  %v709 = vsel %vm610, %v251, 0
  %v712 = vsel %vm610, %v252, 0
  %v715 = vsel %vm610, %v253, 0
  %v718 = vsel %vm610, %v254, 0
  %720 = vmatprep.subr.mxu0 0.0
  %721 = vmatpush1.msra.mxu0 0.0
  %722 = vmatprep.subr.mxu0 0.0
  %723 = vmatpush1.msra.mxu0 0.0
  %724 = vmatprep.subr.mxu0 0.0
  %725 = vmatpush1.msra.mxu0 0.0
  %726 = vmatprep.subr.mxu0 0.0
  %727 = vmatpush1.msra.mxu0 0.0
  %728 = vmatprep.subr.mxu0 0.0
  %729 = vmatpush1.msra.mxu0 0.0
  %730 = vmatprep.subr.mxu0 0.0
  %731 = vmatpush1.msra.mxu0 0.0
  %732 = vmatprep.subr.mxu0 0.0
  %733 = vmatpush1.msra.mxu0 0.0
  %734 = vmatprep.subr.mxu0 0.0
  %735 = vmatpush1.msra.mxu0 0.0
  %736 = vmatprep.subr.mxu0 0.0
  %737 = vmatpush1.msra.mxu0 %v504
  %738 = vmatprep.subr.mxu0 0.0
  %739 = vmatpush1.msra.mxu0 %v503
  %740 = vmatprep.subr.mxu0 0.0
  %741 = vmatpush1.msra.mxu0 %v502
  %742 = vmatprep.subr.mxu0 0.0
  %743 = vmatpush1.msra.mxu0 %v501
  %744 = vmatprep.subr.mxu0 0.0
  %745 = vmatpush1.msra.mxu0 %v500
  %746 = vmatprep.subr.mxu0 0.0
  %747 = vmatpush1.msra.mxu0 %v499
  %748 = vmatprep.subr.mxu0 0.0
  %749 = vmatpush1.msra.mxu0 %v498
  %750 = vmatprep.subr.mxu0 0.0
  %751 = vmatpush1.msra.mxu0 %v497
  %752 = vmatprep.subr.mxu0 0.0
  %753 = vmatpush2.msra.mxu0 0.0
  %754 = vmatprep.subr.mxu0 0.0
  %755 = vmatpush2.msra.mxu0 0.0
  %756 = vmatprep.subr.mxu0 0.0
  %757 = vmatpush2.msra.mxu0 0.0
  %758 = vmatprep.subr.mxu0 0.0
  %759 = vmatpush2.msra.mxu0 0.0
  %760 = vmatprep.subr.mxu0 0.0
  %761 = vmatpush2.msra.mxu0 0.0
  %762 = vmatprep.subr.mxu0 0.0
  %763 = vmatpush2.msra.mxu0 0.0
  %764 = vmatprep.subr.mxu0 0.0
  %765 = vmatpush2.msra.mxu0 0.0
  %766 = vmatprep.subr.mxu0 0.0
  %767 = vmatpush2.msra.mxu0 0.0
  %768 = vmatprep.subr.mxu0 0.0
  %769 = vmatpush2.msra.mxu0 0.0
  %770 = vmatprep.subr.mxu0 0.0
  %771 = vmatpush2.msra.mxu0 0.0
  %772 = vmatprep.subr.mxu0 0.0
  %773 = vmatpush2.msra.mxu0 0.0
  %774 = vmatprep.subr.mxu0 0.0
  %775 = vmatpush2.msra.mxu0 0.0
  %776 = vmatprep.subr.mxu0 0.0
  %777 = vmatpush2.msra.mxu0 0.0
  %778 = vmatprep.subr.mxu0 0.0
  %779 = vmatpush2.msra.mxu0 0.0
  %780 = vmatprep.subr.mxu0 0.0
  %781 = vmatpush2.msra.mxu0 0.0
  %782 = vmatprep.subr.mxu0 0.0
  %783 = vmatpush2.msra.mxu0 0.0
  %784 = vmatprep.mubr.f32.mxu0 0.0
  %785 = vmatmul.mubr.f32.gmra.mxu0 %v709
  %v786 = vpop.f32.mrf.mxu0
  %v787 = vadd.f32 %v690, %v786
  %v788 = vpop.f32.mrf.mxu0
  %789 = vmatprep.mubr.f32.mxu0 0.0
  %790 = vmatmul.mubr.f32.gmra.mxu0 %v712
  %v791 = vpop.f32.mrf.mxu0
  %v792 = vadd.f32 %v695, %v791
  %v793 = vpop.f32.mrf.mxu0
  %794 = vmatprep.mubr.f32.mxu0 0.0
  %795 = vmatmul.mubr.f32.gmra.mxu0 %v715
  %v796 = vpop.f32.mrf.mxu0
  %v797 = vadd.f32 %v700, %v796
  %v798 = vpop.f32.mrf.mxu0
  %799 = vmatprep.mubr.f32.mxu0 0.0
  %800 = vmatmul.mubr.f32.gmra.mxu0 %v718
  %v801 = vpop.f32.mrf.mxu0
  %v802 = vadd.f32 %v705, %v801
  %v803 = vpop.f32.mrf.mxu0
  %804 = vdwg.mxu0
  %v806 = vsel %vm68, %v354, 0
  %v809 = vsel %vm68, %v355, 0
  %v812 = vsel %vm68, %v356, 0
  %v815 = vsel %vm68, %v357, 0
  %817 = vmatprep.subr.mxu0 0.0
  %818 = vmatpush1.msra.mxu0 0.0
  %819 = vmatprep.subr.mxu0 0.0
  %820 = vmatpush1.msra.mxu0 0.0
  %821 = vmatprep.subr.mxu0 0.0
  %822 = vmatpush1.msra.mxu0 0.0
  %823 = vmatprep.subr.mxu0 0.0
  %824 = vmatpush1.msra.mxu0 0.0
  %825 = vmatprep.subr.mxu0 0.0
  %826 = vmatpush1.msra.mxu0 0.0
  %827 = vmatprep.subr.mxu0 0.0
  %828 = vmatpush1.msra.mxu0 0.0
  %829 = vmatprep.subr.mxu0 0.0
  %830 = vmatpush1.msra.mxu0 0.0
  %831 = vmatprep.subr.mxu0 0.0
  %832 = vmatpush1.msra.mxu0 0.0
  %833 = vmatprep.subr.mxu0 0.0
  %834 = vmatpush1.msra.mxu0 0.0
  %835 = vmatprep.subr.mxu0 0.0
  %836 = vmatpush1.msra.mxu0 0.0
  %837 = vmatprep.subr.mxu0 0.0
  %838 = vmatpush1.msra.mxu0 0.0
  %839 = vmatprep.subr.mxu0 0.0
  %840 = vmatpush1.msra.mxu0 0.0
  %841 = vmatprep.subr.mxu0 0.0
  %842 = vmatpush1.msra.mxu0 %v254
  %843 = vmatprep.subr.mxu0 0.0
  %844 = vmatpush1.msra.mxu0 %v253
  %845 = vmatprep.subr.mxu0 0.0
  %846 = vmatpush1.msra.mxu0 %v252
  %847 = vmatprep.subr.mxu0 0.0
  %848 = vmatpush1.msra.mxu0 %v251
  %849 = vmatprep.subr.mxu0 0.0
  %850 = vmatpush2.msra.mxu0 0.0
  %851 = vmatprep.subr.mxu0 0.0
  %852 = vmatpush2.msra.mxu0 0.0
  %853 = vmatprep.subr.mxu0 0.0
  %854 = vmatpush2.msra.mxu0 0.0
  %855 = vmatprep.subr.mxu0 0.0
  %856 = vmatpush2.msra.mxu0 0.0
  %857 = vmatprep.subr.mxu0 0.0
  %858 = vmatpush2.msra.mxu0 0.0
  %859 = vmatprep.subr.mxu0 0.0
  %860 = vmatpush2.msra.mxu0 0.0
  %861 = vmatprep.subr.mxu0 0.0
  %862 = vmatpush2.msra.mxu0 0.0
  %863 = vmatprep.subr.mxu0 0.0
  %864 = vmatpush2.msra.mxu0 0.0
  %865 = vmatprep.subr.mxu0 0.0
  %866 = vmatpush2.msra.mxu0 0.0
  %867 = vmatprep.subr.mxu0 0.0
  %868 = vmatpush2.msra.mxu0 0.0
  %869 = vmatprep.subr.mxu0 0.0
  %870 = vmatpush2.msra.mxu0 0.0
  %871 = vmatprep.subr.mxu0 0.0
  %872 = vmatpush2.msra.mxu0 0.0
  %873 = vmatprep.subr.mxu0 0.0
  %874 = vmatpush2.msra.mxu0 0.0
  %875 = vmatprep.subr.mxu0 0.0
  %876 = vmatpush2.msra.mxu0 0.0
  %877 = vmatprep.subr.mxu0 0.0
  %878 = vmatpush2.msra.mxu0 0.0
  %879 = vmatprep.subr.mxu0 0.0
  %880 = vmatpush2.msra.mxu0 0.0
  %881 = vmatprep.mubr.f32.mxu0 0.0
  %882 = vmatmul.mubr.f32.gmra.mxu0 %v806
  %v883 = vpop.f32.mrf.mxu0
  %v884 = vadd.f32 0.0, %v883
  %v885 = vpop.f32.mrf.mxu0
  %886 = vmatprep.mubr.f32.mxu0 0.0
  %887 = vmatmul.mubr.f32.gmra.mxu0 %v809
  %v888 = vpop.f32.mrf.mxu0
  %v889 = vadd.f32 0.0, %v888
  %v890 = vpop.f32.mrf.mxu0
  %891 = vmatprep.mubr.f32.mxu0 0.0
  %892 = vmatmul.mubr.f32.gmra.mxu0 %v812
  %v893 = vpop.f32.mrf.mxu0
  %v894 = vadd.f32 0.0, %v893
  %v895 = vpop.f32.mrf.mxu0
  %896 = vmatprep.mubr.f32.mxu0 0.0
  %897 = vmatmul.mubr.f32.gmra.mxu0 %v815
  %v898 = vpop.f32.mrf.mxu0
  %v899 = vadd.f32 0.0, %v898
  %v900 = vpop.f32.mrf.mxu0
  %901 = vdwg.mxu0
  %v902 = vld [vmem:[%s1 + $0x1a0] sm:$0xff]
  %v903 = vld [vmem:[%s1 + $0x1a8] sm:$0xff]
  %v904 = vld [vmem:[%s1 + $0x1b0] sm:$0xff]
  %v905 = vld [vmem:[%s1 + $0x1b8] sm:$0xff]
  %v906 = vld [vmem:[%s1 + $0x1c0] sm:$0xff]
  %v907 = vld [vmem:[%s1 + $0x1c8] sm:$0xff]
  %v908 = vld [vmem:[%s1 + $0x1d0] sm:$0xff]
  %v909 = vld [vmem:[%s1 + $0x1d8] sm:$0xff]
  %v911 = vsel %vm610, %v884, 0
  %v914 = vsel %vm610, %v889, 0
  %v917 = vsel %vm610, %v894, 0
  %v920 = vsel %vm610, %v899, 0
  %922 = vmatprep.subr.mxu0 0.0
  %923 = vmatpush1.msra.mxu0 0.0
  %924 = vmatprep.subr.mxu0 0.0
  %925 = vmatpush1.msra.mxu0 0.0
  %926 = vmatprep.subr.mxu0 0.0
  %927 = vmatpush1.msra.mxu0 0.0
  %928 = vmatprep.subr.mxu0 0.0
  %929 = vmatpush1.msra.mxu0 0.0
  %930 = vmatprep.subr.mxu0 0.0
  %931 = vmatpush1.msra.mxu0 0.0
  %932 = vmatprep.subr.mxu0 0.0
  %933 = vmatpush1.msra.mxu0 0.0
  %934 = vmatprep.subr.mxu0 0.0
  %935 = vmatpush1.msra.mxu0 0.0
  %936 = vmatprep.subr.mxu0 0.0
  %937 = vmatpush1.msra.mxu0 0.0
  %938 = vmatprep.subr.mxu0 0.0
  %939 = vmatpush1.msra.mxu0 %v909
  %940 = vmatprep.subr.mxu0 0.0
  %941 = vmatpush1.msra.mxu0 %v908
  %942 = vmatprep.subr.mxu0 0.0
  %943 = vmatpush1.msra.mxu0 %v907
  %944 = vmatprep.subr.mxu0 0.0
  %945 = vmatpush1.msra.mxu0 %v906
  %946 = vmatprep.subr.mxu0 0.0
  %947 = vmatpush1.msra.mxu0 %v905
  %948 = vmatprep.subr.mxu0 0.0
  %949 = vmatpush1.msra.mxu0 %v904
  %950 = vmatprep.subr.mxu0 0.0
  %951 = vmatpush1.msra.mxu0 %v903
  %952 = vmatprep.subr.mxu0 0.0
  %953 = vmatpush1.msra.mxu0 %v902
  %954 = vmatprep.subr.mxu0 0.0
  %955 = vmatpush2.msra.mxu0 0.0
  %956 = vmatprep.subr.mxu0 0.0
  %957 = vmatpush2.msra.mxu0 0.0
  %958 = vmatprep.subr.mxu0 0.0
  %959 = vmatpush2.msra.mxu0 0.0
  %960 = vmatprep.subr.mxu0 0.0
  %961 = vmatpush2.msra.mxu0 0.0
  %962 = vmatprep.subr.mxu0 0.0
  %963 = vmatpush2.msra.mxu0 0.0
  %964 = vmatprep.subr.mxu0 0.0
  %965 = vmatpush2.msra.mxu0 0.0
  %966 = vmatprep.subr.mxu0 0.0
  %967 = vmatpush2.msra.mxu0 0.0
  %968 = vmatprep.subr.mxu0 0.0
  %969 = vmatpush2.msra.mxu0 0.0
  %970 = vmatprep.subr.mxu0 0.0
  %971 = vmatpush2.msra.mxu0 0.0
  %972 = vmatprep.subr.mxu0 0.0
  %973 = vmatpush2.msra.mxu0 0.0
  %974 = vmatprep.subr.mxu0 0.0
  %975 = vmatpush2.msra.mxu0 0.0
  %976 = vmatprep.subr.mxu0 0.0
  %977 = vmatpush2.msra.mxu0 0.0
  %978 = vmatprep.subr.mxu0 0.0
  %979 = vmatpush2.msra.mxu0 0.0
  %980 = vmatprep.subr.mxu0 0.0
  %981 = vmatpush2.msra.mxu0 0.0
  %982 = vmatprep.subr.mxu0 0.0
  %983 = vmatpush2.msra.mxu0 0.0
  %984 = vmatprep.subr.mxu0 0.0
  %985 = vmatpush2.msra.mxu0 0.0
  %986 = vmatprep.mubr.f32.mxu0 0.0
  %987 = vmatmul.mubr.f32.gmra.mxu0 %v911
  %v988 = vpop.f32.mrf.mxu0
  %v989 = vadd.f32 0.0, %v988
  %v990 = vpop.f32.mrf.mxu0
  %991 = vmatprep.mubr.f32.mxu0 0.0
  %992 = vmatmul.mubr.f32.gmra.mxu0 %v914
  %v993 = vpop.f32.mrf.mxu0
  %v994 = vadd.f32 0.0, %v993
  %v995 = vpop.f32.mrf.mxu0
  %996 = vmatprep.mubr.f32.mxu0 0.0
  %997 = vmatmul.mubr.f32.gmra.mxu0 %v917
  %v998 = vpop.f32.mrf.mxu0
  %v999 = vadd.f32 0.0, %v998
  %v1000 = vpop.f32.mrf.mxu0
  %1001 = vmatprep.mubr.f32.mxu0 0.0
  %1002 = vmatmul.mubr.f32.gmra.mxu0 %v920
  %v1003 = vpop.f32.mrf.mxu0
  %v1004 = vadd.f32 0.0, %v1003
  %v1005 = vpop.f32.mrf.mxu0
  %1006 = vdwg.mxu0
  %v1007 = vadd.f32 %v787, %v989
  %v1008 = vadd.f32 %v792, %v994
  %v1009 = vadd.f32 %v797, %v999
  %v1010 = vadd.f32 %v802, %v1004
  %v1011 = vsel %vm610, %v1007, 0.0
  %v1012 = vsel %vm610, %v1008, 0.0
  %v1013 = vadd.f32 %v1011, %v1012
  %v1014 = vsel %vm610, %v1009, 0.0
  %v1015 = vadd.f32 %v1013, %v1014
  %v1016 = vsel %vm610, %v1010, 0.0
  %v1017 = vadd.f32 %v1015, %v1016
  %v1018 = vrot.slane %v1017, 4
  %v1019 = vadd.f32 %v1017, %v1018
  %v1020 = vrot.slane %v1019, 2
  %v1021 = vadd.f32 %v1019, %v1020
  %v1022 = vrot.slane %v1021, 1
  %v1023 = vadd.f32 %v1021, %v1022
  %v1025 = vsel %vm610, %v1023, 0
  %1027 = vmatprep.subr.mxu0 0.0
  %1028 = vmatpush1.msra.mxu0 0.0
  %1029 = vmatprep.subr.mxu0 0.0
  %1030 = vmatpush1.msra.mxu0 0.0
  %1031 = vmatprep.subr.mxu0 0.0
  %1032 = vmatpush1.msra.mxu0 0.0
  %1033 = vmatprep.subr.mxu0 0.0
  %1034 = vmatpush1.msra.mxu0 0.0
  %1035 = vmatprep.subr.mxu0 0.0
  %1036 = vmatpush1.msra.mxu0 0.0
  %1037 = vmatprep.subr.mxu0 0.0
  %1038 = vmatpush1.msra.mxu0 0.0
  %1039 = vmatprep.subr.mxu0 0.0
  %1040 = vmatpush1.msra.mxu0 0.0
  %1041 = vmatprep.subr.mxu0 0.0
  %1042 = vmatpush1.msra.mxu0 0.0
  %1043 = vmatprep.subr.mxu0 0.0
  %1044 = vmatpush1.msra.mxu0 %v481
  %1045 = vmatprep.subr.mxu0 0.0
  %1046 = vmatpush1.msra.mxu0 %v480
  %1047 = vmatprep.subr.mxu0 0.0
  %1048 = vmatpush1.msra.mxu0 %v479
  %1049 = vmatprep.subr.mxu0 0.0
  %1050 = vmatpush1.msra.mxu0 %v478
  %1051 = vmatprep.subr.mxu0 0.0
  %1052 = vmatpush1.msra.mxu0 %v477
  %1053 = vmatprep.subr.mxu0 0.0
  %1054 = vmatpush1.msra.mxu0 %v476
  %1055 = vmatprep.subr.mxu0 0.0
  %1056 = vmatpush1.msra.mxu0 %v475
  %1057 = vmatprep.subr.mxu0 0.0
  %1058 = vmatpush1.msra.mxu0 %v474
  %1059 = vmatprep.subr.mxu0 0.0
  %1060 = vmatpush2.msra.mxu0 0.0
  %1061 = vmatprep.subr.mxu0 0.0
  %1062 = vmatpush2.msra.mxu0 0.0
  %1063 = vmatprep.subr.mxu0 0.0
  %1064 = vmatpush2.msra.mxu0 0.0
  %1065 = vmatprep.subr.mxu0 0.0
  %1066 = vmatpush2.msra.mxu0 0.0
  %1067 = vmatprep.subr.mxu0 0.0
  %1068 = vmatpush2.msra.mxu0 0.0
  %1069 = vmatprep.subr.mxu0 0.0
  %1070 = vmatpush2.msra.mxu0 0.0
  %1071 = vmatprep.subr.mxu0 0.0
  %1072 = vmatpush2.msra.mxu0 0.0
  %1073 = vmatprep.subr.mxu0 0.0
  %1074 = vmatpush2.msra.mxu0 0.0
  %1075 = vmatprep.subr.mxu0 0.0
  %1076 = vmatpush2.msra.mxu0 0.0
  %1077 = vmatprep.subr.mxu0 0.0
  %1078 = vmatpush2.msra.mxu0 0.0
  %1079 = vmatprep.subr.mxu0 0.0
  %1080 = vmatpush2.msra.mxu0 0.0
  %1081 = vmatprep.subr.mxu0 0.0
  %1082 = vmatpush2.msra.mxu0 0.0
  %1083 = vmatprep.subr.mxu0 0.0
  %1084 = vmatpush2.msra.mxu0 0.0
  %1085 = vmatprep.subr.mxu0 0.0
  %1086 = vmatpush2.msra.mxu0 0.0
  %1087 = vmatprep.subr.mxu0 0.0
  %1088 = vmatpush2.msra.mxu0 0.0
  %1089 = vmatprep.subr.mxu0 0.0
  %1090 = vmatpush2.msra.mxu0 0.0
  %1091 = vmatprep.mubr.f32.mxu0 0.0
  %1092 = vmatmul.mubr.f32.gmra.mxu0 %v1025
  %v1093 = vpop.f32.mrf.mxu0
  %v1094 = vadd.f32 0.0, %v1093
  %v1095 = vpop.f32.mrf.mxu0
  %1096 = vdwg.mxu0
  %v1097 = vmul.f32 %v1094, 0.001953125
  %vm1098 = vcmask 31744
  %v1100 = vsel %vm1098, %v1097, 0
  %vm1102 = vcmask 1043456
  %v1104 = vsel %vm1102, %v496, 0
  %1106 = vmatprep.subr.mxu0 0.0
  %1107 = vmatpush1.msra.mxu0 0.0
  %1108 = vmatprep.subr.mxu0 0.0
  %1109 = vmatpush1.msra.mxu0 0.0
  %1110 = vmatprep.subr.mxu0 0.0
  %1111 = vmatpush1.msra.mxu0 0.0
  %1112 = vmatprep.subr.mxu0 0.0
  %1113 = vmatpush1.msra.mxu0 0.0
  %1114 = vmatprep.subr.mxu0 0.0
  %1115 = vmatpush1.msra.mxu0 0.0
  %1116 = vmatprep.subr.mxu0 0.0
  %1117 = vmatpush1.msra.mxu0 0.0
  %1118 = vmatprep.subr.mxu0 0.0
  %1119 = vmatpush1.msra.mxu0 0.0
  %1120 = vmatprep.subr.mxu0 0.0
  %1121 = vmatpush1.msra.mxu0 0.0
  %1122 = vmatprep.subr.mxu0 0.0
  %1123 = vmatpush1.msra.mxu0 0.0
  %1124 = vmatprep.subr.mxu0 0.0
  %1125 = vmatpush1.msra.mxu0 0.0
  %1126 = vmatprep.subr.mxu0 0.0
  %1127 = vmatpush1.msra.mxu0 0.0
  %1128 = vmatprep.subr.mxu0 0.0
  %1129 = vmatpush1.msra.mxu0 0.0
  %1130 = vmatprep.subr.mxu0 0.0
  %1131 = vmatpush1.msra.mxu0 0.0
  %1132 = vmatprep.subr.mxu0 0.0
  %1133 = vmatpush1.msra.mxu0 0.0
  %1134 = vmatprep.subr.mxu0 0.0
  %1135 = vmatpush1.msra.mxu0 0.0
  %1136 = vmatprep.subr.mxu0 0.0
  %1137 = vmatpush1.msra.mxu0 %v1104
  %1138 = vmatprep.subr.mxu0 0.0
  %1139 = vmatpush2.msra.mxu0 0.0
  %1140 = vmatprep.subr.mxu0 0.0
  %1141 = vmatpush2.msra.mxu0 0.0
  %1142 = vmatprep.subr.mxu0 0.0
  %1143 = vmatpush2.msra.mxu0 0.0
  %1144 = vmatprep.subr.mxu0 0.0
  %1145 = vmatpush2.msra.mxu0 0.0
  %1146 = vmatprep.subr.mxu0 0.0
  %1147 = vmatpush2.msra.mxu0 0.0
  %1148 = vmatprep.subr.mxu0 0.0
  %1149 = vmatpush2.msra.mxu0 0.0
  %1150 = vmatprep.subr.mxu0 0.0
  %1151 = vmatpush2.msra.mxu0 0.0
  %1152 = vmatprep.subr.mxu0 0.0
  %1153 = vmatpush2.msra.mxu0 0.0
  %1154 = vmatprep.subr.mxu0 0.0
  %1155 = vmatpush2.msra.mxu0 0.0
  %1156 = vmatprep.subr.mxu0 0.0
  %1157 = vmatpush2.msra.mxu0 0.0
  %1158 = vmatprep.subr.mxu0 0.0
  %1159 = vmatpush2.msra.mxu0 0.0
  %1160 = vmatprep.subr.mxu0 0.0
  %1161 = vmatpush2.msra.mxu0 0.0
  %1162 = vmatprep.subr.mxu0 0.0
  %1163 = vmatpush2.msra.mxu0 0.0
  %1164 = vmatprep.subr.mxu0 0.0
  %1165 = vmatpush2.msra.mxu0 0.0
  %1166 = vmatprep.subr.mxu0 0.0
  %1167 = vmatpush2.msra.mxu0 0.0
  %1168 = vmatprep.subr.mxu0 0.0
  %1169 = vmatpush2.msra.mxu0 0.0
  %1170 = vmatprep.mubr.f32.mxu0 0.0
  %1171 = vmatmul.mubr.f32.gmra.mxu0 %v1100
  %v1172 = vpop.f32.mrf.mxu0
  %v1173 = vadd.f32 0.0, %v1172
  %v1174 = vpop.f32.mrf.mxu0
  %1175 = vdwg.mxu0
  %v1176 = vlaneseq
  %v1177 = vshrl.u32 %v1176, 7
  %v1178 = vsub.s32 0, %v1177
  %v1179 = vrot.slane %v1173, %v1178
  %v1180 = vsub.f32 %v1007, %v1179
  %v1181 = vsub.f32 %v1008, %v1179
  %v1182 = vsub.f32 %v1009, %v1179
  %v1183 = vsub.f32 %v1010, %v1179
  %v1184 = vmul.f32 %v1180, %v1180
  %v1185 = vmul.f32 %v1181, %v1181
  %v1186 = vmul.f32 %v1182, %v1182
  %v1187 = vmul.f32 %v1183, %v1183
  %v1188 = vsel %vm610, %v1184, 0.0
  %v1189 = vsel %vm610, %v1185, 0.0
  %v1190 = vadd.f32 %v1188, %v1189
  %v1191 = vsel %vm610, %v1186, 0.0
  %v1192 = vadd.f32 %v1190, %v1191
  %v1193 = vsel %vm610, %v1187, 0.0
  %v1194 = vadd.f32 %v1192, %v1193
  %v1195 = vrot.slane %v1194, 4
  %v1196 = vadd.f32 %v1194, %v1195
  %v1197 = vrot.slane %v1196, 2
  %v1198 = vadd.f32 %v1196, %v1197
  %v1199 = vrot.slane %v1198, 1
  %v1200 = vadd.f32 %v1198, %v1199
  %v1202 = vsel %vm610, %v1200, 0
  %1204 = vmatprep.subr.mxu0 0.0
  %1205 = vmatpush1.msra.mxu0 0.0
  %1206 = vmatprep.subr.mxu0 0.0
  %1207 = vmatpush1.msra.mxu0 0.0
  %1208 = vmatprep.subr.mxu0 0.0
  %1209 = vmatpush1.msra.mxu0 0.0
  %1210 = vmatprep.subr.mxu0 0.0
  %1211 = vmatpush1.msra.mxu0 0.0
  %1212 = vmatprep.subr.mxu0 0.0
  %1213 = vmatpush1.msra.mxu0 0.0
  %1214 = vmatprep.subr.mxu0 0.0
  %1215 = vmatpush1.msra.mxu0 0.0
  %1216 = vmatprep.subr.mxu0 0.0
  %1217 = vmatpush1.msra.mxu0 0.0
  %1218 = vmatprep.subr.mxu0 0.0
  %1219 = vmatpush1.msra.mxu0 0.0
  %1220 = vmatprep.subr.mxu0 0.0
  %1221 = vmatpush1.msra.mxu0 %v481
  %1222 = vmatprep.subr.mxu0 0.0
  %1223 = vmatpush1.msra.mxu0 %v480
  %1224 = vmatprep.subr.mxu0 0.0
  %1225 = vmatpush1.msra.mxu0 %v479
  %1226 = vmatprep.subr.mxu0 0.0
  %1227 = vmatpush1.msra.mxu0 %v478
  %1228 = vmatprep.subr.mxu0 0.0
  %1229 = vmatpush1.msra.mxu0 %v477
  %1230 = vmatprep.subr.mxu0 0.0
  %1231 = vmatpush1.msra.mxu0 %v476
  %1232 = vmatprep.subr.mxu0 0.0
  %1233 = vmatpush1.msra.mxu0 %v475
  %1234 = vmatprep.subr.mxu0 0.0
  %1235 = vmatpush1.msra.mxu0 %v474
  %1236 = vmatprep.subr.mxu0 0.0
  %1237 = vmatpush2.msra.mxu0 0.0
  %1238 = vmatprep.subr.mxu0 0.0
  %1239 = vmatpush2.msra.mxu0 0.0
  %1240 = vmatprep.subr.mxu0 0.0
  %1241 = vmatpush2.msra.mxu0 0.0
  %1242 = vmatprep.subr.mxu0 0.0
  %1243 = vmatpush2.msra.mxu0 0.0
  %1244 = vmatprep.subr.mxu0 0.0
  %1245 = vmatpush2.msra.mxu0 0.0
  %1246 = vmatprep.subr.mxu0 0.0
  %1247 = vmatpush2.msra.mxu0 0.0
  %1248 = vmatprep.subr.mxu0 0.0
  %1249 = vmatpush2.msra.mxu0 0.0
  %1250 = vmatprep.subr.mxu0 0.0
  %1251 = vmatpush2.msra.mxu0 0.0
  %1252 = vmatprep.subr.mxu0 0.0
  %1253 = vmatpush2.msra.mxu0 0.0
  %1254 = vmatprep.subr.mxu0 0.0
  %1255 = vmatpush2.msra.mxu0 0.0
  %1256 = vmatprep.subr.mxu0 0.0
  %1257 = vmatpush2.msra.mxu0 0.0
  %1258 = vmatprep.subr.mxu0 0.0
  %1259 = vmatpush2.msra.mxu0 0.0
  %1260 = vmatprep.subr.mxu0 0.0
  %1261 = vmatpush2.msra.mxu0 0.0
  %1262 = vmatprep.subr.mxu0 0.0
  %1263 = vmatpush2.msra.mxu0 0.0
  %1264 = vmatprep.subr.mxu0 0.0
  %1265 = vmatpush2.msra.mxu0 0.0
  %1266 = vmatprep.subr.mxu0 0.0
  %1267 = vmatpush2.msra.mxu0 0.0
  %1268 = vmatprep.mubr.f32.mxu0 0.0
  %1269 = vmatmul.mubr.f32.gmra.mxu0 %v1202
  %v1270 = vpop.f32.mrf.mxu0
  %v1271 = vadd.f32 0.0, %v1270
  %v1272 = vpop.f32.mrf.mxu0
  %1273 = vdwg.mxu0
  %v1274 = vmul.f32 %v1271, 0.001953125
  %v1275 = vadd.f32 %v1274, 1e-05
  %v1276 = vrsqrt.pop %v1275
  %v1278 = vsel %vm1098, %v1276, 0
  %1280 = vmatprep.subr.mxu0 0.0
  %1281 = vmatpush1.msra.mxu0 0.0
  %1282 = vmatprep.subr.mxu0 0.0
  %1283 = vmatpush1.msra.mxu0 0.0
  %1284 = vmatprep.subr.mxu0 0.0
  %1285 = vmatpush1.msra.mxu0 0.0
  %1286 = vmatprep.subr.mxu0 0.0
  %1287 = vmatpush1.msra.mxu0 0.0
  %1288 = vmatprep.subr.mxu0 0.0
  %1289 = vmatpush1.msra.mxu0 0.0
  %1290 = vmatprep.subr.mxu0 0.0
  %1291 = vmatpush1.msra.mxu0 0.0
  %1292 = vmatprep.subr.mxu0 0.0
  %1293 = vmatpush1.msra.mxu0 0.0
  %1294 = vmatprep.subr.mxu0 0.0
  %1295 = vmatpush1.msra.mxu0 0.0
  %1296 = vmatprep.subr.mxu0 0.0
  %1297 = vmatpush1.msra.mxu0 0.0
  %1298 = vmatprep.subr.mxu0 0.0
  %1299 = vmatpush1.msra.mxu0 0.0
  %1300 = vmatprep.subr.mxu0 0.0
  %1301 = vmatpush1.msra.mxu0 0.0
  %1302 = vmatprep.subr.mxu0 0.0
  %1303 = vmatpush1.msra.mxu0 0.0
  %1304 = vmatprep.subr.mxu0 0.0
  %1305 = vmatpush1.msra.mxu0 0.0
  %1306 = vmatprep.subr.mxu0 0.0
  %1307 = vmatpush1.msra.mxu0 0.0
  %1308 = vmatprep.subr.mxu0 0.0
  %1309 = vmatpush1.msra.mxu0 0.0
  %1310 = vmatprep.subr.mxu0 0.0
  %1311 = vmatpush1.msra.mxu0 %v1104
  %1312 = vmatprep.subr.mxu0 0.0
  %1313 = vmatpush2.msra.mxu0 0.0
  %1314 = vmatprep.subr.mxu0 0.0
  %1315 = vmatpush2.msra.mxu0 0.0
  %1316 = vmatprep.subr.mxu0 0.0
  %1317 = vmatpush2.msra.mxu0 0.0
  %1318 = vmatprep.subr.mxu0 0.0
  %1319 = vmatpush2.msra.mxu0 0.0
  %1320 = vmatprep.subr.mxu0 0.0
  %1321 = vmatpush2.msra.mxu0 0.0
  %1322 = vmatprep.subr.mxu0 0.0
  %1323 = vmatpush2.msra.mxu0 0.0
  %1324 = vmatprep.subr.mxu0 0.0
  %1325 = vmatpush2.msra.mxu0 0.0
  %1326 = vmatprep.subr.mxu0 0.0
  %1327 = vmatpush2.msra.mxu0 0.0
  %1328 = vmatprep.subr.mxu0 0.0
  %1329 = vmatpush2.msra.mxu0 0.0
  %1330 = vmatprep.subr.mxu0 0.0
  %1331 = vmatpush2.msra.mxu0 0.0
  %1332 = vmatprep.subr.mxu0 0.0
  %1333 = vmatpush2.msra.mxu0 0.0
  %1334 = vmatprep.subr.mxu0 0.0
  %1335 = vmatpush2.msra.mxu0 0.0
  %1336 = vmatprep.subr.mxu0 0.0
  %1337 = vmatpush2.msra.mxu0 0.0
  %1338 = vmatprep.subr.mxu0 0.0
  %1339 = vmatpush2.msra.mxu0 0.0
  %1340 = vmatprep.subr.mxu0 0.0
  %1341 = vmatpush2.msra.mxu0 0.0
  %1342 = vmatprep.subr.mxu0 0.0
  %1343 = vmatpush2.msra.mxu0 0.0
  %1344 = vmatprep.mubr.f32.mxu0 0.0
  %1345 = vmatmul.mubr.f32.gmra.mxu0 %v1278
  %v1346 = vpop.f32.mrf.mxu0
  %v1347 = vadd.f32 0.0, %v1346
  %v1348 = vpop.f32.mrf.mxu0
  %1349 = vdwg.mxu0
  %v1351 = vrot.slane %v1347, 7
  %v1353 = vmul.f32 %v14, %v1351
  %v1354 = vlaneseq
  %v1355 = vshrl.u32 %v1354, 7
  %v1356 = vsub.s32 1, %v1355
  %v1357 = vrot.slane %v1353, %v1356
  %v1358 = vmul.f32 %v1180, %v1357
  %v1359 = vmul.f32 %v1181, %v1357
  %v1360 = vmul.f32 %v1182, %v1357
  %v1361 = vmul.f32 %v1183, %v1357
  %v1362 = vlaneseq
  %v1363 = vshrl.u32 %v1362, 7
  %v1364 = vsub.s32 2, %v1363
  %v1365 = vrot.slane %v14, %v1364
  %v1366 = vadd.f32 %v1358, %v1365
  %v1367 = vadd.f32 %v1359, %v1365
  %v1368 = vadd.f32 %v1360, %v1365
  %v1369 = vadd.f32 %v1361, %v1365
  %v1370 = vmax.f32 %v1366, 0.0
  %v1371 = vmax.f32 %v1367, 0.0
  %v1372 = vmax.f32 %v1368, 0.0
  %v1373 = vmax.f32 %v1369, 0.0
  %v1374 = vld [vmem:[%s1 + $0x220] sm:$0xff]
  %v1375 = vld [vmem:[%s1 + $0x228] sm:$0xff]
  %v1376 = vld [vmem:[%s1 + $0x230] sm:$0xff]
  %v1377 = vld [vmem:[%s1 + $0x238] sm:$0xff]
  %v1378 = vld [vmem:[%s1 + $0x240] sm:$0xff]
  %v1379 = vld [vmem:[%s1 + $0x248] sm:$0xff]
  %v1380 = vld [vmem:[%s1 + $0x250] sm:$0xff]
  %v1381 = vld [vmem:[%s1 + $0x258] sm:$0xff]
  %1382 = vmatprep.subr.mxu0 0.0
  %1383 = vmatpush1.msra.mxu0 0.0
  %1384 = vmatprep.subr.mxu0 0.0
  %1385 = vmatpush1.msra.mxu0 0.0
  %1386 = vmatprep.subr.mxu0 0.0
  %1387 = vmatpush1.msra.mxu0 0.0
  %1388 = vmatprep.subr.mxu0 0.0
  %1389 = vmatpush1.msra.mxu0 0.0
  %1390 = vmatprep.subr.mxu0 0.0
  %1391 = vmatpush1.msra.mxu0 0.0
  %1392 = vmatprep.subr.mxu0 0.0
  %1393 = vmatpush1.msra.mxu0 0.0
  %1394 = vmatprep.subr.mxu0 0.0
  %1395 = vmatpush1.msra.mxu0 0.0
  %1396 = vmatprep.subr.mxu0 0.0
  %1397 = vmatpush1.msra.mxu0 0.0
  %1398 = vmatprep.subr.mxu0 0.0
  %1399 = vmatpush1.msra.mxu0 0.0
  %1400 = vmatprep.subr.mxu0 0.0
  %1401 = vmatpush1.msra.mxu0 0.0
  %1402 = vmatprep.subr.mxu0 0.0
  %1403 = vmatpush1.msra.mxu0 0.0
  %1404 = vmatprep.subr.mxu0 0.0
  %1405 = vmatpush1.msra.mxu0 0.0
  %1406 = vmatprep.subr.mxu0 0.0
  %1407 = vmatpush1.msra.mxu0 %v1373
  %1408 = vmatprep.subr.mxu0 0.0
  %1409 = vmatpush1.msra.mxu0 %v1372
  %1410 = vmatprep.subr.mxu0 0.0
  %1411 = vmatpush1.msra.mxu0 %v1371
  %1412 = vmatprep.subr.mxu0 0.0
  %1413 = vmatpush1.msra.mxu0 %v1370
  %1414 = vmatprep.subr.mxu0 0.0
  %1415 = vmatpush2.msra.mxu0 0.0
  %1416 = vmatprep.subr.mxu0 0.0
  %1417 = vmatpush2.msra.mxu0 0.0
  %1418 = vmatprep.subr.mxu0 0.0
  %1419 = vmatpush2.msra.mxu0 0.0
  %1420 = vmatprep.subr.mxu0 0.0
  %1421 = vmatpush2.msra.mxu0 0.0
  %1422 = vmatprep.subr.mxu0 0.0
  %1423 = vmatpush2.msra.mxu0 0.0
  %1424 = vmatprep.subr.mxu0 0.0
  %1425 = vmatpush2.msra.mxu0 0.0
  %1426 = vmatprep.subr.mxu0 0.0
  %1427 = vmatpush2.msra.mxu0 0.0
  %1428 = vmatprep.subr.mxu0 0.0
  %1429 = vmatpush2.msra.mxu0 0.0
  %1430 = vmatprep.subr.mxu0 0.0
  %1431 = vmatpush2.msra.mxu0 0.0
  %1432 = vmatprep.subr.mxu0 0.0
  %1433 = vmatpush2.msra.mxu0 0.0
  %1434 = vmatprep.subr.mxu0 0.0
  %1435 = vmatpush2.msra.mxu0 0.0
  %1436 = vmatprep.subr.mxu0 0.0
  %1437 = vmatpush2.msra.mxu0 0.0
  %1438 = vmatprep.subr.mxu0 0.0
  %1439 = vmatpush2.msra.mxu0 0.0
  %1440 = vmatprep.subr.mxu0 0.0
  %1441 = vmatpush2.msra.mxu0 0.0
  %1442 = vmatprep.subr.mxu0 0.0
  %1443 = vmatpush2.msra.mxu0 0.0
  %1444 = vmatprep.subr.mxu0 0.0
  %1445 = vmatpush2.msra.mxu0 0.0
  %1446 = vmatprep.mubr.f32.mxu0 0.0
  %1447 = vmatmul.mubr.f32.gmra.mxu0 %v506
  %v1448 = vpop.f32.mrf.mxu0
  %v1449 = vadd.f32 0.0, %v1448
  %v1450 = vpop.f32.mrf.mxu0
  %1451 = vmatprep.mubr.f32.mxu0 0.0
  %1452 = vmatmul.mubr.f32.gmra.mxu0 %v509
  %v1453 = vpop.f32.mrf.mxu0
  %v1454 = vadd.f32 0.0, %v1453
  %v1455 = vpop.f32.mrf.mxu0
  %1456 = vmatprep.mubr.f32.mxu0 0.0
  %1457 = vmatmul.mubr.f32.gmra.mxu0 %v512
  %v1458 = vpop.f32.mrf.mxu0
  %v1459 = vadd.f32 0.0, %v1458
  %v1460 = vpop.f32.mrf.mxu0
  %1461 = vmatprep.mubr.f32.mxu0 0.0
  %1462 = vmatmul.mubr.f32.gmra.mxu0 %v515
  %v1463 = vpop.f32.mrf.mxu0
  %v1464 = vadd.f32 0.0, %v1463
  %v1465 = vpop.f32.mrf.mxu0
  %1466 = vdwg.mxu0
  %v1467 = vld [vmem:[%s1 + $0x1e0] sm:$0xff]
  %v1468 = vld [vmem:[%s1 + $0x1e8] sm:$0xff]
  %v1469 = vld [vmem:[%s1 + $0x1f0] sm:$0xff]
  %v1470 = vld [vmem:[%s1 + $0x1f8] sm:$0xff]
  %v1471 = vld [vmem:[%s1 + $0x200] sm:$0xff]
  %v1472 = vld [vmem:[%s1 + $0x208] sm:$0xff]
  %v1473 = vld [vmem:[%s1 + $0x210] sm:$0xff]
  %v1474 = vld [vmem:[%s1 + $0x218] sm:$0xff]
  %v1476 = vsel %vm610, %v1449, 0
  %v1479 = vsel %vm610, %v1454, 0
  %v1482 = vsel %vm610, %v1459, 0
  %v1485 = vsel %vm610, %v1464, 0
  %1487 = vmatprep.subr.mxu0 0.0
  %1488 = vmatpush1.msra.mxu0 0.0
  %1489 = vmatprep.subr.mxu0 0.0
  %1490 = vmatpush1.msra.mxu0 0.0
  %1491 = vmatprep.subr.mxu0 0.0
  %1492 = vmatpush1.msra.mxu0 0.0
  %1493 = vmatprep.subr.mxu0 0.0
  %1494 = vmatpush1.msra.mxu0 0.0
  %1495 = vmatprep.subr.mxu0 0.0
  %1496 = vmatpush1.msra.mxu0 0.0
  %1497 = vmatprep.subr.mxu0 0.0
  %1498 = vmatpush1.msra.mxu0 0.0
  %1499 = vmatprep.subr.mxu0 0.0
  %1500 = vmatpush1.msra.mxu0 0.0
  %1501 = vmatprep.subr.mxu0 0.0
  %1502 = vmatpush1.msra.mxu0 0.0
  %1503 = vmatprep.subr.mxu0 0.0
  %1504 = vmatpush1.msra.mxu0 %v1474
  %1505 = vmatprep.subr.mxu0 0.0
  %1506 = vmatpush1.msra.mxu0 %v1473
  %1507 = vmatprep.subr.mxu0 0.0
  %1508 = vmatpush1.msra.mxu0 %v1472
  %1509 = vmatprep.subr.mxu0 0.0
  %1510 = vmatpush1.msra.mxu0 %v1471
  %1511 = vmatprep.subr.mxu0 0.0
  %1512 = vmatpush1.msra.mxu0 %v1470
  %1513 = vmatprep.subr.mxu0 0.0
  %1514 = vmatpush1.msra.mxu0 %v1469
  %1515 = vmatprep.subr.mxu0 0.0
  %1516 = vmatpush1.msra.mxu0 %v1468
  %1517 = vmatprep.subr.mxu0 0.0
  %1518 = vmatpush1.msra.mxu0 %v1467
  %1519 = vmatprep.subr.mxu0 0.0
  %1520 = vmatpush2.msra.mxu0 0.0
  %1521 = vmatprep.subr.mxu0 0.0
  %1522 = vmatpush2.msra.mxu0 0.0
  %1523 = vmatprep.subr.mxu0 0.0
  %1524 = vmatpush2.msra.mxu0 0.0
  %1525 = vmatprep.subr.mxu0 0.0
  %1526 = vmatpush2.msra.mxu0 0.0
  %1527 = vmatprep.subr.mxu0 0.0
  %1528 = vmatpush2.msra.mxu0 0.0
  %1529 = vmatprep.subr.mxu0 0.0
  %1530 = vmatpush2.msra.mxu0 0.0
  %1531 = vmatprep.subr.mxu0 0.0
  %1532 = vmatpush2.msra.mxu0 0.0
  %1533 = vmatprep.subr.mxu0 0.0
  %1534 = vmatpush2.msra.mxu0 0.0
  %1535 = vmatprep.subr.mxu0 0.0
  %1536 = vmatpush2.msra.mxu0 0.0
  %1537 = vmatprep.subr.mxu0 0.0
  %1538 = vmatpush2.msra.mxu0 0.0
  %1539 = vmatprep.subr.mxu0 0.0
  %1540 = vmatpush2.msra.mxu0 0.0
  %1541 = vmatprep.subr.mxu0 0.0
  %1542 = vmatpush2.msra.mxu0 0.0
  %1543 = vmatprep.subr.mxu0 0.0
  %1544 = vmatpush2.msra.mxu0 0.0
  %1545 = vmatprep.subr.mxu0 0.0
  %1546 = vmatpush2.msra.mxu0 0.0
  %1547 = vmatprep.subr.mxu0 0.0
  %1548 = vmatpush2.msra.mxu0 0.0
  %1549 = vmatprep.subr.mxu0 0.0
  %1550 = vmatpush2.msra.mxu0 0.0
  %1551 = vmatprep.mubr.f32.mxu0 0.0
  %1552 = vmatmul.mubr.f32.gmra.mxu0 %v1476
  %v1553 = vpop.f32.mrf.mxu0
  %v1554 = vadd.f32 0.0, %v1553
  %v1555 = vpop.f32.mrf.mxu0
  %1556 = vmatprep.mubr.f32.mxu0 0.0
  %1557 = vmatmul.mubr.f32.gmra.mxu0 %v1479
  %v1558 = vpop.f32.mrf.mxu0
  %v1559 = vadd.f32 0.0, %v1558
  %v1560 = vpop.f32.mrf.mxu0
  %1561 = vmatprep.mubr.f32.mxu0 0.0
  %1562 = vmatmul.mubr.f32.gmra.mxu0 %v1482
  %v1563 = vpop.f32.mrf.mxu0
  %v1564 = vadd.f32 0.0, %v1563
  %v1565 = vpop.f32.mrf.mxu0
  %1566 = vmatprep.mubr.f32.mxu0 0.0
  %1567 = vmatmul.mubr.f32.gmra.mxu0 %v1485
  %v1568 = vpop.f32.mrf.mxu0
  %v1569 = vadd.f32 0.0, %v1568
  %v1570 = vpop.f32.mrf.mxu0
  %1571 = vdwg.mxu0
  %v1573 = vsel %vm610, %v1370, 0
  %v1576 = vsel %vm610, %v1371, 0
  %v1579 = vsel %vm610, %v1372, 0
  %v1582 = vsel %vm610, %v1373, 0
  %1584 = vmatprep.subr.mxu0 0.0
  %1585 = vmatpush1.msra.mxu0 0.0
  %1586 = vmatprep.subr.mxu0 0.0
  %1587 = vmatpush1.msra.mxu0 0.0
  %1588 = vmatprep.subr.mxu0 0.0
  %1589 = vmatpush1.msra.mxu0 0.0
  %1590 = vmatprep.subr.mxu0 0.0
  %1591 = vmatpush1.msra.mxu0 0.0
  %1592 = vmatprep.subr.mxu0 0.0
  %1593 = vmatpush1.msra.mxu0 0.0
  %1594 = vmatprep.subr.mxu0 0.0
  %1595 = vmatpush1.msra.mxu0 0.0
  %1596 = vmatprep.subr.mxu0 0.0
  %1597 = vmatpush1.msra.mxu0 0.0
  %1598 = vmatprep.subr.mxu0 0.0
  %1599 = vmatpush1.msra.mxu0 0.0
  %1600 = vmatprep.subr.mxu0 0.0
  %1601 = vmatpush1.msra.mxu0 %v1381
  %1602 = vmatprep.subr.mxu0 0.0
  %1603 = vmatpush1.msra.mxu0 %v1380
  %1604 = vmatprep.subr.mxu0 0.0
  %1605 = vmatpush1.msra.mxu0 %v1379
  %1606 = vmatprep.subr.mxu0 0.0
  %1607 = vmatpush1.msra.mxu0 %v1378
  %1608 = vmatprep.subr.mxu0 0.0
  %1609 = vmatpush1.msra.mxu0 %v1377
  %1610 = vmatprep.subr.mxu0 0.0
  %1611 = vmatpush1.msra.mxu0 %v1376
  %1612 = vmatprep.subr.mxu0 0.0
  %1613 = vmatpush1.msra.mxu0 %v1375
  %1614 = vmatprep.subr.mxu0 0.0
  %1615 = vmatpush1.msra.mxu0 %v1374
  %1616 = vmatprep.subr.mxu0 0.0
  %1617 = vmatpush2.msra.mxu0 0.0
  %1618 = vmatprep.subr.mxu0 0.0
  %1619 = vmatpush2.msra.mxu0 0.0
  %1620 = vmatprep.subr.mxu0 0.0
  %1621 = vmatpush2.msra.mxu0 0.0
  %1622 = vmatprep.subr.mxu0 0.0
  %1623 = vmatpush2.msra.mxu0 0.0
  %1624 = vmatprep.subr.mxu0 0.0
  %1625 = vmatpush2.msra.mxu0 0.0
  %1626 = vmatprep.subr.mxu0 0.0
  %1627 = vmatpush2.msra.mxu0 0.0
  %1628 = vmatprep.subr.mxu0 0.0
  %1629 = vmatpush2.msra.mxu0 0.0
  %1630 = vmatprep.subr.mxu0 0.0
  %1631 = vmatpush2.msra.mxu0 0.0
  %1632 = vmatprep.subr.mxu0 0.0
  %1633 = vmatpush2.msra.mxu0 0.0
  %1634 = vmatprep.subr.mxu0 0.0
  %1635 = vmatpush2.msra.mxu0 0.0
  %1636 = vmatprep.subr.mxu0 0.0
  %1637 = vmatpush2.msra.mxu0 0.0
  %1638 = vmatprep.subr.mxu0 0.0
  %1639 = vmatpush2.msra.mxu0 0.0
  %1640 = vmatprep.subr.mxu0 0.0
  %1641 = vmatpush2.msra.mxu0 0.0
  %1642 = vmatprep.subr.mxu0 0.0
  %1643 = vmatpush2.msra.mxu0 0.0
  %1644 = vmatprep.subr.mxu0 0.0
  %1645 = vmatpush2.msra.mxu0 0.0
  %1646 = vmatprep.subr.mxu0 0.0
  %1647 = vmatpush2.msra.mxu0 0.0
  %1648 = vmatprep.mubr.f32.mxu0 0.0
  %1649 = vmatmul.mubr.f32.gmra.mxu0 %v1573
  %v1650 = vpop.f32.mrf.mxu0
  %v1651 = vadd.f32 %v1554, %v1650
  %v1652 = vpop.f32.mrf.mxu0
  %1653 = vmatprep.mubr.f32.mxu0 0.0
  %1654 = vmatmul.mubr.f32.gmra.mxu0 %v1576
  %v1655 = vpop.f32.mrf.mxu0
  %v1656 = vadd.f32 %v1559, %v1655
  %v1657 = vpop.f32.mrf.mxu0
  %1658 = vmatprep.mubr.f32.mxu0 0.0
  %1659 = vmatmul.mubr.f32.gmra.mxu0 %v1579
  %v1660 = vpop.f32.mrf.mxu0
  %v1661 = vadd.f32 %v1564, %v1660
  %v1662 = vpop.f32.mrf.mxu0
  %1663 = vmatprep.mubr.f32.mxu0 0.0
  %1664 = vmatmul.mubr.f32.gmra.mxu0 %v1582
  %v1665 = vpop.f32.mrf.mxu0
  %v1666 = vadd.f32 %v1569, %v1665
  %v1667 = vpop.f32.mrf.mxu0
  %1668 = vdwg.mxu0
  %1669 = vmatprep.subr.mxu0 0.0
  %1670 = vmatpush1.msra.mxu0 0.0
  %1671 = vmatprep.subr.mxu0 0.0
  %1672 = vmatpush1.msra.mxu0 0.0
  %1673 = vmatprep.subr.mxu0 0.0
  %1674 = vmatpush1.msra.mxu0 0.0
  %1675 = vmatprep.subr.mxu0 0.0
  %1676 = vmatpush1.msra.mxu0 0.0
  %1677 = vmatprep.subr.mxu0 0.0
  %1678 = vmatpush1.msra.mxu0 0.0
  %1679 = vmatprep.subr.mxu0 0.0
  %1680 = vmatpush1.msra.mxu0 0.0
  %1681 = vmatprep.subr.mxu0 0.0
  %1682 = vmatpush1.msra.mxu0 0.0
  %1683 = vmatprep.subr.mxu0 0.0
  %1684 = vmatpush1.msra.mxu0 0.0
  %1685 = vmatprep.subr.mxu0 0.0
  %1686 = vmatpush1.msra.mxu0 0.0
  %1687 = vmatprep.subr.mxu0 0.0
  %1688 = vmatpush1.msra.mxu0 0.0
  %1689 = vmatprep.subr.mxu0 0.0
  %1690 = vmatpush1.msra.mxu0 0.0
  %1691 = vmatprep.subr.mxu0 0.0
  %1692 = vmatpush1.msra.mxu0 0.0
  %1693 = vmatprep.subr.mxu0 0.0
  %1694 = vmatpush1.msra.mxu0 %v1373
  %1695 = vmatprep.subr.mxu0 0.0
  %1696 = vmatpush1.msra.mxu0 %v1372
  %1697 = vmatprep.subr.mxu0 0.0
  %1698 = vmatpush1.msra.mxu0 %v1371
  %1699 = vmatprep.subr.mxu0 0.0
  %1700 = vmatpush1.msra.mxu0 %v1370
  %1701 = vmatprep.subr.mxu0 0.0
  %1702 = vmatpush2.msra.mxu0 0.0
  %1703 = vmatprep.subr.mxu0 0.0
  %1704 = vmatpush2.msra.mxu0 0.0
  %1705 = vmatprep.subr.mxu0 0.0
  %1706 = vmatpush2.msra.mxu0 0.0
  %1707 = vmatprep.subr.mxu0 0.0
  %1708 = vmatpush2.msra.mxu0 0.0
  %1709 = vmatprep.subr.mxu0 0.0
  %1710 = vmatpush2.msra.mxu0 0.0
  %1711 = vmatprep.subr.mxu0 0.0
  %1712 = vmatpush2.msra.mxu0 0.0
  %1713 = vmatprep.subr.mxu0 0.0
  %1714 = vmatpush2.msra.mxu0 0.0
  %1715 = vmatprep.subr.mxu0 0.0
  %1716 = vmatpush2.msra.mxu0 0.0
  %1717 = vmatprep.subr.mxu0 0.0
  %1718 = vmatpush2.msra.mxu0 0.0
  %1719 = vmatprep.subr.mxu0 0.0
  %1720 = vmatpush2.msra.mxu0 0.0
  %1721 = vmatprep.subr.mxu0 0.0
  %1722 = vmatpush2.msra.mxu0 0.0
  %1723 = vmatprep.subr.mxu0 0.0
  %1724 = vmatpush2.msra.mxu0 0.0
  %1725 = vmatprep.subr.mxu0 0.0
  %1726 = vmatpush2.msra.mxu0 0.0
  %1727 = vmatprep.subr.mxu0 0.0
  %1728 = vmatpush2.msra.mxu0 0.0
  %1729 = vmatprep.subr.mxu0 0.0
  %1730 = vmatpush2.msra.mxu0 0.0
  %1731 = vmatprep.subr.mxu0 0.0
  %1732 = vmatpush2.msra.mxu0 0.0
  %1733 = vmatprep.mubr.f32.mxu0 0.0
  %1734 = vmatmul.mubr.f32.gmra.mxu0 %v806
  %v1735 = vpop.f32.mrf.mxu0
  %v1736 = vadd.f32 0.0, %v1735
  %v1737 = vpop.f32.mrf.mxu0
  %1738 = vmatprep.mubr.f32.mxu0 0.0
  %1739 = vmatmul.mubr.f32.gmra.mxu0 %v809
  %v1740 = vpop.f32.mrf.mxu0
  %v1741 = vadd.f32 0.0, %v1740
  %v1742 = vpop.f32.mrf.mxu0
  %1743 = vmatprep.mubr.f32.mxu0 0.0
  %1744 = vmatmul.mubr.f32.gmra.mxu0 %v812
  %v1745 = vpop.f32.mrf.mxu0
  %v1746 = vadd.f32 0.0, %v1745
  %v1747 = vpop.f32.mrf.mxu0
  %1748 = vmatprep.mubr.f32.mxu0 0.0
  %1749 = vmatmul.mubr.f32.gmra.mxu0 %v815
  %v1750 = vpop.f32.mrf.mxu0
  %v1751 = vadd.f32 0.0, %v1750
  %v1752 = vpop.f32.mrf.mxu0
  %1753 = vdwg.mxu0
  %v1754 = vld [vmem:[%s1 + $0x260] sm:$0xff]
  %v1755 = vld [vmem:[%s1 + $0x268] sm:$0xff]
  %v1756 = vld [vmem:[%s1 + $0x270] sm:$0xff]
  %v1757 = vld [vmem:[%s1 + $0x278] sm:$0xff]
  %v1758 = vld [vmem:[%s1 + $0x280] sm:$0xff]
  %v1759 = vld [vmem:[%s1 + $0x288] sm:$0xff]
  %v1760 = vld [vmem:[%s1 + $0x290] sm:$0xff]
  %v1761 = vld [vmem:[%s1 + $0x298] sm:$0xff]
  %v1763 = vsel %vm610, %v1736, 0
  %v1766 = vsel %vm610, %v1741, 0
  %v1769 = vsel %vm610, %v1746, 0
  %v1772 = vsel %vm610, %v1751, 0
  %1774 = vmatprep.subr.mxu0 0.0
  %1775 = vmatpush1.msra.mxu0 0.0
  %1776 = vmatprep.subr.mxu0 0.0
  %1777 = vmatpush1.msra.mxu0 0.0
  %1778 = vmatprep.subr.mxu0 0.0
  %1779 = vmatpush1.msra.mxu0 0.0
  %1780 = vmatprep.subr.mxu0 0.0
  %1781 = vmatpush1.msra.mxu0 0.0
  %1782 = vmatprep.subr.mxu0 0.0
  %1783 = vmatpush1.msra.mxu0 0.0
  %1784 = vmatprep.subr.mxu0 0.0
  %1785 = vmatpush1.msra.mxu0 0.0
  %1786 = vmatprep.subr.mxu0 0.0
  %1787 = vmatpush1.msra.mxu0 0.0
  %1788 = vmatprep.subr.mxu0 0.0
  %1789 = vmatpush1.msra.mxu0 0.0
  %1790 = vmatprep.subr.mxu0 0.0
  %1791 = vmatpush1.msra.mxu0 %v1761
  %1792 = vmatprep.subr.mxu0 0.0
  %1793 = vmatpush1.msra.mxu0 %v1760
  %1794 = vmatprep.subr.mxu0 0.0
  %1795 = vmatpush1.msra.mxu0 %v1759
  %1796 = vmatprep.subr.mxu0 0.0
  %1797 = vmatpush1.msra.mxu0 %v1758
  %1798 = vmatprep.subr.mxu0 0.0
  %1799 = vmatpush1.msra.mxu0 %v1757
  %1800 = vmatprep.subr.mxu0 0.0
  %1801 = vmatpush1.msra.mxu0 %v1756
  %1802 = vmatprep.subr.mxu0 0.0
  %1803 = vmatpush1.msra.mxu0 %v1755
  %1804 = vmatprep.subr.mxu0 0.0
  %1805 = vmatpush1.msra.mxu0 %v1754
  %1806 = vmatprep.subr.mxu0 0.0
  %1807 = vmatpush2.msra.mxu0 0.0
  %1808 = vmatprep.subr.mxu0 0.0
  %1809 = vmatpush2.msra.mxu0 0.0
  %1810 = vmatprep.subr.mxu0 0.0
  %1811 = vmatpush2.msra.mxu0 0.0
  %1812 = vmatprep.subr.mxu0 0.0
  %1813 = vmatpush2.msra.mxu0 0.0
  %1814 = vmatprep.subr.mxu0 0.0
  %1815 = vmatpush2.msra.mxu0 0.0
  %1816 = vmatprep.subr.mxu0 0.0
  %1817 = vmatpush2.msra.mxu0 0.0
  %1818 = vmatprep.subr.mxu0 0.0
  %1819 = vmatpush2.msra.mxu0 0.0
  %1820 = vmatprep.subr.mxu0 0.0
  %1821 = vmatpush2.msra.mxu0 0.0
  %1822 = vmatprep.subr.mxu0 0.0
  %1823 = vmatpush2.msra.mxu0 0.0
  %1824 = vmatprep.subr.mxu0 0.0
  %1825 = vmatpush2.msra.mxu0 0.0
  %1826 = vmatprep.subr.mxu0 0.0
  %1827 = vmatpush2.msra.mxu0 0.0
  %1828 = vmatprep.subr.mxu0 0.0
  %1829 = vmatpush2.msra.mxu0 0.0
  %1830 = vmatprep.subr.mxu0 0.0
  %1831 = vmatpush2.msra.mxu0 0.0
  %1832 = vmatprep.subr.mxu0 0.0
  %1833 = vmatpush2.msra.mxu0 0.0
  %1834 = vmatprep.subr.mxu0 0.0
  %1835 = vmatpush2.msra.mxu0 0.0
  %1836 = vmatprep.subr.mxu0 0.0
  %1837 = vmatpush2.msra.mxu0 0.0
  %1838 = vmatprep.mubr.f32.mxu0 0.0
  %1839 = vmatmul.mubr.f32.gmra.mxu0 %v1763
  %v1840 = vpop.f32.mrf.mxu0
  %v1841 = vadd.f32 0.0, %v1840
  %v1842 = vpop.f32.mrf.mxu0
  %1843 = vmatprep.mubr.f32.mxu0 0.0
  %1844 = vmatmul.mubr.f32.gmra.mxu0 %v1766
  %v1845 = vpop.f32.mrf.mxu0
  %v1846 = vadd.f32 0.0, %v1845
  %v1847 = vpop.f32.mrf.mxu0
  %1848 = vmatprep.mubr.f32.mxu0 0.0
  %1849 = vmatmul.mubr.f32.gmra.mxu0 %v1769
  %v1850 = vpop.f32.mrf.mxu0
  %v1851 = vadd.f32 0.0, %v1850
  %v1852 = vpop.f32.mrf.mxu0
  %1853 = vmatprep.mubr.f32.mxu0 0.0
  %1854 = vmatmul.mubr.f32.gmra.mxu0 %v1772
  %v1855 = vpop.f32.mrf.mxu0
  %v1856 = vadd.f32 0.0, %v1855
  %v1857 = vpop.f32.mrf.mxu0
  %1858 = vdwg.mxu0
  %v1859 = vadd.f32 %v1651, %v1841
  %v1860 = vadd.f32 %v1656, %v1846
  %v1861 = vadd.f32 %v1661, %v1851
  %v1862 = vadd.f32 %v1666, %v1856
  %v1863 = vsel %vm610, %v1859, 0.0
  %v1864 = vsel %vm610, %v1860, 0.0
  %v1865 = vadd.f32 %v1863, %v1864
  %v1866 = vsel %vm610, %v1861, 0.0
  %v1867 = vadd.f32 %v1865, %v1866
  %v1868 = vsel %vm610, %v1862, 0.0
  %v1869 = vadd.f32 %v1867, %v1868
  %v1870 = vrot.slane %v1869, 4
  %v1871 = vadd.f32 %v1869, %v1870
  %v1872 = vrot.slane %v1871, 2
  %v1873 = vadd.f32 %v1871, %v1872
  %v1874 = vrot.slane %v1873, 1
  %v1875 = vadd.f32 %v1873, %v1874
  %v1877 = vsel %vm610, %v1875, 0
  %1879 = vmatprep.subr.mxu0 0.0
  %1880 = vmatpush1.msra.mxu0 0.0
  %1881 = vmatprep.subr.mxu0 0.0
  %1882 = vmatpush1.msra.mxu0 0.0
  %1883 = vmatprep.subr.mxu0 0.0
  %1884 = vmatpush1.msra.mxu0 0.0
  %1885 = vmatprep.subr.mxu0 0.0
  %1886 = vmatpush1.msra.mxu0 0.0
  %1887 = vmatprep.subr.mxu0 0.0
  %1888 = vmatpush1.msra.mxu0 0.0
  %1889 = vmatprep.subr.mxu0 0.0
  %1890 = vmatpush1.msra.mxu0 0.0
  %1891 = vmatprep.subr.mxu0 0.0
  %1892 = vmatpush1.msra.mxu0 0.0
  %1893 = vmatprep.subr.mxu0 0.0
  %1894 = vmatpush1.msra.mxu0 0.0
  %1895 = vmatprep.subr.mxu0 0.0
  %1896 = vmatpush1.msra.mxu0 %v481
  %1897 = vmatprep.subr.mxu0 0.0
  %1898 = vmatpush1.msra.mxu0 %v480
  %1899 = vmatprep.subr.mxu0 0.0
  %1900 = vmatpush1.msra.mxu0 %v479
  %1901 = vmatprep.subr.mxu0 0.0
  %1902 = vmatpush1.msra.mxu0 %v478
  %1903 = vmatprep.subr.mxu0 0.0
  %1904 = vmatpush1.msra.mxu0 %v477
  %1905 = vmatprep.subr.mxu0 0.0
  %1906 = vmatpush1.msra.mxu0 %v476
  %1907 = vmatprep.subr.mxu0 0.0
  %1908 = vmatpush1.msra.mxu0 %v475
  %1909 = vmatprep.subr.mxu0 0.0
  %1910 = vmatpush1.msra.mxu0 %v474
  %1911 = vmatprep.subr.mxu0 0.0
  %1912 = vmatpush2.msra.mxu0 0.0
  %1913 = vmatprep.subr.mxu0 0.0
  %1914 = vmatpush2.msra.mxu0 0.0
  %1915 = vmatprep.subr.mxu0 0.0
  %1916 = vmatpush2.msra.mxu0 0.0
  %1917 = vmatprep.subr.mxu0 0.0
  %1918 = vmatpush2.msra.mxu0 0.0
  %1919 = vmatprep.subr.mxu0 0.0
  %1920 = vmatpush2.msra.mxu0 0.0
  %1921 = vmatprep.subr.mxu0 0.0
  %1922 = vmatpush2.msra.mxu0 0.0
  %1923 = vmatprep.subr.mxu0 0.0
  %1924 = vmatpush2.msra.mxu0 0.0
  %1925 = vmatprep.subr.mxu0 0.0
  %1926 = vmatpush2.msra.mxu0 0.0
  %1927 = vmatprep.subr.mxu0 0.0
  %1928 = vmatpush2.msra.mxu0 0.0
  %1929 = vmatprep.subr.mxu0 0.0
  %1930 = vmatpush2.msra.mxu0 0.0
  %1931 = vmatprep.subr.mxu0 0.0
  %1932 = vmatpush2.msra.mxu0 0.0
  %1933 = vmatprep.subr.mxu0 0.0
  %1934 = vmatpush2.msra.mxu0 0.0
  %1935 = vmatprep.subr.mxu0 0.0
  %1936 = vmatpush2.msra.mxu0 0.0
  %1937 = vmatprep.subr.mxu0 0.0
  %1938 = vmatpush2.msra.mxu0 0.0
  %1939 = vmatprep.subr.mxu0 0.0
  %1940 = vmatpush2.msra.mxu0 0.0
  %1941 = vmatprep.subr.mxu0 0.0
  %1942 = vmatpush2.msra.mxu0 0.0
  %1943 = vmatprep.mubr.f32.mxu0 0.0
  %1944 = vmatmul.mubr.f32.gmra.mxu0 %v1877
  %v1945 = vpop.f32.mrf.mxu0
  %v1946 = vadd.f32 0.0, %v1945
  %v1947 = vpop.f32.mrf.mxu0
  %1948 = vdwg.mxu0
  %v1949 = vmul.f32 %v1946, 0.001953125
  %v1951 = vsel %vm1098, %v1949, 0
  %1953 = vmatprep.subr.mxu0 0.0
  %1954 = vmatpush1.msra.mxu0 0.0
  %1955 = vmatprep.subr.mxu0 0.0
  %1956 = vmatpush1.msra.mxu0 0.0
  %1957 = vmatprep.subr.mxu0 0.0
  %1958 = vmatpush1.msra.mxu0 0.0
  %1959 = vmatprep.subr.mxu0 0.0
  %1960 = vmatpush1.msra.mxu0 0.0
  %1961 = vmatprep.subr.mxu0 0.0
  %1962 = vmatpush1.msra.mxu0 0.0
  %1963 = vmatprep.subr.mxu0 0.0
  %1964 = vmatpush1.msra.mxu0 0.0
  %1965 = vmatprep.subr.mxu0 0.0
  %1966 = vmatpush1.msra.mxu0 0.0
  %1967 = vmatprep.subr.mxu0 0.0
  %1968 = vmatpush1.msra.mxu0 0.0
  %1969 = vmatprep.subr.mxu0 0.0
  %1970 = vmatpush1.msra.mxu0 0.0
  %1971 = vmatprep.subr.mxu0 0.0
  %1972 = vmatpush1.msra.mxu0 0.0
  %1973 = vmatprep.subr.mxu0 0.0
  %1974 = vmatpush1.msra.mxu0 0.0
  %1975 = vmatprep.subr.mxu0 0.0
  %1976 = vmatpush1.msra.mxu0 0.0
  %1977 = vmatprep.subr.mxu0 0.0
  %1978 = vmatpush1.msra.mxu0 0.0
  %1979 = vmatprep.subr.mxu0 0.0
  %1980 = vmatpush1.msra.mxu0 0.0
  %1981 = vmatprep.subr.mxu0 0.0
  %1982 = vmatpush1.msra.mxu0 0.0
  %1983 = vmatprep.subr.mxu0 0.0
  %1984 = vmatpush1.msra.mxu0 %v1104
  %1985 = vmatprep.subr.mxu0 0.0
  %1986 = vmatpush2.msra.mxu0 0.0
  %1987 = vmatprep.subr.mxu0 0.0
  %1988 = vmatpush2.msra.mxu0 0.0
  %1989 = vmatprep.subr.mxu0 0.0
  %1990 = vmatpush2.msra.mxu0 0.0
  %1991 = vmatprep.subr.mxu0 0.0
  %1992 = vmatpush2.msra.mxu0 0.0
  %1993 = vmatprep.subr.mxu0 0.0
  %1994 = vmatpush2.msra.mxu0 0.0
  %1995 = vmatprep.subr.mxu0 0.0
  %1996 = vmatpush2.msra.mxu0 0.0
  %1997 = vmatprep.subr.mxu0 0.0
  %1998 = vmatpush2.msra.mxu0 0.0
  %1999 = vmatprep.subr.mxu0 0.0
  %2000 = vmatpush2.msra.mxu0 0.0
  %2001 = vmatprep.subr.mxu0 0.0
  %2002 = vmatpush2.msra.mxu0 0.0
  %2003 = vmatprep.subr.mxu0 0.0
  %2004 = vmatpush2.msra.mxu0 0.0
  %2005 = vmatprep.subr.mxu0 0.0
  %2006 = vmatpush2.msra.mxu0 0.0
  %2007 = vmatprep.subr.mxu0 0.0
  %2008 = vmatpush2.msra.mxu0 0.0
  %2009 = vmatprep.subr.mxu0 0.0
  %2010 = vmatpush2.msra.mxu0 0.0
  %2011 = vmatprep.subr.mxu0 0.0
  %2012 = vmatpush2.msra.mxu0 0.0
  %2013 = vmatprep.subr.mxu0 0.0
  %2014 = vmatpush2.msra.mxu0 0.0
  %2015 = vmatprep.subr.mxu0 0.0
  %2016 = vmatpush2.msra.mxu0 0.0
  %2017 = vmatprep.mubr.f32.mxu0 0.0
  %2018 = vmatmul.mubr.f32.gmra.mxu0 %v1951
  %v2019 = vpop.f32.mrf.mxu0
  %v2020 = vadd.f32 0.0, %v2019
  %v2021 = vpop.f32.mrf.mxu0
  %2022 = vdwg.mxu0
  %v2023 = vlaneseq
  %v2024 = vshrl.u32 %v2023, 7
  %v2025 = vsub.s32 0, %v2024
  %v2026 = vrot.slane %v2020, %v2025
  %v2027 = vsub.f32 %v1859, %v2026
  %v2028 = vsub.f32 %v1860, %v2026
  %v2029 = vsub.f32 %v1861, %v2026
  %v2030 = vsub.f32 %v1862, %v2026
  %v2031 = vmul.f32 %v2027, %v2027
  %v2032 = vmul.f32 %v2028, %v2028
  %v2033 = vmul.f32 %v2029, %v2029
  %v2034 = vmul.f32 %v2030, %v2030
  %v2035 = vsel %vm610, %v2031, 0.0
  %v2036 = vsel %vm610, %v2032, 0.0
  %v2037 = vadd.f32 %v2035, %v2036
  %v2038 = vsel %vm610, %v2033, 0.0
  %v2039 = vadd.f32 %v2037, %v2038
  %v2040 = vsel %vm610, %v2034, 0.0
  %v2041 = vadd.f32 %v2039, %v2040
  %v2042 = vrot.slane %v2041, 4
  %v2043 = vadd.f32 %v2041, %v2042
  %v2044 = vrot.slane %v2043, 2
  %v2045 = vadd.f32 %v2043, %v2044
  %v2046 = vrot.slane %v2045, 1
  %v2047 = vadd.f32 %v2045, %v2046
  %v2049 = vsel %vm610, %v2047, 0
  %2051 = vmatprep.subr.mxu0 0.0
  %2052 = vmatpush1.msra.mxu0 0.0
  %2053 = vmatprep.subr.mxu0 0.0
  %2054 = vmatpush1.msra.mxu0 0.0
  %2055 = vmatprep.subr.mxu0 0.0
  %2056 = vmatpush1.msra.mxu0 0.0
  %2057 = vmatprep.subr.mxu0 0.0
  %2058 = vmatpush1.msra.mxu0 0.0
  %2059 = vmatprep.subr.mxu0 0.0
  %2060 = vmatpush1.msra.mxu0 0.0
  %2061 = vmatprep.subr.mxu0 0.0
  %2062 = vmatpush1.msra.mxu0 0.0
  %2063 = vmatprep.subr.mxu0 0.0
  %2064 = vmatpush1.msra.mxu0 0.0
  %2065 = vmatprep.subr.mxu0 0.0
  %2066 = vmatpush1.msra.mxu0 0.0
  %2067 = vmatprep.subr.mxu0 0.0
  %2068 = vmatpush1.msra.mxu0 %v481
  %2069 = vmatprep.subr.mxu0 0.0
  %2070 = vmatpush1.msra.mxu0 %v480
  %2071 = vmatprep.subr.mxu0 0.0
  %2072 = vmatpush1.msra.mxu0 %v479
  %2073 = vmatprep.subr.mxu0 0.0
  %2074 = vmatpush1.msra.mxu0 %v478
  %2075 = vmatprep.subr.mxu0 0.0
  %2076 = vmatpush1.msra.mxu0 %v477
  %2077 = vmatprep.subr.mxu0 0.0
  %2078 = vmatpush1.msra.mxu0 %v476
  %2079 = vmatprep.subr.mxu0 0.0
  %2080 = vmatpush1.msra.mxu0 %v475
  %2081 = vmatprep.subr.mxu0 0.0
  %2082 = vmatpush1.msra.mxu0 %v474
  %2083 = vmatprep.subr.mxu0 0.0
  %2084 = vmatpush2.msra.mxu0 0.0
  %2085 = vmatprep.subr.mxu0 0.0
  %2086 = vmatpush2.msra.mxu0 0.0
  %2087 = vmatprep.subr.mxu0 0.0
  %2088 = vmatpush2.msra.mxu0 0.0
  %2089 = vmatprep.subr.mxu0 0.0
  %2090 = vmatpush2.msra.mxu0 0.0
  %2091 = vmatprep.subr.mxu0 0.0
  %2092 = vmatpush2.msra.mxu0 0.0
  %2093 = vmatprep.subr.mxu0 0.0
  %2094 = vmatpush2.msra.mxu0 0.0
  %2095 = vmatprep.subr.mxu0 0.0
  %2096 = vmatpush2.msra.mxu0 0.0
  %2097 = vmatprep.subr.mxu0 0.0
  %2098 = vmatpush2.msra.mxu0 0.0
  %2099 = vmatprep.subr.mxu0 0.0
  %2100 = vmatpush2.msra.mxu0 0.0
  %2101 = vmatprep.subr.mxu0 0.0
  %2102 = vmatpush2.msra.mxu0 0.0
  %2103 = vmatprep.subr.mxu0 0.0
  %2104 = vmatpush2.msra.mxu0 0.0
  %2105 = vmatprep.subr.mxu0 0.0
  %2106 = vmatpush2.msra.mxu0 0.0
  %2107 = vmatprep.subr.mxu0 0.0
  %2108 = vmatpush2.msra.mxu0 0.0
  %2109 = vmatprep.subr.mxu0 0.0
  %2110 = vmatpush2.msra.mxu0 0.0
  %2111 = vmatprep.subr.mxu0 0.0
  %2112 = vmatpush2.msra.mxu0 0.0
  %2113 = vmatprep.subr.mxu0 0.0
  %2114 = vmatpush2.msra.mxu0 0.0
  %2115 = vmatprep.mubr.f32.mxu0 0.0
  %2116 = vmatmul.mubr.f32.gmra.mxu0 %v2049
  %v2117 = vpop.f32.mrf.mxu0
  %v2118 = vadd.f32 0.0, %v2117
  %v2119 = vpop.f32.mrf.mxu0
  %2120 = vdwg.mxu0
  %v2121 = vmul.f32 %v2118, 0.001953125
  %v2122 = vadd.f32 %v2121, 1e-05
  %v2123 = vrsqrt.pop %v2122
  %v2125 = vsel %vm1098, %v2123, 0
  %2127 = vmatprep.subr.mxu0 0.0
  %2128 = vmatpush1.msra.mxu0 0.0
  %2129 = vmatprep.subr.mxu0 0.0
  %2130 = vmatpush1.msra.mxu0 0.0
  %2131 = vmatprep.subr.mxu0 0.0
  %2132 = vmatpush1.msra.mxu0 0.0
  %2133 = vmatprep.subr.mxu0 0.0
  %2134 = vmatpush1.msra.mxu0 0.0
  %2135 = vmatprep.subr.mxu0 0.0
  %2136 = vmatpush1.msra.mxu0 0.0
  %2137 = vmatprep.subr.mxu0 0.0
  %2138 = vmatpush1.msra.mxu0 0.0
  %2139 = vmatprep.subr.mxu0 0.0
  %2140 = vmatpush1.msra.mxu0 0.0
  %2141 = vmatprep.subr.mxu0 0.0
  %2142 = vmatpush1.msra.mxu0 0.0
  %2143 = vmatprep.subr.mxu0 0.0
  %2144 = vmatpush1.msra.mxu0 0.0
  %2145 = vmatprep.subr.mxu0 0.0
  %2146 = vmatpush1.msra.mxu0 0.0
  %2147 = vmatprep.subr.mxu0 0.0
  %2148 = vmatpush1.msra.mxu0 0.0
  %2149 = vmatprep.subr.mxu0 0.0
  %2150 = vmatpush1.msra.mxu0 0.0
  %2151 = vmatprep.subr.mxu0 0.0
  %2152 = vmatpush1.msra.mxu0 0.0
  %2153 = vmatprep.subr.mxu0 0.0
  %2154 = vmatpush1.msra.mxu0 0.0
  %2155 = vmatprep.subr.mxu0 0.0
  %2156 = vmatpush1.msra.mxu0 0.0
  %2157 = vmatprep.subr.mxu0 0.0
  %2158 = vmatpush1.msra.mxu0 %v1104
  %2159 = vmatprep.subr.mxu0 0.0
  %2160 = vmatpush2.msra.mxu0 0.0
  %2161 = vmatprep.subr.mxu0 0.0
  %2162 = vmatpush2.msra.mxu0 0.0
  %2163 = vmatprep.subr.mxu0 0.0
  %2164 = vmatpush2.msra.mxu0 0.0
  %2165 = vmatprep.subr.mxu0 0.0
  %2166 = vmatpush2.msra.mxu0 0.0
  %2167 = vmatprep.subr.mxu0 0.0
  %2168 = vmatpush2.msra.mxu0 0.0
  %2169 = vmatprep.subr.mxu0 0.0
  %2170 = vmatpush2.msra.mxu0 0.0
  %2171 = vmatprep.subr.mxu0 0.0
  %2172 = vmatpush2.msra.mxu0 0.0
  %2173 = vmatprep.subr.mxu0 0.0
  %2174 = vmatpush2.msra.mxu0 0.0
  %2175 = vmatprep.subr.mxu0 0.0
  %2176 = vmatpush2.msra.mxu0 0.0
  %2177 = vmatprep.subr.mxu0 0.0
  %2178 = vmatpush2.msra.mxu0 0.0
  %2179 = vmatprep.subr.mxu0 0.0
  %2180 = vmatpush2.msra.mxu0 0.0
  %2181 = vmatprep.subr.mxu0 0.0
  %2182 = vmatpush2.msra.mxu0 0.0
  %2183 = vmatprep.subr.mxu0 0.0
  %2184 = vmatpush2.msra.mxu0 0.0
  %2185 = vmatprep.subr.mxu0 0.0
  %2186 = vmatpush2.msra.mxu0 0.0
  %2187 = vmatprep.subr.mxu0 0.0
  %2188 = vmatpush2.msra.mxu0 0.0
  %2189 = vmatprep.subr.mxu0 0.0
  %2190 = vmatpush2.msra.mxu0 0.0
  %2191 = vmatprep.mubr.f32.mxu0 0.0
  %2192 = vmatmul.mubr.f32.gmra.mxu0 %v2125
  %v2193 = vpop.f32.mrf.mxu0
  %v2194 = vadd.f32 0.0, %v2193
  %v2195 = vpop.f32.mrf.mxu0
  %2196 = vdwg.mxu0
  %v2198 = vrot.slane %v2194, 5
  %v2200 = vmul.f32 %v14, %v2198
  %v2201 = vlaneseq
  %v2202 = vshrl.u32 %v2201, 7
  %v2203 = vsub.s32 3, %v2202
  %v2204 = vrot.slane %v2200, %v2203
  %v2205 = vmul.f32 %v2027, %v2204
  %v2206 = vmul.f32 %v2028, %v2204
  %v2207 = vmul.f32 %v2029, %v2204
  %v2208 = vmul.f32 %v2030, %v2204
  %v2209 = vlaneseq
  %v2210 = vshrl.u32 %v2209, 7
  %v2211 = vsub.s32 4, %v2210
  %v2212 = vrot.slane %v14, %v2211
  %v2213 = vadd.f32 %v2205, %v2212
  %v2214 = vadd.f32 %v2206, %v2212
  %v2215 = vadd.f32 %v2207, %v2212
  %v2216 = vadd.f32 %v2208, %v2212
  %v2217 = vadd.f32 %v251, %v2213
  %v2218 = vadd.f32 %v252, %v2214
  %v2219 = vadd.f32 %v253, %v2215
  %v2220 = vadd.f32 %v254, %v2216
  %v2221 = vmax.f32 %v2217, 0.0
  %v2222 = vmax.f32 %v2218, 0.0
  %v2223 = vmax.f32 %v2219, 0.0
  %v2224 = vmax.f32 %v2220, 0.0
  %v2225 = vld [vmem:[%s1 + $0x2e0] sm:$0xff]
  %v2226 = vld [vmem:[%s1 + $0x2e8] sm:$0xff]
  %v2227 = vld [vmem:[%s1 + $0x2f0] sm:$0xff]
  %v2228 = vld [vmem:[%s1 + $0x2f8] sm:$0xff]
  %v2229 = vld [vmem:[%s1 + $0x300] sm:$0xff]
  %v2230 = vld [vmem:[%s1 + $0x308] sm:$0xff]
  %v2231 = vld [vmem:[%s1 + $0x310] sm:$0xff]
  %v2232 = vld [vmem:[%s1 + $0x318] sm:$0xff]
  %2233 = vmatprep.subr.mxu0 0.0
  %2234 = vmatpush1.msra.mxu0 0.0
  %2235 = vmatprep.subr.mxu0 0.0
  %2236 = vmatpush1.msra.mxu0 0.0
  %2237 = vmatprep.subr.mxu0 0.0
  %2238 = vmatpush1.msra.mxu0 0.0
  %2239 = vmatprep.subr.mxu0 0.0
  %2240 = vmatpush1.msra.mxu0 0.0
  %2241 = vmatprep.subr.mxu0 0.0
  %2242 = vmatpush1.msra.mxu0 0.0
  %2243 = vmatprep.subr.mxu0 0.0
  %2244 = vmatpush1.msra.mxu0 0.0
  %2245 = vmatprep.subr.mxu0 0.0
  %2246 = vmatpush1.msra.mxu0 0.0
  %2247 = vmatprep.subr.mxu0 0.0
  %2248 = vmatpush1.msra.mxu0 0.0
  %2249 = vmatprep.subr.mxu0 0.0
  %2250 = vmatpush1.msra.mxu0 0.0
  %2251 = vmatprep.subr.mxu0 0.0
  %2252 = vmatpush1.msra.mxu0 0.0
  %2253 = vmatprep.subr.mxu0 0.0
  %2254 = vmatpush1.msra.mxu0 0.0
  %2255 = vmatprep.subr.mxu0 0.0
  %2256 = vmatpush1.msra.mxu0 0.0
  %2257 = vmatprep.subr.mxu0 0.0
  %2258 = vmatpush1.msra.mxu0 %v2224
  %2259 = vmatprep.subr.mxu0 0.0
  %2260 = vmatpush1.msra.mxu0 %v2223
  %2261 = vmatprep.subr.mxu0 0.0
  %2262 = vmatpush1.msra.mxu0 %v2222
  %2263 = vmatprep.subr.mxu0 0.0
  %2264 = vmatpush1.msra.mxu0 %v2221
  %2265 = vmatprep.subr.mxu0 0.0
  %2266 = vmatpush2.msra.mxu0 0.0
  %2267 = vmatprep.subr.mxu0 0.0
  %2268 = vmatpush2.msra.mxu0 0.0
  %2269 = vmatprep.subr.mxu0 0.0
  %2270 = vmatpush2.msra.mxu0 0.0
  %2271 = vmatprep.subr.mxu0 0.0
  %2272 = vmatpush2.msra.mxu0 0.0
  %2273 = vmatprep.subr.mxu0 0.0
  %2274 = vmatpush2.msra.mxu0 0.0
  %2275 = vmatprep.subr.mxu0 0.0
  %2276 = vmatpush2.msra.mxu0 0.0
  %2277 = vmatprep.subr.mxu0 0.0
  %2278 = vmatpush2.msra.mxu0 0.0
  %2279 = vmatprep.subr.mxu0 0.0
  %2280 = vmatpush2.msra.mxu0 0.0
  %2281 = vmatprep.subr.mxu0 0.0
  %2282 = vmatpush2.msra.mxu0 0.0
  %2283 = vmatprep.subr.mxu0 0.0
  %2284 = vmatpush2.msra.mxu0 0.0
  %2285 = vmatprep.subr.mxu0 0.0
  %2286 = vmatpush2.msra.mxu0 0.0
  %2287 = vmatprep.subr.mxu0 0.0
  %2288 = vmatpush2.msra.mxu0 0.0
  %2289 = vmatprep.subr.mxu0 0.0
  %2290 = vmatpush2.msra.mxu0 0.0
  %2291 = vmatprep.subr.mxu0 0.0
  %2292 = vmatpush2.msra.mxu0 0.0
  %2293 = vmatprep.subr.mxu0 0.0
  %2294 = vmatpush2.msra.mxu0 0.0
  %2295 = vmatprep.subr.mxu0 0.0
  %2296 = vmatpush2.msra.mxu0 0.0
  %2297 = vmatprep.mubr.f32.mxu0 0.0
  %2298 = vmatmul.mubr.f32.gmra.mxu0 %v506
  %v2299 = vpop.f32.mrf.mxu0
  %v2300 = vadd.f32 0.0, %v2299
  %v2301 = vpop.f32.mrf.mxu0
  %2302 = vmatprep.mubr.f32.mxu0 0.0
  %2303 = vmatmul.mubr.f32.gmra.mxu0 %v509
  %v2304 = vpop.f32.mrf.mxu0
  %v2305 = vadd.f32 0.0, %v2304
  %v2306 = vpop.f32.mrf.mxu0
  %2307 = vmatprep.mubr.f32.mxu0 0.0
  %2308 = vmatmul.mubr.f32.gmra.mxu0 %v512
  %v2309 = vpop.f32.mrf.mxu0
  %v2310 = vadd.f32 0.0, %v2309
  %v2311 = vpop.f32.mrf.mxu0
  %2312 = vmatprep.mubr.f32.mxu0 0.0
  %2313 = vmatmul.mubr.f32.gmra.mxu0 %v515
  %v2314 = vpop.f32.mrf.mxu0
  %v2315 = vadd.f32 0.0, %v2314
  %v2316 = vpop.f32.mrf.mxu0
  %2317 = vdwg.mxu0
  %v2318 = vld [vmem:[%s1 + $0x2a0] sm:$0xff]
  %v2319 = vld [vmem:[%s1 + $0x2a8] sm:$0xff]
  %v2320 = vld [vmem:[%s1 + $0x2b0] sm:$0xff]
  %v2321 = vld [vmem:[%s1 + $0x2b8] sm:$0xff]
  %v2322 = vld [vmem:[%s1 + $0x2c0] sm:$0xff]
  %v2323 = vld [vmem:[%s1 + $0x2c8] sm:$0xff]
  %v2324 = vld [vmem:[%s1 + $0x2d0] sm:$0xff]
  %v2325 = vld [vmem:[%s1 + $0x2d8] sm:$0xff]
  %v2327 = vsel %vm610, %v2300, 0
  %v2330 = vsel %vm610, %v2305, 0
  %v2333 = vsel %vm610, %v2310, 0
  %v2336 = vsel %vm610, %v2315, 0
  %2338 = vmatprep.subr.mxu0 0.0
  %2339 = vmatpush1.msra.mxu0 0.0
  %2340 = vmatprep.subr.mxu0 0.0
  %2341 = vmatpush1.msra.mxu0 0.0
  %2342 = vmatprep.subr.mxu0 0.0
  %2343 = vmatpush1.msra.mxu0 0.0
  %2344 = vmatprep.subr.mxu0 0.0
  %2345 = vmatpush1.msra.mxu0 0.0
  %2346 = vmatprep.subr.mxu0 0.0
  %2347 = vmatpush1.msra.mxu0 0.0
  %2348 = vmatprep.subr.mxu0 0.0
  %2349 = vmatpush1.msra.mxu0 0.0
  %2350 = vmatprep.subr.mxu0 0.0
  %2351 = vmatpush1.msra.mxu0 0.0
  %2352 = vmatprep.subr.mxu0 0.0
  %2353 = vmatpush1.msra.mxu0 0.0
  %2354 = vmatprep.subr.mxu0 0.0
  %2355 = vmatpush1.msra.mxu0 %v2325
  %2356 = vmatprep.subr.mxu0 0.0
  %2357 = vmatpush1.msra.mxu0 %v2324
  %2358 = vmatprep.subr.mxu0 0.0
  %2359 = vmatpush1.msra.mxu0 %v2323
  %2360 = vmatprep.subr.mxu0 0.0
  %2361 = vmatpush1.msra.mxu0 %v2322
  %2362 = vmatprep.subr.mxu0 0.0
  %2363 = vmatpush1.msra.mxu0 %v2321
  %2364 = vmatprep.subr.mxu0 0.0
  %2365 = vmatpush1.msra.mxu0 %v2320
  %2366 = vmatprep.subr.mxu0 0.0
  %2367 = vmatpush1.msra.mxu0 %v2319
  %2368 = vmatprep.subr.mxu0 0.0
  %2369 = vmatpush1.msra.mxu0 %v2318
  %2370 = vmatprep.subr.mxu0 0.0
  %2371 = vmatpush2.msra.mxu0 0.0
  %2372 = vmatprep.subr.mxu0 0.0
  %2373 = vmatpush2.msra.mxu0 0.0
  %2374 = vmatprep.subr.mxu0 0.0
  %2375 = vmatpush2.msra.mxu0 0.0
  %2376 = vmatprep.subr.mxu0 0.0
  %2377 = vmatpush2.msra.mxu0 0.0
  %2378 = vmatprep.subr.mxu0 0.0
  %2379 = vmatpush2.msra.mxu0 0.0
  %2380 = vmatprep.subr.mxu0 0.0
  %2381 = vmatpush2.msra.mxu0 0.0
  %2382 = vmatprep.subr.mxu0 0.0
  %2383 = vmatpush2.msra.mxu0 0.0
  %2384 = vmatprep.subr.mxu0 0.0
  %2385 = vmatpush2.msra.mxu0 0.0
  %2386 = vmatprep.subr.mxu0 0.0
  %2387 = vmatpush2.msra.mxu0 0.0
  %2388 = vmatprep.subr.mxu0 0.0
  %2389 = vmatpush2.msra.mxu0 0.0
  %2390 = vmatprep.subr.mxu0 0.0
  %2391 = vmatpush2.msra.mxu0 0.0
  %2392 = vmatprep.subr.mxu0 0.0
  %2393 = vmatpush2.msra.mxu0 0.0
  %2394 = vmatprep.subr.mxu0 0.0
  %2395 = vmatpush2.msra.mxu0 0.0
  %2396 = vmatprep.subr.mxu0 0.0
  %2397 = vmatpush2.msra.mxu0 0.0
  %2398 = vmatprep.subr.mxu0 0.0
  %2399 = vmatpush2.msra.mxu0 0.0
  %2400 = vmatprep.subr.mxu0 0.0
  %2401 = vmatpush2.msra.mxu0 0.0
  %2402 = vmatprep.mubr.f32.mxu0 0.0
  %2403 = vmatmul.mubr.f32.gmra.mxu0 %v2327
  %v2404 = vpop.f32.mrf.mxu0
  %v2405 = vadd.f32 0.0, %v2404
  %v2406 = vpop.f32.mrf.mxu0
  %2407 = vmatprep.mubr.f32.mxu0 0.0
  %2408 = vmatmul.mubr.f32.gmra.mxu0 %v2330
  %v2409 = vpop.f32.mrf.mxu0
  %v2410 = vadd.f32 0.0, %v2409
  %v2411 = vpop.f32.mrf.mxu0
  %2412 = vmatprep.mubr.f32.mxu0 0.0
  %2413 = vmatmul.mubr.f32.gmra.mxu0 %v2333
  %v2414 = vpop.f32.mrf.mxu0
  %v2415 = vadd.f32 0.0, %v2414
  %v2416 = vpop.f32.mrf.mxu0
  %2417 = vmatprep.mubr.f32.mxu0 0.0
  %2418 = vmatmul.mubr.f32.gmra.mxu0 %v2336
  %v2419 = vpop.f32.mrf.mxu0
  %v2420 = vadd.f32 0.0, %v2419
  %v2421 = vpop.f32.mrf.mxu0
  %2422 = vdwg.mxu0
  %v2424 = vsel %vm610, %v2221, 0
  %v2427 = vsel %vm610, %v2222, 0
  %v2430 = vsel %vm610, %v2223, 0
  %v2433 = vsel %vm610, %v2224, 0
  %2435 = vmatprep.subr.mxu0 0.0
  %2436 = vmatpush1.msra.mxu0 0.0
  %2437 = vmatprep.subr.mxu0 0.0
  %2438 = vmatpush1.msra.mxu0 0.0
  %2439 = vmatprep.subr.mxu0 0.0
  %2440 = vmatpush1.msra.mxu0 0.0
  %2441 = vmatprep.subr.mxu0 0.0
  %2442 = vmatpush1.msra.mxu0 0.0
  %2443 = vmatprep.subr.mxu0 0.0
  %2444 = vmatpush1.msra.mxu0 0.0
  %2445 = vmatprep.subr.mxu0 0.0
  %2446 = vmatpush1.msra.mxu0 0.0
  %2447 = vmatprep.subr.mxu0 0.0
  %2448 = vmatpush1.msra.mxu0 0.0
  %2449 = vmatprep.subr.mxu0 0.0
  %2450 = vmatpush1.msra.mxu0 0.0
  %2451 = vmatprep.subr.mxu0 0.0
  %2452 = vmatpush1.msra.mxu0 %v2232
  %2453 = vmatprep.subr.mxu0 0.0
  %2454 = vmatpush1.msra.mxu0 %v2231
  %2455 = vmatprep.subr.mxu0 0.0
  %2456 = vmatpush1.msra.mxu0 %v2230
  %2457 = vmatprep.subr.mxu0 0.0
  %2458 = vmatpush1.msra.mxu0 %v2229
  %2459 = vmatprep.subr.mxu0 0.0
  %2460 = vmatpush1.msra.mxu0 %v2228
  %2461 = vmatprep.subr.mxu0 0.0
  %2462 = vmatpush1.msra.mxu0 %v2227
  %2463 = vmatprep.subr.mxu0 0.0
  %2464 = vmatpush1.msra.mxu0 %v2226
  %2465 = vmatprep.subr.mxu0 0.0
  %2466 = vmatpush1.msra.mxu0 %v2225
  %2467 = vmatprep.subr.mxu0 0.0
  %2468 = vmatpush2.msra.mxu0 0.0
  %2469 = vmatprep.subr.mxu0 0.0
  %2470 = vmatpush2.msra.mxu0 0.0
  %2471 = vmatprep.subr.mxu0 0.0
  %2472 = vmatpush2.msra.mxu0 0.0
  %2473 = vmatprep.subr.mxu0 0.0
  %2474 = vmatpush2.msra.mxu0 0.0
  %2475 = vmatprep.subr.mxu0 0.0
  %2476 = vmatpush2.msra.mxu0 0.0
  %2477 = vmatprep.subr.mxu0 0.0
  %2478 = vmatpush2.msra.mxu0 0.0
  %2479 = vmatprep.subr.mxu0 0.0
  %2480 = vmatpush2.msra.mxu0 0.0
  %2481 = vmatprep.subr.mxu0 0.0
  %2482 = vmatpush2.msra.mxu0 0.0
  %2483 = vmatprep.subr.mxu0 0.0
  %2484 = vmatpush2.msra.mxu0 0.0
  %2485 = vmatprep.subr.mxu0 0.0
  %2486 = vmatpush2.msra.mxu0 0.0
  %2487 = vmatprep.subr.mxu0 0.0
  %2488 = vmatpush2.msra.mxu0 0.0
  %2489 = vmatprep.subr.mxu0 0.0
  %2490 = vmatpush2.msra.mxu0 0.0
  %2491 = vmatprep.subr.mxu0 0.0
  %2492 = vmatpush2.msra.mxu0 0.0
  %2493 = vmatprep.subr.mxu0 0.0
  %2494 = vmatpush2.msra.mxu0 0.0
  %2495 = vmatprep.subr.mxu0 0.0
  %2496 = vmatpush2.msra.mxu0 0.0
  %2497 = vmatprep.subr.mxu0 0.0
  %2498 = vmatpush2.msra.mxu0 0.0
  %2499 = vmatprep.mubr.f32.mxu0 0.0
  %2500 = vmatmul.mubr.f32.gmra.mxu0 %v2424
  %v2501 = vpop.f32.mrf.mxu0
  %v2502 = vadd.f32 %v2405, %v2501
  %v2503 = vpop.f32.mrf.mxu0
  %2504 = vmatprep.mubr.f32.mxu0 0.0
  %2505 = vmatmul.mubr.f32.gmra.mxu0 %v2427
  %v2506 = vpop.f32.mrf.mxu0
  %v2507 = vadd.f32 %v2410, %v2506
  %v2508 = vpop.f32.mrf.mxu0
  %2509 = vmatprep.mubr.f32.mxu0 0.0
  %2510 = vmatmul.mubr.f32.gmra.mxu0 %v2430
  %v2511 = vpop.f32.mrf.mxu0
  %v2512 = vadd.f32 %v2415, %v2511
  %v2513 = vpop.f32.mrf.mxu0
  %2514 = vmatprep.mubr.f32.mxu0 0.0
  %2515 = vmatmul.mubr.f32.gmra.mxu0 %v2433
  %v2516 = vpop.f32.mrf.mxu0
  %v2517 = vadd.f32 %v2420, %v2516
  %v2518 = vpop.f32.mrf.mxu0
  %2519 = vdwg.mxu0
  %2520 = vmatprep.subr.mxu0 0.0
  %2521 = vmatpush1.msra.mxu0 0.0
  %2522 = vmatprep.subr.mxu0 0.0
  %2523 = vmatpush1.msra.mxu0 0.0
  %2524 = vmatprep.subr.mxu0 0.0
  %2525 = vmatpush1.msra.mxu0 0.0
  %2526 = vmatprep.subr.mxu0 0.0
  %2527 = vmatpush1.msra.mxu0 0.0
  %2528 = vmatprep.subr.mxu0 0.0
  %2529 = vmatpush1.msra.mxu0 0.0
  %2530 = vmatprep.subr.mxu0 0.0
  %2531 = vmatpush1.msra.mxu0 0.0
  %2532 = vmatprep.subr.mxu0 0.0
  %2533 = vmatpush1.msra.mxu0 0.0
  %2534 = vmatprep.subr.mxu0 0.0
  %2535 = vmatpush1.msra.mxu0 0.0
  %2536 = vmatprep.subr.mxu0 0.0
  %2537 = vmatpush1.msra.mxu0 0.0
  %2538 = vmatprep.subr.mxu0 0.0
  %2539 = vmatpush1.msra.mxu0 0.0
  %2540 = vmatprep.subr.mxu0 0.0
  %2541 = vmatpush1.msra.mxu0 0.0
  %2542 = vmatprep.subr.mxu0 0.0
  %2543 = vmatpush1.msra.mxu0 0.0
  %2544 = vmatprep.subr.mxu0 0.0
  %2545 = vmatpush1.msra.mxu0 %v2224
  %2546 = vmatprep.subr.mxu0 0.0
  %2547 = vmatpush1.msra.mxu0 %v2223
  %2548 = vmatprep.subr.mxu0 0.0
  %2549 = vmatpush1.msra.mxu0 %v2222
  %2550 = vmatprep.subr.mxu0 0.0
  %2551 = vmatpush1.msra.mxu0 %v2221
  %2552 = vmatprep.subr.mxu0 0.0
  %2553 = vmatpush2.msra.mxu0 0.0
  %2554 = vmatprep.subr.mxu0 0.0
  %2555 = vmatpush2.msra.mxu0 0.0
  %2556 = vmatprep.subr.mxu0 0.0
  %2557 = vmatpush2.msra.mxu0 0.0
  %2558 = vmatprep.subr.mxu0 0.0
  %2559 = vmatpush2.msra.mxu0 0.0
  %2560 = vmatprep.subr.mxu0 0.0
  %2561 = vmatpush2.msra.mxu0 0.0
  %2562 = vmatprep.subr.mxu0 0.0
  %2563 = vmatpush2.msra.mxu0 0.0
  %2564 = vmatprep.subr.mxu0 0.0
  %2565 = vmatpush2.msra.mxu0 0.0
  %2566 = vmatprep.subr.mxu0 0.0
  %2567 = vmatpush2.msra.mxu0 0.0
  %2568 = vmatprep.subr.mxu0 0.0
  %2569 = vmatpush2.msra.mxu0 0.0
  %2570 = vmatprep.subr.mxu0 0.0
  %2571 = vmatpush2.msra.mxu0 0.0
  %2572 = vmatprep.subr.mxu0 0.0
  %2573 = vmatpush2.msra.mxu0 0.0
  %2574 = vmatprep.subr.mxu0 0.0
  %2575 = vmatpush2.msra.mxu0 0.0
  %2576 = vmatprep.subr.mxu0 0.0
  %2577 = vmatpush2.msra.mxu0 0.0
  %2578 = vmatprep.subr.mxu0 0.0
  %2579 = vmatpush2.msra.mxu0 0.0
  %2580 = vmatprep.subr.mxu0 0.0
  %2581 = vmatpush2.msra.mxu0 0.0
  %2582 = vmatprep.subr.mxu0 0.0
  %2583 = vmatpush2.msra.mxu0 0.0
  %2584 = vmatprep.mubr.f32.mxu0 0.0
  %2585 = vmatmul.mubr.f32.gmra.mxu0 %v806
  %v2586 = vpop.f32.mrf.mxu0
  %v2587 = vadd.f32 0.0, %v2586
  %v2588 = vpop.f32.mrf.mxu0
  %2589 = vmatprep.mubr.f32.mxu0 0.0
  %2590 = vmatmul.mubr.f32.gmra.mxu0 %v809
  %v2591 = vpop.f32.mrf.mxu0
  %v2592 = vadd.f32 0.0, %v2591
  %v2593 = vpop.f32.mrf.mxu0
  %2594 = vmatprep.mubr.f32.mxu0 0.0
  %2595 = vmatmul.mubr.f32.gmra.mxu0 %v812
  %v2596 = vpop.f32.mrf.mxu0
  %v2597 = vadd.f32 0.0, %v2596
  %v2598 = vpop.f32.mrf.mxu0
  %2599 = vmatprep.mubr.f32.mxu0 0.0
  %2600 = vmatmul.mubr.f32.gmra.mxu0 %v815
  %v2601 = vpop.f32.mrf.mxu0
  %v2602 = vadd.f32 0.0, %v2601
  %v2603 = vpop.f32.mrf.mxu0
  %2604 = vdwg.mxu0
  %v2605 = vld [vmem:[%s1 + $0x320] sm:$0xff]
  %v2606 = vld [vmem:[%s1 + $0x328] sm:$0xff]
  %v2607 = vld [vmem:[%s1 + $0x330] sm:$0xff]
  %v2608 = vld [vmem:[%s1 + $0x338] sm:$0xff]
  %v2609 = vld [vmem:[%s1 + $0x340] sm:$0xff]
  %v2610 = vld [vmem:[%s1 + $0x348] sm:$0xff]
  %v2611 = vld [vmem:[%s1 + $0x350] sm:$0xff]
  %v2612 = vld [vmem:[%s1 + $0x358] sm:$0xff]
  %v2614 = vsel %vm610, %v2587, 0
  %v2617 = vsel %vm610, %v2592, 0
  %v2620 = vsel %vm610, %v2597, 0
  %v2623 = vsel %vm610, %v2602, 0
  %2625 = vmatprep.subr.mxu0 0.0
  %2626 = vmatpush1.msra.mxu0 0.0
  %2627 = vmatprep.subr.mxu0 0.0
  %2628 = vmatpush1.msra.mxu0 0.0
  %2629 = vmatprep.subr.mxu0 0.0
  %2630 = vmatpush1.msra.mxu0 0.0
  %2631 = vmatprep.subr.mxu0 0.0
  %2632 = vmatpush1.msra.mxu0 0.0
  %2633 = vmatprep.subr.mxu0 0.0
  %2634 = vmatpush1.msra.mxu0 0.0
  %2635 = vmatprep.subr.mxu0 0.0
  %2636 = vmatpush1.msra.mxu0 0.0
  %2637 = vmatprep.subr.mxu0 0.0
  %2638 = vmatpush1.msra.mxu0 0.0
  %2639 = vmatprep.subr.mxu0 0.0
  %2640 = vmatpush1.msra.mxu0 0.0
  %2641 = vmatprep.subr.mxu0 0.0
  %2642 = vmatpush1.msra.mxu0 %v2612
  %2643 = vmatprep.subr.mxu0 0.0
  %2644 = vmatpush1.msra.mxu0 %v2611
  %2645 = vmatprep.subr.mxu0 0.0
  %2646 = vmatpush1.msra.mxu0 %v2610
  %2647 = vmatprep.subr.mxu0 0.0
  %2648 = vmatpush1.msra.mxu0 %v2609
  %2649 = vmatprep.subr.mxu0 0.0
  %2650 = vmatpush1.msra.mxu0 %v2608
  %2651 = vmatprep.subr.mxu0 0.0
  %2652 = vmatpush1.msra.mxu0 %v2607
  %2653 = vmatprep.subr.mxu0 0.0
  %2654 = vmatpush1.msra.mxu0 %v2606
  %2655 = vmatprep.subr.mxu0 0.0
  %2656 = vmatpush1.msra.mxu0 %v2605
  %2657 = vmatprep.subr.mxu0 0.0
  %2658 = vmatpush2.msra.mxu0 0.0
  %2659 = vmatprep.subr.mxu0 0.0
  %2660 = vmatpush2.msra.mxu0 0.0
  %2661 = vmatprep.subr.mxu0 0.0
  %2662 = vmatpush2.msra.mxu0 0.0
  %2663 = vmatprep.subr.mxu0 0.0
  %2664 = vmatpush2.msra.mxu0 0.0
  %2665 = vmatprep.subr.mxu0 0.0
  %2666 = vmatpush2.msra.mxu0 0.0
  %2667 = vmatprep.subr.mxu0 0.0
  %2668 = vmatpush2.msra.mxu0 0.0
  %2669 = vmatprep.subr.mxu0 0.0
  %2670 = vmatpush2.msra.mxu0 0.0
  %2671 = vmatprep.subr.mxu0 0.0
  %2672 = vmatpush2.msra.mxu0 0.0
  %2673 = vmatprep.subr.mxu0 0.0
  %2674 = vmatpush2.msra.mxu0 0.0
  %2675 = vmatprep.subr.mxu0 0.0
  %2676 = vmatpush2.msra.mxu0 0.0
  %2677 = vmatprep.subr.mxu0 0.0
  %2678 = vmatpush2.msra.mxu0 0.0
  %2679 = vmatprep.subr.mxu0 0.0
  %2680 = vmatpush2.msra.mxu0 0.0
  %2681 = vmatprep.subr.mxu0 0.0
  %2682 = vmatpush2.msra.mxu0 0.0
  %2683 = vmatprep.subr.mxu0 0.0
  %2684 = vmatpush2.msra.mxu0 0.0
  %2685 = vmatprep.subr.mxu0 0.0
  %2686 = vmatpush2.msra.mxu0 0.0
  %2687 = vmatprep.subr.mxu0 0.0
  %2688 = vmatpush2.msra.mxu0 0.0
  %2689 = vmatprep.mubr.f32.mxu0 0.0
  %2690 = vmatmul.mubr.f32.gmra.mxu0 %v2614
  %v2691 = vpop.f32.mrf.mxu0
  %v2692 = vadd.f32 0.0, %v2691
  %v2693 = vpop.f32.mrf.mxu0
  %2694 = vmatprep.mubr.f32.mxu0 0.0
  %2695 = vmatmul.mubr.f32.gmra.mxu0 %v2617
  %v2696 = vpop.f32.mrf.mxu0
  %v2697 = vadd.f32 0.0, %v2696
  %v2698 = vpop.f32.mrf.mxu0
  %2699 = vmatprep.mubr.f32.mxu0 0.0
  %2700 = vmatmul.mubr.f32.gmra.mxu0 %v2620
  %v2701 = vpop.f32.mrf.mxu0
  %v2702 = vadd.f32 0.0, %v2701
  %v2703 = vpop.f32.mrf.mxu0
  %2704 = vmatprep.mubr.f32.mxu0 0.0
  %2705 = vmatmul.mubr.f32.gmra.mxu0 %v2623
  %v2706 = vpop.f32.mrf.mxu0
  %v2707 = vadd.f32 0.0, %v2706
  %v2708 = vpop.f32.mrf.mxu0
  %2709 = vdwg.mxu0
  %v2710 = vadd.f32 %v2502, %v2692
  %v2711 = vadd.f32 %v2507, %v2697
  %v2712 = vadd.f32 %v2512, %v2702
  %v2713 = vadd.f32 %v2517, %v2707
  %v2714 = vsel %vm610, %v2710, 0.0
  %v2715 = vsel %vm610, %v2711, 0.0
  %v2716 = vadd.f32 %v2714, %v2715
  %v2717 = vsel %vm610, %v2712, 0.0
  %v2718 = vadd.f32 %v2716, %v2717
  %v2719 = vsel %vm610, %v2713, 0.0
  %v2720 = vadd.f32 %v2718, %v2719
  %v2721 = vrot.slane %v2720, 4
  %v2722 = vadd.f32 %v2720, %v2721
  %v2723 = vrot.slane %v2722, 2
  %v2724 = vadd.f32 %v2722, %v2723
  %v2725 = vrot.slane %v2724, 1
  %v2726 = vadd.f32 %v2724, %v2725
  %v2728 = vsel %vm610, %v2726, 0
  %2730 = vmatprep.subr.mxu0 0.0
  %2731 = vmatpush1.msra.mxu0 0.0
  %2732 = vmatprep.subr.mxu0 0.0
  %2733 = vmatpush1.msra.mxu0 0.0
  %2734 = vmatprep.subr.mxu0 0.0
  %2735 = vmatpush1.msra.mxu0 0.0
  %2736 = vmatprep.subr.mxu0 0.0
  %2737 = vmatpush1.msra.mxu0 0.0
  %2738 = vmatprep.subr.mxu0 0.0
  %2739 = vmatpush1.msra.mxu0 0.0
  %2740 = vmatprep.subr.mxu0 0.0
  %2741 = vmatpush1.msra.mxu0 0.0
  %2742 = vmatprep.subr.mxu0 0.0
  %2743 = vmatpush1.msra.mxu0 0.0
  %2744 = vmatprep.subr.mxu0 0.0
  %2745 = vmatpush1.msra.mxu0 0.0
  %2746 = vmatprep.subr.mxu0 0.0
  %2747 = vmatpush1.msra.mxu0 %v481
  %2748 = vmatprep.subr.mxu0 0.0
  %2749 = vmatpush1.msra.mxu0 %v480
  %2750 = vmatprep.subr.mxu0 0.0
  %2751 = vmatpush1.msra.mxu0 %v479
  %2752 = vmatprep.subr.mxu0 0.0
  %2753 = vmatpush1.msra.mxu0 %v478
  %2754 = vmatprep.subr.mxu0 0.0
  %2755 = vmatpush1.msra.mxu0 %v477
  %2756 = vmatprep.subr.mxu0 0.0
  %2757 = vmatpush1.msra.mxu0 %v476
  %2758 = vmatprep.subr.mxu0 0.0
  %2759 = vmatpush1.msra.mxu0 %v475
  %2760 = vmatprep.subr.mxu0 0.0
  %2761 = vmatpush1.msra.mxu0 %v474
  %2762 = vmatprep.subr.mxu0 0.0
  %2763 = vmatpush2.msra.mxu0 0.0
  %2764 = vmatprep.subr.mxu0 0.0
  %2765 = vmatpush2.msra.mxu0 0.0
  %2766 = vmatprep.subr.mxu0 0.0
  %2767 = vmatpush2.msra.mxu0 0.0
  %2768 = vmatprep.subr.mxu0 0.0
  %2769 = vmatpush2.msra.mxu0 0.0
  %2770 = vmatprep.subr.mxu0 0.0
  %2771 = vmatpush2.msra.mxu0 0.0
  %2772 = vmatprep.subr.mxu0 0.0
  %2773 = vmatpush2.msra.mxu0 0.0
  %2774 = vmatprep.subr.mxu0 0.0
  %2775 = vmatpush2.msra.mxu0 0.0
  %2776 = vmatprep.subr.mxu0 0.0
  %2777 = vmatpush2.msra.mxu0 0.0
  %2778 = vmatprep.subr.mxu0 0.0
  %2779 = vmatpush2.msra.mxu0 0.0
  %2780 = vmatprep.subr.mxu0 0.0
  %2781 = vmatpush2.msra.mxu0 0.0
  %2782 = vmatprep.subr.mxu0 0.0
  %2783 = vmatpush2.msra.mxu0 0.0
  %2784 = vmatprep.subr.mxu0 0.0
  %2785 = vmatpush2.msra.mxu0 0.0
  %2786 = vmatprep.subr.mxu0 0.0
  %2787 = vmatpush2.msra.mxu0 0.0
  %2788 = vmatprep.subr.mxu0 0.0
  %2789 = vmatpush2.msra.mxu0 0.0
  %2790 = vmatprep.subr.mxu0 0.0
  %2791 = vmatpush2.msra.mxu0 0.0
  %2792 = vmatprep.subr.mxu0 0.0
  %2793 = vmatpush2.msra.mxu0 0.0
  %2794 = vmatprep.mubr.f32.mxu0 0.0
  %2795 = vmatmul.mubr.f32.gmra.mxu0 %v2728
  %v2796 = vpop.f32.mrf.mxu0
  %v2797 = vadd.f32 0.0, %v2796
  %v2798 = vpop.f32.mrf.mxu0
  %2799 = vdwg.mxu0
  %v2800 = vmul.f32 %v2797, 0.001953125
  %v2802 = vsel %vm1098, %v2800, 0
  %2804 = vmatprep.subr.mxu0 0.0
  %2805 = vmatpush1.msra.mxu0 0.0
  %2806 = vmatprep.subr.mxu0 0.0
  %2807 = vmatpush1.msra.mxu0 0.0
  %2808 = vmatprep.subr.mxu0 0.0
  %2809 = vmatpush1.msra.mxu0 0.0
  %2810 = vmatprep.subr.mxu0 0.0
  %2811 = vmatpush1.msra.mxu0 0.0
  %2812 = vmatprep.subr.mxu0 0.0
  %2813 = vmatpush1.msra.mxu0 0.0
  %2814 = vmatprep.subr.mxu0 0.0
  %2815 = vmatpush1.msra.mxu0 0.0
  %2816 = vmatprep.subr.mxu0 0.0
  %2817 = vmatpush1.msra.mxu0 0.0
  %2818 = vmatprep.subr.mxu0 0.0
  %2819 = vmatpush1.msra.mxu0 0.0
  %2820 = vmatprep.subr.mxu0 0.0
  %2821 = vmatpush1.msra.mxu0 0.0
  %2822 = vmatprep.subr.mxu0 0.0
  %2823 = vmatpush1.msra.mxu0 0.0
  %2824 = vmatprep.subr.mxu0 0.0
  %2825 = vmatpush1.msra.mxu0 0.0
  %2826 = vmatprep.subr.mxu0 0.0
  %2827 = vmatpush1.msra.mxu0 0.0
  %2828 = vmatprep.subr.mxu0 0.0
  %2829 = vmatpush1.msra.mxu0 0.0
  %2830 = vmatprep.subr.mxu0 0.0
  %2831 = vmatpush1.msra.mxu0 0.0
  %2832 = vmatprep.subr.mxu0 0.0
  %2833 = vmatpush1.msra.mxu0 0.0
  %2834 = vmatprep.subr.mxu0 0.0
  %2835 = vmatpush1.msra.mxu0 %v1104
  %2836 = vmatprep.subr.mxu0 0.0
  %2837 = vmatpush2.msra.mxu0 0.0
  %2838 = vmatprep.subr.mxu0 0.0
  %2839 = vmatpush2.msra.mxu0 0.0
  %2840 = vmatprep.subr.mxu0 0.0
  %2841 = vmatpush2.msra.mxu0 0.0
  %2842 = vmatprep.subr.mxu0 0.0
  %2843 = vmatpush2.msra.mxu0 0.0
  %2844 = vmatprep.subr.mxu0 0.0
  %2845 = vmatpush2.msra.mxu0 0.0
  %2846 = vmatprep.subr.mxu0 0.0
  %2847 = vmatpush2.msra.mxu0 0.0
  %2848 = vmatprep.subr.mxu0 0.0
  %2849 = vmatpush2.msra.mxu0 0.0
  %2850 = vmatprep.subr.mxu0 0.0
  %2851 = vmatpush2.msra.mxu0 0.0
  %2852 = vmatprep.subr.mxu0 0.0
  %2853 = vmatpush2.msra.mxu0 0.0
  %2854 = vmatprep.subr.mxu0 0.0
  %2855 = vmatpush2.msra.mxu0 0.0
  %2856 = vmatprep.subr.mxu0 0.0
  %2857 = vmatpush2.msra.mxu0 0.0
  %2858 = vmatprep.subr.mxu0 0.0
  %2859 = vmatpush2.msra.mxu0 0.0
  %2860 = vmatprep.subr.mxu0 0.0
  %2861 = vmatpush2.msra.mxu0 0.0
  %2862 = vmatprep.subr.mxu0 0.0
  %2863 = vmatpush2.msra.mxu0 0.0
  %2864 = vmatprep.subr.mxu0 0.0
  %2865 = vmatpush2.msra.mxu0 0.0
  %2866 = vmatprep.subr.mxu0 0.0
  %2867 = vmatpush2.msra.mxu0 0.0
  %2868 = vmatprep.mubr.f32.mxu0 0.0
  %2869 = vmatmul.mubr.f32.gmra.mxu0 %v2802
  %v2870 = vpop.f32.mrf.mxu0
  %v2871 = vadd.f32 0.0, %v2870
  %v2872 = vpop.f32.mrf.mxu0
  %2873 = vdwg.mxu0
  %v2874 = vlaneseq
  %v2875 = vshrl.u32 %v2874, 7
  %v2876 = vsub.s32 0, %v2875
  %v2877 = vrot.slane %v2871, %v2876
  %v2878 = vsub.f32 %v2710, %v2877
  %v2879 = vsub.f32 %v2711, %v2877
  %v2880 = vsub.f32 %v2712, %v2877
  %v2881 = vsub.f32 %v2713, %v2877
  %v2882 = vmul.f32 %v2878, %v2878
  %v2883 = vmul.f32 %v2879, %v2879
  %v2884 = vmul.f32 %v2880, %v2880
  %v2885 = vmul.f32 %v2881, %v2881
  %v2886 = vsel %vm610, %v2882, 0.0
  %v2887 = vsel %vm610, %v2883, 0.0
  %v2888 = vadd.f32 %v2886, %v2887
  %v2889 = vsel %vm610, %v2884, 0.0
  %v2890 = vadd.f32 %v2888, %v2889
  %v2891 = vsel %vm610, %v2885, 0.0
  %v2892 = vadd.f32 %v2890, %v2891
  %v2893 = vrot.slane %v2892, 4
  %v2894 = vadd.f32 %v2892, %v2893
  %v2895 = vrot.slane %v2894, 2
  %v2896 = vadd.f32 %v2894, %v2895
  %v2897 = vrot.slane %v2896, 1
  %v2898 = vadd.f32 %v2896, %v2897
  %v2900 = vsel %vm610, %v2898, 0
  %2902 = vmatprep.subr.mxu0 0.0
  %2903 = vmatpush1.msra.mxu0 0.0
  %2904 = vmatprep.subr.mxu0 0.0
  %2905 = vmatpush1.msra.mxu0 0.0
  %2906 = vmatprep.subr.mxu0 0.0
  %2907 = vmatpush1.msra.mxu0 0.0
  %2908 = vmatprep.subr.mxu0 0.0
  %2909 = vmatpush1.msra.mxu0 0.0
  %2910 = vmatprep.subr.mxu0 0.0
  %2911 = vmatpush1.msra.mxu0 0.0
  %2912 = vmatprep.subr.mxu0 0.0
  %2913 = vmatpush1.msra.mxu0 0.0
  %2914 = vmatprep.subr.mxu0 0.0
  %2915 = vmatpush1.msra.mxu0 0.0
  %2916 = vmatprep.subr.mxu0 0.0
  %2917 = vmatpush1.msra.mxu0 0.0
  %2918 = vmatprep.subr.mxu0 0.0
  %2919 = vmatpush1.msra.mxu0 %v481
  %2920 = vmatprep.subr.mxu0 0.0
  %2921 = vmatpush1.msra.mxu0 %v480
  %2922 = vmatprep.subr.mxu0 0.0
  %2923 = vmatpush1.msra.mxu0 %v479
  %2924 = vmatprep.subr.mxu0 0.0
  %2925 = vmatpush1.msra.mxu0 %v478
  %2926 = vmatprep.subr.mxu0 0.0
  %2927 = vmatpush1.msra.mxu0 %v477
  %2928 = vmatprep.subr.mxu0 0.0
  %2929 = vmatpush1.msra.mxu0 %v476
  %2930 = vmatprep.subr.mxu0 0.0
  %2931 = vmatpush1.msra.mxu0 %v475
  %2932 = vmatprep.subr.mxu0 0.0
  %2933 = vmatpush1.msra.mxu0 %v474
  %2934 = vmatprep.subr.mxu0 0.0
  %2935 = vmatpush2.msra.mxu0 0.0
  %2936 = vmatprep.subr.mxu0 0.0
  %2937 = vmatpush2.msra.mxu0 0.0
  %2938 = vmatprep.subr.mxu0 0.0
  %2939 = vmatpush2.msra.mxu0 0.0
  %2940 = vmatprep.subr.mxu0 0.0
  %2941 = vmatpush2.msra.mxu0 0.0
  %2942 = vmatprep.subr.mxu0 0.0
  %2943 = vmatpush2.msra.mxu0 0.0
  %2944 = vmatprep.subr.mxu0 0.0
  %2945 = vmatpush2.msra.mxu0 0.0
  %2946 = vmatprep.subr.mxu0 0.0
  %2947 = vmatpush2.msra.mxu0 0.0
  %2948 = vmatprep.subr.mxu0 0.0
  %2949 = vmatpush2.msra.mxu0 0.0
  %2950 = vmatprep.subr.mxu0 0.0
  %2951 = vmatpush2.msra.mxu0 0.0
  %2952 = vmatprep.subr.mxu0 0.0
  %2953 = vmatpush2.msra.mxu0 0.0
  %2954 = vmatprep.subr.mxu0 0.0
  %2955 = vmatpush2.msra.mxu0 0.0
  %2956 = vmatprep.subr.mxu0 0.0
  %2957 = vmatpush2.msra.mxu0 0.0
  %2958 = vmatprep.subr.mxu0 0.0
  %2959 = vmatpush2.msra.mxu0 0.0
  %2960 = vmatprep.subr.mxu0 0.0
  %2961 = vmatpush2.msra.mxu0 0.0
  %2962 = vmatprep.subr.mxu0 0.0
  %2963 = vmatpush2.msra.mxu0 0.0
  %2964 = vmatprep.subr.mxu0 0.0
  %2965 = vmatpush2.msra.mxu0 0.0
  %2966 = vmatprep.mubr.f32.mxu0 0.0
  %2967 = vmatmul.mubr.f32.gmra.mxu0 %v2900
  %v2968 = vpop.f32.mrf.mxu0
  %v2969 = vadd.f32 0.0, %v2968
  %v2970 = vpop.f32.mrf.mxu0
  %2971 = vdwg.mxu0
  %v2972 = vmul.f32 %v2969, 0.001953125
  %v2973 = vadd.f32 %v2972, 1e-05
  %v2974 = vrsqrt.pop %v2973
  %v2976 = vsel %vm1098, %v2974, 0
  %2978 = vmatprep.subr.mxu0 0.0
  %2979 = vmatpush1.msra.mxu0 0.0
  %2980 = vmatprep.subr.mxu0 0.0
  %2981 = vmatpush1.msra.mxu0 0.0
  %2982 = vmatprep.subr.mxu0 0.0
  %2983 = vmatpush1.msra.mxu0 0.0
  %2984 = vmatprep.subr.mxu0 0.0
  %2985 = vmatpush1.msra.mxu0 0.0
  %2986 = vmatprep.subr.mxu0 0.0
  %2987 = vmatpush1.msra.mxu0 0.0
  %2988 = vmatprep.subr.mxu0 0.0
  %2989 = vmatpush1.msra.mxu0 0.0
  %2990 = vmatprep.subr.mxu0 0.0
  %2991 = vmatpush1.msra.mxu0 0.0
  %2992 = vmatprep.subr.mxu0 0.0
  %2993 = vmatpush1.msra.mxu0 0.0
  %2994 = vmatprep.subr.mxu0 0.0
  %2995 = vmatpush1.msra.mxu0 0.0
  %2996 = vmatprep.subr.mxu0 0.0
  %2997 = vmatpush1.msra.mxu0 0.0
  %2998 = vmatprep.subr.mxu0 0.0
  %2999 = vmatpush1.msra.mxu0 0.0
  %3000 = vmatprep.subr.mxu0 0.0
  %3001 = vmatpush1.msra.mxu0 0.0
  %3002 = vmatprep.subr.mxu0 0.0
  %3003 = vmatpush1.msra.mxu0 0.0
  %3004 = vmatprep.subr.mxu0 0.0
  %3005 = vmatpush1.msra.mxu0 0.0
  %3006 = vmatprep.subr.mxu0 0.0
  %3007 = vmatpush1.msra.mxu0 0.0
  %3008 = vmatprep.subr.mxu0 0.0
  %3009 = vmatpush1.msra.mxu0 %v1104
  %3010 = vmatprep.subr.mxu0 0.0
  %3011 = vmatpush2.msra.mxu0 0.0
  %3012 = vmatprep.subr.mxu0 0.0
  %3013 = vmatpush2.msra.mxu0 0.0
  %3014 = vmatprep.subr.mxu0 0.0
  %3015 = vmatpush2.msra.mxu0 0.0
  %3016 = vmatprep.subr.mxu0 0.0
  %3017 = vmatpush2.msra.mxu0 0.0
  %3018 = vmatprep.subr.mxu0 0.0
  %3019 = vmatpush2.msra.mxu0 0.0
  %3020 = vmatprep.subr.mxu0 0.0
  %3021 = vmatpush2.msra.mxu0 0.0
  %3022 = vmatprep.subr.mxu0 0.0
  %3023 = vmatpush2.msra.mxu0 0.0
  %3024 = vmatprep.subr.mxu0 0.0
  %3025 = vmatpush2.msra.mxu0 0.0
  %3026 = vmatprep.subr.mxu0 0.0
  %3027 = vmatpush2.msra.mxu0 0.0
  %3028 = vmatprep.subr.mxu0 0.0
  %3029 = vmatpush2.msra.mxu0 0.0
  %3030 = vmatprep.subr.mxu0 0.0
  %3031 = vmatpush2.msra.mxu0 0.0
  %3032 = vmatprep.subr.mxu0 0.0
  %3033 = vmatpush2.msra.mxu0 0.0
  %3034 = vmatprep.subr.mxu0 0.0
  %3035 = vmatpush2.msra.mxu0 0.0
  %3036 = vmatprep.subr.mxu0 0.0
  %3037 = vmatpush2.msra.mxu0 0.0
  %3038 = vmatprep.subr.mxu0 0.0
  %3039 = vmatpush2.msra.mxu0 0.0
  %3040 = vmatprep.subr.mxu0 0.0
  %3041 = vmatpush2.msra.mxu0 0.0
  %3042 = vmatprep.mubr.f32.mxu0 0.0
  %3043 = vmatmul.mubr.f32.gmra.mxu0 %v2976
  %v3044 = vpop.f32.mrf.mxu0
  %v3045 = vadd.f32 0.0, %v3044
  %v3046 = vpop.f32.mrf.mxu0
  %3047 = vdwg.mxu0
  %v3049 = vrot.slane %v3045, 3
  %v3051 = vmul.f32 %v14, %v3049
  %v3052 = vlaneseq
  %v3053 = vshrl.u32 %v3052, 7
  %v3054 = vsub.s32 5, %v3053
  %v3055 = vrot.slane %v3051, %v3054
  %v3056 = vmul.f32 %v2878, %v3055
  %v3057 = vmul.f32 %v2879, %v3055
  %v3058 = vmul.f32 %v2880, %v3055
  %v3059 = vmul.f32 %v2881, %v3055
  %v3060 = vlaneseq
  %v3061 = vshrl.u32 %v3060, 7
  %v3062 = vsub.s32 6, %v3061
  %v3063 = vrot.slane %v14, %v3062
  %v3064 = vadd.f32 %v3056, %v3063
  %v3065 = vadd.f32 %v3057, %v3063
  %v3066 = vadd.f32 %v3058, %v3063
  %v3067 = vadd.f32 %v3059, %v3063
  %v3068 = vmax.f32 %v3064, 0.0
  %v3069 = vmax.f32 %v3065, 0.0
  %v3070 = vmax.f32 %v3066, 0.0
  %v3071 = vmax.f32 %v3067, 0.0
  %v3072 = vld [vmem:[%s1 + $0x3a0] sm:$0xff]
  %v3073 = vld [vmem:[%s1 + $0x3a8] sm:$0xff]
  %v3074 = vld [vmem:[%s1 + $0x3b0] sm:$0xff]
  %v3075 = vld [vmem:[%s1 + $0x3b8] sm:$0xff]
  %v3076 = vld [vmem:[%s1 + $0x3c0] sm:$0xff]
  %v3077 = vld [vmem:[%s1 + $0x3c8] sm:$0xff]
  %v3078 = vld [vmem:[%s1 + $0x3d0] sm:$0xff]
  %v3079 = vld [vmem:[%s1 + $0x3d8] sm:$0xff]
  %3080 = vmatprep.subr.mxu0 0.0
  %3081 = vmatpush1.msra.mxu0 0.0
  %3082 = vmatprep.subr.mxu0 0.0
  %3083 = vmatpush1.msra.mxu0 0.0
  %3084 = vmatprep.subr.mxu0 0.0
  %3085 = vmatpush1.msra.mxu0 0.0
  %3086 = vmatprep.subr.mxu0 0.0
  %3087 = vmatpush1.msra.mxu0 0.0
  %3088 = vmatprep.subr.mxu0 0.0
  %3089 = vmatpush1.msra.mxu0 0.0
  %3090 = vmatprep.subr.mxu0 0.0
  %3091 = vmatpush1.msra.mxu0 0.0
  %3092 = vmatprep.subr.mxu0 0.0
  %3093 = vmatpush1.msra.mxu0 0.0
  %3094 = vmatprep.subr.mxu0 0.0
  %3095 = vmatpush1.msra.mxu0 0.0
  %3096 = vmatprep.subr.mxu0 0.0
  %3097 = vmatpush1.msra.mxu0 0.0
  %3098 = vmatprep.subr.mxu0 0.0
  %3099 = vmatpush1.msra.mxu0 0.0
  %3100 = vmatprep.subr.mxu0 0.0
  %3101 = vmatpush1.msra.mxu0 0.0
  %3102 = vmatprep.subr.mxu0 0.0
  %3103 = vmatpush1.msra.mxu0 0.0
  %3104 = vmatprep.subr.mxu0 0.0
  %3105 = vmatpush1.msra.mxu0 %v3071
  %3106 = vmatprep.subr.mxu0 0.0
  %3107 = vmatpush1.msra.mxu0 %v3070
  %3108 = vmatprep.subr.mxu0 0.0
  %3109 = vmatpush1.msra.mxu0 %v3069
  %3110 = vmatprep.subr.mxu0 0.0
  %3111 = vmatpush1.msra.mxu0 %v3068
  %3112 = vmatprep.subr.mxu0 0.0
  %3113 = vmatpush2.msra.mxu0 0.0
  %3114 = vmatprep.subr.mxu0 0.0
  %3115 = vmatpush2.msra.mxu0 0.0
  %3116 = vmatprep.subr.mxu0 0.0
  %3117 = vmatpush2.msra.mxu0 0.0
  %3118 = vmatprep.subr.mxu0 0.0
  %3119 = vmatpush2.msra.mxu0 0.0
  %3120 = vmatprep.subr.mxu0 0.0
  %3121 = vmatpush2.msra.mxu0 0.0
  %3122 = vmatprep.subr.mxu0 0.0
  %3123 = vmatpush2.msra.mxu0 0.0
  %3124 = vmatprep.subr.mxu0 0.0
  %3125 = vmatpush2.msra.mxu0 0.0
  %3126 = vmatprep.subr.mxu0 0.0
  %3127 = vmatpush2.msra.mxu0 0.0
  %3128 = vmatprep.subr.mxu0 0.0
  %3129 = vmatpush2.msra.mxu0 0.0
  %3130 = vmatprep.subr.mxu0 0.0
  %3131 = vmatpush2.msra.mxu0 0.0
  %3132 = vmatprep.subr.mxu0 0.0
  %3133 = vmatpush2.msra.mxu0 0.0
  %3134 = vmatprep.subr.mxu0 0.0
  %3135 = vmatpush2.msra.mxu0 0.0
  %3136 = vmatprep.subr.mxu0 0.0
  %3137 = vmatpush2.msra.mxu0 0.0
  %3138 = vmatprep.subr.mxu0 0.0
  %3139 = vmatpush2.msra.mxu0 0.0
  %3140 = vmatprep.subr.mxu0 0.0
  %3141 = vmatpush2.msra.mxu0 0.0
  %3142 = vmatprep.subr.mxu0 0.0
  %3143 = vmatpush2.msra.mxu0 0.0
  %3144 = vmatprep.mubr.f32.mxu0 0.0
  %3145 = vmatmul.mubr.f32.gmra.mxu0 %v506
  %v3146 = vpop.f32.mrf.mxu0
  %v3147 = vadd.f32 0.0, %v3146
  %v3148 = vpop.f32.mrf.mxu0
  %3149 = vmatprep.mubr.f32.mxu0 0.0
  %3150 = vmatmul.mubr.f32.gmra.mxu0 %v509
  %v3151 = vpop.f32.mrf.mxu0
  %v3152 = vadd.f32 0.0, %v3151
  %v3153 = vpop.f32.mrf.mxu0
  %3154 = vmatprep.mubr.f32.mxu0 0.0
  %3155 = vmatmul.mubr.f32.gmra.mxu0 %v512
  %v3156 = vpop.f32.mrf.mxu0
  %v3157 = vadd.f32 0.0, %v3156
  %v3158 = vpop.f32.mrf.mxu0
  %3159 = vmatprep.mubr.f32.mxu0 0.0
  %3160 = vmatmul.mubr.f32.gmra.mxu0 %v515
  %v3161 = vpop.f32.mrf.mxu0
  %v3162 = vadd.f32 0.0, %v3161
  %v3163 = vpop.f32.mrf.mxu0
  %3164 = vdwg.mxu0
  %v3165 = vld [vmem:[%s1 + $0x360] sm:$0xff]
  %v3166 = vld [vmem:[%s1 + $0x368] sm:$0xff]
  %v3167 = vld [vmem:[%s1 + $0x370] sm:$0xff]
  %v3168 = vld [vmem:[%s1 + $0x378] sm:$0xff]
  %v3169 = vld [vmem:[%s1 + $0x380] sm:$0xff]
  %v3170 = vld [vmem:[%s1 + $0x388] sm:$0xff]
  %v3171 = vld [vmem:[%s1 + $0x390] sm:$0xff]
  %v3172 = vld [vmem:[%s1 + $0x398] sm:$0xff]
  %v3174 = vsel %vm610, %v3147, 0
  %v3177 = vsel %vm610, %v3152, 0
  %v3180 = vsel %vm610, %v3157, 0
  %v3183 = vsel %vm610, %v3162, 0
  %3185 = vmatprep.subr.mxu0 0.0
  %3186 = vmatpush1.msra.mxu0 0.0
  %3187 = vmatprep.subr.mxu0 0.0
  %3188 = vmatpush1.msra.mxu0 0.0
  %3189 = vmatprep.subr.mxu0 0.0
  %3190 = vmatpush1.msra.mxu0 0.0
  %3191 = vmatprep.subr.mxu0 0.0
  %3192 = vmatpush1.msra.mxu0 0.0
  %3193 = vmatprep.subr.mxu0 0.0
  %3194 = vmatpush1.msra.mxu0 0.0
  %3195 = vmatprep.subr.mxu0 0.0
  %3196 = vmatpush1.msra.mxu0 0.0
  %3197 = vmatprep.subr.mxu0 0.0
  %3198 = vmatpush1.msra.mxu0 0.0
  %3199 = vmatprep.subr.mxu0 0.0
  %3200 = vmatpush1.msra.mxu0 0.0
  %3201 = vmatprep.subr.mxu0 0.0
  %3202 = vmatpush1.msra.mxu0 %v3172
  %3203 = vmatprep.subr.mxu0 0.0
  %3204 = vmatpush1.msra.mxu0 %v3171
  %3205 = vmatprep.subr.mxu0 0.0
  %3206 = vmatpush1.msra.mxu0 %v3170
  %3207 = vmatprep.subr.mxu0 0.0
  %3208 = vmatpush1.msra.mxu0 %v3169
  %3209 = vmatprep.subr.mxu0 0.0
  %3210 = vmatpush1.msra.mxu0 %v3168
  %3211 = vmatprep.subr.mxu0 0.0
  %3212 = vmatpush1.msra.mxu0 %v3167
  %3213 = vmatprep.subr.mxu0 0.0
  %3214 = vmatpush1.msra.mxu0 %v3166
  %3215 = vmatprep.subr.mxu0 0.0
  %3216 = vmatpush1.msra.mxu0 %v3165
  %3217 = vmatprep.subr.mxu0 0.0
  %3218 = vmatpush2.msra.mxu0 0.0
  %3219 = vmatprep.subr.mxu0 0.0
  %3220 = vmatpush2.msra.mxu0 0.0
  %3221 = vmatprep.subr.mxu0 0.0
  %3222 = vmatpush2.msra.mxu0 0.0
  %3223 = vmatprep.subr.mxu0 0.0
  %3224 = vmatpush2.msra.mxu0 0.0
  %3225 = vmatprep.subr.mxu0 0.0
  %3226 = vmatpush2.msra.mxu0 0.0
  %3227 = vmatprep.subr.mxu0 0.0
  %3228 = vmatpush2.msra.mxu0 0.0
  %3229 = vmatprep.subr.mxu0 0.0
  %3230 = vmatpush2.msra.mxu0 0.0
  %3231 = vmatprep.subr.mxu0 0.0
  %3232 = vmatpush2.msra.mxu0 0.0
  %3233 = vmatprep.subr.mxu0 0.0
  %3234 = vmatpush2.msra.mxu0 0.0
  %3235 = vmatprep.subr.mxu0 0.0
  %3236 = vmatpush2.msra.mxu0 0.0
  %3237 = vmatprep.subr.mxu0 0.0
  %3238 = vmatpush2.msra.mxu0 0.0
  %3239 = vmatprep.subr.mxu0 0.0
  %3240 = vmatpush2.msra.mxu0 0.0
  %3241 = vmatprep.subr.mxu0 0.0
  %3242 = vmatpush2.msra.mxu0 0.0
  %3243 = vmatprep.subr.mxu0 0.0
  %3244 = vmatpush2.msra.mxu0 0.0
  %3245 = vmatprep.subr.mxu0 0.0
  %3246 = vmatpush2.msra.mxu0 0.0
  %3247 = vmatprep.subr.mxu0 0.0
  %3248 = vmatpush2.msra.mxu0 0.0
  %3249 = vmatprep.mubr.f32.mxu0 0.0
  %3250 = vmatmul.mubr.f32.gmra.mxu0 %v3174
  %v3251 = vpop.f32.mrf.mxu0
  %v3252 = vadd.f32 0.0, %v3251
  %v3253 = vpop.f32.mrf.mxu0
  %3254 = vmatprep.mubr.f32.mxu0 0.0
  %3255 = vmatmul.mubr.f32.gmra.mxu0 %v3177
  %v3256 = vpop.f32.mrf.mxu0
  %v3257 = vadd.f32 0.0, %v3256
  %v3258 = vpop.f32.mrf.mxu0
  %3259 = vmatprep.mubr.f32.mxu0 0.0
  %3260 = vmatmul.mubr.f32.gmra.mxu0 %v3180
  %v3261 = vpop.f32.mrf.mxu0
  %v3262 = vadd.f32 0.0, %v3261
  %v3263 = vpop.f32.mrf.mxu0
  %3264 = vmatprep.mubr.f32.mxu0 0.0
  %3265 = vmatmul.mubr.f32.gmra.mxu0 %v3183
  %v3266 = vpop.f32.mrf.mxu0
  %v3267 = vadd.f32 0.0, %v3266
  %v3268 = vpop.f32.mrf.mxu0
  %3269 = vdwg.mxu0
  %v3271 = vsel %vm610, %v3068, 0
  %v3274 = vsel %vm610, %v3069, 0
  %v3277 = vsel %vm610, %v3070, 0
  %v3280 = vsel %vm610, %v3071, 0
  %3282 = vmatprep.subr.mxu0 0.0
  %3283 = vmatpush1.msra.mxu0 0.0
  %3284 = vmatprep.subr.mxu0 0.0
  %3285 = vmatpush1.msra.mxu0 0.0
  %3286 = vmatprep.subr.mxu0 0.0
  %3287 = vmatpush1.msra.mxu0 0.0
  %3288 = vmatprep.subr.mxu0 0.0
  %3289 = vmatpush1.msra.mxu0 0.0
  %3290 = vmatprep.subr.mxu0 0.0
  %3291 = vmatpush1.msra.mxu0 0.0
  %3292 = vmatprep.subr.mxu0 0.0
  %3293 = vmatpush1.msra.mxu0 0.0
  %3294 = vmatprep.subr.mxu0 0.0
  %3295 = vmatpush1.msra.mxu0 0.0
  %3296 = vmatprep.subr.mxu0 0.0
  %3297 = vmatpush1.msra.mxu0 0.0
  %3298 = vmatprep.subr.mxu0 0.0
  %3299 = vmatpush1.msra.mxu0 %v3079
  %3300 = vmatprep.subr.mxu0 0.0
  %3301 = vmatpush1.msra.mxu0 %v3078
  %3302 = vmatprep.subr.mxu0 0.0
  %3303 = vmatpush1.msra.mxu0 %v3077
  %3304 = vmatprep.subr.mxu0 0.0
  %3305 = vmatpush1.msra.mxu0 %v3076
  %3306 = vmatprep.subr.mxu0 0.0
  %3307 = vmatpush1.msra.mxu0 %v3075
  %3308 = vmatprep.subr.mxu0 0.0
  %3309 = vmatpush1.msra.mxu0 %v3074
  %3310 = vmatprep.subr.mxu0 0.0
  %3311 = vmatpush1.msra.mxu0 %v3073
  %3312 = vmatprep.subr.mxu0 0.0
  %3313 = vmatpush1.msra.mxu0 %v3072
  %3314 = vmatprep.subr.mxu0 0.0
  %3315 = vmatpush2.msra.mxu0 0.0
  %3316 = vmatprep.subr.mxu0 0.0
  %3317 = vmatpush2.msra.mxu0 0.0
  %3318 = vmatprep.subr.mxu0 0.0
  %3319 = vmatpush2.msra.mxu0 0.0
  %3320 = vmatprep.subr.mxu0 0.0
  %3321 = vmatpush2.msra.mxu0 0.0
  %3322 = vmatprep.subr.mxu0 0.0
  %3323 = vmatpush2.msra.mxu0 0.0
  %3324 = vmatprep.subr.mxu0 0.0
  %3325 = vmatpush2.msra.mxu0 0.0
  %3326 = vmatprep.subr.mxu0 0.0
  %3327 = vmatpush2.msra.mxu0 0.0
  %3328 = vmatprep.subr.mxu0 0.0
  %3329 = vmatpush2.msra.mxu0 0.0
  %3330 = vmatprep.subr.mxu0 0.0
  %3331 = vmatpush2.msra.mxu0 0.0
  %3332 = vmatprep.subr.mxu0 0.0
  %3333 = vmatpush2.msra.mxu0 0.0
  %3334 = vmatprep.subr.mxu0 0.0
  %3335 = vmatpush2.msra.mxu0 0.0
  %3336 = vmatprep.subr.mxu0 0.0
  %3337 = vmatpush2.msra.mxu0 0.0
  %3338 = vmatprep.subr.mxu0 0.0
  %3339 = vmatpush2.msra.mxu0 0.0
  %3340 = vmatprep.subr.mxu0 0.0
  %3341 = vmatpush2.msra.mxu0 0.0
  %3342 = vmatprep.subr.mxu0 0.0
  %3343 = vmatpush2.msra.mxu0 0.0
  %3344 = vmatprep.subr.mxu0 0.0
  %3345 = vmatpush2.msra.mxu0 0.0
  %3346 = vmatprep.mubr.f32.mxu0 0.0
  %3347 = vmatmul.mubr.f32.gmra.mxu0 %v3271
  %v3348 = vpop.f32.mrf.mxu0
  %v3349 = vadd.f32 %v3252, %v3348
  %v3350 = vpop.f32.mrf.mxu0
  %3351 = vmatprep.mubr.f32.mxu0 0.0
  %3352 = vmatmul.mubr.f32.gmra.mxu0 %v3274
  %v3353 = vpop.f32.mrf.mxu0
  %v3354 = vadd.f32 %v3257, %v3353
  %v3355 = vpop.f32.mrf.mxu0
  %3356 = vmatprep.mubr.f32.mxu0 0.0
  %3357 = vmatmul.mubr.f32.gmra.mxu0 %v3277
  %v3358 = vpop.f32.mrf.mxu0
  %v3359 = vadd.f32 %v3262, %v3358
  %v3360 = vpop.f32.mrf.mxu0
  %3361 = vmatprep.mubr.f32.mxu0 0.0
  %3362 = vmatmul.mubr.f32.gmra.mxu0 %v3280
  %v3363 = vpop.f32.mrf.mxu0
  %v3364 = vadd.f32 %v3267, %v3363
  %v3365 = vpop.f32.mrf.mxu0
  %3366 = vdwg.mxu0
  %3367 = vmatprep.subr.mxu0 0.0
  %3368 = vmatpush1.msra.mxu0 0.0
  %3369 = vmatprep.subr.mxu0 0.0
  %3370 = vmatpush1.msra.mxu0 0.0
  %3371 = vmatprep.subr.mxu0 0.0
  %3372 = vmatpush1.msra.mxu0 0.0
  %3373 = vmatprep.subr.mxu0 0.0
  %3374 = vmatpush1.msra.mxu0 0.0
  %3375 = vmatprep.subr.mxu0 0.0
  %3376 = vmatpush1.msra.mxu0 0.0
  %3377 = vmatprep.subr.mxu0 0.0
  %3378 = vmatpush1.msra.mxu0 0.0
  %3379 = vmatprep.subr.mxu0 0.0
  %3380 = vmatpush1.msra.mxu0 0.0
  %3381 = vmatprep.subr.mxu0 0.0
  %3382 = vmatpush1.msra.mxu0 0.0
  %3383 = vmatprep.subr.mxu0 0.0
  %3384 = vmatpush1.msra.mxu0 0.0
  %3385 = vmatprep.subr.mxu0 0.0
  %3386 = vmatpush1.msra.mxu0 0.0
  %3387 = vmatprep.subr.mxu0 0.0
  %3388 = vmatpush1.msra.mxu0 0.0
  %3389 = vmatprep.subr.mxu0 0.0
  %3390 = vmatpush1.msra.mxu0 0.0
  %3391 = vmatprep.subr.mxu0 0.0
  %3392 = vmatpush1.msra.mxu0 %v3071
  %3393 = vmatprep.subr.mxu0 0.0
  %3394 = vmatpush1.msra.mxu0 %v3070
  %3395 = vmatprep.subr.mxu0 0.0
  %3396 = vmatpush1.msra.mxu0 %v3069
  %3397 = vmatprep.subr.mxu0 0.0
  %3398 = vmatpush1.msra.mxu0 %v3068
  %3399 = vmatprep.subr.mxu0 0.0
  %3400 = vmatpush2.msra.mxu0 0.0
  %3401 = vmatprep.subr.mxu0 0.0
  %3402 = vmatpush2.msra.mxu0 0.0
  %3403 = vmatprep.subr.mxu0 0.0
  %3404 = vmatpush2.msra.mxu0 0.0
  %3405 = vmatprep.subr.mxu0 0.0
  %3406 = vmatpush2.msra.mxu0 0.0
  %3407 = vmatprep.subr.mxu0 0.0
  %3408 = vmatpush2.msra.mxu0 0.0
  %3409 = vmatprep.subr.mxu0 0.0
  %3410 = vmatpush2.msra.mxu0 0.0
  %3411 = vmatprep.subr.mxu0 0.0
  %3412 = vmatpush2.msra.mxu0 0.0
  %3413 = vmatprep.subr.mxu0 0.0
  %3414 = vmatpush2.msra.mxu0 0.0
  %3415 = vmatprep.subr.mxu0 0.0
  %3416 = vmatpush2.msra.mxu0 0.0
  %3417 = vmatprep.subr.mxu0 0.0
  %3418 = vmatpush2.msra.mxu0 0.0
  %3419 = vmatprep.subr.mxu0 0.0
  %3420 = vmatpush2.msra.mxu0 0.0
  %3421 = vmatprep.subr.mxu0 0.0
  %3422 = vmatpush2.msra.mxu0 0.0
  %3423 = vmatprep.subr.mxu0 0.0
  %3424 = vmatpush2.msra.mxu0 0.0
  %3425 = vmatprep.subr.mxu0 0.0
  %3426 = vmatpush2.msra.mxu0 0.0
  %3427 = vmatprep.subr.mxu0 0.0
  %3428 = vmatpush2.msra.mxu0 0.0
  %3429 = vmatprep.subr.mxu0 0.0
  %3430 = vmatpush2.msra.mxu0 0.0
  %3431 = vmatprep.mubr.f32.mxu0 0.0
  %3432 = vmatmul.mubr.f32.gmra.mxu0 %v806
  %v3433 = vpop.f32.mrf.mxu0
  %v3434 = vadd.f32 0.0, %v3433
  %v3435 = vpop.f32.mrf.mxu0
  %3436 = vmatprep.mubr.f32.mxu0 0.0
  %3437 = vmatmul.mubr.f32.gmra.mxu0 %v809
  %v3438 = vpop.f32.mrf.mxu0
  %v3439 = vadd.f32 0.0, %v3438
  %v3440 = vpop.f32.mrf.mxu0
  %3441 = vmatprep.mubr.f32.mxu0 0.0
  %3442 = vmatmul.mubr.f32.gmra.mxu0 %v812
  %v3443 = vpop.f32.mrf.mxu0
  %v3444 = vadd.f32 0.0, %v3443
  %v3445 = vpop.f32.mrf.mxu0
  %3446 = vmatprep.mubr.f32.mxu0 0.0
  %3447 = vmatmul.mubr.f32.gmra.mxu0 %v815
  %v3448 = vpop.f32.mrf.mxu0
  %v3449 = vadd.f32 0.0, %v3448
  %v3450 = vpop.f32.mrf.mxu0
  %3451 = vdwg.mxu0
  %v3452 = vld [vmem:[%s1 + $0x3e0] sm:$0xff]
  %v3453 = vld [vmem:[%s1 + $0x3e8] sm:$0xff]
  %v3454 = vld [vmem:[%s1 + $0x3f0] sm:$0xff]
  %v3455 = vld [vmem:[%s1 + $0x3f8] sm:$0xff]
  %v3456 = vld [vmem:[%s1 + $0x400] sm:$0xff]
  %v3457 = vld [vmem:[%s1 + $0x408] sm:$0xff]
  %v3458 = vld [vmem:[%s1 + $0x410] sm:$0xff]
  %v3459 = vld [vmem:[%s1 + $0x418] sm:$0xff]
  %v3461 = vsel %vm610, %v3434, 0
  %v3464 = vsel %vm610, %v3439, 0
  %v3467 = vsel %vm610, %v3444, 0
  %v3470 = vsel %vm610, %v3449, 0
  %3472 = vmatprep.subr.mxu0 0.0
  %3473 = vmatpush1.msra.mxu0 0.0
  %3474 = vmatprep.subr.mxu0 0.0
  %3475 = vmatpush1.msra.mxu0 0.0
  %3476 = vmatprep.subr.mxu0 0.0
  %3477 = vmatpush1.msra.mxu0 0.0
  %3478 = vmatprep.subr.mxu0 0.0
  %3479 = vmatpush1.msra.mxu0 0.0
  %3480 = vmatprep.subr.mxu0 0.0
  %3481 = vmatpush1.msra.mxu0 0.0
  %3482 = vmatprep.subr.mxu0 0.0
  %3483 = vmatpush1.msra.mxu0 0.0
  %3484 = vmatprep.subr.mxu0 0.0
  %3485 = vmatpush1.msra.mxu0 0.0
  %3486 = vmatprep.subr.mxu0 0.0
  %3487 = vmatpush1.msra.mxu0 0.0
  %3488 = vmatprep.subr.mxu0 0.0
  %3489 = vmatpush1.msra.mxu0 %v3459
  %3490 = vmatprep.subr.mxu0 0.0
  %3491 = vmatpush1.msra.mxu0 %v3458
  %3492 = vmatprep.subr.mxu0 0.0
  %3493 = vmatpush1.msra.mxu0 %v3457
  %3494 = vmatprep.subr.mxu0 0.0
  %3495 = vmatpush1.msra.mxu0 %v3456
  %3496 = vmatprep.subr.mxu0 0.0
  %3497 = vmatpush1.msra.mxu0 %v3455
  %3498 = vmatprep.subr.mxu0 0.0
  %3499 = vmatpush1.msra.mxu0 %v3454
  %3500 = vmatprep.subr.mxu0 0.0
  %3501 = vmatpush1.msra.mxu0 %v3453
  %3502 = vmatprep.subr.mxu0 0.0
  %3503 = vmatpush1.msra.mxu0 %v3452
  %3504 = vmatprep.subr.mxu0 0.0
  %3505 = vmatpush2.msra.mxu0 0.0
  %3506 = vmatprep.subr.mxu0 0.0
  %3507 = vmatpush2.msra.mxu0 0.0
  %3508 = vmatprep.subr.mxu0 0.0
  %3509 = vmatpush2.msra.mxu0 0.0
  %3510 = vmatprep.subr.mxu0 0.0
  %3511 = vmatpush2.msra.mxu0 0.0
  %3512 = vmatprep.subr.mxu0 0.0
  %3513 = vmatpush2.msra.mxu0 0.0
  %3514 = vmatprep.subr.mxu0 0.0
  %3515 = vmatpush2.msra.mxu0 0.0
  %3516 = vmatprep.subr.mxu0 0.0
  %3517 = vmatpush2.msra.mxu0 0.0
  %3518 = vmatprep.subr.mxu0 0.0
  %3519 = vmatpush2.msra.mxu0 0.0
  %3520 = vmatprep.subr.mxu0 0.0
  %3521 = vmatpush2.msra.mxu0 0.0
  %3522 = vmatprep.subr.mxu0 0.0
  %3523 = vmatpush2.msra.mxu0 0.0
  %3524 = vmatprep.subr.mxu0 0.0
  %3525 = vmatpush2.msra.mxu0 0.0
  %3526 = vmatprep.subr.mxu0 0.0
  %3527 = vmatpush2.msra.mxu0 0.0
  %3528 = vmatprep.subr.mxu0 0.0
  %3529 = vmatpush2.msra.mxu0 0.0
  %3530 = vmatprep.subr.mxu0 0.0
  %3531 = vmatpush2.msra.mxu0 0.0
  %3532 = vmatprep.subr.mxu0 0.0
  %3533 = vmatpush2.msra.mxu0 0.0
  %3534 = vmatprep.subr.mxu0 0.0
  %3535 = vmatpush2.msra.mxu0 0.0
  %3536 = vmatprep.mubr.f32.mxu0 0.0
  %3537 = vmatmul.mubr.f32.gmra.mxu0 %v3461
  %v3538 = vpop.f32.mrf.mxu0
  %v3539 = vadd.f32 0.0, %v3538
  %v3540 = vpop.f32.mrf.mxu0
  %3541 = vmatprep.mubr.f32.mxu0 0.0
  %3542 = vmatmul.mubr.f32.gmra.mxu0 %v3464
  %v3543 = vpop.f32.mrf.mxu0
  %v3544 = vadd.f32 0.0, %v3543
  %v3545 = vpop.f32.mrf.mxu0
  %3546 = vmatprep.mubr.f32.mxu0 0.0
  %3547 = vmatmul.mubr.f32.gmra.mxu0 %v3467
  %v3548 = vpop.f32.mrf.mxu0
  %v3549 = vadd.f32 0.0, %v3548
  %v3550 = vpop.f32.mrf.mxu0
  %3551 = vmatprep.mubr.f32.mxu0 0.0
  %3552 = vmatmul.mubr.f32.gmra.mxu0 %v3470
  %v3553 = vpop.f32.mrf.mxu0
  %v3554 = vadd.f32 0.0, %v3553
  %v3555 = vpop.f32.mrf.mxu0
  %3556 = vdwg.mxu0
  %v3557 = vadd.f32 %v3349, %v3539
  %v3558 = vadd.f32 %v3354, %v3544
  %v3559 = vadd.f32 %v3359, %v3549
  %v3560 = vadd.f32 %v3364, %v3554
  %v3561 = vsel %vm610, %v3557, 0.0
  %v3562 = vsel %vm610, %v3558, 0.0
  %v3563 = vadd.f32 %v3561, %v3562
  %v3564 = vsel %vm610, %v3559, 0.0
  %v3565 = vadd.f32 %v3563, %v3564
  %v3566 = vsel %vm610, %v3560, 0.0
  %v3567 = vadd.f32 %v3565, %v3566
  %v3568 = vrot.slane %v3567, 4
  %v3569 = vadd.f32 %v3567, %v3568
  %v3570 = vrot.slane %v3569, 2
  %v3571 = vadd.f32 %v3569, %v3570
  %v3572 = vrot.slane %v3571, 1
  %v3573 = vadd.f32 %v3571, %v3572
  %v3575 = vsel %vm610, %v3573, 0
  %3577 = vmatprep.subr.mxu0 0.0
  %3578 = vmatpush1.msra.mxu0 0.0
  %3579 = vmatprep.subr.mxu0 0.0
  %3580 = vmatpush1.msra.mxu0 0.0
  %3581 = vmatprep.subr.mxu0 0.0
  %3582 = vmatpush1.msra.mxu0 0.0
  %3583 = vmatprep.subr.mxu0 0.0
  %3584 = vmatpush1.msra.mxu0 0.0
  %3585 = vmatprep.subr.mxu0 0.0
  %3586 = vmatpush1.msra.mxu0 0.0
  %3587 = vmatprep.subr.mxu0 0.0
  %3588 = vmatpush1.msra.mxu0 0.0
  %3589 = vmatprep.subr.mxu0 0.0
  %3590 = vmatpush1.msra.mxu0 0.0
  %3591 = vmatprep.subr.mxu0 0.0
  %3592 = vmatpush1.msra.mxu0 0.0
  %3593 = vmatprep.subr.mxu0 0.0
  %3594 = vmatpush1.msra.mxu0 %v481
  %3595 = vmatprep.subr.mxu0 0.0
  %3596 = vmatpush1.msra.mxu0 %v480
  %3597 = vmatprep.subr.mxu0 0.0
  %3598 = vmatpush1.msra.mxu0 %v479
  %3599 = vmatprep.subr.mxu0 0.0
  %3600 = vmatpush1.msra.mxu0 %v478
  %3601 = vmatprep.subr.mxu0 0.0
  %3602 = vmatpush1.msra.mxu0 %v477
  %3603 = vmatprep.subr.mxu0 0.0
  %3604 = vmatpush1.msra.mxu0 %v476
  %3605 = vmatprep.subr.mxu0 0.0
  %3606 = vmatpush1.msra.mxu0 %v475
  %3607 = vmatprep.subr.mxu0 0.0
  %3608 = vmatpush1.msra.mxu0 %v474
  %3609 = vmatprep.subr.mxu0 0.0
  %3610 = vmatpush2.msra.mxu0 0.0
  %3611 = vmatprep.subr.mxu0 0.0
  %3612 = vmatpush2.msra.mxu0 0.0
  %3613 = vmatprep.subr.mxu0 0.0
  %3614 = vmatpush2.msra.mxu0 0.0
  %3615 = vmatprep.subr.mxu0 0.0
  %3616 = vmatpush2.msra.mxu0 0.0
  %3617 = vmatprep.subr.mxu0 0.0
  %3618 = vmatpush2.msra.mxu0 0.0
  %3619 = vmatprep.subr.mxu0 0.0
  %3620 = vmatpush2.msra.mxu0 0.0
  %3621 = vmatprep.subr.mxu0 0.0
  %3622 = vmatpush2.msra.mxu0 0.0
  %3623 = vmatprep.subr.mxu0 0.0
  %3624 = vmatpush2.msra.mxu0 0.0
  %3625 = vmatprep.subr.mxu0 0.0
  %3626 = vmatpush2.msra.mxu0 0.0
  %3627 = vmatprep.subr.mxu0 0.0
  %3628 = vmatpush2.msra.mxu0 0.0
  %3629 = vmatprep.subr.mxu0 0.0
  %3630 = vmatpush2.msra.mxu0 0.0
  %3631 = vmatprep.subr.mxu0 0.0
  %3632 = vmatpush2.msra.mxu0 0.0
  %3633 = vmatprep.subr.mxu0 0.0
  %3634 = vmatpush2.msra.mxu0 0.0
  %3635 = vmatprep.subr.mxu0 0.0
  %3636 = vmatpush2.msra.mxu0 0.0
  %3637 = vmatprep.subr.mxu0 0.0
  %3638 = vmatpush2.msra.mxu0 0.0
  %3639 = vmatprep.subr.mxu0 0.0
  %3640 = vmatpush2.msra.mxu0 0.0
  %3641 = vmatprep.mubr.f32.mxu0 0.0
  %3642 = vmatmul.mubr.f32.gmra.mxu0 %v3575
  %v3643 = vpop.f32.mrf.mxu0
  %v3644 = vadd.f32 0.0, %v3643
  %v3645 = vpop.f32.mrf.mxu0
  %3646 = vdwg.mxu0
  %v3647 = vmul.f32 %v3644, 0.001953125
  %v3649 = vsel %vm1098, %v3647, 0
  %3651 = vmatprep.subr.mxu0 0.0
  %3652 = vmatpush1.msra.mxu0 0.0
  %3653 = vmatprep.subr.mxu0 0.0
  %3654 = vmatpush1.msra.mxu0 0.0
  %3655 = vmatprep.subr.mxu0 0.0
  %3656 = vmatpush1.msra.mxu0 0.0
  %3657 = vmatprep.subr.mxu0 0.0
  %3658 = vmatpush1.msra.mxu0 0.0
  %3659 = vmatprep.subr.mxu0 0.0
  %3660 = vmatpush1.msra.mxu0 0.0
  %3661 = vmatprep.subr.mxu0 0.0
  %3662 = vmatpush1.msra.mxu0 0.0
  %3663 = vmatprep.subr.mxu0 0.0
  %3664 = vmatpush1.msra.mxu0 0.0
  %3665 = vmatprep.subr.mxu0 0.0
  %3666 = vmatpush1.msra.mxu0 0.0
  %3667 = vmatprep.subr.mxu0 0.0
  %3668 = vmatpush1.msra.mxu0 0.0
  %3669 = vmatprep.subr.mxu0 0.0
  %3670 = vmatpush1.msra.mxu0 0.0
  %3671 = vmatprep.subr.mxu0 0.0
  %3672 = vmatpush1.msra.mxu0 0.0
  %3673 = vmatprep.subr.mxu0 0.0
  %3674 = vmatpush1.msra.mxu0 0.0
  %3675 = vmatprep.subr.mxu0 0.0
  %3676 = vmatpush1.msra.mxu0 0.0
  %3677 = vmatprep.subr.mxu0 0.0
  %3678 = vmatpush1.msra.mxu0 0.0
  %3679 = vmatprep.subr.mxu0 0.0
  %3680 = vmatpush1.msra.mxu0 0.0
  %3681 = vmatprep.subr.mxu0 0.0
  %3682 = vmatpush1.msra.mxu0 %v1104
  %3683 = vmatprep.subr.mxu0 0.0
  %3684 = vmatpush2.msra.mxu0 0.0
  %3685 = vmatprep.subr.mxu0 0.0
  %3686 = vmatpush2.msra.mxu0 0.0
  %3687 = vmatprep.subr.mxu0 0.0
  %3688 = vmatpush2.msra.mxu0 0.0
  %3689 = vmatprep.subr.mxu0 0.0
  %3690 = vmatpush2.msra.mxu0 0.0
  %3691 = vmatprep.subr.mxu0 0.0
  %3692 = vmatpush2.msra.mxu0 0.0
  %3693 = vmatprep.subr.mxu0 0.0
  %3694 = vmatpush2.msra.mxu0 0.0
  %3695 = vmatprep.subr.mxu0 0.0
  %3696 = vmatpush2.msra.mxu0 0.0
  %3697 = vmatprep.subr.mxu0 0.0
  %3698 = vmatpush2.msra.mxu0 0.0
  %3699 = vmatprep.subr.mxu0 0.0
  %3700 = vmatpush2.msra.mxu0 0.0
  %3701 = vmatprep.subr.mxu0 0.0
  %3702 = vmatpush2.msra.mxu0 0.0
  %3703 = vmatprep.subr.mxu0 0.0
  %3704 = vmatpush2.msra.mxu0 0.0
  %3705 = vmatprep.subr.mxu0 0.0
  %3706 = vmatpush2.msra.mxu0 0.0
  %3707 = vmatprep.subr.mxu0 0.0
  %3708 = vmatpush2.msra.mxu0 0.0
  %3709 = vmatprep.subr.mxu0 0.0
  %3710 = vmatpush2.msra.mxu0 0.0
  %3711 = vmatprep.subr.mxu0 0.0
  %3712 = vmatpush2.msra.mxu0 0.0
  %3713 = vmatprep.subr.mxu0 0.0
  %3714 = vmatpush2.msra.mxu0 0.0
  %3715 = vmatprep.mubr.f32.mxu0 0.0
  %3716 = vmatmul.mubr.f32.gmra.mxu0 %v3649
  %v3717 = vpop.f32.mrf.mxu0
  %v3718 = vadd.f32 0.0, %v3717
  %v3719 = vpop.f32.mrf.mxu0
  %3720 = vdwg.mxu0
  %v3721 = vlaneseq
  %v3722 = vshrl.u32 %v3721, 7
  %v3723 = vsub.s32 0, %v3722
  %v3724 = vrot.slane %v3718, %v3723
  %v3725 = vsub.f32 %v3557, %v3724
  %v3726 = vsub.f32 %v3558, %v3724
  %v3727 = vsub.f32 %v3559, %v3724
  %v3728 = vsub.f32 %v3560, %v3724
  %v3729 = vmul.f32 %v3725, %v3725
  %v3730 = vmul.f32 %v3726, %v3726
  %v3731 = vmul.f32 %v3727, %v3727
  %v3732 = vmul.f32 %v3728, %v3728
  %v3733 = vsel %vm610, %v3729, 0.0
  %v3734 = vsel %vm610, %v3730, 0.0
  %v3735 = vadd.f32 %v3733, %v3734
  %v3736 = vsel %vm610, %v3731, 0.0
  %v3737 = vadd.f32 %v3735, %v3736
  %v3738 = vsel %vm610, %v3732, 0.0
  %v3739 = vadd.f32 %v3737, %v3738
  %v3740 = vrot.slane %v3739, 4
  %v3741 = vadd.f32 %v3739, %v3740
  %v3742 = vrot.slane %v3741, 2
  %v3743 = vadd.f32 %v3741, %v3742
  %v3744 = vrot.slane %v3743, 1
  %v3745 = vadd.f32 %v3743, %v3744
  %v3747 = vsel %vm610, %v3745, 0
  %3749 = vmatprep.subr.mxu0 0.0
  %3750 = vmatpush1.msra.mxu0 0.0
  %3751 = vmatprep.subr.mxu0 0.0
  %3752 = vmatpush1.msra.mxu0 0.0
  %3753 = vmatprep.subr.mxu0 0.0
  %3754 = vmatpush1.msra.mxu0 0.0
  %3755 = vmatprep.subr.mxu0 0.0
  %3756 = vmatpush1.msra.mxu0 0.0
  %3757 = vmatprep.subr.mxu0 0.0
  %3758 = vmatpush1.msra.mxu0 0.0
  %3759 = vmatprep.subr.mxu0 0.0
  %3760 = vmatpush1.msra.mxu0 0.0
  %3761 = vmatprep.subr.mxu0 0.0
  %3762 = vmatpush1.msra.mxu0 0.0
  %3763 = vmatprep.subr.mxu0 0.0
  %3764 = vmatpush1.msra.mxu0 0.0
  %3765 = vmatprep.subr.mxu0 0.0
  %3766 = vmatpush1.msra.mxu0 %v481
  %3767 = vmatprep.subr.mxu0 0.0
  %3768 = vmatpush1.msra.mxu0 %v480
  %3769 = vmatprep.subr.mxu0 0.0
  %3770 = vmatpush1.msra.mxu0 %v479
  %3771 = vmatprep.subr.mxu0 0.0
  %3772 = vmatpush1.msra.mxu0 %v478
  %3773 = vmatprep.subr.mxu0 0.0
  %3774 = vmatpush1.msra.mxu0 %v477
  %3775 = vmatprep.subr.mxu0 0.0
  %3776 = vmatpush1.msra.mxu0 %v476
  %3777 = vmatprep.subr.mxu0 0.0
  %3778 = vmatpush1.msra.mxu0 %v475
  %3779 = vmatprep.subr.mxu0 0.0
  %3780 = vmatpush1.msra.mxu0 %v474
  %3781 = vmatprep.subr.mxu0 0.0
  %3782 = vmatpush2.msra.mxu0 0.0
  %3783 = vmatprep.subr.mxu0 0.0
  %3784 = vmatpush2.msra.mxu0 0.0
  %3785 = vmatprep.subr.mxu0 0.0
  %3786 = vmatpush2.msra.mxu0 0.0
  %3787 = vmatprep.subr.mxu0 0.0
  %3788 = vmatpush2.msra.mxu0 0.0
  %3789 = vmatprep.subr.mxu0 0.0
  %3790 = vmatpush2.msra.mxu0 0.0
  %3791 = vmatprep.subr.mxu0 0.0
  %3792 = vmatpush2.msra.mxu0 0.0
  %3793 = vmatprep.subr.mxu0 0.0
  %3794 = vmatpush2.msra.mxu0 0.0
  %3795 = vmatprep.subr.mxu0 0.0
  %3796 = vmatpush2.msra.mxu0 0.0
  %3797 = vmatprep.subr.mxu0 0.0
  %3798 = vmatpush2.msra.mxu0 0.0
  %3799 = vmatprep.subr.mxu0 0.0
  %3800 = vmatpush2.msra.mxu0 0.0
  %3801 = vmatprep.subr.mxu0 0.0
  %3802 = vmatpush2.msra.mxu0 0.0
  %3803 = vmatprep.subr.mxu0 0.0
  %3804 = vmatpush2.msra.mxu0 0.0
  %3805 = vmatprep.subr.mxu0 0.0
  %3806 = vmatpush2.msra.mxu0 0.0
  %3807 = vmatprep.subr.mxu0 0.0
  %3808 = vmatpush2.msra.mxu0 0.0
  %3809 = vmatprep.subr.mxu0 0.0
  %3810 = vmatpush2.msra.mxu0 0.0
  %3811 = vmatprep.subr.mxu0 0.0
  %3812 = vmatpush2.msra.mxu0 0.0
  %3813 = vmatprep.mubr.f32.mxu0 0.0
  %3814 = vmatmul.mubr.f32.gmra.mxu0 %v3747
  %v3815 = vpop.f32.mrf.mxu0
  %v3816 = vadd.f32 0.0, %v3815
  %v3817 = vpop.f32.mrf.mxu0
  %3818 = vdwg.mxu0
  %v3819 = vmul.f32 %v3816, 0.001953125
  %v3820 = vadd.f32 %v3819, 1e-05
  %v3821 = vrsqrt.pop %v3820
  %v3823 = vsel %vm1098, %v3821, 0
  %3825 = vmatprep.subr.mxu0 0.0
  %3826 = vmatpush1.msra.mxu0 0.0
  %3827 = vmatprep.subr.mxu0 0.0
  %3828 = vmatpush1.msra.mxu0 0.0
  %3829 = vmatprep.subr.mxu0 0.0
  %3830 = vmatpush1.msra.mxu0 0.0
  %3831 = vmatprep.subr.mxu0 0.0
  %3832 = vmatpush1.msra.mxu0 0.0
  %3833 = vmatprep.subr.mxu0 0.0
  %3834 = vmatpush1.msra.mxu0 0.0
  %3835 = vmatprep.subr.mxu0 0.0
  %3836 = vmatpush1.msra.mxu0 0.0
  %3837 = vmatprep.subr.mxu0 0.0
  %3838 = vmatpush1.msra.mxu0 0.0
  %3839 = vmatprep.subr.mxu0 0.0
  %3840 = vmatpush1.msra.mxu0 0.0
  %3841 = vmatprep.subr.mxu0 0.0
  %3842 = vmatpush1.msra.mxu0 0.0
  %3843 = vmatprep.subr.mxu0 0.0
  %3844 = vmatpush1.msra.mxu0 0.0
  %3845 = vmatprep.subr.mxu0 0.0
  %3846 = vmatpush1.msra.mxu0 0.0
  %3847 = vmatprep.subr.mxu0 0.0
  %3848 = vmatpush1.msra.mxu0 0.0
  %3849 = vmatprep.subr.mxu0 0.0
  %3850 = vmatpush1.msra.mxu0 0.0
  %3851 = vmatprep.subr.mxu0 0.0
  %3852 = vmatpush1.msra.mxu0 0.0
  %3853 = vmatprep.subr.mxu0 0.0
  %3854 = vmatpush1.msra.mxu0 0.0
  %3855 = vmatprep.subr.mxu0 0.0
  %3856 = vmatpush1.msra.mxu0 %v1104
  %3857 = vmatprep.subr.mxu0 0.0
  %3858 = vmatpush2.msra.mxu0 0.0
  %3859 = vmatprep.subr.mxu0 0.0
  %3860 = vmatpush2.msra.mxu0 0.0
  %3861 = vmatprep.subr.mxu0 0.0
  %3862 = vmatpush2.msra.mxu0 0.0
  %3863 = vmatprep.subr.mxu0 0.0
  %3864 = vmatpush2.msra.mxu0 0.0
  %3865 = vmatprep.subr.mxu0 0.0
  %3866 = vmatpush2.msra.mxu0 0.0
  %3867 = vmatprep.subr.mxu0 0.0
  %3868 = vmatpush2.msra.mxu0 0.0
  %3869 = vmatprep.subr.mxu0 0.0
  %3870 = vmatpush2.msra.mxu0 0.0
  %3871 = vmatprep.subr.mxu0 0.0
  %3872 = vmatpush2.msra.mxu0 0.0
  %3873 = vmatprep.subr.mxu0 0.0
  %3874 = vmatpush2.msra.mxu0 0.0
  %3875 = vmatprep.subr.mxu0 0.0
  %3876 = vmatpush2.msra.mxu0 0.0
  %3877 = vmatprep.subr.mxu0 0.0
  %3878 = vmatpush2.msra.mxu0 0.0
  %3879 = vmatprep.subr.mxu0 0.0
  %3880 = vmatpush2.msra.mxu0 0.0
  %3881 = vmatprep.subr.mxu0 0.0
  %3882 = vmatpush2.msra.mxu0 0.0
  %3883 = vmatprep.subr.mxu0 0.0
  %3884 = vmatpush2.msra.mxu0 0.0
  %3885 = vmatprep.subr.mxu0 0.0
  %3886 = vmatpush2.msra.mxu0 0.0
  %3887 = vmatprep.subr.mxu0 0.0
  %3888 = vmatpush2.msra.mxu0 0.0
  %3889 = vmatprep.mubr.f32.mxu0 0.0
  %3890 = vmatmul.mubr.f32.gmra.mxu0 %v3823
  %v3891 = vpop.f32.mrf.mxu0
  %v3892 = vadd.f32 0.0, %v3891
  %v3893 = vpop.f32.mrf.mxu0
  %3894 = vdwg.mxu0
  %v3896 = vrot.slane %v3892, 1
  %v3898 = vmul.f32 %v14, %v3896
  %v3899 = vlaneseq
  %v3900 = vshrl.u32 %v3899, 7
  %v3901 = vsub.s32 7, %v3900
  %v3902 = vrot.slane %v3898, %v3901
  %v3903 = vmul.f32 %v3725, %v3902
  %v3904 = vmul.f32 %v3726, %v3902
  %v3905 = vmul.f32 %v3727, %v3902
  %v3906 = vmul.f32 %v3728, %v3902
  %v3907 = vlaneseq
  %v3908 = vshrl.u32 %v3907, 7
  %v3909 = vsub.s32 0, %v3908
  %v3910 = vrot.slane %v15, %v3909
  %v3911 = vadd.f32 %v3903, %v3910
  %v3912 = vadd.f32 %v3904, %v3910
  %v3913 = vadd.f32 %v3905, %v3910
  %v3914 = vadd.f32 %v3906, %v3910
  %v3915 = vadd.f32 %v2221, %v3911
  %v3916 = vadd.f32 %v2222, %v3912
  %v3917 = vadd.f32 %v2223, %v3913
  %v3918 = vadd.f32 %v2224, %v3914
  %v3919 = vmax.f32 %v3915, 0.0
  %v3920 = vmax.f32 %v3916, 0.0
  %v3921 = vmax.f32 %v3917, 0.0
  %v3922 = vmax.f32 %v3918, 0.0
  %3923 = vst.msk [vmem:[%s3] sm:$0xff] %vm610, %v3919
  %3924 = vst.msk [vmem:[%s3 + $0x8] sm:$0xff] %vm610, %v3920
  %3925 = vst.msk [vmem:[%s3 + $0x10] sm:$0xff] %vm610, %v3921
  %3926 = vst.msk [vmem:[%s3 + $0x18] sm:$0xff] %vm610, %v3922
  // Predicated region
  $region14: #{encoder_pallas.2} parent=0 // pred_check
    _
  $region15: #{encoder_pallas.2} parent=0 // pred_check_branch
    %3928 = sbr.rel (0) target = $region17
  $region16: #{encoder_pallas.2} parent=0 // pred_region
    _
  $region17: #{encoder_pallas.2} parent=0 // pred_fallthru
    _
  // Predicated region
  $region18: #{encoder_pallas.2} parent=0 // pred_check
    _
  $region19: #{encoder_pallas.2} parent=0 // pred_check_branch
    %3930 = sbr.rel (0) target = $region21
  $region20: #{encoder_pallas.2} parent=0 // pred_region
    _
  $region21: #{encoder_pallas.2} parent=0 // pred_fallthru
    _

// kernel: tile.138
$region0: #{tile.138}
  #allocation0 [shape = 's32[1]{0}', space=sflag, size = 0x4, scoped, tag = 'scoped memory for tile.138']
  %s0 = inlined_call_operand.vmem [shape: f32[8], index: 0, kind: input, shape index: {}]
  %s1 = inlined_call_operand.vmem [shape: f32[8,8], index: 1, kind: output, shape index: {}]
  // Predicated region
  $region2: #{tile.138} parent=0 // pred_check
    _
  $region3: #{tile.138} parent=0 // pred_check_branch
    %3 = sbr.rel (0) target = $region5
  $region4: #{tile.138} parent=0 // pred_region
    _
  $region5: #{tile.138} parent=0 // pred_fallthru
    _
  %v4 = vld [vmem:[%s0] ss:$0 sm:$0xff]
  %5 = vst [vmem:[%s1] sm:$0xff] %v4

// kernel: tile.139
$region0: #{tile.139}
  %s0 = inlined_call_operand.vmem [shape: f32[8,8], index: 0, kind: input, shape index: {}]
  %s1 = inlined_call_operand.vmem [shape: f32[1,64], index: 1, kind: output, shape index: {}]
  $region1: #{tile.139} parent=0
    #allocation0 [shape = 'u8[4096]{0}', space=vmem, size = 0x1000, scoped, tag = 'scoped mem for output reshape']
    %v2 = vld [vmem:[%s0] sm:$0x1]
    %vm3 = vcmask 64512
    %4 = vst.msk [vmem:[#allocation0] sm:$0x1] %vm3, %v2
    %s5 = scalar_lea.vmem %s0, 7
    %v6 = vld [vmem:[%s5] sm:$0x1]
    %7 = vrot.lane.b32.xlu0 %v6, 56
    %v8 = vpop.permute.xlu0 %7
    %vm9 = vcmask 523712
    %10 = vst.msk [vmem:[#allocation0] sm:$0x1] %vm9, %v8
    %s11 = scalar_lea.vmem %s0, 6
    %v12 = vld [vmem:[%s11] sm:$0x1]
    %13 = vrot.lane.b32.xlu0 %v12, 48
    %v14 = vpop.permute.xlu0 %13
    %vm15 = vcmask 458112
    %16 = vst.msk [vmem:[#allocation0] sm:$0x1] %vm15, %v14
    %s17 = scalar_lea.vmem %s0, 5
    %v18 = vld [vmem:[%s17] sm:$0x1]
    %19 = vrot.lane.b32.xlu0 %v18, 40
    %v20 = vpop.permute.xlu0 %19
    %vm21 = vcmask 392512
    %22 = vst.msk [vmem:[#allocation0] sm:$0x1] %vm21, %v20
    %s23 = scalar_lea.vmem %s0, 4
    %v24 = vld [vmem:[%s23] sm:$0x1]
    %25 = vrot.lane.b32.xlu0 %v24, 32
    %v26 = vpop.permute.xlu0 %25
    %vm27 = vcmask 326912
    %28 = vst.msk [vmem:[#allocation0] sm:$0x1] %vm27, %v26
    %s29 = scalar_lea.vmem %s0, 3
    %v30 = vld [vmem:[%s29] sm:$0x1]
    %31 = vrot.lane.b32.xlu0 %v30, 24
    %v32 = vpop.permute.xlu0 %31
    %vm33 = vcmask 261312
    %34 = vst.msk [vmem:[#allocation0] sm:$0x1] %vm33, %v32
    %s35 = scalar_lea.vmem %s0, 2
    %v36 = vld [vmem:[%s35] sm:$0x1]
    %37 = vrot.lane.b32.xlu0 %v36, 16
    %v38 = vpop.permute.xlu0 %37
    %vm39 = vcmask 195712
    %40 = vst.msk [vmem:[#allocation0] sm:$0x1] %vm39, %v38
    %s41 = scalar_lea.vmem %s0, 1
    %v42 = vld [vmem:[%s41] sm:$0x1]
    %43 = vrot.lane.b32.xlu0 %v42, 8
    %v44 = vpop.permute.xlu0 %43
    %vm45 = vcmask 130112
    %46 = vst.msk [vmem:[#allocation0] sm:$0x1] %vm45, %v44
    %s48 = sshll.u32 1, 1
    %s49 = ssub.s32 %s48, 1
    %v51 = vld [vmem:[#allocation0] sm:%s49]
    %s52 = sshll.u32 1, 1
    %s53 = ssub.s32 %s52, 1
    %54 = vst [vmem:[%s1] sm:%s53] %v51

// kernel: encoder_pallas.3
$region0: #{encoder_pallas.3}
  #allocation0 [shape = 'u32[]', space=smem, size = 0x4, offset = 0x4, fixed_abs, tag = 'smem constant byte address 0x4 - core index']
  #allocation1 [shape = 'u32[144,128]{1,0:T(1,128)}', space=vmem, size = 0x12000, scoped, tag = 'internal scratch']
  %s0 = inlined_call_operand.vmem [shape: f32[16,192], index: 0, kind: input, shape index: {}]
  %s1 = inlined_call_operand.vmem [shape: f32[960,64], index: 1, kind: input, shape index: {}]
  %s2 = inlined_call_operand.vmem [shape: f32[9,64], index: 2, kind: input, shape index: {}]
  %s3 = inlined_call_operand.vmem [shape: f32[16,64], index: 3, kind: output, shape index: {}]
  %s4 = sld [smem:[#allocation0]]
  $region22: #{encoder_pallas.3} parent=0
    _
  %s6 = ssub.s32 1, %s4
  %s7 = scalar_select 0, %s6, %s4
  // Predicated region
  $region2: #{encoder_pallas.3} parent=0 // pred_check
    _
  $region3: #{encoder_pallas.3} parent=0 // pred_check_branch
    %9 = sbr.rel (0) target = $region5
  $region4: #{encoder_pallas.3} parent=0 // pred_region
    _
  $region5: #{encoder_pallas.3} parent=0 // pred_fallthru
    _
  // Predicated region
  $region6: #{encoder_pallas.3} parent=0 // pred_check
    _
  $region7: #{encoder_pallas.3} parent=0 // pred_check_branch
    %11 = sbr.rel (0) target = $region9
  $region8: #{encoder_pallas.3} parent=0 // pred_region
    _
  $region9: #{encoder_pallas.3} parent=0 // pred_fallthru
    _
  // Predicated region
  $region10: #{encoder_pallas.3} parent=0 // pred_check
    _
  $region11: #{encoder_pallas.3} parent=0 // pred_check_branch
    %13 = sbr.rel (0) target = $region13
  $region12: #{encoder_pallas.3} parent=0 // pred_region
    _
  $region13: #{encoder_pallas.3} parent=0 // pred_fallthru
    _
  %v14 = vld [vmem:[%s2] sm:$0xff]
  %v15 = vld [vmem:[%s2 + $0x8] sm:$0x1]
  %v16 = vld [vmem:[%s0] sm:$0xff]
  %v17 = vld [vmem:[%s0 + $0x8] sm:$0xff]
  %v18 = vld [vmem:[%s0 + $0x10] sm:$0xff]
  %v19 = vld [vmem:[%s0 + $0x18] sm:$0xff]
  %v20 = vld [vmem:[%s1] sm:$0xff]
  %v21 = vld [vmem:[%s1 + $0x8] sm:$0xff]
  %v22 = vld [vmem:[%s1 + $0x10] sm:$0xff]
  %v23 = vld [vmem:[%s1 + $0x18] sm:$0xff]
  %v24 = vld [vmem:[%s1 + $0x20] sm:$0xff]
  %v25 = vld [vmem:[%s1 + $0x28] sm:$0xff]
  %v26 = vld [vmem:[%s1 + $0x30] sm:$0xff]
  %v27 = vld [vmem:[%s1 + $0x38] sm:$0xff]
  %v28 = vld [vmem:[%s1 + $0x40] sm:$0xff]
  %v29 = vld [vmem:[%s1 + $0x48] sm:$0xff]
  %v30 = vld [vmem:[%s1 + $0x50] sm:$0xff]
  %v31 = vld [vmem:[%s1 + $0x58] sm:$0xff]
  %v32 = vld [vmem:[%s1 + $0x60] sm:$0xff]
  %v33 = vld [vmem:[%s1 + $0x68] sm:$0xff]
  %v34 = vld [vmem:[%s1 + $0x70] sm:$0xff]
  %v35 = vld [vmem:[%s1 + $0x78] sm:$0xff]
  %v36 = vld [vmem:[%s1 + $0x80] sm:$0xff]
  %v37 = vld [vmem:[%s1 + $0x88] sm:$0xff]
  %v38 = vld [vmem:[%s1 + $0x90] sm:$0xff]
  %v39 = vld [vmem:[%s1 + $0x98] sm:$0xff]
  %v40 = vld [vmem:[%s1 + $0xa0] sm:$0xff]
  %v41 = vld [vmem:[%s1 + $0xa8] sm:$0xff]
  %v42 = vld [vmem:[%s1 + $0xb0] sm:$0xff]
  %v43 = vld [vmem:[%s1 + $0xb8] sm:$0xff]
  %v44 = vlaneseq
  %v45 = vshrl.u32 %v44, 7
  %v46 = vsub.s32 0, %v45
  %v47 = vrot.slane %v14, %v46
  %vm48 = vcmask 523264
  %v50 = vsel %vm48, %v17, 0
  %v53 = vsel %vm48, %v19, 0
  %55 = vmatprep.subr.mxu0 0.0
  %56 = vmatpush1.msra.mxu0 %v35
  %57 = vmatprep.subr.mxu0 0.0
  %58 = vmatpush1.msra.mxu0 %v34
  %59 = vmatprep.subr.mxu0 0.0
  %60 = vmatpush1.msra.mxu0 %v33
  %61 = vmatprep.subr.mxu0 0.0
  %62 = vmatpush1.msra.mxu0 %v32
  %63 = vmatprep.subr.mxu0 0.0
  %64 = vmatpush1.msra.mxu0 %v31
  %65 = vmatprep.subr.mxu0 0.0
  %66 = vmatpush1.msra.mxu0 %v30
  %67 = vmatprep.subr.mxu0 0.0
  %68 = vmatpush1.msra.mxu0 %v29
  %69 = vmatprep.subr.mxu0 0.0
  %70 = vmatpush1.msra.mxu0 %v28
  %71 = vmatprep.subr.mxu0 0.0
  %72 = vmatpush1.msra.mxu0 %v27
  %73 = vmatprep.subr.mxu0 0.0
  %74 = vmatpush1.msra.mxu0 %v26
  %75 = vmatprep.subr.mxu0 0.0
  %76 = vmatpush1.msra.mxu0 %v25
  %77 = vmatprep.subr.mxu0 0.0
  %78 = vmatpush1.msra.mxu0 %v24
  %79 = vmatprep.subr.mxu0 0.0
  %80 = vmatpush1.msra.mxu0 %v23
  %81 = vmatprep.subr.mxu0 0.0
  %82 = vmatpush1.msra.mxu0 %v22
  %83 = vmatprep.subr.mxu0 0.0
  %84 = vmatpush1.msra.mxu0 %v21
  %85 = vmatprep.subr.mxu0 0.0
  %86 = vmatpush1.msra.mxu0 %v20
  %87 = vmatprep.subr.mxu0 0.0
  %88 = vmatpush2.msra.mxu0 0.0
  %89 = vmatprep.subr.mxu0 0.0
  %90 = vmatpush2.msra.mxu0 0.0
  %91 = vmatprep.subr.mxu0 0.0
  %92 = vmatpush2.msra.mxu0 0.0
  %93 = vmatprep.subr.mxu0 0.0
  %94 = vmatpush2.msra.mxu0 0.0
  %95 = vmatprep.subr.mxu0 0.0
  %96 = vmatpush2.msra.mxu0 0.0
  %97 = vmatprep.subr.mxu0 0.0
  %98 = vmatpush2.msra.mxu0 0.0
  %99 = vmatprep.subr.mxu0 0.0
  %100 = vmatpush2.msra.mxu0 0.0
  %101 = vmatprep.subr.mxu0 0.0
  %102 = vmatpush2.msra.mxu0 0.0
  %103 = vmatprep.subr.mxu0 0.0
  %104 = vmatpush2.msra.mxu0 %v43
  %105 = vmatprep.subr.mxu0 0.0
  %106 = vmatpush2.msra.mxu0 %v42
  %107 = vmatprep.subr.mxu0 0.0
  %108 = vmatpush2.msra.mxu0 %v41
  %109 = vmatprep.subr.mxu0 0.0
  %110 = vmatpush2.msra.mxu0 %v40
  %111 = vmatprep.subr.mxu0 0.0
  %112 = vmatpush2.msra.mxu0 %v39
  %113 = vmatprep.subr.mxu0 0.0
  %114 = vmatpush2.msra.mxu0 %v38
  %115 = vmatprep.subr.mxu0 0.0
  %116 = vmatpush2.msra.mxu0 %v37
  %117 = vmatprep.subr.mxu0 0.0
  %118 = vmatpush2.msra.mxu0 %v36
  %119 = vmatprep.mubr.f32.mxu0 %v50
  %120 = vmatmul.mubr.f32.gmra.mxu0 %v16
  %v121 = vpop.f32.mrf.mxu0
  %v122 = vadd.f32 %v47, %v121
  %v123 = vpop.f32.mrf.mxu0
  %124 = vmatprep.mubr.f32.mxu0 %v53
  %125 = vmatmul.mubr.f32.gmra.mxu0 %v18
  %v126 = vpop.f32.mrf.mxu0
  %v127 = vadd.f32 %v47, %v126
  %v128 = vpop.f32.mrf.mxu0
  %129 = vdwg.mxu0
  %v130 = vmax.f32 %v122, 0.0
  %v131 = vmax.f32 %v127, 0.0
  %v132 = vlaneseq
  %v133 = vshrl.u32 %v132, 7
  %v134 = vadd.s32 %v133, 8
  %v135 = vlaneseq
  %v136 = vand.u32 %v135, 127
  %v137 = vsub.s32 %v133, 1
  %v138 = vsub.s32 %v134, 1
  %vm139 = vcmp.eq.s32.totalorder %v136, %v137
  %vm140 = vcmp.eq.s32.totalorder %v136, %v138
  %vm141 = vcmp.lt.s32.totalorder %v133, 0
  %v142 = vsub.s32 0, %v133
  %v143 = vsel %vm141, %v142, %v133
  %v144 = vshrl.u32 %v143, 3
  %v145 = vand.u32 %v143, 7
  %v146 = vsub.s32 0, %v145
  %v147 = vsel %vm141, %v146, %v145
  %vm148 = vcmp.lt.s32.totalorder %v134, 0
  %v149 = vsub.s32 0, %v134
  %v150 = vsel %vm148, %v149, %v134
  %v151 = vshrl.u32 %v150, 3
  %v152 = vand.u32 %v150, 7
  %v153 = vsub.s32 0, %v152
  %v154 = vsel %vm148, %v153, %v152
  %vm155 = vcmp.ne.s32.totalorder %v147, 0
  %vm156 = vcmp.ne.s32.totalorder %v154, 0
  %vm157 = vcmp.lt.s32.totalorder %v147, 0
  %vm158 = vcmp.lt.s32.totalorder %v154, 0
  %vm159 = vmand %vm157, %vm155
  %vm160 = vmand %vm158, %vm156
  %v161 = vadd.s32 %v147, 8
  %v162 = vadd.s32 %v154, 8
  %v163 = vsel %vm159, %v161, %v147
  %v164 = vsel %vm160, %v162, %v154
  %vm165 = vcmp.ne.s32.totalorder %v163, 0
  %vm166 = vcmp.ne.s32.totalorder %v164, 0
  %vm167 = vmand %vm139, %vm165
  %vm168 = vmand %vm140, %vm166
  %v169 = vsel %vm167, 1, 0
  %v170 = vsel %vm168, 1, 0
  %v171 = vcvt.s32.f32 %v169
  %v172 = vcvt.s32.f32 %v170
  %v173 = vadd.s32 %v133, 1
  %v174 = vadd.s32 %v134, 1
  %vm175 = vcmp.eq.s32.totalorder %v136, %v173
  %vm176 = vcmp.eq.s32.totalorder %v136, %v174
  %vm177 = vcmp.ne.s32.totalorder %v163, 7
  %vm178 = vcmp.ne.s32.totalorder %v164, 7
  %vm179 = vmand %vm175, %vm177
  %vm180 = vmand %vm176, %vm178
  %v181 = vsel %vm179, 1, 0
  %v182 = vsel %vm180, 1, 0
  %v183 = vcvt.s32.f32 %v181
  %v184 = vcvt.s32.f32 %v182
  %v185 = vadd.s32 %v133, 16
  %v186 = vadd.s32 %v133, 24
  %v187 = vadd.s32 %v133, 32
  %v188 = vadd.s32 %v133, 40
  %v189 = vadd.s32 %v133, 48
  %v190 = vadd.s32 %v133, 56
  %vm191 = vcmp.lt.s32.totalorder %v185, 0
  %v192 = vsub.s32 0, %v185
  %v193 = vsel %vm191, %v192, %v185
  %v194 = vshrl.u32 %v193, 3
  %v195 = vand.u32 %v193, 7
  %v196 = vsub.s32 0, %v195
  %v197 = vsel %vm191, %v196, %v195
  %vm198 = vcmp.lt.s32.totalorder %v186, 0
  %v199 = vsub.s32 0, %v186
  %v200 = vsel %vm198, %v199, %v186
  %v201 = vshrl.u32 %v200, 3
  %v202 = vand.u32 %v200, 7
  %v203 = vsub.s32 0, %v202
  %v204 = vsel %vm198, %v203, %v202
  %vm205 = vcmp.lt.s32.totalorder %v187, 0
  %v206 = vsub.s32 0, %v187
  %v207 = vsel %vm205, %v206, %v187
  %v208 = vshrl.u32 %v207, 3
  %v209 = vand.u32 %v207, 7
  %v210 = vsub.s32 0, %v209
  %v211 = vsel %vm205, %v210, %v209
  %vm212 = vcmp.lt.s32.totalorder %v188, 0
  %v213 = vsub.s32 0, %v188
  %v214 = vsel %vm212, %v213, %v188
  %v215 = vshrl.u32 %v214, 3
  %v216 = vand.u32 %v214, 7
  %v217 = vsub.s32 0, %v216
  %v218 = vsel %vm212, %v217, %v216
  %vm219 = vcmp.lt.s32.totalorder %v189, 0
  %v220 = vsub.s32 0, %v189
  %v221 = vsel %vm219, %v220, %v189
  %v222 = vshrl.u32 %v221, 3
  %v223 = vand.u32 %v221, 7
  %v224 = vsub.s32 0, %v223
  %v225 = vsel %vm219, %v224, %v223
  %vm226 = vcmp.lt.s32.totalorder %v190, 0
  %v227 = vsub.s32 0, %v190
  %v228 = vsel %vm226, %v227, %v190
  %v229 = vshrl.u32 %v228, 3
  %v230 = vand.u32 %v228, 7
  %v231 = vsub.s32 0, %v230
  %v232 = vsel %vm226, %v231, %v230
  %vm233 = vcmp.ne.s32.totalorder %v197, 0
  %vm234 = vcmp.ne.s32.totalorder %v204, 0
  %vm235 = vcmp.ne.s32.totalorder %v211, 0
  %vm236 = vcmp.ne.s32.totalorder %v218, 0
  %vm237 = vcmp.ne.s32.totalorder %v225, 0
  %vm238 = vcmp.ne.s32.totalorder %v232, 0
  %vm239 = vcmp.lt.s32.totalorder %v197, 0
  %vm240 = vcmp.lt.s32.totalorder %v204, 0
  %vm241 = vcmp.lt.s32.totalorder %v211, 0
  %vm242 = vcmp.lt.s32.totalorder %v218, 0
  %vm243 = vcmp.lt.s32.totalorder %v225, 0
  %vm244 = vcmp.lt.s32.totalorder %v232, 0
  %vm245 = vmand %vm239, %vm233
  %vm246 = vmand %vm240, %vm234
  %vm247 = vmand %vm241, %vm235
  %vm248 = vmand %vm242, %vm236
  %vm249 = vmand %vm243, %vm237
  %vm250 = vmand %vm244, %vm238
  %v251 = vadd.s32 %v197, 8
  %v252 = vadd.s32 %v204, 8
  %v253 = vadd.s32 %v211, 8
  %v254 = vadd.s32 %v218, 8
  %v255 = vadd.s32 %v225, 8
  %v256 = vadd.s32 %v232, 8
  %v257 = vsel %vm245, %v251, %v197
  %v258 = vsel %vm246, %v252, %v204
  %v259 = vsel %vm247, %v253, %v211
  %v260 = vsel %vm248, %v254, %v218
  %v261 = vsel %vm249, %v255, %v225
  %v262 = vsel %vm250, %v256, %v232
  %vm263 = vcmp.eq.s32.totalorder %v163, %v136
  %vm264 = vcmp.eq.s32.totalorder %v164, %v136
  %vm265 = vcmp.eq.s32.totalorder %v257, %v136
  %vm266 = vcmp.eq.s32.totalorder %v258, %v136
  %vm267 = vcmp.eq.s32.totalorder %v259, %v136
  %vm268 = vcmp.eq.s32.totalorder %v260, %v136
  %vm269 = vcmp.eq.s32.totalorder %v261, %v136
  %vm270 = vcmp.eq.s32.totalorder %v262, %v136
  %v271 = vsel %vm263, 1, 0
  %v272 = vsel %vm264, 1, 0
  %v273 = vsel %vm265, 1, 0
  %v274 = vsel %vm266, 1, 0
  %v275 = vsel %vm267, 1, 0
  %v276 = vsel %vm268, 1, 0
  %v277 = vsel %vm269, 1, 0
  %v278 = vsel %vm270, 1, 0
  %v279 = vcvt.s32.f32 %v271
  %v280 = vcvt.s32.f32 %v272
  %v281 = vcvt.s32.f32 %v273
  %v282 = vcvt.s32.f32 %v274
  %v283 = vcvt.s32.f32 %v275
  %v284 = vcvt.s32.f32 %v276
  %v285 = vcvt.s32.f32 %v277
  %v286 = vcvt.s32.f32 %v278
  %vm287 = vcmp.lt.s32.totalorder %v136, 0
  %v288 = vsub.s32 0, %v136
  %v289 = vsel %vm287, %v288, %v136
  %v290 = vshrl.u32 %v289, 3
  %v291 = vand.u32 %v289, 7
  %v292 = vsub.s32 0, %v291
  %v293 = vsel %vm287, %v292, %v291
  %vm294 = vcmp.ne.s32.totalorder %v293, 0
  %vm295 = vcmp.lt.s32.totalorder %v293, 0
  %vm296 = vmand %vm295, %vm294
  %v297 = vadd.s32 %v293, 8
  %v298 = vsel %vm296, %v297, %v293
  %vm299 = vcmp.eq.s32.totalorder %v133, %v298
  %v300 = vsel %vm299, 1, 0
  %v301 = vcvt.s32.f32 %v300
  %v302 = vld [vmem:[%s1 + $0x100] sm:$0xff]
  %v303 = vld [vmem:[%s1 + $0x108] sm:$0xff]
  %v304 = vld [vmem:[%s1 + $0x110] sm:$0xff]
  %v305 = vld [vmem:[%s1 + $0x118] sm:$0xff]
  %v306 = vld [vmem:[%s1 + $0x120] sm:$0xff]
  %v307 = vld [vmem:[%s1 + $0x128] sm:$0xff]
  %v308 = vld [vmem:[%s1 + $0x130] sm:$0xff]
  %v309 = vld [vmem:[%s1 + $0x138] sm:$0xff]
  %vm310 = vcmask 130048
  %v312 = vsel %vm310, %v171, 0
  %v315 = vsel %vm310, %v172, 0
  %317 = vmatprep.subr.mxu0 0.0
  %318 = vmatpush1.msra.mxu0 0.0
  %319 = vmatprep.subr.mxu0 0.0
  %320 = vmatpush1.msra.mxu0 0.0
  %321 = vmatprep.subr.mxu0 0.0
  %322 = vmatpush1.msra.mxu0 0.0
  %323 = vmatprep.subr.mxu0 0.0
  %324 = vmatpush1.msra.mxu0 0.0
  %325 = vmatprep.subr.mxu0 0.0
  %326 = vmatpush1.msra.mxu0 0.0
  %327 = vmatprep.subr.mxu0 0.0
  %328 = vmatpush1.msra.mxu0 0.0
  %329 = vmatprep.subr.mxu0 0.0
  %330 = vmatpush1.msra.mxu0 0.0
  %331 = vmatprep.subr.mxu0 0.0
  %332 = vmatpush1.msra.mxu0 0.0
  %333 = vmatprep.subr.mxu0 0.0
  %334 = vmatpush1.msra.mxu0 0.0
  %335 = vmatprep.subr.mxu0 0.0
  %336 = vmatpush1.msra.mxu0 0.0
  %337 = vmatprep.subr.mxu0 0.0
  %338 = vmatpush1.msra.mxu0 0.0
  %339 = vmatprep.subr.mxu0 0.0
  %340 = vmatpush1.msra.mxu0 0.0
  %341 = vmatprep.subr.mxu0 0.0
  %342 = vmatpush1.msra.mxu0 0.0
  %343 = vmatprep.subr.mxu0 0.0
  %344 = vmatpush1.msra.mxu0 0.0
  %345 = vmatprep.subr.mxu0 0.0
  %346 = vmatpush1.msra.mxu0 %v131
  %347 = vmatprep.subr.mxu0 0.0
  %348 = vmatpush1.msra.mxu0 %v130
  %349 = vmatprep.subr.mxu0 0.0
  %350 = vmatpush2.msra.mxu0 0.0
  %351 = vmatprep.subr.mxu0 0.0
  %352 = vmatpush2.msra.mxu0 0.0
  %353 = vmatprep.subr.mxu0 0.0
  %354 = vmatpush2.msra.mxu0 0.0
  %355 = vmatprep.subr.mxu0 0.0
  %356 = vmatpush2.msra.mxu0 0.0
  %357 = vmatprep.subr.mxu0 0.0
  %358 = vmatpush2.msra.mxu0 0.0
  %359 = vmatprep.subr.mxu0 0.0
  %360 = vmatpush2.msra.mxu0 0.0
  %361 = vmatprep.subr.mxu0 0.0
  %362 = vmatpush2.msra.mxu0 0.0
  %363 = vmatprep.subr.mxu0 0.0
  %364 = vmatpush2.msra.mxu0 0.0
  %365 = vmatprep.subr.mxu0 0.0
  %366 = vmatpush2.msra.mxu0 0.0
  %367 = vmatprep.subr.mxu0 0.0
  %368 = vmatpush2.msra.mxu0 0.0
  %369 = vmatprep.subr.mxu0 0.0
  %370 = vmatpush2.msra.mxu0 0.0
  %371 = vmatprep.subr.mxu0 0.0
  %372 = vmatpush2.msra.mxu0 0.0
  %373 = vmatprep.subr.mxu0 0.0
  %374 = vmatpush2.msra.mxu0 0.0
  %375 = vmatprep.subr.mxu0 0.0
  %376 = vmatpush2.msra.mxu0 0.0
  %377 = vmatprep.subr.mxu0 0.0
  %378 = vmatpush2.msra.mxu0 0.0
  %379 = vmatprep.subr.mxu0 0.0
  %380 = vmatpush2.msra.mxu0 0.0
  %381 = vmatprep.mubr.f32.mxu0 0.0
  %382 = vmatmul.mubr.f32.gmra.mxu0 %v312
  %v383 = vpop.f32.mrf.mxu0
  %v384 = vadd.f32 0.0, %v383
  %v385 = vpop.f32.mrf.mxu0
  %386 = vmatprep.mubr.f32.mxu0 0.0
  %387 = vmatmul.mubr.f32.gmra.mxu0 %v315
  %v388 = vpop.f32.mrf.mxu0
  %v389 = vadd.f32 0.0, %v388
  %v390 = vpop.f32.mrf.mxu0
  %391 = vdwg.mxu0
  %v392 = vld [vmem:[%s1 + $0xc0] sm:$0xff]
  %v393 = vld [vmem:[%s1 + $0xc8] sm:$0xff]
  %v394 = vld [vmem:[%s1 + $0xd0] sm:$0xff]
  %v395 = vld [vmem:[%s1 + $0xd8] sm:$0xff]
  %v396 = vld [vmem:[%s1 + $0xe0] sm:$0xff]
  %v397 = vld [vmem:[%s1 + $0xe8] sm:$0xff]
  %v398 = vld [vmem:[%s1 + $0xf0] sm:$0xff]
  %v399 = vld [vmem:[%s1 + $0xf8] sm:$0xff]
  %v401 = vsel %vm48, %v384, 0
  %v404 = vsel %vm48, %v389, 0
  %406 = vmatprep.subr.mxu0 0.0
  %407 = vmatpush1.msra.mxu0 0.0
  %408 = vmatprep.subr.mxu0 0.0
  %409 = vmatpush1.msra.mxu0 0.0
  %410 = vmatprep.subr.mxu0 0.0
  %411 = vmatpush1.msra.mxu0 0.0
  %412 = vmatprep.subr.mxu0 0.0
  %413 = vmatpush1.msra.mxu0 0.0
  %414 = vmatprep.subr.mxu0 0.0
  %415 = vmatpush1.msra.mxu0 0.0
  %416 = vmatprep.subr.mxu0 0.0
  %417 = vmatpush1.msra.mxu0 0.0
  %418 = vmatprep.subr.mxu0 0.0
  %419 = vmatpush1.msra.mxu0 0.0
  %420 = vmatprep.subr.mxu0 0.0
  %421 = vmatpush1.msra.mxu0 0.0
  %422 = vmatprep.subr.mxu0 0.0
  %423 = vmatpush1.msra.mxu0 %v399
  %424 = vmatprep.subr.mxu0 0.0
  %425 = vmatpush1.msra.mxu0 %v398
  %426 = vmatprep.subr.mxu0 0.0
  %427 = vmatpush1.msra.mxu0 %v397
  %428 = vmatprep.subr.mxu0 0.0
  %429 = vmatpush1.msra.mxu0 %v396
  %430 = vmatprep.subr.mxu0 0.0
  %431 = vmatpush1.msra.mxu0 %v395
  %432 = vmatprep.subr.mxu0 0.0
  %433 = vmatpush1.msra.mxu0 %v394
  %434 = vmatprep.subr.mxu0 0.0
  %435 = vmatpush1.msra.mxu0 %v393
  %436 = vmatprep.subr.mxu0 0.0
  %437 = vmatpush1.msra.mxu0 %v392
  %438 = vmatprep.subr.mxu0 0.0
  %439 = vmatpush2.msra.mxu0 0.0
  %440 = vmatprep.subr.mxu0 0.0
  %441 = vmatpush2.msra.mxu0 0.0
  %442 = vmatprep.subr.mxu0 0.0
  %443 = vmatpush2.msra.mxu0 0.0
  %444 = vmatprep.subr.mxu0 0.0
  %445 = vmatpush2.msra.mxu0 0.0
  %446 = vmatprep.subr.mxu0 0.0
  %447 = vmatpush2.msra.mxu0 0.0
  %448 = vmatprep.subr.mxu0 0.0
  %449 = vmatpush2.msra.mxu0 0.0
  %450 = vmatprep.subr.mxu0 0.0
  %451 = vmatpush2.msra.mxu0 0.0
  %452 = vmatprep.subr.mxu0 0.0
  %453 = vmatpush2.msra.mxu0 0.0
  %454 = vmatprep.subr.mxu0 0.0
  %455 = vmatpush2.msra.mxu0 0.0
  %456 = vmatprep.subr.mxu0 0.0
  %457 = vmatpush2.msra.mxu0 0.0
  %458 = vmatprep.subr.mxu0 0.0
  %459 = vmatpush2.msra.mxu0 0.0
  %460 = vmatprep.subr.mxu0 0.0
  %461 = vmatpush2.msra.mxu0 0.0
  %462 = vmatprep.subr.mxu0 0.0
  %463 = vmatpush2.msra.mxu0 0.0
  %464 = vmatprep.subr.mxu0 0.0
  %465 = vmatpush2.msra.mxu0 0.0
  %466 = vmatprep.subr.mxu0 0.0
  %467 = vmatpush2.msra.mxu0 0.0
  %468 = vmatprep.subr.mxu0 0.0
  %469 = vmatpush2.msra.mxu0 0.0
  %470 = vmatprep.mubr.f32.mxu0 0.0
  %471 = vmatmul.mubr.f32.gmra.mxu0 %v401
  %v472 = vpop.f32.mrf.mxu0
  %v473 = vadd.f32 0.0, %v472
  %v474 = vpop.f32.mrf.mxu0
  %475 = vmatprep.mubr.f32.mxu0 0.0
  %476 = vmatmul.mubr.f32.gmra.mxu0 %v404
  %v477 = vpop.f32.mrf.mxu0
  %v478 = vadd.f32 0.0, %v477
  %v479 = vpop.f32.mrf.mxu0
  %480 = vdwg.mxu0
  %v482 = vsel %vm48, %v130, 0
  %v485 = vsel %vm48, %v131, 0
  %487 = vmatprep.subr.mxu0 0.0
  %488 = vmatpush1.msra.mxu0 0.0
  %489 = vmatprep.subr.mxu0 0.0
  %490 = vmatpush1.msra.mxu0 0.0
  %491 = vmatprep.subr.mxu0 0.0
  %492 = vmatpush1.msra.mxu0 0.0
  %493 = vmatprep.subr.mxu0 0.0
  %494 = vmatpush1.msra.mxu0 0.0
  %495 = vmatprep.subr.mxu0 0.0
  %496 = vmatpush1.msra.mxu0 0.0
  %497 = vmatprep.subr.mxu0 0.0
  %498 = vmatpush1.msra.mxu0 0.0
  %499 = vmatprep.subr.mxu0 0.0
  %500 = vmatpush1.msra.mxu0 0.0
  %501 = vmatprep.subr.mxu0 0.0
  %502 = vmatpush1.msra.mxu0 0.0
  %503 = vmatprep.subr.mxu0 0.0
  %504 = vmatpush1.msra.mxu0 %v309
  %505 = vmatprep.subr.mxu0 0.0
  %506 = vmatpush1.msra.mxu0 %v308
  %507 = vmatprep.subr.mxu0 0.0
  %508 = vmatpush1.msra.mxu0 %v307
  %509 = vmatprep.subr.mxu0 0.0
  %510 = vmatpush1.msra.mxu0 %v306
  %511 = vmatprep.subr.mxu0 0.0
  %512 = vmatpush1.msra.mxu0 %v305
  %513 = vmatprep.subr.mxu0 0.0
  %514 = vmatpush1.msra.mxu0 %v304
  %515 = vmatprep.subr.mxu0 0.0
  %516 = vmatpush1.msra.mxu0 %v303
  %517 = vmatprep.subr.mxu0 0.0
  %518 = vmatpush1.msra.mxu0 %v302
  %519 = vmatprep.subr.mxu0 0.0
  %520 = vmatpush2.msra.mxu0 0.0
  %521 = vmatprep.subr.mxu0 0.0
  %522 = vmatpush2.msra.mxu0 0.0
  %523 = vmatprep.subr.mxu0 0.0
  %524 = vmatpush2.msra.mxu0 0.0
  %525 = vmatprep.subr.mxu0 0.0
  %526 = vmatpush2.msra.mxu0 0.0
  %527 = vmatprep.subr.mxu0 0.0
  %528 = vmatpush2.msra.mxu0 0.0
  %529 = vmatprep.subr.mxu0 0.0
  %530 = vmatpush2.msra.mxu0 0.0
  %531 = vmatprep.subr.mxu0 0.0
  %532 = vmatpush2.msra.mxu0 0.0
  %533 = vmatprep.subr.mxu0 0.0
  %534 = vmatpush2.msra.mxu0 0.0
  %535 = vmatprep.subr.mxu0 0.0
  %536 = vmatpush2.msra.mxu0 0.0
  %537 = vmatprep.subr.mxu0 0.0
  %538 = vmatpush2.msra.mxu0 0.0
  %539 = vmatprep.subr.mxu0 0.0
  %540 = vmatpush2.msra.mxu0 0.0
  %541 = vmatprep.subr.mxu0 0.0
  %542 = vmatpush2.msra.mxu0 0.0
  %543 = vmatprep.subr.mxu0 0.0
  %544 = vmatpush2.msra.mxu0 0.0
  %545 = vmatprep.subr.mxu0 0.0
  %546 = vmatpush2.msra.mxu0 0.0
  %547 = vmatprep.subr.mxu0 0.0
  %548 = vmatpush2.msra.mxu0 0.0
  %549 = vmatprep.subr.mxu0 0.0
  %550 = vmatpush2.msra.mxu0 0.0
  %551 = vmatprep.mubr.f32.mxu0 0.0
  %552 = vmatmul.mubr.f32.gmra.mxu0 %v482
  %v553 = vpop.f32.mrf.mxu0
  %v554 = vadd.f32 %v473, %v553
  %v555 = vpop.f32.mrf.mxu0
  %556 = vmatprep.mubr.f32.mxu0 0.0
  %557 = vmatmul.mubr.f32.gmra.mxu0 %v485
  %v558 = vpop.f32.mrf.mxu0
  %v559 = vadd.f32 %v478, %v558
  %v560 = vpop.f32.mrf.mxu0
  %561 = vdwg.mxu0
  %v563 = vsel %vm310, %v183, 0
  %v566 = vsel %vm310, %v184, 0
  %568 = vmatprep.subr.mxu0 0.0
  %569 = vmatpush1.msra.mxu0 0.0
  %570 = vmatprep.subr.mxu0 0.0
  %571 = vmatpush1.msra.mxu0 0.0
  %572 = vmatprep.subr.mxu0 0.0
  %573 = vmatpush1.msra.mxu0 0.0
  %574 = vmatprep.subr.mxu0 0.0
  %575 = vmatpush1.msra.mxu0 0.0
  %576 = vmatprep.subr.mxu0 0.0
  %577 = vmatpush1.msra.mxu0 0.0
  %578 = vmatprep.subr.mxu0 0.0
  %579 = vmatpush1.msra.mxu0 0.0
  %580 = vmatprep.subr.mxu0 0.0
  %581 = vmatpush1.msra.mxu0 0.0
  %582 = vmatprep.subr.mxu0 0.0
  %583 = vmatpush1.msra.mxu0 0.0
  %584 = vmatprep.subr.mxu0 0.0
  %585 = vmatpush1.msra.mxu0 0.0
  %586 = vmatprep.subr.mxu0 0.0
  %587 = vmatpush1.msra.mxu0 0.0
  %588 = vmatprep.subr.mxu0 0.0
  %589 = vmatpush1.msra.mxu0 0.0
  %590 = vmatprep.subr.mxu0 0.0
  %591 = vmatpush1.msra.mxu0 0.0
  %592 = vmatprep.subr.mxu0 0.0
  %593 = vmatpush1.msra.mxu0 0.0
  %594 = vmatprep.subr.mxu0 0.0
  %595 = vmatpush1.msra.mxu0 0.0
  %596 = vmatprep.subr.mxu0 0.0
  %597 = vmatpush1.msra.mxu0 %v131
  %598 = vmatprep.subr.mxu0 0.0
  %599 = vmatpush1.msra.mxu0 %v130
  %600 = vmatprep.subr.mxu0 0.0
  %601 = vmatpush2.msra.mxu0 0.0
  %602 = vmatprep.subr.mxu0 0.0
  %603 = vmatpush2.msra.mxu0 0.0
  %604 = vmatprep.subr.mxu0 0.0
  %605 = vmatpush2.msra.mxu0 0.0
  %606 = vmatprep.subr.mxu0 0.0
  %607 = vmatpush2.msra.mxu0 0.0
  %608 = vmatprep.subr.mxu0 0.0
  %609 = vmatpush2.msra.mxu0 0.0
  %610 = vmatprep.subr.mxu0 0.0
  %611 = vmatpush2.msra.mxu0 0.0
  %612 = vmatprep.subr.mxu0 0.0
  %613 = vmatpush2.msra.mxu0 0.0
  %614 = vmatprep.subr.mxu0 0.0
  %615 = vmatpush2.msra.mxu0 0.0
  %616 = vmatprep.subr.mxu0 0.0
  %617 = vmatpush2.msra.mxu0 0.0
  %618 = vmatprep.subr.mxu0 0.0
  %619 = vmatpush2.msra.mxu0 0.0
  %620 = vmatprep.subr.mxu0 0.0
  %621 = vmatpush2.msra.mxu0 0.0
  %622 = vmatprep.subr.mxu0 0.0
  %623 = vmatpush2.msra.mxu0 0.0
  %624 = vmatprep.subr.mxu0 0.0
  %625 = vmatpush2.msra.mxu0 0.0
  %626 = vmatprep.subr.mxu0 0.0
  %627 = vmatpush2.msra.mxu0 0.0
  %628 = vmatprep.subr.mxu0 0.0
  %629 = vmatpush2.msra.mxu0 0.0
  %630 = vmatprep.subr.mxu0 0.0
  %631 = vmatpush2.msra.mxu0 0.0
  %632 = vmatprep.mubr.f32.mxu0 0.0
  %633 = vmatmul.mubr.f32.gmra.mxu0 %v563
  %v634 = vpop.f32.mrf.mxu0
  %v635 = vadd.f32 0.0, %v634
  %v636 = vpop.f32.mrf.mxu0
  %637 = vmatprep.mubr.f32.mxu0 0.0
  %638 = vmatmul.mubr.f32.gmra.mxu0 %v566
  %v639 = vpop.f32.mrf.mxu0
  %v640 = vadd.f32 0.0, %v639
  %v641 = vpop.f32.mrf.mxu0
  %642 = vdwg.mxu0
  %v643 = vld [vmem:[%s1 + $0x140] sm:$0xff]
  %v644 = vld [vmem:[%s1 + $0x148] sm:$0xff]
  %v645 = vld [vmem:[%s1 + $0x150] sm:$0xff]
  %v646 = vld [vmem:[%s1 + $0x158] sm:$0xff]
  %v647 = vld [vmem:[%s1 + $0x160] sm:$0xff]
  %v648 = vld [vmem:[%s1 + $0x168] sm:$0xff]
  %v649 = vld [vmem:[%s1 + $0x170] sm:$0xff]
  %v650 = vld [vmem:[%s1 + $0x178] sm:$0xff]
  %v652 = vsel %vm48, %v635, 0
  %v655 = vsel %vm48, %v640, 0
  %657 = vmatprep.subr.mxu0 0.0
  %658 = vmatpush1.msra.mxu0 0.0
  %659 = vmatprep.subr.mxu0 0.0
  %660 = vmatpush1.msra.mxu0 0.0
  %661 = vmatprep.subr.mxu0 0.0
  %662 = vmatpush1.msra.mxu0 0.0
  %663 = vmatprep.subr.mxu0 0.0
  %664 = vmatpush1.msra.mxu0 0.0
  %665 = vmatprep.subr.mxu0 0.0
  %666 = vmatpush1.msra.mxu0 0.0
  %667 = vmatprep.subr.mxu0 0.0
  %668 = vmatpush1.msra.mxu0 0.0
  %669 = vmatprep.subr.mxu0 0.0
  %670 = vmatpush1.msra.mxu0 0.0
  %671 = vmatprep.subr.mxu0 0.0
  %672 = vmatpush1.msra.mxu0 0.0
  %673 = vmatprep.subr.mxu0 0.0
  %674 = vmatpush1.msra.mxu0 %v650
  %675 = vmatprep.subr.mxu0 0.0
  %676 = vmatpush1.msra.mxu0 %v649
  %677 = vmatprep.subr.mxu0 0.0
  %678 = vmatpush1.msra.mxu0 %v648
  %679 = vmatprep.subr.mxu0 0.0
  %680 = vmatpush1.msra.mxu0 %v647
  %681 = vmatprep.subr.mxu0 0.0
  %682 = vmatpush1.msra.mxu0 %v646
  %683 = vmatprep.subr.mxu0 0.0
  %684 = vmatpush1.msra.mxu0 %v645
  %685 = vmatprep.subr.mxu0 0.0
  %686 = vmatpush1.msra.mxu0 %v644
  %687 = vmatprep.subr.mxu0 0.0
  %688 = vmatpush1.msra.mxu0 %v643
  %689 = vmatprep.subr.mxu0 0.0
  %690 = vmatpush2.msra.mxu0 0.0
  %691 = vmatprep.subr.mxu0 0.0
  %692 = vmatpush2.msra.mxu0 0.0
  %693 = vmatprep.subr.mxu0 0.0
  %694 = vmatpush2.msra.mxu0 0.0
  %695 = vmatprep.subr.mxu0 0.0
  %696 = vmatpush2.msra.mxu0 0.0
  %697 = vmatprep.subr.mxu0 0.0
  %698 = vmatpush2.msra.mxu0 0.0
  %699 = vmatprep.subr.mxu0 0.0
  %700 = vmatpush2.msra.mxu0 0.0
  %701 = vmatprep.subr.mxu0 0.0
  %702 = vmatpush2.msra.mxu0 0.0
  %703 = vmatprep.subr.mxu0 0.0
  %704 = vmatpush2.msra.mxu0 0.0
  %705 = vmatprep.subr.mxu0 0.0
  %706 = vmatpush2.msra.mxu0 0.0
  %707 = vmatprep.subr.mxu0 0.0
  %708 = vmatpush2.msra.mxu0 0.0
  %709 = vmatprep.subr.mxu0 0.0
  %710 = vmatpush2.msra.mxu0 0.0
  %711 = vmatprep.subr.mxu0 0.0
  %712 = vmatpush2.msra.mxu0 0.0
  %713 = vmatprep.subr.mxu0 0.0
  %714 = vmatpush2.msra.mxu0 0.0
  %715 = vmatprep.subr.mxu0 0.0
  %716 = vmatpush2.msra.mxu0 0.0
  %717 = vmatprep.subr.mxu0 0.0
  %718 = vmatpush2.msra.mxu0 0.0
  %719 = vmatprep.subr.mxu0 0.0
  %720 = vmatpush2.msra.mxu0 0.0
  %721 = vmatprep.mubr.f32.mxu0 0.0
  %722 = vmatmul.mubr.f32.gmra.mxu0 %v652
  %v723 = vpop.f32.mrf.mxu0
  %v724 = vadd.f32 0.0, %v723
  %v725 = vpop.f32.mrf.mxu0
  %726 = vmatprep.mubr.f32.mxu0 0.0
  %727 = vmatmul.mubr.f32.gmra.mxu0 %v655
  %v728 = vpop.f32.mrf.mxu0
  %v729 = vadd.f32 0.0, %v728
  %v730 = vpop.f32.mrf.mxu0
  %731 = vdwg.mxu0
  %v732 = vadd.f32 %v554, %v724
  %v733 = vadd.f32 %v559, %v729
  %v734 = vsel %vm48, %v732, 0.0
  %v735 = vsel %vm48, %v733, 0.0
  %v736 = vadd.f32 %v734, %v735
  %v737 = vrot.slane %v736, 4
  %v738 = vadd.f32 %v736, %v737
  %v739 = vrot.slane %v738, 2
  %v740 = vadd.f32 %v738, %v739
  %v741 = vrot.slane %v740, 1
  %v742 = vadd.f32 %v740, %v741
  %v744 = vsel %vm48, %v742, 0
  %746 = vmatprep.subr.mxu0 0.0
  %747 = vmatpush1.msra.mxu0 0.0
  %748 = vmatprep.subr.mxu0 0.0
  %749 = vmatpush1.msra.mxu0 0.0
  %750 = vmatprep.subr.mxu0 0.0
  %751 = vmatpush1.msra.mxu0 0.0
  %752 = vmatprep.subr.mxu0 0.0
  %753 = vmatpush1.msra.mxu0 0.0
  %754 = vmatprep.subr.mxu0 0.0
  %755 = vmatpush1.msra.mxu0 0.0
  %756 = vmatprep.subr.mxu0 0.0
  %757 = vmatpush1.msra.mxu0 0.0
  %758 = vmatprep.subr.mxu0 0.0
  %759 = vmatpush1.msra.mxu0 0.0
  %760 = vmatprep.subr.mxu0 0.0
  %761 = vmatpush1.msra.mxu0 0.0
  %762 = vmatprep.subr.mxu0 0.0
  %763 = vmatpush1.msra.mxu0 %v286
  %764 = vmatprep.subr.mxu0 0.0
  %765 = vmatpush1.msra.mxu0 %v285
  %766 = vmatprep.subr.mxu0 0.0
  %767 = vmatpush1.msra.mxu0 %v284
  %768 = vmatprep.subr.mxu0 0.0
  %769 = vmatpush1.msra.mxu0 %v283
  %770 = vmatprep.subr.mxu0 0.0
  %771 = vmatpush1.msra.mxu0 %v282
  %772 = vmatprep.subr.mxu0 0.0
  %773 = vmatpush1.msra.mxu0 %v281
  %774 = vmatprep.subr.mxu0 0.0
  %775 = vmatpush1.msra.mxu0 %v280
  %776 = vmatprep.subr.mxu0 0.0
  %777 = vmatpush1.msra.mxu0 %v279
  %778 = vmatprep.subr.mxu0 0.0
  %779 = vmatpush2.msra.mxu0 0.0
  %780 = vmatprep.subr.mxu0 0.0
  %781 = vmatpush2.msra.mxu0 0.0
  %782 = vmatprep.subr.mxu0 0.0
  %783 = vmatpush2.msra.mxu0 0.0
  %784 = vmatprep.subr.mxu0 0.0
  %785 = vmatpush2.msra.mxu0 0.0
  %786 = vmatprep.subr.mxu0 0.0
  %787 = vmatpush2.msra.mxu0 0.0
  %788 = vmatprep.subr.mxu0 0.0
  %789 = vmatpush2.msra.mxu0 0.0
  %790 = vmatprep.subr.mxu0 0.0
  %791 = vmatpush2.msra.mxu0 0.0
  %792 = vmatprep.subr.mxu0 0.0
  %793 = vmatpush2.msra.mxu0 0.0
  %794 = vmatprep.subr.mxu0 0.0
  %795 = vmatpush2.msra.mxu0 0.0
  %796 = vmatprep.subr.mxu0 0.0
  %797 = vmatpush2.msra.mxu0 0.0
  %798 = vmatprep.subr.mxu0 0.0
  %799 = vmatpush2.msra.mxu0 0.0
  %800 = vmatprep.subr.mxu0 0.0
  %801 = vmatpush2.msra.mxu0 0.0
  %802 = vmatprep.subr.mxu0 0.0
  %803 = vmatpush2.msra.mxu0 0.0
  %804 = vmatprep.subr.mxu0 0.0
  %805 = vmatpush2.msra.mxu0 0.0
  %806 = vmatprep.subr.mxu0 0.0
  %807 = vmatpush2.msra.mxu0 0.0
  %808 = vmatprep.subr.mxu0 0.0
  %809 = vmatpush2.msra.mxu0 0.0
  %810 = vmatprep.mubr.f32.mxu0 0.0
  %811 = vmatmul.mubr.f32.gmra.mxu0 %v744
  %v812 = vpop.f32.mrf.mxu0
  %v813 = vadd.f32 0.0, %v812
  %v814 = vpop.f32.mrf.mxu0
  %815 = vdwg.mxu0
  %v816 = vmul.f32 %v813, 0.0078125
  %vm817 = vcmask 64512
  %v819 = vsel %vm817, %v816, 0
  %821 = vmatprep.subr.mxu0 0.0
  %822 = vmatpush1.msra.mxu0 0.0
  %823 = vmatprep.subr.mxu0 0.0
  %824 = vmatpush1.msra.mxu0 0.0
  %825 = vmatprep.subr.mxu0 0.0
  %826 = vmatpush1.msra.mxu0 0.0
  %827 = vmatprep.subr.mxu0 0.0
  %828 = vmatpush1.msra.mxu0 0.0
  %829 = vmatprep.subr.mxu0 0.0
  %830 = vmatpush1.msra.mxu0 0.0
  %831 = vmatprep.subr.mxu0 0.0
  %832 = vmatpush1.msra.mxu0 0.0
  %833 = vmatprep.subr.mxu0 0.0
  %834 = vmatpush1.msra.mxu0 0.0
  %835 = vmatprep.subr.mxu0 0.0
  %836 = vmatpush1.msra.mxu0 0.0
  %837 = vmatprep.subr.mxu0 0.0
  %838 = vmatpush1.msra.mxu0 0.0
  %839 = vmatprep.subr.mxu0 0.0
  %840 = vmatpush1.msra.mxu0 0.0
  %841 = vmatprep.subr.mxu0 0.0
  %842 = vmatpush1.msra.mxu0 0.0
  %843 = vmatprep.subr.mxu0 0.0
  %844 = vmatpush1.msra.mxu0 0.0
  %845 = vmatprep.subr.mxu0 0.0
  %846 = vmatpush1.msra.mxu0 0.0
  %847 = vmatprep.subr.mxu0 0.0
  %848 = vmatpush1.msra.mxu0 0.0
  %849 = vmatprep.subr.mxu0 0.0
  %850 = vmatpush1.msra.mxu0 0.0
  %851 = vmatprep.subr.mxu0 0.0
  %852 = vmatpush1.msra.mxu0 %v301
  %853 = vmatprep.subr.mxu0 0.0
  %854 = vmatpush2.msra.mxu0 0.0
  %855 = vmatprep.subr.mxu0 0.0
  %856 = vmatpush2.msra.mxu0 0.0
  %857 = vmatprep.subr.mxu0 0.0
  %858 = vmatpush2.msra.mxu0 0.0
  %859 = vmatprep.subr.mxu0 0.0
  %860 = vmatpush2.msra.mxu0 0.0
  %861 = vmatprep.subr.mxu0 0.0
  %862 = vmatpush2.msra.mxu0 0.0
  %863 = vmatprep.subr.mxu0 0.0
  %864 = vmatpush2.msra.mxu0 0.0
  %865 = vmatprep.subr.mxu0 0.0
  %866 = vmatpush2.msra.mxu0 0.0
  %867 = vmatprep.subr.mxu0 0.0
  %868 = vmatpush2.msra.mxu0 0.0
  %869 = vmatprep.subr.mxu0 0.0
  %870 = vmatpush2.msra.mxu0 0.0
  %871 = vmatprep.subr.mxu0 0.0
  %872 = vmatpush2.msra.mxu0 0.0
  %873 = vmatprep.subr.mxu0 0.0
  %874 = vmatpush2.msra.mxu0 0.0
  %875 = vmatprep.subr.mxu0 0.0
  %876 = vmatpush2.msra.mxu0 0.0
  %877 = vmatprep.subr.mxu0 0.0
  %878 = vmatpush2.msra.mxu0 0.0
  %879 = vmatprep.subr.mxu0 0.0
  %880 = vmatpush2.msra.mxu0 0.0
  %881 = vmatprep.subr.mxu0 0.0
  %882 = vmatpush2.msra.mxu0 0.0
  %883 = vmatprep.subr.mxu0 0.0
  %884 = vmatpush2.msra.mxu0 0.0
  %885 = vmatprep.mubr.f32.mxu0 0.0
  %886 = vmatmul.mubr.f32.gmra.mxu0 %v819
  %v887 = vpop.f32.mrf.mxu0
  %v888 = vadd.f32 0.0, %v887
  %v889 = vpop.f32.mrf.mxu0
  %890 = vdwg.mxu0
  %v891 = vlaneseq
  %v892 = vshrl.u32 %v891, 7
  %v893 = vsub.s32 0, %v892
  %v894 = vrot.slane %v888, %v893
  %v895 = vsub.f32 %v732, %v894
  %v896 = vsub.f32 %v733, %v894
  %v897 = vmul.f32 %v895, %v895
  %v898 = vmul.f32 %v896, %v896
  %v899 = vsel %vm48, %v897, 0.0
  %v900 = vsel %vm48, %v898, 0.0
  %v901 = vadd.f32 %v899, %v900
  %v902 = vrot.slane %v901, 4
  %v903 = vadd.f32 %v901, %v902
  %v904 = vrot.slane %v903, 2
  %v905 = vadd.f32 %v903, %v904
  %v906 = vrot.slane %v905, 1
  %v907 = vadd.f32 %v905, %v906
  %v909 = vsel %vm48, %v907, 0
  %911 = vmatprep.subr.mxu0 0.0
  %912 = vmatpush1.msra.mxu0 0.0
  %913 = vmatprep.subr.mxu0 0.0
  %914 = vmatpush1.msra.mxu0 0.0
  %915 = vmatprep.subr.mxu0 0.0
  %916 = vmatpush1.msra.mxu0 0.0
  %917 = vmatprep.subr.mxu0 0.0
  %918 = vmatpush1.msra.mxu0 0.0
  %919 = vmatprep.subr.mxu0 0.0
  %920 = vmatpush1.msra.mxu0 0.0
  %921 = vmatprep.subr.mxu0 0.0
  %922 = vmatpush1.msra.mxu0 0.0
  %923 = vmatprep.subr.mxu0 0.0
  %924 = vmatpush1.msra.mxu0 0.0
  %925 = vmatprep.subr.mxu0 0.0
  %926 = vmatpush1.msra.mxu0 0.0
  %927 = vmatprep.subr.mxu0 0.0
  %928 = vmatpush1.msra.mxu0 %v286
  %929 = vmatprep.subr.mxu0 0.0
  %930 = vmatpush1.msra.mxu0 %v285
  %931 = vmatprep.subr.mxu0 0.0
  %932 = vmatpush1.msra.mxu0 %v284
  %933 = vmatprep.subr.mxu0 0.0
  %934 = vmatpush1.msra.mxu0 %v283
  %935 = vmatprep.subr.mxu0 0.0
  %936 = vmatpush1.msra.mxu0 %v282
  %937 = vmatprep.subr.mxu0 0.0
  %938 = vmatpush1.msra.mxu0 %v281
  %939 = vmatprep.subr.mxu0 0.0
  %940 = vmatpush1.msra.mxu0 %v280
  %941 = vmatprep.subr.mxu0 0.0
  %942 = vmatpush1.msra.mxu0 %v279
  %943 = vmatprep.subr.mxu0 0.0
  %944 = vmatpush2.msra.mxu0 0.0
  %945 = vmatprep.subr.mxu0 0.0
  %946 = vmatpush2.msra.mxu0 0.0
  %947 = vmatprep.subr.mxu0 0.0
  %948 = vmatpush2.msra.mxu0 0.0
  %949 = vmatprep.subr.mxu0 0.0
  %950 = vmatpush2.msra.mxu0 0.0
  %951 = vmatprep.subr.mxu0 0.0
  %952 = vmatpush2.msra.mxu0 0.0
  %953 = vmatprep.subr.mxu0 0.0
  %954 = vmatpush2.msra.mxu0 0.0
  %955 = vmatprep.subr.mxu0 0.0
  %956 = vmatpush2.msra.mxu0 0.0
  %957 = vmatprep.subr.mxu0 0.0
  %958 = vmatpush2.msra.mxu0 0.0
  %959 = vmatprep.subr.mxu0 0.0
  %960 = vmatpush2.msra.mxu0 0.0
  %961 = vmatprep.subr.mxu0 0.0
  %962 = vmatpush2.msra.mxu0 0.0
  %963 = vmatprep.subr.mxu0 0.0
  %964 = vmatpush2.msra.mxu0 0.0
  %965 = vmatprep.subr.mxu0 0.0
  %966 = vmatpush2.msra.mxu0 0.0
  %967 = vmatprep.subr.mxu0 0.0
  %968 = vmatpush2.msra.mxu0 0.0
  %969 = vmatprep.subr.mxu0 0.0
  %970 = vmatpush2.msra.mxu0 0.0
  %971 = vmatprep.subr.mxu0 0.0
  %972 = vmatpush2.msra.mxu0 0.0
  %973 = vmatprep.subr.mxu0 0.0
  %974 = vmatpush2.msra.mxu0 0.0
  %975 = vmatprep.mubr.f32.mxu0 0.0
  %976 = vmatmul.mubr.f32.gmra.mxu0 %v909
  %v977 = vpop.f32.mrf.mxu0
  %v978 = vadd.f32 0.0, %v977
  %v979 = vpop.f32.mrf.mxu0
  %980 = vdwg.mxu0
  %v981 = vmul.f32 %v978, 0.0078125
  %v982 = vadd.f32 %v981, 1e-05
  %v983 = vrsqrt.pop %v982
  %v985 = vsel %vm817, %v983, 0
  %987 = vmatprep.subr.mxu0 0.0
  %988 = vmatpush1.msra.mxu0 0.0
  %989 = vmatprep.subr.mxu0 0.0
  %990 = vmatpush1.msra.mxu0 0.0
  %991 = vmatprep.subr.mxu0 0.0
  %992 = vmatpush1.msra.mxu0 0.0
  %993 = vmatprep.subr.mxu0 0.0
  %994 = vmatpush1.msra.mxu0 0.0
  %995 = vmatprep.subr.mxu0 0.0
  %996 = vmatpush1.msra.mxu0 0.0
  %997 = vmatprep.subr.mxu0 0.0
  %998 = vmatpush1.msra.mxu0 0.0
  %999 = vmatprep.subr.mxu0 0.0
  %1000 = vmatpush1.msra.mxu0 0.0
  %1001 = vmatprep.subr.mxu0 0.0
  %1002 = vmatpush1.msra.mxu0 0.0
  %1003 = vmatprep.subr.mxu0 0.0
  %1004 = vmatpush1.msra.mxu0 0.0
  %1005 = vmatprep.subr.mxu0 0.0
  %1006 = vmatpush1.msra.mxu0 0.0
  %1007 = vmatprep.subr.mxu0 0.0
  %1008 = vmatpush1.msra.mxu0 0.0
  %1009 = vmatprep.subr.mxu0 0.0
  %1010 = vmatpush1.msra.mxu0 0.0
  %1011 = vmatprep.subr.mxu0 0.0
  %1012 = vmatpush1.msra.mxu0 0.0
  %1013 = vmatprep.subr.mxu0 0.0
  %1014 = vmatpush1.msra.mxu0 0.0
  %1015 = vmatprep.subr.mxu0 0.0
  %1016 = vmatpush1.msra.mxu0 0.0
  %1017 = vmatprep.subr.mxu0 0.0
  %1018 = vmatpush1.msra.mxu0 %v301
  %1019 = vmatprep.subr.mxu0 0.0
  %1020 = vmatpush2.msra.mxu0 0.0
  %1021 = vmatprep.subr.mxu0 0.0
  %1022 = vmatpush2.msra.mxu0 0.0
  %1023 = vmatprep.subr.mxu0 0.0
  %1024 = vmatpush2.msra.mxu0 0.0
  %1025 = vmatprep.subr.mxu0 0.0
  %1026 = vmatpush2.msra.mxu0 0.0
  %1027 = vmatprep.subr.mxu0 0.0
  %1028 = vmatpush2.msra.mxu0 0.0
  %1029 = vmatprep.subr.mxu0 0.0
  %1030 = vmatpush2.msra.mxu0 0.0
  %1031 = vmatprep.subr.mxu0 0.0
  %1032 = vmatpush2.msra.mxu0 0.0
  %1033 = vmatprep.subr.mxu0 0.0
  %1034 = vmatpush2.msra.mxu0 0.0
  %1035 = vmatprep.subr.mxu0 0.0
  %1036 = vmatpush2.msra.mxu0 0.0
  %1037 = vmatprep.subr.mxu0 0.0
  %1038 = vmatpush2.msra.mxu0 0.0
  %1039 = vmatprep.subr.mxu0 0.0
  %1040 = vmatpush2.msra.mxu0 0.0
  %1041 = vmatprep.subr.mxu0 0.0
  %1042 = vmatpush2.msra.mxu0 0.0
  %1043 = vmatprep.subr.mxu0 0.0
  %1044 = vmatpush2.msra.mxu0 0.0
  %1045 = vmatprep.subr.mxu0 0.0
  %1046 = vmatpush2.msra.mxu0 0.0
  %1047 = vmatprep.subr.mxu0 0.0
  %1048 = vmatpush2.msra.mxu0 0.0
  %1049 = vmatprep.subr.mxu0 0.0
  %1050 = vmatpush2.msra.mxu0 0.0
  %1051 = vmatprep.mubr.f32.mxu0 0.0
  %1052 = vmatmul.mubr.f32.gmra.mxu0 %v985
  %v1053 = vpop.f32.mrf.mxu0
  %v1054 = vadd.f32 0.0, %v1053
  %v1055 = vpop.f32.mrf.mxu0
  %1056 = vdwg.mxu0
  %v1058 = vrot.slane %v1054, 7
  %v1060 = vmul.f32 %v14, %v1058
  %v1061 = vlaneseq
  %v1062 = vshrl.u32 %v1061, 7
  %v1063 = vsub.s32 1, %v1062
  %v1064 = vrot.slane %v1060, %v1063
  %v1065 = vmul.f32 %v895, %v1064
  %v1066 = vmul.f32 %v896, %v1064
  %v1067 = vlaneseq
  %v1068 = vshrl.u32 %v1067, 7
  %v1069 = vsub.s32 2, %v1068
  %v1070 = vrot.slane %v14, %v1069
  %v1071 = vadd.f32 %v1065, %v1070
  %v1072 = vadd.f32 %v1066, %v1070
  %v1073 = vmax.f32 %v1071, 0.0
  %v1074 = vmax.f32 %v1072, 0.0
  %v1075 = vld [vmem:[%s1 + $0x1c0] sm:$0xff]
  %v1076 = vld [vmem:[%s1 + $0x1c8] sm:$0xff]
  %v1077 = vld [vmem:[%s1 + $0x1d0] sm:$0xff]
  %v1078 = vld [vmem:[%s1 + $0x1d8] sm:$0xff]
  %v1079 = vld [vmem:[%s1 + $0x1e0] sm:$0xff]
  %v1080 = vld [vmem:[%s1 + $0x1e8] sm:$0xff]
  %v1081 = vld [vmem:[%s1 + $0x1f0] sm:$0xff]
  %v1082 = vld [vmem:[%s1 + $0x1f8] sm:$0xff]
  %1083 = vmatprep.subr.mxu0 0.0
  %1084 = vmatpush1.msra.mxu0 0.0
  %1085 = vmatprep.subr.mxu0 0.0
  %1086 = vmatpush1.msra.mxu0 0.0
  %1087 = vmatprep.subr.mxu0 0.0
  %1088 = vmatpush1.msra.mxu0 0.0
  %1089 = vmatprep.subr.mxu0 0.0
  %1090 = vmatpush1.msra.mxu0 0.0
  %1091 = vmatprep.subr.mxu0 0.0
  %1092 = vmatpush1.msra.mxu0 0.0
  %1093 = vmatprep.subr.mxu0 0.0
  %1094 = vmatpush1.msra.mxu0 0.0
  %1095 = vmatprep.subr.mxu0 0.0
  %1096 = vmatpush1.msra.mxu0 0.0
  %1097 = vmatprep.subr.mxu0 0.0
  %1098 = vmatpush1.msra.mxu0 0.0
  %1099 = vmatprep.subr.mxu0 0.0
  %1100 = vmatpush1.msra.mxu0 0.0
  %1101 = vmatprep.subr.mxu0 0.0
  %1102 = vmatpush1.msra.mxu0 0.0
  %1103 = vmatprep.subr.mxu0 0.0
  %1104 = vmatpush1.msra.mxu0 0.0
  %1105 = vmatprep.subr.mxu0 0.0
  %1106 = vmatpush1.msra.mxu0 0.0
  %1107 = vmatprep.subr.mxu0 0.0
  %1108 = vmatpush1.msra.mxu0 0.0
  %1109 = vmatprep.subr.mxu0 0.0
  %1110 = vmatpush1.msra.mxu0 0.0
  %1111 = vmatprep.subr.mxu0 0.0
  %1112 = vmatpush1.msra.mxu0 %v1074
  %1113 = vmatprep.subr.mxu0 0.0
  %1114 = vmatpush1.msra.mxu0 %v1073
  %1115 = vmatprep.subr.mxu0 0.0
  %1116 = vmatpush2.msra.mxu0 0.0
  %1117 = vmatprep.subr.mxu0 0.0
  %1118 = vmatpush2.msra.mxu0 0.0
  %1119 = vmatprep.subr.mxu0 0.0
  %1120 = vmatpush2.msra.mxu0 0.0
  %1121 = vmatprep.subr.mxu0 0.0
  %1122 = vmatpush2.msra.mxu0 0.0
  %1123 = vmatprep.subr.mxu0 0.0
  %1124 = vmatpush2.msra.mxu0 0.0
  %1125 = vmatprep.subr.mxu0 0.0
  %1126 = vmatpush2.msra.mxu0 0.0
  %1127 = vmatprep.subr.mxu0 0.0
  %1128 = vmatpush2.msra.mxu0 0.0
  %1129 = vmatprep.subr.mxu0 0.0
  %1130 = vmatpush2.msra.mxu0 0.0
  %1131 = vmatprep.subr.mxu0 0.0
  %1132 = vmatpush2.msra.mxu0 0.0
  %1133 = vmatprep.subr.mxu0 0.0
  %1134 = vmatpush2.msra.mxu0 0.0
  %1135 = vmatprep.subr.mxu0 0.0
  %1136 = vmatpush2.msra.mxu0 0.0
  %1137 = vmatprep.subr.mxu0 0.0
  %1138 = vmatpush2.msra.mxu0 0.0
  %1139 = vmatprep.subr.mxu0 0.0
  %1140 = vmatpush2.msra.mxu0 0.0
  %1141 = vmatprep.subr.mxu0 0.0
  %1142 = vmatpush2.msra.mxu0 0.0
  %1143 = vmatprep.subr.mxu0 0.0
  %1144 = vmatpush2.msra.mxu0 0.0
  %1145 = vmatprep.subr.mxu0 0.0
  %1146 = vmatpush2.msra.mxu0 0.0
  %1147 = vmatprep.mubr.f32.mxu0 0.0
  %1148 = vmatmul.mubr.f32.gmra.mxu0 %v312
  %v1149 = vpop.f32.mrf.mxu0
  %v1150 = vadd.f32 0.0, %v1149
  %v1151 = vpop.f32.mrf.mxu0
  %1152 = vmatprep.mubr.f32.mxu0 0.0
  %1153 = vmatmul.mubr.f32.gmra.mxu0 %v315
  %v1154 = vpop.f32.mrf.mxu0
  %v1155 = vadd.f32 0.0, %v1154
  %v1156 = vpop.f32.mrf.mxu0
  %1157 = vdwg.mxu0
  %v1158 = vld [vmem:[%s1 + $0x180] sm:$0xff]
  %v1159 = vld [vmem:[%s1 + $0x188] sm:$0xff]
  %v1160 = vld [vmem:[%s1 + $0x190] sm:$0xff]
  %v1161 = vld [vmem:[%s1 + $0x198] sm:$0xff]
  %v1162 = vld [vmem:[%s1 + $0x1a0] sm:$0xff]
  %v1163 = vld [vmem:[%s1 + $0x1a8] sm:$0xff]
  %v1164 = vld [vmem:[%s1 + $0x1b0] sm:$0xff]
  %v1165 = vld [vmem:[%s1 + $0x1b8] sm:$0xff]
  %v1167 = vsel %vm48, %v1150, 0
  %v1170 = vsel %vm48, %v1155, 0
  %1172 = vmatprep.subr.mxu0 0.0
  %1173 = vmatpush1.msra.mxu0 0.0
  %1174 = vmatprep.subr.mxu0 0.0
  %1175 = vmatpush1.msra.mxu0 0.0
  %1176 = vmatprep.subr.mxu0 0.0
  %1177 = vmatpush1.msra.mxu0 0.0
  %1178 = vmatprep.subr.mxu0 0.0
  %1179 = vmatpush1.msra.mxu0 0.0
  %1180 = vmatprep.subr.mxu0 0.0
  %1181 = vmatpush1.msra.mxu0 0.0
  %1182 = vmatprep.subr.mxu0 0.0
  %1183 = vmatpush1.msra.mxu0 0.0
  %1184 = vmatprep.subr.mxu0 0.0
  %1185 = vmatpush1.msra.mxu0 0.0
  %1186 = vmatprep.subr.mxu0 0.0
  %1187 = vmatpush1.msra.mxu0 0.0
  %1188 = vmatprep.subr.mxu0 0.0
  %1189 = vmatpush1.msra.mxu0 %v1165
  %1190 = vmatprep.subr.mxu0 0.0
  %1191 = vmatpush1.msra.mxu0 %v1164
  %1192 = vmatprep.subr.mxu0 0.0
  %1193 = vmatpush1.msra.mxu0 %v1163
  %1194 = vmatprep.subr.mxu0 0.0
  %1195 = vmatpush1.msra.mxu0 %v1162
  %1196 = vmatprep.subr.mxu0 0.0
  %1197 = vmatpush1.msra.mxu0 %v1161
  %1198 = vmatprep.subr.mxu0 0.0
  %1199 = vmatpush1.msra.mxu0 %v1160
  %1200 = vmatprep.subr.mxu0 0.0
  %1201 = vmatpush1.msra.mxu0 %v1159
  %1202 = vmatprep.subr.mxu0 0.0
  %1203 = vmatpush1.msra.mxu0 %v1158
  %1204 = vmatprep.subr.mxu0 0.0
  %1205 = vmatpush2.msra.mxu0 0.0
  %1206 = vmatprep.subr.mxu0 0.0
  %1207 = vmatpush2.msra.mxu0 0.0
  %1208 = vmatprep.subr.mxu0 0.0
  %1209 = vmatpush2.msra.mxu0 0.0
  %1210 = vmatprep.subr.mxu0 0.0
  %1211 = vmatpush2.msra.mxu0 0.0
  %1212 = vmatprep.subr.mxu0 0.0
  %1213 = vmatpush2.msra.mxu0 0.0
  %1214 = vmatprep.subr.mxu0 0.0
  %1215 = vmatpush2.msra.mxu0 0.0
  %1216 = vmatprep.subr.mxu0 0.0
  %1217 = vmatpush2.msra.mxu0 0.0
  %1218 = vmatprep.subr.mxu0 0.0
  %1219 = vmatpush2.msra.mxu0 0.0
  %1220 = vmatprep.subr.mxu0 0.0
  %1221 = vmatpush2.msra.mxu0 0.0
  %1222 = vmatprep.subr.mxu0 0.0
  %1223 = vmatpush2.msra.mxu0 0.0
  %1224 = vmatprep.subr.mxu0 0.0
  %1225 = vmatpush2.msra.mxu0 0.0
  %1226 = vmatprep.subr.mxu0 0.0
  %1227 = vmatpush2.msra.mxu0 0.0
  %1228 = vmatprep.subr.mxu0 0.0
  %1229 = vmatpush2.msra.mxu0 0.0
  %1230 = vmatprep.subr.mxu0 0.0
  %1231 = vmatpush2.msra.mxu0 0.0
  %1232 = vmatprep.subr.mxu0 0.0
  %1233 = vmatpush2.msra.mxu0 0.0
  %1234 = vmatprep.subr.mxu0 0.0
  %1235 = vmatpush2.msra.mxu0 0.0
  %1236 = vmatprep.mubr.f32.mxu0 0.0
  %1237 = vmatmul.mubr.f32.gmra.mxu0 %v1167
  %v1238 = vpop.f32.mrf.mxu0
  %v1239 = vadd.f32 0.0, %v1238
  %v1240 = vpop.f32.mrf.mxu0
  %1241 = vmatprep.mubr.f32.mxu0 0.0
  %1242 = vmatmul.mubr.f32.gmra.mxu0 %v1170
  %v1243 = vpop.f32.mrf.mxu0
  %v1244 = vadd.f32 0.0, %v1243
  %v1245 = vpop.f32.mrf.mxu0
  %1246 = vdwg.mxu0
  %v1248 = vsel %vm48, %v1073, 0
  %v1251 = vsel %vm48, %v1074, 0
  %1253 = vmatprep.subr.mxu0 0.0
  %1254 = vmatpush1.msra.mxu0 0.0
  %1255 = vmatprep.subr.mxu0 0.0
  %1256 = vmatpush1.msra.mxu0 0.0
  %1257 = vmatprep.subr.mxu0 0.0
  %1258 = vmatpush1.msra.mxu0 0.0
  %1259 = vmatprep.subr.mxu0 0.0
  %1260 = vmatpush1.msra.mxu0 0.0
  %1261 = vmatprep.subr.mxu0 0.0
  %1262 = vmatpush1.msra.mxu0 0.0
  %1263 = vmatprep.subr.mxu0 0.0
  %1264 = vmatpush1.msra.mxu0 0.0
  %1265 = vmatprep.subr.mxu0 0.0
  %1266 = vmatpush1.msra.mxu0 0.0
  %1267 = vmatprep.subr.mxu0 0.0
  %1268 = vmatpush1.msra.mxu0 0.0
  %1269 = vmatprep.subr.mxu0 0.0
  %1270 = vmatpush1.msra.mxu0 %v1082
  %1271 = vmatprep.subr.mxu0 0.0
  %1272 = vmatpush1.msra.mxu0 %v1081
  %1273 = vmatprep.subr.mxu0 0.0
  %1274 = vmatpush1.msra.mxu0 %v1080
  %1275 = vmatprep.subr.mxu0 0.0
  %1276 = vmatpush1.msra.mxu0 %v1079
  %1277 = vmatprep.subr.mxu0 0.0
  %1278 = vmatpush1.msra.mxu0 %v1078
  %1279 = vmatprep.subr.mxu0 0.0
  %1280 = vmatpush1.msra.mxu0 %v1077
  %1281 = vmatprep.subr.mxu0 0.0
  %1282 = vmatpush1.msra.mxu0 %v1076
  %1283 = vmatprep.subr.mxu0 0.0
  %1284 = vmatpush1.msra.mxu0 %v1075
  %1285 = vmatprep.subr.mxu0 0.0
  %1286 = vmatpush2.msra.mxu0 0.0
  %1287 = vmatprep.subr.mxu0 0.0
  %1288 = vmatpush2.msra.mxu0 0.0
  %1289 = vmatprep.subr.mxu0 0.0
  %1290 = vmatpush2.msra.mxu0 0.0
  %1291 = vmatprep.subr.mxu0 0.0
  %1292 = vmatpush2.msra.mxu0 0.0
  %1293 = vmatprep.subr.mxu0 0.0
  %1294 = vmatpush2.msra.mxu0 0.0
  %1295 = vmatprep.subr.mxu0 0.0
  %1296 = vmatpush2.msra.mxu0 0.0
  %1297 = vmatprep.subr.mxu0 0.0
  %1298 = vmatpush2.msra.mxu0 0.0
  %1299 = vmatprep.subr.mxu0 0.0
  %1300 = vmatpush2.msra.mxu0 0.0
  %1301 = vmatprep.subr.mxu0 0.0
  %1302 = vmatpush2.msra.mxu0 0.0
  %1303 = vmatprep.subr.mxu0 0.0
  %1304 = vmatpush2.msra.mxu0 0.0
  %1305 = vmatprep.subr.mxu0 0.0
  %1306 = vmatpush2.msra.mxu0 0.0
  %1307 = vmatprep.subr.mxu0 0.0
  %1308 = vmatpush2.msra.mxu0 0.0
  %1309 = vmatprep.subr.mxu0 0.0
  %1310 = vmatpush2.msra.mxu0 0.0
  %1311 = vmatprep.subr.mxu0 0.0
  %1312 = vmatpush2.msra.mxu0 0.0
  %1313 = vmatprep.subr.mxu0 0.0
  %1314 = vmatpush2.msra.mxu0 0.0
  %1315 = vmatprep.subr.mxu0 0.0
  %1316 = vmatpush2.msra.mxu0 0.0
  %1317 = vmatprep.mubr.f32.mxu0 0.0
  %1318 = vmatmul.mubr.f32.gmra.mxu0 %v1248
  %v1319 = vpop.f32.mrf.mxu0
  %v1320 = vadd.f32 %v1239, %v1319
  %v1321 = vpop.f32.mrf.mxu0
  %1322 = vmatprep.mubr.f32.mxu0 0.0
  %1323 = vmatmul.mubr.f32.gmra.mxu0 %v1251
  %v1324 = vpop.f32.mrf.mxu0
  %v1325 = vadd.f32 %v1244, %v1324
  %v1326 = vpop.f32.mrf.mxu0
  %1327 = vdwg.mxu0
  %1328 = vmatprep.subr.mxu0 0.0
  %1329 = vmatpush1.msra.mxu0 0.0
  %1330 = vmatprep.subr.mxu0 0.0
  %1331 = vmatpush1.msra.mxu0 0.0
  %1332 = vmatprep.subr.mxu0 0.0
  %1333 = vmatpush1.msra.mxu0 0.0
  %1334 = vmatprep.subr.mxu0 0.0
  %1335 = vmatpush1.msra.mxu0 0.0
  %1336 = vmatprep.subr.mxu0 0.0
  %1337 = vmatpush1.msra.mxu0 0.0
  %1338 = vmatprep.subr.mxu0 0.0
  %1339 = vmatpush1.msra.mxu0 0.0
  %1340 = vmatprep.subr.mxu0 0.0
  %1341 = vmatpush1.msra.mxu0 0.0
  %1342 = vmatprep.subr.mxu0 0.0
  %1343 = vmatpush1.msra.mxu0 0.0
  %1344 = vmatprep.subr.mxu0 0.0
  %1345 = vmatpush1.msra.mxu0 0.0
  %1346 = vmatprep.subr.mxu0 0.0
  %1347 = vmatpush1.msra.mxu0 0.0
  %1348 = vmatprep.subr.mxu0 0.0
  %1349 = vmatpush1.msra.mxu0 0.0
  %1350 = vmatprep.subr.mxu0 0.0
  %1351 = vmatpush1.msra.mxu0 0.0
  %1352 = vmatprep.subr.mxu0 0.0
  %1353 = vmatpush1.msra.mxu0 0.0
  %1354 = vmatprep.subr.mxu0 0.0
  %1355 = vmatpush1.msra.mxu0 0.0
  %1356 = vmatprep.subr.mxu0 0.0
  %1357 = vmatpush1.msra.mxu0 %v1074
  %1358 = vmatprep.subr.mxu0 0.0
  %1359 = vmatpush1.msra.mxu0 %v1073
  %1360 = vmatprep.subr.mxu0 0.0
  %1361 = vmatpush2.msra.mxu0 0.0
  %1362 = vmatprep.subr.mxu0 0.0
  %1363 = vmatpush2.msra.mxu0 0.0
  %1364 = vmatprep.subr.mxu0 0.0
  %1365 = vmatpush2.msra.mxu0 0.0
  %1366 = vmatprep.subr.mxu0 0.0
  %1367 = vmatpush2.msra.mxu0 0.0
  %1368 = vmatprep.subr.mxu0 0.0
  %1369 = vmatpush2.msra.mxu0 0.0
  %1370 = vmatprep.subr.mxu0 0.0
  %1371 = vmatpush2.msra.mxu0 0.0
  %1372 = vmatprep.subr.mxu0 0.0
  %1373 = vmatpush2.msra.mxu0 0.0
  %1374 = vmatprep.subr.mxu0 0.0
  %1375 = vmatpush2.msra.mxu0 0.0
  %1376 = vmatprep.subr.mxu0 0.0
  %1377 = vmatpush2.msra.mxu0 0.0
  %1378 = vmatprep.subr.mxu0 0.0
  %1379 = vmatpush2.msra.mxu0 0.0
  %1380 = vmatprep.subr.mxu0 0.0
  %1381 = vmatpush2.msra.mxu0 0.0
  %1382 = vmatprep.subr.mxu0 0.0
  %1383 = vmatpush2.msra.mxu0 0.0
  %1384 = vmatprep.subr.mxu0 0.0
  %1385 = vmatpush2.msra.mxu0 0.0
  %1386 = vmatprep.subr.mxu0 0.0
  %1387 = vmatpush2.msra.mxu0 0.0
  %1388 = vmatprep.subr.mxu0 0.0
  %1389 = vmatpush2.msra.mxu0 0.0
  %1390 = vmatprep.subr.mxu0 0.0
  %1391 = vmatpush2.msra.mxu0 0.0
  %1392 = vmatprep.mubr.f32.mxu0 0.0
  %1393 = vmatmul.mubr.f32.gmra.mxu0 %v563
  %v1394 = vpop.f32.mrf.mxu0
  %v1395 = vadd.f32 0.0, %v1394
  %v1396 = vpop.f32.mrf.mxu0
  %1397 = vmatprep.mubr.f32.mxu0 0.0
  %1398 = vmatmul.mubr.f32.gmra.mxu0 %v566
  %v1399 = vpop.f32.mrf.mxu0
  %v1400 = vadd.f32 0.0, %v1399
  %v1401 = vpop.f32.mrf.mxu0
  %1402 = vdwg.mxu0
  %v1403 = vld [vmem:[%s1 + $0x200] sm:$0xff]
  %v1404 = vld [vmem:[%s1 + $0x208] sm:$0xff]
  %v1405 = vld [vmem:[%s1 + $0x210] sm:$0xff]
  %v1406 = vld [vmem:[%s1 + $0x218] sm:$0xff]
  %v1407 = vld [vmem:[%s1 + $0x220] sm:$0xff]
  %v1408 = vld [vmem:[%s1 + $0x228] sm:$0xff]
  %v1409 = vld [vmem:[%s1 + $0x230] sm:$0xff]
  %v1410 = vld [vmem:[%s1 + $0x238] sm:$0xff]
  %v1412 = vsel %vm48, %v1395, 0
  %v1415 = vsel %vm48, %v1400, 0
  %1417 = vmatprep.subr.mxu0 0.0
  %1418 = vmatpush1.msra.mxu0 0.0
  %1419 = vmatprep.subr.mxu0 0.0
  %1420 = vmatpush1.msra.mxu0 0.0
  %1421 = vmatprep.subr.mxu0 0.0
  %1422 = vmatpush1.msra.mxu0 0.0
  %1423 = vmatprep.subr.mxu0 0.0
  %1424 = vmatpush1.msra.mxu0 0.0
  %1425 = vmatprep.subr.mxu0 0.0
  %1426 = vmatpush1.msra.mxu0 0.0
  %1427 = vmatprep.subr.mxu0 0.0
  %1428 = vmatpush1.msra.mxu0 0.0
  %1429 = vmatprep.subr.mxu0 0.0
  %1430 = vmatpush1.msra.mxu0 0.0
  %1431 = vmatprep.subr.mxu0 0.0
  %1432 = vmatpush1.msra.mxu0 0.0
  %1433 = vmatprep.subr.mxu0 0.0
  %1434 = vmatpush1.msra.mxu0 %v1410
  %1435 = vmatprep.subr.mxu0 0.0
  %1436 = vmatpush1.msra.mxu0 %v1409
  %1437 = vmatprep.subr.mxu0 0.0
  %1438 = vmatpush1.msra.mxu0 %v1408
  %1439 = vmatprep.subr.mxu0 0.0
  %1440 = vmatpush1.msra.mxu0 %v1407
  %1441 = vmatprep.subr.mxu0 0.0
  %1442 = vmatpush1.msra.mxu0 %v1406
  %1443 = vmatprep.subr.mxu0 0.0
  %1444 = vmatpush1.msra.mxu0 %v1405
  %1445 = vmatprep.subr.mxu0 0.0
  %1446 = vmatpush1.msra.mxu0 %v1404
  %1447 = vmatprep.subr.mxu0 0.0
  %1448 = vmatpush1.msra.mxu0 %v1403
  %1449 = vmatprep.subr.mxu0 0.0
  %1450 = vmatpush2.msra.mxu0 0.0
  %1451 = vmatprep.subr.mxu0 0.0
  %1452 = vmatpush2.msra.mxu0 0.0
  %1453 = vmatprep.subr.mxu0 0.0
  %1454 = vmatpush2.msra.mxu0 0.0
  %1455 = vmatprep.subr.mxu0 0.0
  %1456 = vmatpush2.msra.mxu0 0.0
  %1457 = vmatprep.subr.mxu0 0.0
  %1458 = vmatpush2.msra.mxu0 0.0
  %1459 = vmatprep.subr.mxu0 0.0
  %1460 = vmatpush2.msra.mxu0 0.0
  %1461 = vmatprep.subr.mxu0 0.0
  %1462 = vmatpush2.msra.mxu0 0.0
  %1463 = vmatprep.subr.mxu0 0.0
  %1464 = vmatpush2.msra.mxu0 0.0
  %1465 = vmatprep.subr.mxu0 0.0
  %1466 = vmatpush2.msra.mxu0 0.0
  %1467 = vmatprep.subr.mxu0 0.0
  %1468 = vmatpush2.msra.mxu0 0.0
  %1469 = vmatprep.subr.mxu0 0.0
  %1470 = vmatpush2.msra.mxu0 0.0
  %1471 = vmatprep.subr.mxu0 0.0
  %1472 = vmatpush2.msra.mxu0 0.0
  %1473 = vmatprep.subr.mxu0 0.0
  %1474 = vmatpush2.msra.mxu0 0.0
  %1475 = vmatprep.subr.mxu0 0.0
  %1476 = vmatpush2.msra.mxu0 0.0
  %1477 = vmatprep.subr.mxu0 0.0
  %1478 = vmatpush2.msra.mxu0 0.0
  %1479 = vmatprep.subr.mxu0 0.0
  %1480 = vmatpush2.msra.mxu0 0.0
  %1481 = vmatprep.mubr.f32.mxu0 0.0
  %1482 = vmatmul.mubr.f32.gmra.mxu0 %v1412
  %v1483 = vpop.f32.mrf.mxu0
  %v1484 = vadd.f32 0.0, %v1483
  %v1485 = vpop.f32.mrf.mxu0
  %1486 = vmatprep.mubr.f32.mxu0 0.0
  %1487 = vmatmul.mubr.f32.gmra.mxu0 %v1415
  %v1488 = vpop.f32.mrf.mxu0
  %v1489 = vadd.f32 0.0, %v1488
  %v1490 = vpop.f32.mrf.mxu0
  %1491 = vdwg.mxu0
  %v1492 = vadd.f32 %v1320, %v1484
  %v1493 = vadd.f32 %v1325, %v1489
  %v1494 = vsel %vm48, %v1492, 0.0
  %v1495 = vsel %vm48, %v1493, 0.0
  %v1496 = vadd.f32 %v1494, %v1495
  %v1497 = vrot.slane %v1496, 4
  %v1498 = vadd.f32 %v1496, %v1497
  %v1499 = vrot.slane %v1498, 2
  %v1500 = vadd.f32 %v1498, %v1499
  %v1501 = vrot.slane %v1500, 1
  %v1502 = vadd.f32 %v1500, %v1501
  %v1504 = vsel %vm48, %v1502, 0
  %1506 = vmatprep.subr.mxu0 0.0
  %1507 = vmatpush1.msra.mxu0 0.0
  %1508 = vmatprep.subr.mxu0 0.0
  %1509 = vmatpush1.msra.mxu0 0.0
  %1510 = vmatprep.subr.mxu0 0.0
  %1511 = vmatpush1.msra.mxu0 0.0
  %1512 = vmatprep.subr.mxu0 0.0
  %1513 = vmatpush1.msra.mxu0 0.0
  %1514 = vmatprep.subr.mxu0 0.0
  %1515 = vmatpush1.msra.mxu0 0.0
  %1516 = vmatprep.subr.mxu0 0.0
  %1517 = vmatpush1.msra.mxu0 0.0
  %1518 = vmatprep.subr.mxu0 0.0
  %1519 = vmatpush1.msra.mxu0 0.0
  %1520 = vmatprep.subr.mxu0 0.0
  %1521 = vmatpush1.msra.mxu0 0.0
  %1522 = vmatprep.subr.mxu0 0.0
  %1523 = vmatpush1.msra.mxu0 %v286
  %1524 = vmatprep.subr.mxu0 0.0
  %1525 = vmatpush1.msra.mxu0 %v285
  %1526 = vmatprep.subr.mxu0 0.0
  %1527 = vmatpush1.msra.mxu0 %v284
  %1528 = vmatprep.subr.mxu0 0.0
  %1529 = vmatpush1.msra.mxu0 %v283
  %1530 = vmatprep.subr.mxu0 0.0
  %1531 = vmatpush1.msra.mxu0 %v282
  %1532 = vmatprep.subr.mxu0 0.0
  %1533 = vmatpush1.msra.mxu0 %v281
  %1534 = vmatprep.subr.mxu0 0.0
  %1535 = vmatpush1.msra.mxu0 %v280
  %1536 = vmatprep.subr.mxu0 0.0
  %1537 = vmatpush1.msra.mxu0 %v279
  %1538 = vmatprep.subr.mxu0 0.0
  %1539 = vmatpush2.msra.mxu0 0.0
  %1540 = vmatprep.subr.mxu0 0.0
  %1541 = vmatpush2.msra.mxu0 0.0
  %1542 = vmatprep.subr.mxu0 0.0
  %1543 = vmatpush2.msra.mxu0 0.0
  %1544 = vmatprep.subr.mxu0 0.0
  %1545 = vmatpush2.msra.mxu0 0.0
  %1546 = vmatprep.subr.mxu0 0.0
  %1547 = vmatpush2.msra.mxu0 0.0
  %1548 = vmatprep.subr.mxu0 0.0
  %1549 = vmatpush2.msra.mxu0 0.0
  %1550 = vmatprep.subr.mxu0 0.0
  %1551 = vmatpush2.msra.mxu0 0.0
  %1552 = vmatprep.subr.mxu0 0.0
  %1553 = vmatpush2.msra.mxu0 0.0
  %1554 = vmatprep.subr.mxu0 0.0
  %1555 = vmatpush2.msra.mxu0 0.0
  %1556 = vmatprep.subr.mxu0 0.0
  %1557 = vmatpush2.msra.mxu0 0.0
  %1558 = vmatprep.subr.mxu0 0.0
  %1559 = vmatpush2.msra.mxu0 0.0
  %1560 = vmatprep.subr.mxu0 0.0
  %1561 = vmatpush2.msra.mxu0 0.0
  %1562 = vmatprep.subr.mxu0 0.0
  %1563 = vmatpush2.msra.mxu0 0.0
  %1564 = vmatprep.subr.mxu0 0.0
  %1565 = vmatpush2.msra.mxu0 0.0
  %1566 = vmatprep.subr.mxu0 0.0
  %1567 = vmatpush2.msra.mxu0 0.0
  %1568 = vmatprep.subr.mxu0 0.0
  %1569 = vmatpush2.msra.mxu0 0.0
  %1570 = vmatprep.mubr.f32.mxu0 0.0
  %1571 = vmatmul.mubr.f32.gmra.mxu0 %v1504
  %v1572 = vpop.f32.mrf.mxu0
  %v1573 = vadd.f32 0.0, %v1572
  %v1574 = vpop.f32.mrf.mxu0
  %1575 = vdwg.mxu0
  %v1576 = vmul.f32 %v1573, 0.0078125
  %v1578 = vsel %vm817, %v1576, 0
  %1580 = vmatprep.subr.mxu0 0.0
  %1581 = vmatpush1.msra.mxu0 0.0
  %1582 = vmatprep.subr.mxu0 0.0
  %1583 = vmatpush1.msra.mxu0 0.0
  %1584 = vmatprep.subr.mxu0 0.0
  %1585 = vmatpush1.msra.mxu0 0.0
  %1586 = vmatprep.subr.mxu0 0.0
  %1587 = vmatpush1.msra.mxu0 0.0
  %1588 = vmatprep.subr.mxu0 0.0
  %1589 = vmatpush1.msra.mxu0 0.0
  %1590 = vmatprep.subr.mxu0 0.0
  %1591 = vmatpush1.msra.mxu0 0.0
  %1592 = vmatprep.subr.mxu0 0.0
  %1593 = vmatpush1.msra.mxu0 0.0
  %1594 = vmatprep.subr.mxu0 0.0
  %1595 = vmatpush1.msra.mxu0 0.0
  %1596 = vmatprep.subr.mxu0 0.0
  %1597 = vmatpush1.msra.mxu0 0.0
  %1598 = vmatprep.subr.mxu0 0.0
  %1599 = vmatpush1.msra.mxu0 0.0
  %1600 = vmatprep.subr.mxu0 0.0
  %1601 = vmatpush1.msra.mxu0 0.0
  %1602 = vmatprep.subr.mxu0 0.0
  %1603 = vmatpush1.msra.mxu0 0.0
  %1604 = vmatprep.subr.mxu0 0.0
  %1605 = vmatpush1.msra.mxu0 0.0
  %1606 = vmatprep.subr.mxu0 0.0
  %1607 = vmatpush1.msra.mxu0 0.0
  %1608 = vmatprep.subr.mxu0 0.0
  %1609 = vmatpush1.msra.mxu0 0.0
  %1610 = vmatprep.subr.mxu0 0.0
  %1611 = vmatpush1.msra.mxu0 %v301
  %1612 = vmatprep.subr.mxu0 0.0
  %1613 = vmatpush2.msra.mxu0 0.0
  %1614 = vmatprep.subr.mxu0 0.0
  %1615 = vmatpush2.msra.mxu0 0.0
  %1616 = vmatprep.subr.mxu0 0.0
  %1617 = vmatpush2.msra.mxu0 0.0
  %1618 = vmatprep.subr.mxu0 0.0
  %1619 = vmatpush2.msra.mxu0 0.0
  %1620 = vmatprep.subr.mxu0 0.0
  %1621 = vmatpush2.msra.mxu0 0.0
  %1622 = vmatprep.subr.mxu0 0.0
  %1623 = vmatpush2.msra.mxu0 0.0
  %1624 = vmatprep.subr.mxu0 0.0
  %1625 = vmatpush2.msra.mxu0 0.0
  %1626 = vmatprep.subr.mxu0 0.0
  %1627 = vmatpush2.msra.mxu0 0.0
  %1628 = vmatprep.subr.mxu0 0.0
  %1629 = vmatpush2.msra.mxu0 0.0
  %1630 = vmatprep.subr.mxu0 0.0
  %1631 = vmatpush2.msra.mxu0 0.0
  %1632 = vmatprep.subr.mxu0 0.0
  %1633 = vmatpush2.msra.mxu0 0.0
  %1634 = vmatprep.subr.mxu0 0.0
  %1635 = vmatpush2.msra.mxu0 0.0
  %1636 = vmatprep.subr.mxu0 0.0
  %1637 = vmatpush2.msra.mxu0 0.0
  %1638 = vmatprep.subr.mxu0 0.0
  %1639 = vmatpush2.msra.mxu0 0.0
  %1640 = vmatprep.subr.mxu0 0.0
  %1641 = vmatpush2.msra.mxu0 0.0
  %1642 = vmatprep.subr.mxu0 0.0
  %1643 = vmatpush2.msra.mxu0 0.0
  %1644 = vmatprep.mubr.f32.mxu0 0.0
  %1645 = vmatmul.mubr.f32.gmra.mxu0 %v1578
  %v1646 = vpop.f32.mrf.mxu0
  %v1647 = vadd.f32 0.0, %v1646
  %v1648 = vpop.f32.mrf.mxu0
  %1649 = vdwg.mxu0
  %v1650 = vlaneseq
  %v1651 = vshrl.u32 %v1650, 7
  %v1652 = vsub.s32 0, %v1651
  %v1653 = vrot.slane %v1647, %v1652
  %v1654 = vsub.f32 %v1492, %v1653
  %v1655 = vsub.f32 %v1493, %v1653
  %v1656 = vmul.f32 %v1654, %v1654
  %v1657 = vmul.f32 %v1655, %v1655
  %v1658 = vsel %vm48, %v1656, 0.0
  %v1659 = vsel %vm48, %v1657, 0.0
  %v1660 = vadd.f32 %v1658, %v1659
  %v1661 = vrot.slane %v1660, 4
  %v1662 = vadd.f32 %v1660, %v1661
  %v1663 = vrot.slane %v1662, 2
  %v1664 = vadd.f32 %v1662, %v1663
  %v1665 = vrot.slane %v1664, 1
  %v1666 = vadd.f32 %v1664, %v1665
  %v1668 = vsel %vm48, %v1666, 0
  %1670 = vmatprep.subr.mxu0 0.0
  %1671 = vmatpush1.msra.mxu0 0.0
  %1672 = vmatprep.subr.mxu0 0.0
  %1673 = vmatpush1.msra.mxu0 0.0
  %1674 = vmatprep.subr.mxu0 0.0
  %1675 = vmatpush1.msra.mxu0 0.0
  %1676 = vmatprep.subr.mxu0 0.0
  %1677 = vmatpush1.msra.mxu0 0.0
  %1678 = vmatprep.subr.mxu0 0.0
  %1679 = vmatpush1.msra.mxu0 0.0
  %1680 = vmatprep.subr.mxu0 0.0
  %1681 = vmatpush1.msra.mxu0 0.0
  %1682 = vmatprep.subr.mxu0 0.0
  %1683 = vmatpush1.msra.mxu0 0.0
  %1684 = vmatprep.subr.mxu0 0.0
  %1685 = vmatpush1.msra.mxu0 0.0
  %1686 = vmatprep.subr.mxu0 0.0
  %1687 = vmatpush1.msra.mxu0 %v286
  %1688 = vmatprep.subr.mxu0 0.0
  %1689 = vmatpush1.msra.mxu0 %v285
  %1690 = vmatprep.subr.mxu0 0.0
  %1691 = vmatpush1.msra.mxu0 %v284
  %1692 = vmatprep.subr.mxu0 0.0
  %1693 = vmatpush1.msra.mxu0 %v283
  %1694 = vmatprep.subr.mxu0 0.0
  %1695 = vmatpush1.msra.mxu0 %v282
  %1696 = vmatprep.subr.mxu0 0.0
  %1697 = vmatpush1.msra.mxu0 %v281
  %1698 = vmatprep.subr.mxu0 0.0
  %1699 = vmatpush1.msra.mxu0 %v280
  %1700 = vmatprep.subr.mxu0 0.0
  %1701 = vmatpush1.msra.mxu0 %v279
  %1702 = vmatprep.subr.mxu0 0.0
  %1703 = vmatpush2.msra.mxu0 0.0
  %1704 = vmatprep.subr.mxu0 0.0
  %1705 = vmatpush2.msra.mxu0 0.0
  %1706 = vmatprep.subr.mxu0 0.0
  %1707 = vmatpush2.msra.mxu0 0.0
  %1708 = vmatprep.subr.mxu0 0.0
  %1709 = vmatpush2.msra.mxu0 0.0
  %1710 = vmatprep.subr.mxu0 0.0
  %1711 = vmatpush2.msra.mxu0 0.0
  %1712 = vmatprep.subr.mxu0 0.0
  %1713 = vmatpush2.msra.mxu0 0.0
  %1714 = vmatprep.subr.mxu0 0.0
  %1715 = vmatpush2.msra.mxu0 0.0
  %1716 = vmatprep.subr.mxu0 0.0
  %1717 = vmatpush2.msra.mxu0 0.0
  %1718 = vmatprep.subr.mxu0 0.0
  %1719 = vmatpush2.msra.mxu0 0.0
  %1720 = vmatprep.subr.mxu0 0.0
  %1721 = vmatpush2.msra.mxu0 0.0
  %1722 = vmatprep.subr.mxu0 0.0
  %1723 = vmatpush2.msra.mxu0 0.0
  %1724 = vmatprep.subr.mxu0 0.0
  %1725 = vmatpush2.msra.mxu0 0.0
  %1726 = vmatprep.subr.mxu0 0.0
  %1727 = vmatpush2.msra.mxu0 0.0
  %1728 = vmatprep.subr.mxu0 0.0
  %1729 = vmatpush2.msra.mxu0 0.0
  %1730 = vmatprep.subr.mxu0 0.0
  %1731 = vmatpush2.msra.mxu0 0.0
  %1732 = vmatprep.subr.mxu0 0.0
  %1733 = vmatpush2.msra.mxu0 0.0
  %1734 = vmatprep.mubr.f32.mxu0 0.0
  %1735 = vmatmul.mubr.f32.gmra.mxu0 %v1668
  %v1736 = vpop.f32.mrf.mxu0
  %v1737 = vadd.f32 0.0, %v1736
  %v1738 = vpop.f32.mrf.mxu0
  %1739 = vdwg.mxu0
  %v1740 = vmul.f32 %v1737, 0.0078125
  %v1741 = vadd.f32 %v1740, 1e-05
  %v1742 = vrsqrt.pop %v1741
  %v1744 = vsel %vm817, %v1742, 0
  %1746 = vmatprep.subr.mxu0 0.0
  %1747 = vmatpush1.msra.mxu0 0.0
  %1748 = vmatprep.subr.mxu0 0.0
  %1749 = vmatpush1.msra.mxu0 0.0
  %1750 = vmatprep.subr.mxu0 0.0
  %1751 = vmatpush1.msra.mxu0 0.0
  %1752 = vmatprep.subr.mxu0 0.0
  %1753 = vmatpush1.msra.mxu0 0.0
  %1754 = vmatprep.subr.mxu0 0.0
  %1755 = vmatpush1.msra.mxu0 0.0
  %1756 = vmatprep.subr.mxu0 0.0
  %1757 = vmatpush1.msra.mxu0 0.0
  %1758 = vmatprep.subr.mxu0 0.0
  %1759 = vmatpush1.msra.mxu0 0.0
  %1760 = vmatprep.subr.mxu0 0.0
  %1761 = vmatpush1.msra.mxu0 0.0
  %1762 = vmatprep.subr.mxu0 0.0
  %1763 = vmatpush1.msra.mxu0 0.0
  %1764 = vmatprep.subr.mxu0 0.0
  %1765 = vmatpush1.msra.mxu0 0.0
  %1766 = vmatprep.subr.mxu0 0.0
  %1767 = vmatpush1.msra.mxu0 0.0
  %1768 = vmatprep.subr.mxu0 0.0
  %1769 = vmatpush1.msra.mxu0 0.0
  %1770 = vmatprep.subr.mxu0 0.0
  %1771 = vmatpush1.msra.mxu0 0.0
  %1772 = vmatprep.subr.mxu0 0.0
  %1773 = vmatpush1.msra.mxu0 0.0
  %1774 = vmatprep.subr.mxu0 0.0
  %1775 = vmatpush1.msra.mxu0 0.0
  %1776 = vmatprep.subr.mxu0 0.0
  %1777 = vmatpush1.msra.mxu0 %v301
  %1778 = vmatprep.subr.mxu0 0.0
  %1779 = vmatpush2.msra.mxu0 0.0
  %1780 = vmatprep.subr.mxu0 0.0
  %1781 = vmatpush2.msra.mxu0 0.0
  %1782 = vmatprep.subr.mxu0 0.0
  %1783 = vmatpush2.msra.mxu0 0.0
  %1784 = vmatprep.subr.mxu0 0.0
  %1785 = vmatpush2.msra.mxu0 0.0
  %1786 = vmatprep.subr.mxu0 0.0
  %1787 = vmatpush2.msra.mxu0 0.0
  %1788 = vmatprep.subr.mxu0 0.0
  %1789 = vmatpush2.msra.mxu0 0.0
  %1790 = vmatprep.subr.mxu0 0.0
  %1791 = vmatpush2.msra.mxu0 0.0
  %1792 = vmatprep.subr.mxu0 0.0
  %1793 = vmatpush2.msra.mxu0 0.0
  %1794 = vmatprep.subr.mxu0 0.0
  %1795 = vmatpush2.msra.mxu0 0.0
  %1796 = vmatprep.subr.mxu0 0.0
  %1797 = vmatpush2.msra.mxu0 0.0
  %1798 = vmatprep.subr.mxu0 0.0
  %1799 = vmatpush2.msra.mxu0 0.0
  %1800 = vmatprep.subr.mxu0 0.0
  %1801 = vmatpush2.msra.mxu0 0.0
  %1802 = vmatprep.subr.mxu0 0.0
  %1803 = vmatpush2.msra.mxu0 0.0
  %1804 = vmatprep.subr.mxu0 0.0
  %1805 = vmatpush2.msra.mxu0 0.0
  %1806 = vmatprep.subr.mxu0 0.0
  %1807 = vmatpush2.msra.mxu0 0.0
  %1808 = vmatprep.subr.mxu0 0.0
  %1809 = vmatpush2.msra.mxu0 0.0
  %1810 = vmatprep.mubr.f32.mxu0 0.0
  %1811 = vmatmul.mubr.f32.gmra.mxu0 %v1744
  %v1812 = vpop.f32.mrf.mxu0
  %v1813 = vadd.f32 0.0, %v1812
  %v1814 = vpop.f32.mrf.mxu0
  %1815 = vdwg.mxu0
  %v1817 = vrot.slane %v1813, 5
  %v1819 = vmul.f32 %v14, %v1817
  %v1820 = vlaneseq
  %v1821 = vshrl.u32 %v1820, 7
  %v1822 = vsub.s32 3, %v1821
  %v1823 = vrot.slane %v1819, %v1822
  %v1824 = vmul.f32 %v1654, %v1823
  %v1825 = vmul.f32 %v1655, %v1823
  %v1826 = vlaneseq
  %v1827 = vshrl.u32 %v1826, 7
  %v1828 = vsub.s32 4, %v1827
  %v1829 = vrot.slane %v14, %v1828
  %v1830 = vadd.f32 %v1824, %v1829
  %v1831 = vadd.f32 %v1825, %v1829
  %v1832 = vadd.f32 %v130, %v1830
  %v1833 = vadd.f32 %v131, %v1831
  %v1834 = vmax.f32 %v1832, 0.0
  %v1835 = vmax.f32 %v1833, 0.0
  %v1836 = vld [vmem:[%s1 + $0x280] sm:$0xff]
  %v1837 = vld [vmem:[%s1 + $0x288] sm:$0xff]
  %v1838 = vld [vmem:[%s1 + $0x290] sm:$0xff]
  %v1839 = vld [vmem:[%s1 + $0x298] sm:$0xff]
  %v1840 = vld [vmem:[%s1 + $0x2a0] sm:$0xff]
  %v1841 = vld [vmem:[%s1 + $0x2a8] sm:$0xff]
  %v1842 = vld [vmem:[%s1 + $0x2b0] sm:$0xff]
  %v1843 = vld [vmem:[%s1 + $0x2b8] sm:$0xff]
  %1844 = vmatprep.subr.mxu0 0.0
  %1845 = vmatpush1.msra.mxu0 0.0
  %1846 = vmatprep.subr.mxu0 0.0
  %1847 = vmatpush1.msra.mxu0 0.0
  %1848 = vmatprep.subr.mxu0 0.0
  %1849 = vmatpush1.msra.mxu0 0.0
  %1850 = vmatprep.subr.mxu0 0.0
  %1851 = vmatpush1.msra.mxu0 0.0
  %1852 = vmatprep.subr.mxu0 0.0
  %1853 = vmatpush1.msra.mxu0 0.0
  %1854 = vmatprep.subr.mxu0 0.0
  %1855 = vmatpush1.msra.mxu0 0.0
  %1856 = vmatprep.subr.mxu0 0.0
  %1857 = vmatpush1.msra.mxu0 0.0
  %1858 = vmatprep.subr.mxu0 0.0
  %1859 = vmatpush1.msra.mxu0 0.0
  %1860 = vmatprep.subr.mxu0 0.0
  %1861 = vmatpush1.msra.mxu0 0.0
  %1862 = vmatprep.subr.mxu0 0.0
  %1863 = vmatpush1.msra.mxu0 0.0
  %1864 = vmatprep.subr.mxu0 0.0
  %1865 = vmatpush1.msra.mxu0 0.0
  %1866 = vmatprep.subr.mxu0 0.0
  %1867 = vmatpush1.msra.mxu0 0.0
  %1868 = vmatprep.subr.mxu0 0.0
  %1869 = vmatpush1.msra.mxu0 0.0
  %1870 = vmatprep.subr.mxu0 0.0
  %1871 = vmatpush1.msra.mxu0 0.0
  %1872 = vmatprep.subr.mxu0 0.0
  %1873 = vmatpush1.msra.mxu0 %v1835
  %1874 = vmatprep.subr.mxu0 0.0
  %1875 = vmatpush1.msra.mxu0 %v1834
  %1876 = vmatprep.subr.mxu0 0.0
  %1877 = vmatpush2.msra.mxu0 0.0
  %1878 = vmatprep.subr.mxu0 0.0
  %1879 = vmatpush2.msra.mxu0 0.0
  %1880 = vmatprep.subr.mxu0 0.0
  %1881 = vmatpush2.msra.mxu0 0.0
  %1882 = vmatprep.subr.mxu0 0.0
  %1883 = vmatpush2.msra.mxu0 0.0
  %1884 = vmatprep.subr.mxu0 0.0
  %1885 = vmatpush2.msra.mxu0 0.0
  %1886 = vmatprep.subr.mxu0 0.0
  %1887 = vmatpush2.msra.mxu0 0.0
  %1888 = vmatprep.subr.mxu0 0.0
  %1889 = vmatpush2.msra.mxu0 0.0
  %1890 = vmatprep.subr.mxu0 0.0
  %1891 = vmatpush2.msra.mxu0 0.0
  %1892 = vmatprep.subr.mxu0 0.0
  %1893 = vmatpush2.msra.mxu0 0.0
  %1894 = vmatprep.subr.mxu0 0.0
  %1895 = vmatpush2.msra.mxu0 0.0
  %1896 = vmatprep.subr.mxu0 0.0
  %1897 = vmatpush2.msra.mxu0 0.0
  %1898 = vmatprep.subr.mxu0 0.0
  %1899 = vmatpush2.msra.mxu0 0.0
  %1900 = vmatprep.subr.mxu0 0.0
  %1901 = vmatpush2.msra.mxu0 0.0
  %1902 = vmatprep.subr.mxu0 0.0
  %1903 = vmatpush2.msra.mxu0 0.0
  %1904 = vmatprep.subr.mxu0 0.0
  %1905 = vmatpush2.msra.mxu0 0.0
  %1906 = vmatprep.subr.mxu0 0.0
  %1907 = vmatpush2.msra.mxu0 0.0
  %1908 = vmatprep.mubr.f32.mxu0 0.0
  %1909 = vmatmul.mubr.f32.gmra.mxu0 %v312
  %v1910 = vpop.f32.mrf.mxu0
  %v1911 = vadd.f32 0.0, %v1910
  %v1912 = vpop.f32.mrf.mxu0
  %1913 = vmatprep.mubr.f32.mxu0 0.0
  %1914 = vmatmul.mubr.f32.gmra.mxu0 %v315
  %v1915 = vpop.f32.mrf.mxu0
  %v1916 = vadd.f32 0.0, %v1915
  %v1917 = vpop.f32.mrf.mxu0
  %1918 = vdwg.mxu0
  %v1919 = vld [vmem:[%s1 + $0x240] sm:$0xff]
  %v1920 = vld [vmem:[%s1 + $0x248] sm:$0xff]
  %v1921 = vld [vmem:[%s1 + $0x250] sm:$0xff]
  %v1922 = vld [vmem:[%s1 + $0x258] sm:$0xff]
  %v1923 = vld [vmem:[%s1 + $0x260] sm:$0xff]
  %v1924 = vld [vmem:[%s1 + $0x268] sm:$0xff]
  %v1925 = vld [vmem:[%s1 + $0x270] sm:$0xff]
  %v1926 = vld [vmem:[%s1 + $0x278] sm:$0xff]
  %v1928 = vsel %vm48, %v1911, 0
  %v1931 = vsel %vm48, %v1916, 0
  %1933 = vmatprep.subr.mxu0 0.0
  %1934 = vmatpush1.msra.mxu0 0.0
  %1935 = vmatprep.subr.mxu0 0.0
  %1936 = vmatpush1.msra.mxu0 0.0
  %1937 = vmatprep.subr.mxu0 0.0
  %1938 = vmatpush1.msra.mxu0 0.0
  %1939 = vmatprep.subr.mxu0 0.0
  %1940 = vmatpush1.msra.mxu0 0.0
  %1941 = vmatprep.subr.mxu0 0.0
  %1942 = vmatpush1.msra.mxu0 0.0
  %1943 = vmatprep.subr.mxu0 0.0
  %1944 = vmatpush1.msra.mxu0 0.0
  %1945 = vmatprep.subr.mxu0 0.0
  %1946 = vmatpush1.msra.mxu0 0.0
  %1947 = vmatprep.subr.mxu0 0.0
  %1948 = vmatpush1.msra.mxu0 0.0
  %1949 = vmatprep.subr.mxu0 0.0
  %1950 = vmatpush1.msra.mxu0 %v1926
  %1951 = vmatprep.subr.mxu0 0.0
  %1952 = vmatpush1.msra.mxu0 %v1925
  %1953 = vmatprep.subr.mxu0 0.0
  %1954 = vmatpush1.msra.mxu0 %v1924
  %1955 = vmatprep.subr.mxu0 0.0
  %1956 = vmatpush1.msra.mxu0 %v1923
  %1957 = vmatprep.subr.mxu0 0.0
  %1958 = vmatpush1.msra.mxu0 %v1922
  %1959 = vmatprep.subr.mxu0 0.0
  %1960 = vmatpush1.msra.mxu0 %v1921
  %1961 = vmatprep.subr.mxu0 0.0
  %1962 = vmatpush1.msra.mxu0 %v1920
  %1963 = vmatprep.subr.mxu0 0.0
  %1964 = vmatpush1.msra.mxu0 %v1919
  %1965 = vmatprep.subr.mxu0 0.0
  %1966 = vmatpush2.msra.mxu0 0.0
  %1967 = vmatprep.subr.mxu0 0.0
  %1968 = vmatpush2.msra.mxu0 0.0
  %1969 = vmatprep.subr.mxu0 0.0
  %1970 = vmatpush2.msra.mxu0 0.0
  %1971 = vmatprep.subr.mxu0 0.0
  %1972 = vmatpush2.msra.mxu0 0.0
  %1973 = vmatprep.subr.mxu0 0.0
  %1974 = vmatpush2.msra.mxu0 0.0
  %1975 = vmatprep.subr.mxu0 0.0
  %1976 = vmatpush2.msra.mxu0 0.0
  %1977 = vmatprep.subr.mxu0 0.0
  %1978 = vmatpush2.msra.mxu0 0.0
  %1979 = vmatprep.subr.mxu0 0.0
  %1980 = vmatpush2.msra.mxu0 0.0
  %1981 = vmatprep.subr.mxu0 0.0
  %1982 = vmatpush2.msra.mxu0 0.0
  %1983 = vmatprep.subr.mxu0 0.0
  %1984 = vmatpush2.msra.mxu0 0.0
  %1985 = vmatprep.subr.mxu0 0.0
  %1986 = vmatpush2.msra.mxu0 0.0
  %1987 = vmatprep.subr.mxu0 0.0
  %1988 = vmatpush2.msra.mxu0 0.0
  %1989 = vmatprep.subr.mxu0 0.0
  %1990 = vmatpush2.msra.mxu0 0.0
  %1991 = vmatprep.subr.mxu0 0.0
  %1992 = vmatpush2.msra.mxu0 0.0
  %1993 = vmatprep.subr.mxu0 0.0
  %1994 = vmatpush2.msra.mxu0 0.0
  %1995 = vmatprep.subr.mxu0 0.0
  %1996 = vmatpush2.msra.mxu0 0.0
  %1997 = vmatprep.mubr.f32.mxu0 0.0
  %1998 = vmatmul.mubr.f32.gmra.mxu0 %v1928
  %v1999 = vpop.f32.mrf.mxu0
  %v2000 = vadd.f32 0.0, %v1999
  %v2001 = vpop.f32.mrf.mxu0
  %2002 = vmatprep.mubr.f32.mxu0 0.0
  %2003 = vmatmul.mubr.f32.gmra.mxu0 %v1931
  %v2004 = vpop.f32.mrf.mxu0
  %v2005 = vadd.f32 0.0, %v2004
  %v2006 = vpop.f32.mrf.mxu0
  %2007 = vdwg.mxu0
  %v2009 = vsel %vm48, %v1834, 0
  %v2012 = vsel %vm48, %v1835, 0
  %2014 = vmatprep.subr.mxu0 0.0
  %2015 = vmatpush1.msra.mxu0 0.0
  %2016 = vmatprep.subr.mxu0 0.0
  %2017 = vmatpush1.msra.mxu0 0.0
  %2018 = vmatprep.subr.mxu0 0.0
  %2019 = vmatpush1.msra.mxu0 0.0
  %2020 = vmatprep.subr.mxu0 0.0
  %2021 = vmatpush1.msra.mxu0 0.0
  %2022 = vmatprep.subr.mxu0 0.0
  %2023 = vmatpush1.msra.mxu0 0.0
  %2024 = vmatprep.subr.mxu0 0.0
  %2025 = vmatpush1.msra.mxu0 0.0
  %2026 = vmatprep.subr.mxu0 0.0
  %2027 = vmatpush1.msra.mxu0 0.0
  %2028 = vmatprep.subr.mxu0 0.0
  %2029 = vmatpush1.msra.mxu0 0.0
  %2030 = vmatprep.subr.mxu0 0.0
  %2031 = vmatpush1.msra.mxu0 %v1843
  %2032 = vmatprep.subr.mxu0 0.0
  %2033 = vmatpush1.msra.mxu0 %v1842
  %2034 = vmatprep.subr.mxu0 0.0
  %2035 = vmatpush1.msra.mxu0 %v1841
  %2036 = vmatprep.subr.mxu0 0.0
  %2037 = vmatpush1.msra.mxu0 %v1840
  %2038 = vmatprep.subr.mxu0 0.0
  %2039 = vmatpush1.msra.mxu0 %v1839
  %2040 = vmatprep.subr.mxu0 0.0
  %2041 = vmatpush1.msra.mxu0 %v1838
  %2042 = vmatprep.subr.mxu0 0.0
  %2043 = vmatpush1.msra.mxu0 %v1837
  %2044 = vmatprep.subr.mxu0 0.0
  %2045 = vmatpush1.msra.mxu0 %v1836
  %2046 = vmatprep.subr.mxu0 0.0
  %2047 = vmatpush2.msra.mxu0 0.0
  %2048 = vmatprep.subr.mxu0 0.0
  %2049 = vmatpush2.msra.mxu0 0.0
  %2050 = vmatprep.subr.mxu0 0.0
  %2051 = vmatpush2.msra.mxu0 0.0
  %2052 = vmatprep.subr.mxu0 0.0
  %2053 = vmatpush2.msra.mxu0 0.0
  %2054 = vmatprep.subr.mxu0 0.0
  %2055 = vmatpush2.msra.mxu0 0.0
  %2056 = vmatprep.subr.mxu0 0.0
  %2057 = vmatpush2.msra.mxu0 0.0
  %2058 = vmatprep.subr.mxu0 0.0
  %2059 = vmatpush2.msra.mxu0 0.0
  %2060 = vmatprep.subr.mxu0 0.0
  %2061 = vmatpush2.msra.mxu0 0.0
  %2062 = vmatprep.subr.mxu0 0.0
  %2063 = vmatpush2.msra.mxu0 0.0
  %2064 = vmatprep.subr.mxu0 0.0
  %2065 = vmatpush2.msra.mxu0 0.0
  %2066 = vmatprep.subr.mxu0 0.0
  %2067 = vmatpush2.msra.mxu0 0.0
  %2068 = vmatprep.subr.mxu0 0.0
  %2069 = vmatpush2.msra.mxu0 0.0
  %2070 = vmatprep.subr.mxu0 0.0
  %2071 = vmatpush2.msra.mxu0 0.0
  %2072 = vmatprep.subr.mxu0 0.0
  %2073 = vmatpush2.msra.mxu0 0.0
  %2074 = vmatprep.subr.mxu0 0.0
  %2075 = vmatpush2.msra.mxu0 0.0
  %2076 = vmatprep.subr.mxu0 0.0
  %2077 = vmatpush2.msra.mxu0 0.0
  %2078 = vmatprep.mubr.f32.mxu0 0.0
  %2079 = vmatmul.mubr.f32.gmra.mxu0 %v2009
  %v2080 = vpop.f32.mrf.mxu0
  %v2081 = vadd.f32 %v2000, %v2080
  %v2082 = vpop.f32.mrf.mxu0
  %2083 = vmatprep.mubr.f32.mxu0 0.0
  %2084 = vmatmul.mubr.f32.gmra.mxu0 %v2012
  %v2085 = vpop.f32.mrf.mxu0
  %v2086 = vadd.f32 %v2005, %v2085
  %v2087 = vpop.f32.mrf.mxu0
  %2088 = vdwg.mxu0
  %2089 = vmatprep.subr.mxu0 0.0
  %2090 = vmatpush1.msra.mxu0 0.0
  %2091 = vmatprep.subr.mxu0 0.0
  %2092 = vmatpush1.msra.mxu0 0.0
  %2093 = vmatprep.subr.mxu0 0.0
  %2094 = vmatpush1.msra.mxu0 0.0
  %2095 = vmatprep.subr.mxu0 0.0
  %2096 = vmatpush1.msra.mxu0 0.0
  %2097 = vmatprep.subr.mxu0 0.0
  %2098 = vmatpush1.msra.mxu0 0.0
  %2099 = vmatprep.subr.mxu0 0.0
  %2100 = vmatpush1.msra.mxu0 0.0
  %2101 = vmatprep.subr.mxu0 0.0
  %2102 = vmatpush1.msra.mxu0 0.0
  %2103 = vmatprep.subr.mxu0 0.0
  %2104 = vmatpush1.msra.mxu0 0.0
  %2105 = vmatprep.subr.mxu0 0.0
  %2106 = vmatpush1.msra.mxu0 0.0
  %2107 = vmatprep.subr.mxu0 0.0
  %2108 = vmatpush1.msra.mxu0 0.0
  %2109 = vmatprep.subr.mxu0 0.0
  %2110 = vmatpush1.msra.mxu0 0.0
  %2111 = vmatprep.subr.mxu0 0.0
  %2112 = vmatpush1.msra.mxu0 0.0
  %2113 = vmatprep.subr.mxu0 0.0
  %2114 = vmatpush1.msra.mxu0 0.0
  %2115 = vmatprep.subr.mxu0 0.0
  %2116 = vmatpush1.msra.mxu0 0.0
  %2117 = vmatprep.subr.mxu0 0.0
  %2118 = vmatpush1.msra.mxu0 %v1835
  %2119 = vmatprep.subr.mxu0 0.0
  %2120 = vmatpush1.msra.mxu0 %v1834
  %2121 = vmatprep.subr.mxu0 0.0
  %2122 = vmatpush2.msra.mxu0 0.0
  %2123 = vmatprep.subr.mxu0 0.0
  %2124 = vmatpush2.msra.mxu0 0.0
  %2125 = vmatprep.subr.mxu0 0.0
  %2126 = vmatpush2.msra.mxu0 0.0
  %2127 = vmatprep.subr.mxu0 0.0
  %2128 = vmatpush2.msra.mxu0 0.0
  %2129 = vmatprep.subr.mxu0 0.0
  %2130 = vmatpush2.msra.mxu0 0.0
  %2131 = vmatprep.subr.mxu0 0.0
  %2132 = vmatpush2.msra.mxu0 0.0
  %2133 = vmatprep.subr.mxu0 0.0
  %2134 = vmatpush2.msra.mxu0 0.0
  %2135 = vmatprep.subr.mxu0 0.0
  %2136 = vmatpush2.msra.mxu0 0.0
  %2137 = vmatprep.subr.mxu0 0.0
  %2138 = vmatpush2.msra.mxu0 0.0
  %2139 = vmatprep.subr.mxu0 0.0
  %2140 = vmatpush2.msra.mxu0 0.0
  %2141 = vmatprep.subr.mxu0 0.0
  %2142 = vmatpush2.msra.mxu0 0.0
  %2143 = vmatprep.subr.mxu0 0.0
  %2144 = vmatpush2.msra.mxu0 0.0
  %2145 = vmatprep.subr.mxu0 0.0
  %2146 = vmatpush2.msra.mxu0 0.0
  %2147 = vmatprep.subr.mxu0 0.0
  %2148 = vmatpush2.msra.mxu0 0.0
  %2149 = vmatprep.subr.mxu0 0.0
  %2150 = vmatpush2.msra.mxu0 0.0
  %2151 = vmatprep.subr.mxu0 0.0
  %2152 = vmatpush2.msra.mxu0 0.0
  %2153 = vmatprep.mubr.f32.mxu0 0.0
  %2154 = vmatmul.mubr.f32.gmra.mxu0 %v563
  %v2155 = vpop.f32.mrf.mxu0
  %v2156 = vadd.f32 0.0, %v2155
  %v2157 = vpop.f32.mrf.mxu0
  %2158 = vmatprep.mubr.f32.mxu0 0.0
  %2159 = vmatmul.mubr.f32.gmra.mxu0 %v566
  %v2160 = vpop.f32.mrf.mxu0
  %v2161 = vadd.f32 0.0, %v2160
  %v2162 = vpop.f32.mrf.mxu0
  %2163 = vdwg.mxu0
  %v2164 = vld [vmem:[%s1 + $0x2c0] sm:$0xff]
  %v2165 = vld [vmem:[%s1 + $0x2c8] sm:$0xff]
  %v2166 = vld [vmem:[%s1 + $0x2d0] sm:$0xff]
  %v2167 = vld [vmem:[%s1 + $0x2d8] sm:$0xff]
  %v2168 = vld [vmem:[%s1 + $0x2e0] sm:$0xff]
  %v2169 = vld [vmem:[%s1 + $0x2e8] sm:$0xff]
  %v2170 = vld [vmem:[%s1 + $0x2f0] sm:$0xff]
  %v2171 = vld [vmem:[%s1 + $0x2f8] sm:$0xff]
  %v2173 = vsel %vm48, %v2156, 0
  %v2176 = vsel %vm48, %v2161, 0
  %2178 = vmatprep.subr.mxu0 0.0
  %2179 = vmatpush1.msra.mxu0 0.0
  %2180 = vmatprep.subr.mxu0 0.0
  %2181 = vmatpush1.msra.mxu0 0.0
  %2182 = vmatprep.subr.mxu0 0.0
  %2183 = vmatpush1.msra.mxu0 0.0
  %2184 = vmatprep.subr.mxu0 0.0
  %2185 = vmatpush1.msra.mxu0 0.0
  %2186 = vmatprep.subr.mxu0 0.0
  %2187 = vmatpush1.msra.mxu0 0.0
  %2188 = vmatprep.subr.mxu0 0.0
  %2189 = vmatpush1.msra.mxu0 0.0
  %2190 = vmatprep.subr.mxu0 0.0
  %2191 = vmatpush1.msra.mxu0 0.0
  %2192 = vmatprep.subr.mxu0 0.0
  %2193 = vmatpush1.msra.mxu0 0.0
  %2194 = vmatprep.subr.mxu0 0.0
  %2195 = vmatpush1.msra.mxu0 %v2171
  %2196 = vmatprep.subr.mxu0 0.0
  %2197 = vmatpush1.msra.mxu0 %v2170
  %2198 = vmatprep.subr.mxu0 0.0
  %2199 = vmatpush1.msra.mxu0 %v2169
  %2200 = vmatprep.subr.mxu0 0.0
  %2201 = vmatpush1.msra.mxu0 %v2168
  %2202 = vmatprep.subr.mxu0 0.0
  %2203 = vmatpush1.msra.mxu0 %v2167
  %2204 = vmatprep.subr.mxu0 0.0
  %2205 = vmatpush1.msra.mxu0 %v2166
  %2206 = vmatprep.subr.mxu0 0.0
  %2207 = vmatpush1.msra.mxu0 %v2165
  %2208 = vmatprep.subr.mxu0 0.0
  %2209 = vmatpush1.msra.mxu0 %v2164
  %2210 = vmatprep.subr.mxu0 0.0
  %2211 = vmatpush2.msra.mxu0 0.0
  %2212 = vmatprep.subr.mxu0 0.0
  %2213 = vmatpush2.msra.mxu0 0.0
  %2214 = vmatprep.subr.mxu0 0.0
  %2215 = vmatpush2.msra.mxu0 0.0
  %2216 = vmatprep.subr.mxu0 0.0
  %2217 = vmatpush2.msra.mxu0 0.0
  %2218 = vmatprep.subr.mxu0 0.0
  %2219 = vmatpush2.msra.mxu0 0.0
  %2220 = vmatprep.subr.mxu0 0.0
  %2221 = vmatpush2.msra.mxu0 0.0
  %2222 = vmatprep.subr.mxu0 0.0
  %2223 = vmatpush2.msra.mxu0 0.0
  %2224 = vmatprep.subr.mxu0 0.0
  %2225 = vmatpush2.msra.mxu0 0.0
  %2226 = vmatprep.subr.mxu0 0.0
  %2227 = vmatpush2.msra.mxu0 0.0
  %2228 = vmatprep.subr.mxu0 0.0
  %2229 = vmatpush2.msra.mxu0 0.0
  %2230 = vmatprep.subr.mxu0 0.0
  %2231 = vmatpush2.msra.mxu0 0.0
  %2232 = vmatprep.subr.mxu0 0.0
  %2233 = vmatpush2.msra.mxu0 0.0
  %2234 = vmatprep.subr.mxu0 0.0
  %2235 = vmatpush2.msra.mxu0 0.0
  %2236 = vmatprep.subr.mxu0 0.0
  %2237 = vmatpush2.msra.mxu0 0.0
  %2238 = vmatprep.subr.mxu0 0.0
  %2239 = vmatpush2.msra.mxu0 0.0
  %2240 = vmatprep.subr.mxu0 0.0
  %2241 = vmatpush2.msra.mxu0 0.0
  %2242 = vmatprep.mubr.f32.mxu0 0.0
  %2243 = vmatmul.mubr.f32.gmra.mxu0 %v2173
  %v2244 = vpop.f32.mrf.mxu0
  %v2245 = vadd.f32 0.0, %v2244
  %v2246 = vpop.f32.mrf.mxu0
  %2247 = vmatprep.mubr.f32.mxu0 0.0
  %2248 = vmatmul.mubr.f32.gmra.mxu0 %v2176
  %v2249 = vpop.f32.mrf.mxu0
  %v2250 = vadd.f32 0.0, %v2249
  %v2251 = vpop.f32.mrf.mxu0
  %2252 = vdwg.mxu0
  %v2253 = vadd.f32 %v2081, %v2245
  %v2254 = vadd.f32 %v2086, %v2250
  %v2255 = vsel %vm48, %v2253, 0.0
  %v2256 = vsel %vm48, %v2254, 0.0
  %v2257 = vadd.f32 %v2255, %v2256
  %v2258 = vrot.slane %v2257, 4
  %v2259 = vadd.f32 %v2257, %v2258
  %v2260 = vrot.slane %v2259, 2
  %v2261 = vadd.f32 %v2259, %v2260
  %v2262 = vrot.slane %v2261, 1
  %v2263 = vadd.f32 %v2261, %v2262
  %v2265 = vsel %vm48, %v2263, 0
  %2267 = vmatprep.subr.mxu0 0.0
  %2268 = vmatpush1.msra.mxu0 0.0
  %2269 = vmatprep.subr.mxu0 0.0
  %2270 = vmatpush1.msra.mxu0 0.0
  %2271 = vmatprep.subr.mxu0 0.0
  %2272 = vmatpush1.msra.mxu0 0.0
  %2273 = vmatprep.subr.mxu0 0.0
  %2274 = vmatpush1.msra.mxu0 0.0
  %2275 = vmatprep.subr.mxu0 0.0
  %2276 = vmatpush1.msra.mxu0 0.0
  %2277 = vmatprep.subr.mxu0 0.0
  %2278 = vmatpush1.msra.mxu0 0.0
  %2279 = vmatprep.subr.mxu0 0.0
  %2280 = vmatpush1.msra.mxu0 0.0
  %2281 = vmatprep.subr.mxu0 0.0
  %2282 = vmatpush1.msra.mxu0 0.0
  %2283 = vmatprep.subr.mxu0 0.0
  %2284 = vmatpush1.msra.mxu0 %v286
  %2285 = vmatprep.subr.mxu0 0.0
  %2286 = vmatpush1.msra.mxu0 %v285
  %2287 = vmatprep.subr.mxu0 0.0
  %2288 = vmatpush1.msra.mxu0 %v284
  %2289 = vmatprep.subr.mxu0 0.0
  %2290 = vmatpush1.msra.mxu0 %v283
  %2291 = vmatprep.subr.mxu0 0.0
  %2292 = vmatpush1.msra.mxu0 %v282
  %2293 = vmatprep.subr.mxu0 0.0
  %2294 = vmatpush1.msra.mxu0 %v281
  %2295 = vmatprep.subr.mxu0 0.0
  %2296 = vmatpush1.msra.mxu0 %v280
  %2297 = vmatprep.subr.mxu0 0.0
  %2298 = vmatpush1.msra.mxu0 %v279
  %2299 = vmatprep.subr.mxu0 0.0
  %2300 = vmatpush2.msra.mxu0 0.0
  %2301 = vmatprep.subr.mxu0 0.0
  %2302 = vmatpush2.msra.mxu0 0.0
  %2303 = vmatprep.subr.mxu0 0.0
  %2304 = vmatpush2.msra.mxu0 0.0
  %2305 = vmatprep.subr.mxu0 0.0
  %2306 = vmatpush2.msra.mxu0 0.0
  %2307 = vmatprep.subr.mxu0 0.0
  %2308 = vmatpush2.msra.mxu0 0.0
  %2309 = vmatprep.subr.mxu0 0.0
  %2310 = vmatpush2.msra.mxu0 0.0
  %2311 = vmatprep.subr.mxu0 0.0
  %2312 = vmatpush2.msra.mxu0 0.0
  %2313 = vmatprep.subr.mxu0 0.0
  %2314 = vmatpush2.msra.mxu0 0.0
  %2315 = vmatprep.subr.mxu0 0.0
  %2316 = vmatpush2.msra.mxu0 0.0
  %2317 = vmatprep.subr.mxu0 0.0
  %2318 = vmatpush2.msra.mxu0 0.0
  %2319 = vmatprep.subr.mxu0 0.0
  %2320 = vmatpush2.msra.mxu0 0.0
  %2321 = vmatprep.subr.mxu0 0.0
  %2322 = vmatpush2.msra.mxu0 0.0
  %2323 = vmatprep.subr.mxu0 0.0
  %2324 = vmatpush2.msra.mxu0 0.0
  %2325 = vmatprep.subr.mxu0 0.0
  %2326 = vmatpush2.msra.mxu0 0.0
  %2327 = vmatprep.subr.mxu0 0.0
  %2328 = vmatpush2.msra.mxu0 0.0
  %2329 = vmatprep.subr.mxu0 0.0
  %2330 = vmatpush2.msra.mxu0 0.0
  %2331 = vmatprep.mubr.f32.mxu0 0.0
  %2332 = vmatmul.mubr.f32.gmra.mxu0 %v2265
  %v2333 = vpop.f32.mrf.mxu0
  %v2334 = vadd.f32 0.0, %v2333
  %v2335 = vpop.f32.mrf.mxu0
  %2336 = vdwg.mxu0
  %v2337 = vmul.f32 %v2334, 0.0078125
  %v2339 = vsel %vm817, %v2337, 0
  %2341 = vmatprep.subr.mxu0 0.0
  %2342 = vmatpush1.msra.mxu0 0.0
  %2343 = vmatprep.subr.mxu0 0.0
  %2344 = vmatpush1.msra.mxu0 0.0
  %2345 = vmatprep.subr.mxu0 0.0
  %2346 = vmatpush1.msra.mxu0 0.0
  %2347 = vmatprep.subr.mxu0 0.0
  %2348 = vmatpush1.msra.mxu0 0.0
  %2349 = vmatprep.subr.mxu0 0.0
  %2350 = vmatpush1.msra.mxu0 0.0
  %2351 = vmatprep.subr.mxu0 0.0
  %2352 = vmatpush1.msra.mxu0 0.0
  %2353 = vmatprep.subr.mxu0 0.0
  %2354 = vmatpush1.msra.mxu0 0.0
  %2355 = vmatprep.subr.mxu0 0.0
  %2356 = vmatpush1.msra.mxu0 0.0
  %2357 = vmatprep.subr.mxu0 0.0
  %2358 = vmatpush1.msra.mxu0 0.0
  %2359 = vmatprep.subr.mxu0 0.0
  %2360 = vmatpush1.msra.mxu0 0.0
  %2361 = vmatprep.subr.mxu0 0.0
  %2362 = vmatpush1.msra.mxu0 0.0
  %2363 = vmatprep.subr.mxu0 0.0
  %2364 = vmatpush1.msra.mxu0 0.0
  %2365 = vmatprep.subr.mxu0 0.0
  %2366 = vmatpush1.msra.mxu0 0.0
  %2367 = vmatprep.subr.mxu0 0.0
  %2368 = vmatpush1.msra.mxu0 0.0
  %2369 = vmatprep.subr.mxu0 0.0
  %2370 = vmatpush1.msra.mxu0 0.0
  %2371 = vmatprep.subr.mxu0 0.0
  %2372 = vmatpush1.msra.mxu0 %v301
  %2373 = vmatprep.subr.mxu0 0.0
  %2374 = vmatpush2.msra.mxu0 0.0
  %2375 = vmatprep.subr.mxu0 0.0
  %2376 = vmatpush2.msra.mxu0 0.0
  %2377 = vmatprep.subr.mxu0 0.0
  %2378 = vmatpush2.msra.mxu0 0.0
  %2379 = vmatprep.subr.mxu0 0.0
  %2380 = vmatpush2.msra.mxu0 0.0
  %2381 = vmatprep.subr.mxu0 0.0
  %2382 = vmatpush2.msra.mxu0 0.0
  %2383 = vmatprep.subr.mxu0 0.0
  %2384 = vmatpush2.msra.mxu0 0.0
  %2385 = vmatprep.subr.mxu0 0.0
  %2386 = vmatpush2.msra.mxu0 0.0
  %2387 = vmatprep.subr.mxu0 0.0
  %2388 = vmatpush2.msra.mxu0 0.0
  %2389 = vmatprep.subr.mxu0 0.0
  %2390 = vmatpush2.msra.mxu0 0.0
  %2391 = vmatprep.subr.mxu0 0.0
  %2392 = vmatpush2.msra.mxu0 0.0
  %2393 = vmatprep.subr.mxu0 0.0
  %2394 = vmatpush2.msra.mxu0 0.0
  %2395 = vmatprep.subr.mxu0 0.0
  %2396 = vmatpush2.msra.mxu0 0.0
  %2397 = vmatprep.subr.mxu0 0.0
  %2398 = vmatpush2.msra.mxu0 0.0
  %2399 = vmatprep.subr.mxu0 0.0
  %2400 = vmatpush2.msra.mxu0 0.0
  %2401 = vmatprep.subr.mxu0 0.0
  %2402 = vmatpush2.msra.mxu0 0.0
  %2403 = vmatprep.subr.mxu0 0.0
  %2404 = vmatpush2.msra.mxu0 0.0
  %2405 = vmatprep.mubr.f32.mxu0 0.0
  %2406 = vmatmul.mubr.f32.gmra.mxu0 %v2339
  %v2407 = vpop.f32.mrf.mxu0
  %v2408 = vadd.f32 0.0, %v2407
  %v2409 = vpop.f32.mrf.mxu0
  %2410 = vdwg.mxu0
  %v2411 = vlaneseq
  %v2412 = vshrl.u32 %v2411, 7
  %v2413 = vsub.s32 0, %v2412
  %v2414 = vrot.slane %v2408, %v2413
  %v2415 = vsub.f32 %v2253, %v2414
  %v2416 = vsub.f32 %v2254, %v2414
  %v2417 = vmul.f32 %v2415, %v2415
  %v2418 = vmul.f32 %v2416, %v2416
  %v2419 = vsel %vm48, %v2417, 0.0
  %v2420 = vsel %vm48, %v2418, 0.0
  %v2421 = vadd.f32 %v2419, %v2420
  %v2422 = vrot.slane %v2421, 4
  %v2423 = vadd.f32 %v2421, %v2422
  %v2424 = vrot.slane %v2423, 2
  %v2425 = vadd.f32 %v2423, %v2424
  %v2426 = vrot.slane %v2425, 1
  %v2427 = vadd.f32 %v2425, %v2426
  %v2429 = vsel %vm48, %v2427, 0
  %2431 = vmatprep.subr.mxu0 0.0
  %2432 = vmatpush1.msra.mxu0 0.0
  %2433 = vmatprep.subr.mxu0 0.0
  %2434 = vmatpush1.msra.mxu0 0.0
  %2435 = vmatprep.subr.mxu0 0.0
  %2436 = vmatpush1.msra.mxu0 0.0
  %2437 = vmatprep.subr.mxu0 0.0
  %2438 = vmatpush1.msra.mxu0 0.0
  %2439 = vmatprep.subr.mxu0 0.0
  %2440 = vmatpush1.msra.mxu0 0.0
  %2441 = vmatprep.subr.mxu0 0.0
  %2442 = vmatpush1.msra.mxu0 0.0
  %2443 = vmatprep.subr.mxu0 0.0
  %2444 = vmatpush1.msra.mxu0 0.0
  %2445 = vmatprep.subr.mxu0 0.0
  %2446 = vmatpush1.msra.mxu0 0.0
  %2447 = vmatprep.subr.mxu0 0.0
  %2448 = vmatpush1.msra.mxu0 %v286
  %2449 = vmatprep.subr.mxu0 0.0
  %2450 = vmatpush1.msra.mxu0 %v285
  %2451 = vmatprep.subr.mxu0 0.0
  %2452 = vmatpush1.msra.mxu0 %v284
  %2453 = vmatprep.subr.mxu0 0.0
  %2454 = vmatpush1.msra.mxu0 %v283
  %2455 = vmatprep.subr.mxu0 0.0
  %2456 = vmatpush1.msra.mxu0 %v282
  %2457 = vmatprep.subr.mxu0 0.0
  %2458 = vmatpush1.msra.mxu0 %v281
  %2459 = vmatprep.subr.mxu0 0.0
  %2460 = vmatpush1.msra.mxu0 %v280
  %2461 = vmatprep.subr.mxu0 0.0
  %2462 = vmatpush1.msra.mxu0 %v279
  %2463 = vmatprep.subr.mxu0 0.0
  %2464 = vmatpush2.msra.mxu0 0.0
  %2465 = vmatprep.subr.mxu0 0.0
  %2466 = vmatpush2.msra.mxu0 0.0
  %2467 = vmatprep.subr.mxu0 0.0
  %2468 = vmatpush2.msra.mxu0 0.0
  %2469 = vmatprep.subr.mxu0 0.0
  %2470 = vmatpush2.msra.mxu0 0.0
  %2471 = vmatprep.subr.mxu0 0.0
  %2472 = vmatpush2.msra.mxu0 0.0
  %2473 = vmatprep.subr.mxu0 0.0
  %2474 = vmatpush2.msra.mxu0 0.0
  %2475 = vmatprep.subr.mxu0 0.0
  %2476 = vmatpush2.msra.mxu0 0.0
  %2477 = vmatprep.subr.mxu0 0.0
  %2478 = vmatpush2.msra.mxu0 0.0
  %2479 = vmatprep.subr.mxu0 0.0
  %2480 = vmatpush2.msra.mxu0 0.0
  %2481 = vmatprep.subr.mxu0 0.0
  %2482 = vmatpush2.msra.mxu0 0.0
  %2483 = vmatprep.subr.mxu0 0.0
  %2484 = vmatpush2.msra.mxu0 0.0
  %2485 = vmatprep.subr.mxu0 0.0
  %2486 = vmatpush2.msra.mxu0 0.0
  %2487 = vmatprep.subr.mxu0 0.0
  %2488 = vmatpush2.msra.mxu0 0.0
  %2489 = vmatprep.subr.mxu0 0.0
  %2490 = vmatpush2.msra.mxu0 0.0
  %2491 = vmatprep.subr.mxu0 0.0
  %2492 = vmatpush2.msra.mxu0 0.0
  %2493 = vmatprep.subr.mxu0 0.0
  %2494 = vmatpush2.msra.mxu0 0.0
  %2495 = vmatprep.mubr.f32.mxu0 0.0
  %2496 = vmatmul.mubr.f32.gmra.mxu0 %v2429
  %v2497 = vpop.f32.mrf.mxu0
  %v2498 = vadd.f32 0.0, %v2497
  %v2499 = vpop.f32.mrf.mxu0
  %2500 = vdwg.mxu0
  %v2501 = vmul.f32 %v2498, 0.0078125
  %v2502 = vadd.f32 %v2501, 1e-05
  %v2503 = vrsqrt.pop %v2502
  %v2505 = vsel %vm817, %v2503, 0
  %2507 = vmatprep.subr.mxu0 0.0
  %2508 = vmatpush1.msra.mxu0 0.0
  %2509 = vmatprep.subr.mxu0 0.0
  %2510 = vmatpush1.msra.mxu0 0.0
  %2511 = vmatprep.subr.mxu0 0.0
  %2512 = vmatpush1.msra.mxu0 0.0
  %2513 = vmatprep.subr.mxu0 0.0
  %2514 = vmatpush1.msra.mxu0 0.0
  %2515 = vmatprep.subr.mxu0 0.0
  %2516 = vmatpush1.msra.mxu0 0.0
  %2517 = vmatprep.subr.mxu0 0.0
  %2518 = vmatpush1.msra.mxu0 0.0
  %2519 = vmatprep.subr.mxu0 0.0
  %2520 = vmatpush1.msra.mxu0 0.0
  %2521 = vmatprep.subr.mxu0 0.0
  %2522 = vmatpush1.msra.mxu0 0.0
  %2523 = vmatprep.subr.mxu0 0.0
  %2524 = vmatpush1.msra.mxu0 0.0
  %2525 = vmatprep.subr.mxu0 0.0
  %2526 = vmatpush1.msra.mxu0 0.0
  %2527 = vmatprep.subr.mxu0 0.0
  %2528 = vmatpush1.msra.mxu0 0.0
  %2529 = vmatprep.subr.mxu0 0.0
  %2530 = vmatpush1.msra.mxu0 0.0
  %2531 = vmatprep.subr.mxu0 0.0
  %2532 = vmatpush1.msra.mxu0 0.0
  %2533 = vmatprep.subr.mxu0 0.0
  %2534 = vmatpush1.msra.mxu0 0.0
  %2535 = vmatprep.subr.mxu0 0.0
  %2536 = vmatpush1.msra.mxu0 0.0
  %2537 = vmatprep.subr.mxu0 0.0
  %2538 = vmatpush1.msra.mxu0 %v301
  %2539 = vmatprep.subr.mxu0 0.0
  %2540 = vmatpush2.msra.mxu0 0.0
  %2541 = vmatprep.subr.mxu0 0.0
  %2542 = vmatpush2.msra.mxu0 0.0
  %2543 = vmatprep.subr.mxu0 0.0
  %2544 = vmatpush2.msra.mxu0 0.0
  %2545 = vmatprep.subr.mxu0 0.0
  %2546 = vmatpush2.msra.mxu0 0.0
  %2547 = vmatprep.subr.mxu0 0.0
  %2548 = vmatpush2.msra.mxu0 0.0
  %2549 = vmatprep.subr.mxu0 0.0
  %2550 = vmatpush2.msra.mxu0 0.0
  %2551 = vmatprep.subr.mxu0 0.0
  %2552 = vmatpush2.msra.mxu0 0.0
  %2553 = vmatprep.subr.mxu0 0.0
  %2554 = vmatpush2.msra.mxu0 0.0
  %2555 = vmatprep.subr.mxu0 0.0
  %2556 = vmatpush2.msra.mxu0 0.0
  %2557 = vmatprep.subr.mxu0 0.0
  %2558 = vmatpush2.msra.mxu0 0.0
  %2559 = vmatprep.subr.mxu0 0.0
  %2560 = vmatpush2.msra.mxu0 0.0
  %2561 = vmatprep.subr.mxu0 0.0
  %2562 = vmatpush2.msra.mxu0 0.0
  %2563 = vmatprep.subr.mxu0 0.0
  %2564 = vmatpush2.msra.mxu0 0.0
  %2565 = vmatprep.subr.mxu0 0.0
  %2566 = vmatpush2.msra.mxu0 0.0
  %2567 = vmatprep.subr.mxu0 0.0
  %2568 = vmatpush2.msra.mxu0 0.0
  %2569 = vmatprep.subr.mxu0 0.0
  %2570 = vmatpush2.msra.mxu0 0.0
  %2571 = vmatprep.mubr.f32.mxu0 0.0
  %2572 = vmatmul.mubr.f32.gmra.mxu0 %v2505
  %v2573 = vpop.f32.mrf.mxu0
  %v2574 = vadd.f32 0.0, %v2573
  %v2575 = vpop.f32.mrf.mxu0
  %2576 = vdwg.mxu0
  %v2578 = vrot.slane %v2574, 3
  %v2580 = vmul.f32 %v14, %v2578
  %v2581 = vlaneseq
  %v2582 = vshrl.u32 %v2581, 7
  %v2583 = vsub.s32 5, %v2582
  %v2584 = vrot.slane %v2580, %v2583
  %v2585 = vmul.f32 %v2415, %v2584
  %v2586 = vmul.f32 %v2416, %v2584
  %v2587 = vlaneseq
  %v2588 = vshrl.u32 %v2587, 7
  %v2589 = vsub.s32 6, %v2588
  %v2590 = vrot.slane %v14, %v2589
  %v2591 = vadd.f32 %v2585, %v2590
  %v2592 = vadd.f32 %v2586, %v2590
  %v2593 = vmax.f32 %v2591, 0.0
  %v2594 = vmax.f32 %v2592, 0.0
  %v2595 = vld [vmem:[%s1 + $0x340] sm:$0xff]
  %v2596 = vld [vmem:[%s1 + $0x348] sm:$0xff]
  %v2597 = vld [vmem:[%s1 + $0x350] sm:$0xff]
  %v2598 = vld [vmem:[%s1 + $0x358] sm:$0xff]
  %v2599 = vld [vmem:[%s1 + $0x360] sm:$0xff]
  %v2600 = vld [vmem:[%s1 + $0x368] sm:$0xff]
  %v2601 = vld [vmem:[%s1 + $0x370] sm:$0xff]
  %v2602 = vld [vmem:[%s1 + $0x378] sm:$0xff]
  %2603 = vmatprep.subr.mxu0 0.0
  %2604 = vmatpush1.msra.mxu0 0.0
  %2605 = vmatprep.subr.mxu0 0.0
  %2606 = vmatpush1.msra.mxu0 0.0
  %2607 = vmatprep.subr.mxu0 0.0
  %2608 = vmatpush1.msra.mxu0 0.0
  %2609 = vmatprep.subr.mxu0 0.0
  %2610 = vmatpush1.msra.mxu0 0.0
  %2611 = vmatprep.subr.mxu0 0.0
  %2612 = vmatpush1.msra.mxu0 0.0
  %2613 = vmatprep.subr.mxu0 0.0
  %2614 = vmatpush1.msra.mxu0 0.0
  %2615 = vmatprep.subr.mxu0 0.0
  %2616 = vmatpush1.msra.mxu0 0.0
  %2617 = vmatprep.subr.mxu0 0.0
  %2618 = vmatpush1.msra.mxu0 0.0
  %2619 = vmatprep.subr.mxu0 0.0
  %2620 = vmatpush1.msra.mxu0 0.0
  %2621 = vmatprep.subr.mxu0 0.0
  %2622 = vmatpush1.msra.mxu0 0.0
  %2623 = vmatprep.subr.mxu0 0.0
  %2624 = vmatpush1.msra.mxu0 0.0
  %2625 = vmatprep.subr.mxu0 0.0
  %2626 = vmatpush1.msra.mxu0 0.0
  %2627 = vmatprep.subr.mxu0 0.0
  %2628 = vmatpush1.msra.mxu0 0.0
  %2629 = vmatprep.subr.mxu0 0.0
  %2630 = vmatpush1.msra.mxu0 0.0
  %2631 = vmatprep.subr.mxu0 0.0
  %2632 = vmatpush1.msra.mxu0 %v2594
  %2633 = vmatprep.subr.mxu0 0.0
  %2634 = vmatpush1.msra.mxu0 %v2593
  %2635 = vmatprep.subr.mxu0 0.0
  %2636 = vmatpush2.msra.mxu0 0.0
  %2637 = vmatprep.subr.mxu0 0.0
  %2638 = vmatpush2.msra.mxu0 0.0
  %2639 = vmatprep.subr.mxu0 0.0
  %2640 = vmatpush2.msra.mxu0 0.0
  %2641 = vmatprep.subr.mxu0 0.0
  %2642 = vmatpush2.msra.mxu0 0.0
  %2643 = vmatprep.subr.mxu0 0.0
  %2644 = vmatpush2.msra.mxu0 0.0
  %2645 = vmatprep.subr.mxu0 0.0
  %2646 = vmatpush2.msra.mxu0 0.0
  %2647 = vmatprep.subr.mxu0 0.0
  %2648 = vmatpush2.msra.mxu0 0.0
  %2649 = vmatprep.subr.mxu0 0.0
  %2650 = vmatpush2.msra.mxu0 0.0
  %2651 = vmatprep.subr.mxu0 0.0
  %2652 = vmatpush2.msra.mxu0 0.0
  %2653 = vmatprep.subr.mxu0 0.0
  %2654 = vmatpush2.msra.mxu0 0.0
  %2655 = vmatprep.subr.mxu0 0.0
  %2656 = vmatpush2.msra.mxu0 0.0
  %2657 = vmatprep.subr.mxu0 0.0
  %2658 = vmatpush2.msra.mxu0 0.0
  %2659 = vmatprep.subr.mxu0 0.0
  %2660 = vmatpush2.msra.mxu0 0.0
  %2661 = vmatprep.subr.mxu0 0.0
  %2662 = vmatpush2.msra.mxu0 0.0
  %2663 = vmatprep.subr.mxu0 0.0
  %2664 = vmatpush2.msra.mxu0 0.0
  %2665 = vmatprep.subr.mxu0 0.0
  %2666 = vmatpush2.msra.mxu0 0.0
  %2667 = vmatprep.mubr.f32.mxu0 0.0
  %2668 = vmatmul.mubr.f32.gmra.mxu0 %v312
  %v2669 = vpop.f32.mrf.mxu0
  %v2670 = vadd.f32 0.0, %v2669
  %v2671 = vpop.f32.mrf.mxu0
  %2672 = vmatprep.mubr.f32.mxu0 0.0
  %2673 = vmatmul.mubr.f32.gmra.mxu0 %v315
  %v2674 = vpop.f32.mrf.mxu0
  %v2675 = vadd.f32 0.0, %v2674
  %v2676 = vpop.f32.mrf.mxu0
  %2677 = vdwg.mxu0
  %v2678 = vld [vmem:[%s1 + $0x300] sm:$0xff]
  %v2679 = vld [vmem:[%s1 + $0x308] sm:$0xff]
  %v2680 = vld [vmem:[%s1 + $0x310] sm:$0xff]
  %v2681 = vld [vmem:[%s1 + $0x318] sm:$0xff]
  %v2682 = vld [vmem:[%s1 + $0x320] sm:$0xff]
  %v2683 = vld [vmem:[%s1 + $0x328] sm:$0xff]
  %v2684 = vld [vmem:[%s1 + $0x330] sm:$0xff]
  %v2685 = vld [vmem:[%s1 + $0x338] sm:$0xff]
  %v2687 = vsel %vm48, %v2670, 0
  %v2690 = vsel %vm48, %v2675, 0
  %2692 = vmatprep.subr.mxu0 0.0
  %2693 = vmatpush1.msra.mxu0 0.0
  %2694 = vmatprep.subr.mxu0 0.0
  %2695 = vmatpush1.msra.mxu0 0.0
  %2696 = vmatprep.subr.mxu0 0.0
  %2697 = vmatpush1.msra.mxu0 0.0
  %2698 = vmatprep.subr.mxu0 0.0
  %2699 = vmatpush1.msra.mxu0 0.0
  %2700 = vmatprep.subr.mxu0 0.0
  %2701 = vmatpush1.msra.mxu0 0.0
  %2702 = vmatprep.subr.mxu0 0.0
  %2703 = vmatpush1.msra.mxu0 0.0
  %2704 = vmatprep.subr.mxu0 0.0
  %2705 = vmatpush1.msra.mxu0 0.0
  %2706 = vmatprep.subr.mxu0 0.0
  %2707 = vmatpush1.msra.mxu0 0.0
  %2708 = vmatprep.subr.mxu0 0.0
  %2709 = vmatpush1.msra.mxu0 %v2685
  %2710 = vmatprep.subr.mxu0 0.0
  %2711 = vmatpush1.msra.mxu0 %v2684
  %2712 = vmatprep.subr.mxu0 0.0
  %2713 = vmatpush1.msra.mxu0 %v2683
  %2714 = vmatprep.subr.mxu0 0.0
  %2715 = vmatpush1.msra.mxu0 %v2682
  %2716 = vmatprep.subr.mxu0 0.0
  %2717 = vmatpush1.msra.mxu0 %v2681
  %2718 = vmatprep.subr.mxu0 0.0
  %2719 = vmatpush1.msra.mxu0 %v2680
  %2720 = vmatprep.subr.mxu0 0.0
  %2721 = vmatpush1.msra.mxu0 %v2679
  %2722 = vmatprep.subr.mxu0 0.0
  %2723 = vmatpush1.msra.mxu0 %v2678
  %2724 = vmatprep.subr.mxu0 0.0
  %2725 = vmatpush2.msra.mxu0 0.0
  %2726 = vmatprep.subr.mxu0 0.0
  %2727 = vmatpush2.msra.mxu0 0.0
  %2728 = vmatprep.subr.mxu0 0.0
  %2729 = vmatpush2.msra.mxu0 0.0
  %2730 = vmatprep.subr.mxu0 0.0
  %2731 = vmatpush2.msra.mxu0 0.0
  %2732 = vmatprep.subr.mxu0 0.0
  %2733 = vmatpush2.msra.mxu0 0.0
  %2734 = vmatprep.subr.mxu0 0.0
  %2735 = vmatpush2.msra.mxu0 0.0
  %2736 = vmatprep.subr.mxu0 0.0
  %2737 = vmatpush2.msra.mxu0 0.0
  %2738 = vmatprep.subr.mxu0 0.0
  %2739 = vmatpush2.msra.mxu0 0.0
  %2740 = vmatprep.subr.mxu0 0.0
  %2741 = vmatpush2.msra.mxu0 0.0
  %2742 = vmatprep.subr.mxu0 0.0
  %2743 = vmatpush2.msra.mxu0 0.0
  %2744 = vmatprep.subr.mxu0 0.0
  %2745 = vmatpush2.msra.mxu0 0.0
  %2746 = vmatprep.subr.mxu0 0.0
  %2747 = vmatpush2.msra.mxu0 0.0
  %2748 = vmatprep.subr.mxu0 0.0
  %2749 = vmatpush2.msra.mxu0 0.0
  %2750 = vmatprep.subr.mxu0 0.0
  %2751 = vmatpush2.msra.mxu0 0.0
  %2752 = vmatprep.subr.mxu0 0.0
  %2753 = vmatpush2.msra.mxu0 0.0
  %2754 = vmatprep.subr.mxu0 0.0
  %2755 = vmatpush2.msra.mxu0 0.0
  %2756 = vmatprep.mubr.f32.mxu0 0.0
  %2757 = vmatmul.mubr.f32.gmra.mxu0 %v2687
  %v2758 = vpop.f32.mrf.mxu0
  %v2759 = vadd.f32 0.0, %v2758
  %v2760 = vpop.f32.mrf.mxu0
  %2761 = vmatprep.mubr.f32.mxu0 0.0
  %2762 = vmatmul.mubr.f32.gmra.mxu0 %v2690
  %v2763 = vpop.f32.mrf.mxu0
  %v2764 = vadd.f32 0.0, %v2763
  %v2765 = vpop.f32.mrf.mxu0
  %2766 = vdwg.mxu0
  %v2768 = vsel %vm48, %v2593, 0
  %v2771 = vsel %vm48, %v2594, 0
  %2773 = vmatprep.subr.mxu0 0.0
  %2774 = vmatpush1.msra.mxu0 0.0
  %2775 = vmatprep.subr.mxu0 0.0
  %2776 = vmatpush1.msra.mxu0 0.0
  %2777 = vmatprep.subr.mxu0 0.0
  %2778 = vmatpush1.msra.mxu0 0.0
  %2779 = vmatprep.subr.mxu0 0.0
  %2780 = vmatpush1.msra.mxu0 0.0
  %2781 = vmatprep.subr.mxu0 0.0
  %2782 = vmatpush1.msra.mxu0 0.0
  %2783 = vmatprep.subr.mxu0 0.0
  %2784 = vmatpush1.msra.mxu0 0.0
  %2785 = vmatprep.subr.mxu0 0.0
  %2786 = vmatpush1.msra.mxu0 0.0
  %2787 = vmatprep.subr.mxu0 0.0
  %2788 = vmatpush1.msra.mxu0 0.0
  %2789 = vmatprep.subr.mxu0 0.0
  %2790 = vmatpush1.msra.mxu0 %v2602
  %2791 = vmatprep.subr.mxu0 0.0
  %2792 = vmatpush1.msra.mxu0 %v2601
  %2793 = vmatprep.subr.mxu0 0.0
  %2794 = vmatpush1.msra.mxu0 %v2600
  %2795 = vmatprep.subr.mxu0 0.0
  %2796 = vmatpush1.msra.mxu0 %v2599
  %2797 = vmatprep.subr.mxu0 0.0
  %2798 = vmatpush1.msra.mxu0 %v2598
  %2799 = vmatprep.subr.mxu0 0.0
  %2800 = vmatpush1.msra.mxu0 %v2597
  %2801 = vmatprep.subr.mxu0 0.0
  %2802 = vmatpush1.msra.mxu0 %v2596
  %2803 = vmatprep.subr.mxu0 0.0
  %2804 = vmatpush1.msra.mxu0 %v2595
  %2805 = vmatprep.subr.mxu0 0.0
  %2806 = vmatpush2.msra.mxu0 0.0
  %2807 = vmatprep.subr.mxu0 0.0
  %2808 = vmatpush2.msra.mxu0 0.0
  %2809 = vmatprep.subr.mxu0 0.0
  %2810 = vmatpush2.msra.mxu0 0.0
  %2811 = vmatprep.subr.mxu0 0.0
  %2812 = vmatpush2.msra.mxu0 0.0
  %2813 = vmatprep.subr.mxu0 0.0
  %2814 = vmatpush2.msra.mxu0 0.0
  %2815 = vmatprep.subr.mxu0 0.0
  %2816 = vmatpush2.msra.mxu0 0.0
  %2817 = vmatprep.subr.mxu0 0.0
  %2818 = vmatpush2.msra.mxu0 0.0
  %2819 = vmatprep.subr.mxu0 0.0
  %2820 = vmatpush2.msra.mxu0 0.0
  %2821 = vmatprep.subr.mxu0 0.0
  %2822 = vmatpush2.msra.mxu0 0.0
  %2823 = vmatprep.subr.mxu0 0.0
  %2824 = vmatpush2.msra.mxu0 0.0
  %2825 = vmatprep.subr.mxu0 0.0
  %2826 = vmatpush2.msra.mxu0 0.0
  %2827 = vmatprep.subr.mxu0 0.0
  %2828 = vmatpush2.msra.mxu0 0.0
  %2829 = vmatprep.subr.mxu0 0.0
  %2830 = vmatpush2.msra.mxu0 0.0
  %2831 = vmatprep.subr.mxu0 0.0
  %2832 = vmatpush2.msra.mxu0 0.0
  %2833 = vmatprep.subr.mxu0 0.0
  %2834 = vmatpush2.msra.mxu0 0.0
  %2835 = vmatprep.subr.mxu0 0.0
  %2836 = vmatpush2.msra.mxu0 0.0
  %2837 = vmatprep.mubr.f32.mxu0 0.0
  %2838 = vmatmul.mubr.f32.gmra.mxu0 %v2768
  %v2839 = vpop.f32.mrf.mxu0
  %v2840 = vadd.f32 %v2759, %v2839
  %v2841 = vpop.f32.mrf.mxu0
  %2842 = vmatprep.mubr.f32.mxu0 0.0
  %2843 = vmatmul.mubr.f32.gmra.mxu0 %v2771
  %v2844 = vpop.f32.mrf.mxu0
  %v2845 = vadd.f32 %v2764, %v2844
  %v2846 = vpop.f32.mrf.mxu0
  %2847 = vdwg.mxu0
  %2848 = vmatprep.subr.mxu0 0.0
  %2849 = vmatpush1.msra.mxu0 0.0
  %2850 = vmatprep.subr.mxu0 0.0
  %2851 = vmatpush1.msra.mxu0 0.0
  %2852 = vmatprep.subr.mxu0 0.0
  %2853 = vmatpush1.msra.mxu0 0.0
  %2854 = vmatprep.subr.mxu0 0.0
  %2855 = vmatpush1.msra.mxu0 0.0
  %2856 = vmatprep.subr.mxu0 0.0
  %2857 = vmatpush1.msra.mxu0 0.0
  %2858 = vmatprep.subr.mxu0 0.0
  %2859 = vmatpush1.msra.mxu0 0.0
  %2860 = vmatprep.subr.mxu0 0.0
  %2861 = vmatpush1.msra.mxu0 0.0
  %2862 = vmatprep.subr.mxu0 0.0
  %2863 = vmatpush1.msra.mxu0 0.0
  %2864 = vmatprep.subr.mxu0 0.0
  %2865 = vmatpush1.msra.mxu0 0.0
  %2866 = vmatprep.subr.mxu0 0.0
  %2867 = vmatpush1.msra.mxu0 0.0
  %2868 = vmatprep.subr.mxu0 0.0
  %2869 = vmatpush1.msra.mxu0 0.0
  %2870 = vmatprep.subr.mxu0 0.0
  %2871 = vmatpush1.msra.mxu0 0.0
  %2872 = vmatprep.subr.mxu0 0.0
  %2873 = vmatpush1.msra.mxu0 0.0
  %2874 = vmatprep.subr.mxu0 0.0
  %2875 = vmatpush1.msra.mxu0 0.0
  %2876 = vmatprep.subr.mxu0 0.0
  %2877 = vmatpush1.msra.mxu0 %v2594
  %2878 = vmatprep.subr.mxu0 0.0
  %2879 = vmatpush1.msra.mxu0 %v2593
  %2880 = vmatprep.subr.mxu0 0.0
  %2881 = vmatpush2.msra.mxu0 0.0
  %2882 = vmatprep.subr.mxu0 0.0
  %2883 = vmatpush2.msra.mxu0 0.0
  %2884 = vmatprep.subr.mxu0 0.0
  %2885 = vmatpush2.msra.mxu0 0.0
  %2886 = vmatprep.subr.mxu0 0.0
  %2887 = vmatpush2.msra.mxu0 0.0
  %2888 = vmatprep.subr.mxu0 0.0
  %2889 = vmatpush2.msra.mxu0 0.0
  %2890 = vmatprep.subr.mxu0 0.0
  %2891 = vmatpush2.msra.mxu0 0.0
  %2892 = vmatprep.subr.mxu0 0.0
  %2893 = vmatpush2.msra.mxu0 0.0
  %2894 = vmatprep.subr.mxu0 0.0
  %2895 = vmatpush2.msra.mxu0 0.0
  %2896 = vmatprep.subr.mxu0 0.0
  %2897 = vmatpush2.msra.mxu0 0.0
  %2898 = vmatprep.subr.mxu0 0.0
  %2899 = vmatpush2.msra.mxu0 0.0
  %2900 = vmatprep.subr.mxu0 0.0
  %2901 = vmatpush2.msra.mxu0 0.0
  %2902 = vmatprep.subr.mxu0 0.0
  %2903 = vmatpush2.msra.mxu0 0.0
  %2904 = vmatprep.subr.mxu0 0.0
  %2905 = vmatpush2.msra.mxu0 0.0
  %2906 = vmatprep.subr.mxu0 0.0
  %2907 = vmatpush2.msra.mxu0 0.0
  %2908 = vmatprep.subr.mxu0 0.0
  %2909 = vmatpush2.msra.mxu0 0.0
  %2910 = vmatprep.subr.mxu0 0.0
  %2911 = vmatpush2.msra.mxu0 0.0
  %2912 = vmatprep.mubr.f32.mxu0 0.0
  %2913 = vmatmul.mubr.f32.gmra.mxu0 %v563
  %v2914 = vpop.f32.mrf.mxu0
  %v2915 = vadd.f32 0.0, %v2914
  %v2916 = vpop.f32.mrf.mxu0
  %2917 = vmatprep.mubr.f32.mxu0 0.0
  %2918 = vmatmul.mubr.f32.gmra.mxu0 %v566
  %v2919 = vpop.f32.mrf.mxu0
  %v2920 = vadd.f32 0.0, %v2919
  %v2921 = vpop.f32.mrf.mxu0
  %2922 = vdwg.mxu0
  %v2923 = vld [vmem:[%s1 + $0x380] sm:$0xff]
  %v2924 = vld [vmem:[%s1 + $0x388] sm:$0xff]
  %v2925 = vld [vmem:[%s1 + $0x390] sm:$0xff]
  %v2926 = vld [vmem:[%s1 + $0x398] sm:$0xff]
  %v2927 = vld [vmem:[%s1 + $0x3a0] sm:$0xff]
  %v2928 = vld [vmem:[%s1 + $0x3a8] sm:$0xff]
  %v2929 = vld [vmem:[%s1 + $0x3b0] sm:$0xff]
  %v2930 = vld [vmem:[%s1 + $0x3b8] sm:$0xff]
  %v2932 = vsel %vm48, %v2915, 0
  %v2935 = vsel %vm48, %v2920, 0
  %2937 = vmatprep.subr.mxu0 0.0
  %2938 = vmatpush1.msra.mxu0 0.0
  %2939 = vmatprep.subr.mxu0 0.0
  %2940 = vmatpush1.msra.mxu0 0.0
  %2941 = vmatprep.subr.mxu0 0.0
  %2942 = vmatpush1.msra.mxu0 0.0
  %2943 = vmatprep.subr.mxu0 0.0
  %2944 = vmatpush1.msra.mxu0 0.0
  %2945 = vmatprep.subr.mxu0 0.0
  %2946 = vmatpush1.msra.mxu0 0.0
  %2947 = vmatprep.subr.mxu0 0.0
  %2948 = vmatpush1.msra.mxu0 0.0
  %2949 = vmatprep.subr.mxu0 0.0
  %2950 = vmatpush1.msra.mxu0 0.0
  %2951 = vmatprep.subr.mxu0 0.0
  %2952 = vmatpush1.msra.mxu0 0.0
  %2953 = vmatprep.subr.mxu0 0.0
  %2954 = vmatpush1.msra.mxu0 %v2930
  %2955 = vmatprep.subr.mxu0 0.0
  %2956 = vmatpush1.msra.mxu0 %v2929
  %2957 = vmatprep.subr.mxu0 0.0
  %2958 = vmatpush1.msra.mxu0 %v2928
  %2959 = vmatprep.subr.mxu0 0.0
  %2960 = vmatpush1.msra.mxu0 %v2927
  %2961 = vmatprep.subr.mxu0 0.0
  %2962 = vmatpush1.msra.mxu0 %v2926
  %2963 = vmatprep.subr.mxu0 0.0
  %2964 = vmatpush1.msra.mxu0 %v2925
  %2965 = vmatprep.subr.mxu0 0.0
  %2966 = vmatpush1.msra.mxu0 %v2924
  %2967 = vmatprep.subr.mxu0 0.0
  %2968 = vmatpush1.msra.mxu0 %v2923
  %2969 = vmatprep.subr.mxu0 0.0
  %2970 = vmatpush2.msra.mxu0 0.0
  %2971 = vmatprep.subr.mxu0 0.0
  %2972 = vmatpush2.msra.mxu0 0.0
  %2973 = vmatprep.subr.mxu0 0.0
  %2974 = vmatpush2.msra.mxu0 0.0
  %2975 = vmatprep.subr.mxu0 0.0
  %2976 = vmatpush2.msra.mxu0 0.0
  %2977 = vmatprep.subr.mxu0 0.0
  %2978 = vmatpush2.msra.mxu0 0.0
  %2979 = vmatprep.subr.mxu0 0.0
  %2980 = vmatpush2.msra.mxu0 0.0
  %2981 = vmatprep.subr.mxu0 0.0
  %2982 = vmatpush2.msra.mxu0 0.0
  %2983 = vmatprep.subr.mxu0 0.0
  %2984 = vmatpush2.msra.mxu0 0.0
  %2985 = vmatprep.subr.mxu0 0.0
  %2986 = vmatpush2.msra.mxu0 0.0
  %2987 = vmatprep.subr.mxu0 0.0
  %2988 = vmatpush2.msra.mxu0 0.0
  %2989 = vmatprep.subr.mxu0 0.0
  %2990 = vmatpush2.msra.mxu0 0.0
  %2991 = vmatprep.subr.mxu0 0.0
  %2992 = vmatpush2.msra.mxu0 0.0
  %2993 = vmatprep.subr.mxu0 0.0
  %2994 = vmatpush2.msra.mxu0 0.0
  %2995 = vmatprep.subr.mxu0 0.0
  %2996 = vmatpush2.msra.mxu0 0.0
  %2997 = vmatprep.subr.mxu0 0.0
  %2998 = vmatpush2.msra.mxu0 0.0
  %2999 = vmatprep.subr.mxu0 0.0
  %3000 = vmatpush2.msra.mxu0 0.0
  %3001 = vmatprep.mubr.f32.mxu0 0.0
  %3002 = vmatmul.mubr.f32.gmra.mxu0 %v2932
  %v3003 = vpop.f32.mrf.mxu0
  %v3004 = vadd.f32 0.0, %v3003
  %v3005 = vpop.f32.mrf.mxu0
  %3006 = vmatprep.mubr.f32.mxu0 0.0
  %3007 = vmatmul.mubr.f32.gmra.mxu0 %v2935
  %v3008 = vpop.f32.mrf.mxu0
  %v3009 = vadd.f32 0.0, %v3008
  %v3010 = vpop.f32.mrf.mxu0
  %3011 = vdwg.mxu0
  %v3012 = vadd.f32 %v2840, %v3004
  %v3013 = vadd.f32 %v2845, %v3009
  %v3014 = vsel %vm48, %v3012, 0.0
  %v3015 = vsel %vm48, %v3013, 0.0
  %v3016 = vadd.f32 %v3014, %v3015
  %v3017 = vrot.slane %v3016, 4
  %v3018 = vadd.f32 %v3016, %v3017
  %v3019 = vrot.slane %v3018, 2
  %v3020 = vadd.f32 %v3018, %v3019
  %v3021 = vrot.slane %v3020, 1
  %v3022 = vadd.f32 %v3020, %v3021
  %v3024 = vsel %vm48, %v3022, 0
  %3026 = vmatprep.subr.mxu0 0.0
  %3027 = vmatpush1.msra.mxu0 0.0
  %3028 = vmatprep.subr.mxu0 0.0
  %3029 = vmatpush1.msra.mxu0 0.0
  %3030 = vmatprep.subr.mxu0 0.0
  %3031 = vmatpush1.msra.mxu0 0.0
  %3032 = vmatprep.subr.mxu0 0.0
  %3033 = vmatpush1.msra.mxu0 0.0
  %3034 = vmatprep.subr.mxu0 0.0
  %3035 = vmatpush1.msra.mxu0 0.0
  %3036 = vmatprep.subr.mxu0 0.0
  %3037 = vmatpush1.msra.mxu0 0.0
  %3038 = vmatprep.subr.mxu0 0.0
  %3039 = vmatpush1.msra.mxu0 0.0
  %3040 = vmatprep.subr.mxu0 0.0
  %3041 = vmatpush1.msra.mxu0 0.0
  %3042 = vmatprep.subr.mxu0 0.0
  %3043 = vmatpush1.msra.mxu0 %v286
  %3044 = vmatprep.subr.mxu0 0.0
  %3045 = vmatpush1.msra.mxu0 %v285
  %3046 = vmatprep.subr.mxu0 0.0
  %3047 = vmatpush1.msra.mxu0 %v284
  %3048 = vmatprep.subr.mxu0 0.0
  %3049 = vmatpush1.msra.mxu0 %v283
  %3050 = vmatprep.subr.mxu0 0.0
  %3051 = vmatpush1.msra.mxu0 %v282
  %3052 = vmatprep.subr.mxu0 0.0
  %3053 = vmatpush1.msra.mxu0 %v281
  %3054 = vmatprep.subr.mxu0 0.0
  %3055 = vmatpush1.msra.mxu0 %v280
  %3056 = vmatprep.subr.mxu0 0.0
  %3057 = vmatpush1.msra.mxu0 %v279
  %3058 = vmatprep.subr.mxu0 0.0
  %3059 = vmatpush2.msra.mxu0 0.0
  %3060 = vmatprep.subr.mxu0 0.0
  %3061 = vmatpush2.msra.mxu0 0.0
  %3062 = vmatprep.subr.mxu0 0.0
  %3063 = vmatpush2.msra.mxu0 0.0
  %3064 = vmatprep.subr.mxu0 0.0
  %3065 = vmatpush2.msra.mxu0 0.0
  %3066 = vmatprep.subr.mxu0 0.0
  %3067 = vmatpush2.msra.mxu0 0.0
  %3068 = vmatprep.subr.mxu0 0.0
  %3069 = vmatpush2.msra.mxu0 0.0
  %3070 = vmatprep.subr.mxu0 0.0
  %3071 = vmatpush2.msra.mxu0 0.0
  %3072 = vmatprep.subr.mxu0 0.0
  %3073 = vmatpush2.msra.mxu0 0.0
  %3074 = vmatprep.subr.mxu0 0.0
  %3075 = vmatpush2.msra.mxu0 0.0
  %3076 = vmatprep.subr.mxu0 0.0
  %3077 = vmatpush2.msra.mxu0 0.0
  %3078 = vmatprep.subr.mxu0 0.0
  %3079 = vmatpush2.msra.mxu0 0.0
  %3080 = vmatprep.subr.mxu0 0.0
  %3081 = vmatpush2.msra.mxu0 0.0
  %3082 = vmatprep.subr.mxu0 0.0
  %3083 = vmatpush2.msra.mxu0 0.0
  %3084 = vmatprep.subr.mxu0 0.0
  %3085 = vmatpush2.msra.mxu0 0.0
  %3086 = vmatprep.subr.mxu0 0.0
  %3087 = vmatpush2.msra.mxu0 0.0
  %3088 = vmatprep.subr.mxu0 0.0
  %3089 = vmatpush2.msra.mxu0 0.0
  %3090 = vmatprep.mubr.f32.mxu0 0.0
  %3091 = vmatmul.mubr.f32.gmra.mxu0 %v3024
  %v3092 = vpop.f32.mrf.mxu0
  %v3093 = vadd.f32 0.0, %v3092
  %v3094 = vpop.f32.mrf.mxu0
  %3095 = vdwg.mxu0
  %v3096 = vmul.f32 %v3093, 0.0078125
  %v3098 = vsel %vm817, %v3096, 0
  %3100 = vmatprep.subr.mxu0 0.0
  %3101 = vmatpush1.msra.mxu0 0.0
  %3102 = vmatprep.subr.mxu0 0.0
  %3103 = vmatpush1.msra.mxu0 0.0
  %3104 = vmatprep.subr.mxu0 0.0
  %3105 = vmatpush1.msra.mxu0 0.0
  %3106 = vmatprep.subr.mxu0 0.0
  %3107 = vmatpush1.msra.mxu0 0.0
  %3108 = vmatprep.subr.mxu0 0.0
  %3109 = vmatpush1.msra.mxu0 0.0
  %3110 = vmatprep.subr.mxu0 0.0
  %3111 = vmatpush1.msra.mxu0 0.0
  %3112 = vmatprep.subr.mxu0 0.0
  %3113 = vmatpush1.msra.mxu0 0.0
  %3114 = vmatprep.subr.mxu0 0.0
  %3115 = vmatpush1.msra.mxu0 0.0
  %3116 = vmatprep.subr.mxu0 0.0
  %3117 = vmatpush1.msra.mxu0 0.0
  %3118 = vmatprep.subr.mxu0 0.0
  %3119 = vmatpush1.msra.mxu0 0.0
  %3120 = vmatprep.subr.mxu0 0.0
  %3121 = vmatpush1.msra.mxu0 0.0
  %3122 = vmatprep.subr.mxu0 0.0
  %3123 = vmatpush1.msra.mxu0 0.0
  %3124 = vmatprep.subr.mxu0 0.0
  %3125 = vmatpush1.msra.mxu0 0.0
  %3126 = vmatprep.subr.mxu0 0.0
  %3127 = vmatpush1.msra.mxu0 0.0
  %3128 = vmatprep.subr.mxu0 0.0
  %3129 = vmatpush1.msra.mxu0 0.0
  %3130 = vmatprep.subr.mxu0 0.0
  %3131 = vmatpush1.msra.mxu0 %v301
  %3132 = vmatprep.subr.mxu0 0.0
  %3133 = vmatpush2.msra.mxu0 0.0
  %3134 = vmatprep.subr.mxu0 0.0
  %3135 = vmatpush2.msra.mxu0 0.0
  %3136 = vmatprep.subr.mxu0 0.0
  %3137 = vmatpush2.msra.mxu0 0.0
  %3138 = vmatprep.subr.mxu0 0.0
  %3139 = vmatpush2.msra.mxu0 0.0
  %3140 = vmatprep.subr.mxu0 0.0
  %3141 = vmatpush2.msra.mxu0 0.0
  %3142 = vmatprep.subr.mxu0 0.0
  %3143 = vmatpush2.msra.mxu0 0.0
  %3144 = vmatprep.subr.mxu0 0.0
  %3145 = vmatpush2.msra.mxu0 0.0
  %3146 = vmatprep.subr.mxu0 0.0
  %3147 = vmatpush2.msra.mxu0 0.0
  %3148 = vmatprep.subr.mxu0 0.0
  %3149 = vmatpush2.msra.mxu0 0.0
  %3150 = vmatprep.subr.mxu0 0.0
  %3151 = vmatpush2.msra.mxu0 0.0
  %3152 = vmatprep.subr.mxu0 0.0
  %3153 = vmatpush2.msra.mxu0 0.0
  %3154 = vmatprep.subr.mxu0 0.0
  %3155 = vmatpush2.msra.mxu0 0.0
  %3156 = vmatprep.subr.mxu0 0.0
  %3157 = vmatpush2.msra.mxu0 0.0
  %3158 = vmatprep.subr.mxu0 0.0
  %3159 = vmatpush2.msra.mxu0 0.0
  %3160 = vmatprep.subr.mxu0 0.0
  %3161 = vmatpush2.msra.mxu0 0.0
  %3162 = vmatprep.subr.mxu0 0.0
  %3163 = vmatpush2.msra.mxu0 0.0
  %3164 = vmatprep.mubr.f32.mxu0 0.0
  %3165 = vmatmul.mubr.f32.gmra.mxu0 %v3098
  %v3166 = vpop.f32.mrf.mxu0
  %v3167 = vadd.f32 0.0, %v3166
  %v3168 = vpop.f32.mrf.mxu0
  %3169 = vdwg.mxu0
  %v3170 = vlaneseq
  %v3171 = vshrl.u32 %v3170, 7
  %v3172 = vsub.s32 0, %v3171
  %v3173 = vrot.slane %v3167, %v3172
  %v3174 = vsub.f32 %v3012, %v3173
  %v3175 = vsub.f32 %v3013, %v3173
  %v3176 = vmul.f32 %v3174, %v3174
  %v3177 = vmul.f32 %v3175, %v3175
  %v3178 = vsel %vm48, %v3176, 0.0
  %v3179 = vsel %vm48, %v3177, 0.0
  %v3180 = vadd.f32 %v3178, %v3179
  %v3181 = vrot.slane %v3180, 4
  %v3182 = vadd.f32 %v3180, %v3181
  %v3183 = vrot.slane %v3182, 2
  %v3184 = vadd.f32 %v3182, %v3183
  %v3185 = vrot.slane %v3184, 1
  %v3186 = vadd.f32 %v3184, %v3185
  %v3188 = vsel %vm48, %v3186, 0
  %3190 = vmatprep.subr.mxu0 0.0
  %3191 = vmatpush1.msra.mxu0 0.0
  %3192 = vmatprep.subr.mxu0 0.0
  %3193 = vmatpush1.msra.mxu0 0.0
  %3194 = vmatprep.subr.mxu0 0.0
  %3195 = vmatpush1.msra.mxu0 0.0
  %3196 = vmatprep.subr.mxu0 0.0
  %3197 = vmatpush1.msra.mxu0 0.0
  %3198 = vmatprep.subr.mxu0 0.0
  %3199 = vmatpush1.msra.mxu0 0.0
  %3200 = vmatprep.subr.mxu0 0.0
  %3201 = vmatpush1.msra.mxu0 0.0
  %3202 = vmatprep.subr.mxu0 0.0
  %3203 = vmatpush1.msra.mxu0 0.0
  %3204 = vmatprep.subr.mxu0 0.0
  %3205 = vmatpush1.msra.mxu0 0.0
  %3206 = vmatprep.subr.mxu0 0.0
  %3207 = vmatpush1.msra.mxu0 %v286
  %3208 = vmatprep.subr.mxu0 0.0
  %3209 = vmatpush1.msra.mxu0 %v285
  %3210 = vmatprep.subr.mxu0 0.0
  %3211 = vmatpush1.msra.mxu0 %v284
  %3212 = vmatprep.subr.mxu0 0.0
  %3213 = vmatpush1.msra.mxu0 %v283
  %3214 = vmatprep.subr.mxu0 0.0
  %3215 = vmatpush1.msra.mxu0 %v282
  %3216 = vmatprep.subr.mxu0 0.0
  %3217 = vmatpush1.msra.mxu0 %v281
  %3218 = vmatprep.subr.mxu0 0.0
  %3219 = vmatpush1.msra.mxu0 %v280
  %3220 = vmatprep.subr.mxu0 0.0
  %3221 = vmatpush1.msra.mxu0 %v279
  %3222 = vmatprep.subr.mxu0 0.0
  %3223 = vmatpush2.msra.mxu0 0.0
  %3224 = vmatprep.subr.mxu0 0.0
  %3225 = vmatpush2.msra.mxu0 0.0
  %3226 = vmatprep.subr.mxu0 0.0
  %3227 = vmatpush2.msra.mxu0 0.0
  %3228 = vmatprep.subr.mxu0 0.0
  %3229 = vmatpush2.msra.mxu0 0.0
  %3230 = vmatprep.subr.mxu0 0.0
  %3231 = vmatpush2.msra.mxu0 0.0
  %3232 = vmatprep.subr.mxu0 0.0
  %3233 = vmatpush2.msra.mxu0 0.0
  %3234 = vmatprep.subr.mxu0 0.0
  %3235 = vmatpush2.msra.mxu0 0.0
  %3236 = vmatprep.subr.mxu0 0.0
  %3237 = vmatpush2.msra.mxu0 0.0
  %3238 = vmatprep.subr.mxu0 0.0
  %3239 = vmatpush2.msra.mxu0 0.0
  %3240 = vmatprep.subr.mxu0 0.0
  %3241 = vmatpush2.msra.mxu0 0.0
  %3242 = vmatprep.subr.mxu0 0.0
  %3243 = vmatpush2.msra.mxu0 0.0
  %3244 = vmatprep.subr.mxu0 0.0
  %3245 = vmatpush2.msra.mxu0 0.0
  %3246 = vmatprep.subr.mxu0 0.0
  %3247 = vmatpush2.msra.mxu0 0.0
  %3248 = vmatprep.subr.mxu0 0.0
  %3249 = vmatpush2.msra.mxu0 0.0
  %3250 = vmatprep.subr.mxu0 0.0
  %3251 = vmatpush2.msra.mxu0 0.0
  %3252 = vmatprep.subr.mxu0 0.0
  %3253 = vmatpush2.msra.mxu0 0.0
  %3254 = vmatprep.mubr.f32.mxu0 0.0
  %3255 = vmatmul.mubr.f32.gmra.mxu0 %v3188
  %v3256 = vpop.f32.mrf.mxu0
  %v3257 = vadd.f32 0.0, %v3256
  %v3258 = vpop.f32.mrf.mxu0
  %3259 = vdwg.mxu0
  %v3260 = vmul.f32 %v3257, 0.0078125
  %v3261 = vadd.f32 %v3260, 1e-05
  %v3262 = vrsqrt.pop %v3261
  %v3264 = vsel %vm817, %v3262, 0
  %3266 = vmatprep.subr.mxu0 0.0
  %3267 = vmatpush1.msra.mxu0 0.0
  %3268 = vmatprep.subr.mxu0 0.0
  %3269 = vmatpush1.msra.mxu0 0.0
  %3270 = vmatprep.subr.mxu0 0.0
  %3271 = vmatpush1.msra.mxu0 0.0
  %3272 = vmatprep.subr.mxu0 0.0
  %3273 = vmatpush1.msra.mxu0 0.0
  %3274 = vmatprep.subr.mxu0 0.0
  %3275 = vmatpush1.msra.mxu0 0.0
  %3276 = vmatprep.subr.mxu0 0.0
  %3277 = vmatpush1.msra.mxu0 0.0
  %3278 = vmatprep.subr.mxu0 0.0
  %3279 = vmatpush1.msra.mxu0 0.0
  %3280 = vmatprep.subr.mxu0 0.0
  %3281 = vmatpush1.msra.mxu0 0.0
  %3282 = vmatprep.subr.mxu0 0.0
  %3283 = vmatpush1.msra.mxu0 0.0
  %3284 = vmatprep.subr.mxu0 0.0
  %3285 = vmatpush1.msra.mxu0 0.0
  %3286 = vmatprep.subr.mxu0 0.0
  %3287 = vmatpush1.msra.mxu0 0.0
  %3288 = vmatprep.subr.mxu0 0.0
  %3289 = vmatpush1.msra.mxu0 0.0
  %3290 = vmatprep.subr.mxu0 0.0
  %3291 = vmatpush1.msra.mxu0 0.0
  %3292 = vmatprep.subr.mxu0 0.0
  %3293 = vmatpush1.msra.mxu0 0.0
  %3294 = vmatprep.subr.mxu0 0.0
  %3295 = vmatpush1.msra.mxu0 0.0
  %3296 = vmatprep.subr.mxu0 0.0
  %3297 = vmatpush1.msra.mxu0 %v301
  %3298 = vmatprep.subr.mxu0 0.0
  %3299 = vmatpush2.msra.mxu0 0.0
  %3300 = vmatprep.subr.mxu0 0.0
  %3301 = vmatpush2.msra.mxu0 0.0
  %3302 = vmatprep.subr.mxu0 0.0
  %3303 = vmatpush2.msra.mxu0 0.0
  %3304 = vmatprep.subr.mxu0 0.0
  %3305 = vmatpush2.msra.mxu0 0.0
  %3306 = vmatprep.subr.mxu0 0.0
  %3307 = vmatpush2.msra.mxu0 0.0
  %3308 = vmatprep.subr.mxu0 0.0
  %3309 = vmatpush2.msra.mxu0 0.0
  %3310 = vmatprep.subr.mxu0 0.0
  %3311 = vmatpush2.msra.mxu0 0.0
  %3312 = vmatprep.subr.mxu0 0.0
  %3313 = vmatpush2.msra.mxu0 0.0
  %3314 = vmatprep.subr.mxu0 0.0
  %3315 = vmatpush2.msra.mxu0 0.0
  %3316 = vmatprep.subr.mxu0 0.0
  %3317 = vmatpush2.msra.mxu0 0.0
  %3318 = vmatprep.subr.mxu0 0.0
  %3319 = vmatpush2.msra.mxu0 0.0
  %3320 = vmatprep.subr.mxu0 0.0
  %3321 = vmatpush2.msra.mxu0 0.0
  %3322 = vmatprep.subr.mxu0 0.0
  %3323 = vmatpush2.msra.mxu0 0.0
  %3324 = vmatprep.subr.mxu0 0.0
  %3325 = vmatpush2.msra.mxu0 0.0
  %3326 = vmatprep.subr.mxu0 0.0
  %3327 = vmatpush2.msra.mxu0 0.0
  %3328 = vmatprep.subr.mxu0 0.0
  %3329 = vmatpush2.msra.mxu0 0.0
  %3330 = vmatprep.mubr.f32.mxu0 0.0
  %3331 = vmatmul.mubr.f32.gmra.mxu0 %v3264
  %v3332 = vpop.f32.mrf.mxu0
  %v3333 = vadd.f32 0.0, %v3332
  %v3334 = vpop.f32.mrf.mxu0
  %3335 = vdwg.mxu0
  %v3337 = vrot.slane %v3333, 1
  %v3339 = vmul.f32 %v14, %v3337
  %v3340 = vlaneseq
  %v3341 = vshrl.u32 %v3340, 7
  %v3342 = vsub.s32 7, %v3341
  %v3343 = vrot.slane %v3339, %v3342
  %v3344 = vmul.f32 %v3174, %v3343
  %v3345 = vmul.f32 %v3175, %v3343
  %v3346 = vlaneseq
  %v3347 = vshrl.u32 %v3346, 7
  %v3348 = vsub.s32 0, %v3347
  %v3349 = vrot.slane %v15, %v3348
  %v3350 = vadd.f32 %v3344, %v3349
  %v3351 = vadd.f32 %v3345, %v3349
  %v3352 = vadd.f32 %v1834, %v3350
  %v3353 = vadd.f32 %v1835, %v3351
  %v3354 = vmax.f32 %v3352, 0.0
  %v3355 = vmax.f32 %v3353, 0.0
  %3356 = vst.msk [vmem:[%s3] sm:$0xff] %vm48, %v3354
  %3357 = vst.msk [vmem:[%s3 + $0x8] sm:$0xff] %vm48, %v3355
  // Predicated region
  $region14: #{encoder_pallas.3} parent=0 // pred_check
    _
  $region15: #{encoder_pallas.3} parent=0 // pred_check_branch
    %3359 = sbr.rel (0) target = $region17
  $region16: #{encoder_pallas.3} parent=0 // pred_region
    _
  $region17: #{encoder_pallas.3} parent=0 // pred_fallthru
    _
  // Predicated region
  $region18: #{encoder_pallas.3} parent=0 // pred_check
    _
  $region19: #{encoder_pallas.3} parent=0 // pred_check_branch
    %3361 = sbr.rel (0) target = $region21
  $region20: #{encoder_pallas.3} parent=0 // pred_region
    _
  $region21: #{encoder_pallas.3} parent=0 // pred_fallthru
    _

</llo_original>
